<compile_context>
chip_gen: v7x
topology: tpu7x:2x2x1
jax: 0.10.0
libtpu: 0.0.40
codegen_flags: <defaults>
</compile_context>

<pallas_src>
import math

import jax
import jax.numpy as jnp
from jax.experimental import pallas as pl
from jax.experimental.pallas import tpu as pltpu


D_STATE = 4
D_CONV = 2
EXPAND = 2


def _sigmoid(v):
    # exp on the EUP + approximate EUP reciprocal (frees VALU divide slots).
    return pl.reciprocal(1.0 + jnp.exp(-v), approx=True)


def _softplus(v):
    return jnp.where(v > 20.0, v, jnp.log(1.0 + jnp.exp(jnp.minimum(v, 20.0))))


def _round_up(v, m):
    return ((v + m - 1) // m) * m


def _make_kernel(Bt, L, aud_dim, d_inner, d_state, d_conv, attn_out_dims, n_dt):
    n_attn = len(attn_out_dims)
    N = Bt * L

    def kernel(*refs):
        x_ref, wx_ref, wz_ref, wbc_ref = refs[0:4]
        dt_refs = refs[4:4 + n_dt]
        wout_ref = refs[4 + n_dt]
        small_ref = refs[5 + n_dt]
        attn_w_refs = refs[6 + n_dt:6 + n_dt + n_attn]
        attn_b_ref = refs[6 + n_dt + n_attn]
        out_ref = refs[7 + n_dt + n_attn]
        ys_ref = refs[8 + n_dt + n_attn]          # VMEM scratch (N, d_inner) f32

        x_f32 = x_ref[0]                          # (N, aud_dim), rows r = t*Bt + b
        x_bf = x_f32.astype(jnp.bfloat16)

        small = small_ref[...]                    # (3 + d_state + d_conv, d_inner)
        conv_b = small[0:1, :]
        dt_b = small[1:2, :]
        d_row = small[2:3, :]
        a_t = -jnp.exp(small[3:3 + d_state, :])               # (d_state, d_inner)
        cw = small[3 + d_state:3 + d_state + d_conv, :]       # (d_conv, d_inner)

        # ---- in_proj: two lane-aligned bf16 matmuls ----
        x_part = jnp.dot(x_bf, wx_ref[...], preferred_element_type=jnp.float32)
        z_part = jnp.dot(x_bf, wz_ref[...], preferred_element_type=jnp.float32)

        # ---- depthwise causal conv1d + SiLU ----
        # Time shift by s steps == shift by s*Bt rows (rows are time-major).
        # Bt % 8 == 0, so the pad+slice below is a sublane-aligned copy (no
        # MXU work; equivalent to pltpu.roll + first-rows mask on the XLU).
        acc = conv_b + cw[d_conv - 1:d_conv, :] * x_part
        for s in range(1, d_conv):
            xs = jnp.concatenate(
                [jnp.zeros((s * Bt, d_inner), jnp.float32),
                 x_part[:N - s * Bt, :]], axis=0)
            acc = acc + cw[d_conv - 1 - s:d_conv - s, :] * xs
        u = acc * _sigmoid(acc)                               # (N, d_inner) f32
        u_bf = u.astype(jnp.bfloat16)

        # ---- x_proj (B, C) and dt projection (fused only when small) ----
        bc = jnp.dot(u_bf, wbc_ref[...],
                     preferred_element_type=jnp.float32)      # (N, 2*d_state)
        if n_dt == 1:
            dt_pre = jnp.dot(u_bf, dt_refs[0][...],
                             preferred_element_type=jnp.float32)
        else:
            tmp = jnp.dot(u_bf, dt_refs[0][...],
                          preferred_element_type=jnp.float32)
            dt_pre = jnp.dot(tmp.astype(jnp.bfloat16), dt_refs[1][...],
                             preferred_element_type=jnp.float32)
        delta = _softplus(dt_pre + dt_b)                      # (N, d_inner)

        gate = z_part * _sigmoid(z_part)                      # SiLU(z), (N, d_inner)

        # ---- selective scan: lazy per-timestep dA / dBu on (Bt, d_inner) ----
        # TODO(synk): for long sequences (L >~ 64) switch this statically
        # unrolled loop to lax.fori_loop over VMEM-resident per-t slices.
        h = [jnp.zeros((Bt, d_inner), jnp.float32) for _ in range(d_state)]
        for t in range(L):
            r0 = t * Bt
            u_t = u[r0:r0 + Bt, :]
            delta_t = delta[r0:r0 + Bt, :]
            du_t = delta_t * u_t
            b_t = bc[r0:r0 + Bt, :d_state]
            c_t = bc[r0:r0 + Bt, d_state:]
            y_t = d_row * u_t
            for n in range(d_state):
                dA_tn = jnp.exp(delta_t * a_t[n:n + 1, :])
                h[n] = dA_tn * h[n] + du_t * b_t[:, n:n + 1]
                y_t = y_t + h[n] * c_t[:, n:n + 1]
            # z-gate fused into the scan (no post-loop full-array pass).
            ys_ref[r0:r0 + Bt, :] = y_t * gate[r0:r0 + Bt, :]

        # ---- output projection ----
        y_m = jnp.dot(ys_ref[...].astype(jnp.bfloat16), wout_ref[...],
                      preferred_element_type=jnp.float32)     # (N, aud_dim)

        # ---- attention MLP (tiny widths -> keep f32) ----
        ab = attn_b_ref[...]
        a = y_m
        for i in range(n_attn):
            w = attn_w_refs[i][...]
            a = jnp.maximum(
                jnp.dot(a, w, preferred_element_type=jnp.float32)
                + ab[i:i + 1, :attn_out_dims[i]], 0.0)
        # a: (N, 1) attention logits

        # ---- per-batch softmax over time + weighted pooling ----
        # Pure time-axis reduction over aligned (Bt, .) slices; no MXU, no
        # pool matrix.  Per-batch max shift; exact divide for the denominator.
        m_b = a[0:Bt, :]
        for t in range(1, L):
            m_b = jnp.maximum(m_b, a[t * Bt:(t + 1) * Bt, :])
        den = jnp.zeros((Bt, 1), jnp.float32)
        wsum = jnp.zeros((Bt, aud_dim), jnp.float32)
        for t in range(L):
            r0 = t * Bt
            e_t = jnp.exp(a[r0:r0 + Bt, :] - m_b)             # (Bt, 1)
            den = den + e_t
            wsum = wsum + e_t * x_f32[r0:r0 + Bt, :]
        out_ref[0] = (wsum / den).astype(out_ref.dtype)

    return kernel


def init_params(key, aud_dim, d_state=D_STATE, d_conv=D_CONV, expand=EXPAND):
    d_inner = expand * aud_dim
    dt_rank = math.ceil(aud_dim / 16)
    ks = jax.random.split(key, 32)

    def rnd(k, shape, scale=0.1):
        return (scale * jax.random.normal(k, shape)).astype(jnp.float32)

    params = {
        "in_proj_w": rnd(ks[0], (2 * d_inner, aud_dim)),
        "conv_w": rnd(ks[1], (d_inner, 1, d_conv), 0.3),      # torch Conv1d layout
        "conv_b": rnd(ks[2], (d_inner,), 0.02),
        "x_proj_w": rnd(ks[3], (dt_rank + 2 * d_state, d_inner)),
        "dt_proj_w": rnd(ks[4], (d_inner, dt_rank), 0.5),
        "dt_proj_b": rnd(ks[5], (d_inner,), 0.1),
        "A_log": jnp.log(jnp.broadcast_to(
            jnp.arange(1, d_state + 1, dtype=jnp.float32), (d_inner, d_state))),
        "D": jnp.ones((d_inner,), jnp.float32),
        "out_proj_w": rnd(ks[6], (aud_dim, d_inner)),
    }
    attn = []
    cur, i = aud_dim, 7
    while cur > 1:
        nxt = max(cur // 4, 1)
        attn.append((rnd(ks[i], (nxt, cur), 0.3), rnd(ks[i + 1], (nxt,), 0.05)))
        cur = nxt
        i += 2
    params["attn"] = attn
    params["dims"] = (aud_dim, d_inner, d_state, d_conv, dt_rank)
    return params


def audio_mamba_forward(x, params, *, target_rows=512):
    B, L, A = x.shape
    aud_dim, d_inner, d_state, d_conv, dt_rank = params["dims"]
    assert A == aud_dim and d_conv >= 2
    attn = params["attn"]
    attn_out_dims = [w.shape[0] for w, _ in attn]

    # --- batch tile: Bt*L rows per grid step, Bt forced to a multiple of 8
    #     so every per-timestep slice / store in the scan is sublane-aligned.
    Bt_cap = max(8, (max(1, target_rows // max(L, 1)) // 8) * 8)
    Bt = min(Bt_cap, _round_up(B, 8))
    G = -(-B // Bt)
    # Keep >= 2 grid steps when the batch allows so both TensorCores of a
    # dual-core chip (grid axis marked "parallel") get work.
    if G == 1 and Bt >= 16 and B > Bt // 2:
        Bt = _round_up(-(-B // 2), 8)
        G = -(-B // Bt)
    B_pad = G * Bt
    N = Bt * L

    x = x.astype(jnp.float32)
    if B_pad != B:
        x = jnp.concatenate(
            [x, jnp.zeros((B_pad - B, L, A), jnp.float32)], axis=0)
    # time-major rows within each batch tile: r = t*Bt + b
    x_rows = x.reshape(G, Bt, L, A).transpose(0, 2, 1, 3).reshape(G, N, A)

    # --- weights: big matmul operands in bf16, per-channel params packed ---
    bf = jnp.bfloat16
    w_x = params["in_proj_w"][:d_inner, :].T.astype(bf)          # (A, d_inner)
    w_z = params["in_proj_w"][d_inner:, :].T.astype(bf)          # (A, d_inner)
    w_bc = params["x_proj_w"][dt_rank:, :].T.astype(bf)          # (d_inner, 2*d_state)
    if d_inner <= 256:
        # fused dt projection: one (d_inner, d_inner) matmul
        w_dt_list = [(params["x_proj_w"][:dt_rank, :].T
                      @ params["dt_proj_w"].T).astype(bf)]
    else:
        # two-step dt projection, rank padded to a lane-friendly width
        rank_pad = _round_up(dt_rank, 128)
        w1 = jnp.zeros((d_inner, rank_pad), jnp.float32).at[:, :dt_rank].set(
            params["x_proj_w"][:dt_rank, :].T)
        w2 = jnp.zeros((rank_pad, d_inner), jnp.float32).at[:dt_rank, :].set(
            params["dt_proj_w"].T)
        w_dt_list = [w1.astype(bf), w2.astype(bf)]
    n_dt = len(w_dt_list)
    w_out = params["out_proj_w"].T.astype(bf)                    # (d_inner, A)

    small = jnp.concatenate([
        params["conv_b"][None, :],
        params["dt_proj_b"][None, :],
        params["D"][None, :],
        params["A_log"].T,                                       # (d_state, d_inner)
        jnp.transpose(params["conv_w"][:, 0, :]),                # (d_conv, d_inner)
    ], axis=0).astype(jnp.float32)

    attn_ws = [w.T.astype(jnp.float32) for w, _ in attn]
    max_out = max(attn_out_dims)
    attn_b = jnp.concatenate(
        [jnp.pad(b, (0, max_out - b.shape[0]))[None, :] for _, b in attn],
        axis=0).astype(jnp.float32)                              # (n_attn, max_out)

    kernel = _make_kernel(Bt, L, A, d_inner, d_state, d_conv,
                          attn_out_dims, n_dt)

    inputs = [x_rows, w_x, w_z, w_bc, *w_dt_list, w_out, small, *attn_ws, attn_b]

    def _invariant_spec(arr, single_buffer):
        nd = arr.ndim
        idx = lambda g, _nd=nd: (0,) * _nd
        shape = tuple(arr.shape)
        if single_buffer and hasattr(pl, "Buffered"):
            try:
                # grid-invariant operand -> no need for double buffering
                return pl.BlockSpec(shape, idx, pipeline_mode=pl.Buffered(1))
            except TypeError:
                pass
        return pl.BlockSpec(shape, idx)

    def _run(single_buffer):
        in_specs = [pl.BlockSpec((1, N, A), lambda g: (g, 0, 0))]
        in_specs += [_invariant_spec(arr, single_buffer) for arr in inputs[1:]]
        out_specs = pl.BlockSpec((1, Bt, A), lambda g: (g, 0, 0))
        return pl.pallas_call(
            kernel,
            out_shape=jax.ShapeDtypeStruct((G, Bt, A), jnp.float32),
            grid=(G,),
            in_specs=in_specs,
            out_specs=out_specs,
            scratch_shapes=[pltpu.VMEM((N, d_inner), jnp.float32)],
            compiler_params=pltpu.CompilerParams(
                dimension_semantics=("parallel",),
                vmem_limit_bytes=64 * 1024 * 1024),
        )(*inputs)

    try:
        out = _run(True)
    except Exception:
        # Fallback: default double-buffered pipeline for invariant weights.
        out = _run(False)
    return out.reshape(B_pad, A)[:B]


def reference_forward(x, p):
    """Pure-JAX reference mirroring the PyTorch forward (for validation)."""
    B, L, _ = x.shape
    aud_dim, d_inner, d_state, d_conv, dt_rank = p["dims"]
    xz = jnp.einsum("bld,ed->ble", x, p["in_proj_w"])
    xp, z = xz[..., :d_inner], xz[..., d_inner:]
    w = p["conv_w"][:, 0, :]                                  # (d_inner, d_conv)
    acc = jnp.zeros((B, L, d_inner)) + p["conv_b"]
    for k in range(d_conv):
        shift = d_conv - 1 - k
        if shift == 0:
            xs = xp
        else:
            xs = jnp.concatenate(
                [jnp.zeros((B, shift, d_inner)), xp[:, :L - shift, :]], axis=1)
        acc = acc + w[:, k] * xs
    u = acc * jax.nn.sigmoid(acc)
    x_dbl = jnp.einsum("bld,ed->ble", u, p["x_proj_w"])
    dt = x_dbl[..., :dt_rank]
    Bm = x_dbl[..., dt_rank:dt_rank + d_state]
    Cm = x_dbl[..., dt_rank + d_state:]
    delta = jax.nn.softplus(
        jnp.einsum("blr,dr->bld", dt, p["dt_proj_w"]) + p["dt_proj_b"])
    A = -jnp.exp(p["A_log"])
    dA = jnp.exp(jnp.einsum("bld,dn->bldn", delta, A))
    dBu = (delta * u)[:, :, :, None] * Bm[:, :, None, :]
    h = jnp.zeros((B, d_inner, d_state))
    ys = []
    for t in range(L):
        h = dA[:, t] * h + dBu[:, t]
        ys.append(jnp.einsum("bdn,bn->bd", h, Cm[:, t]))
    y = jnp.stack(ys, axis=1) + u * p["D"]
    y = y * (z * jax.nn.sigmoid(z))
    ym = jnp.einsum("bld,ed->ble", y, p["out_proj_w"])
    a = ym
    for w_, b_ in p["attn"]:
        a = jax.nn.relu(jnp.einsum("bld,ed->ble", a, w_) + b_)
    s = jax.nn.softmax(a, axis=1)
    return jnp.sum(s * x, axis=1)


if __name__ == "__main__":
    B, L, AUD_DIM = 2, 8, 32
    key = jax.random.PRNGKey(0)
    kx, kp = jax.random.split(key)
    x = jax.random.normal(kx, (B, L, AUD_DIM), dtype=jnp.float32)
    params = init_params(kp, AUD_DIM)

    out = jax.block_until_ready(audio_mamba_forward(x, params))
    assert out.shape == (B, AUD_DIM)

    ref = reference_forward(x, params)
    assert jnp.allclose(out, ref, rtol=2e-2, atol=2e-2), \
        float(jnp.max(jnp.abs(out - ref)))
    print("KERNEL_OK")
</pallas_src>

<mosaic_0001>
module attributes {stable_mosaic.version = 11 : i64} {
  func.func @kernel(%arg0: i32, %arg1: memref<1x64x32xf32, #tpu.memory_space<vmem>>, %arg2: memref<32x64xbf16, #tpu.memory_space<vmem>>, %arg3: memref<32x64xbf16, #tpu.memory_space<vmem>>, %arg4: memref<64x8xbf16, #tpu.memory_space<vmem>>, %arg5: memref<64x64xbf16, #tpu.memory_space<vmem>>, %arg6: memref<64x32xbf16, #tpu.memory_space<vmem>>, %arg7: memref<9x64xf32, #tpu.memory_space<vmem>>, %arg8: memref<32x8xf32, #tpu.memory_space<vmem>>, %arg9: memref<8x2xf32, #tpu.memory_space<vmem>>, %arg10: memref<2x1xf32, #tpu.memory_space<vmem>>, %arg11: memref<3x8xf32, #tpu.memory_space<vmem>>, %arg12: memref<1x8x32xf32, #tpu.memory_space<vmem>>, %arg13: memref<64x64xf32, #tpu.memory_space<vmem>>) attributes {dimension_semantics = [#tpu.dimension_semantics<parallel>], iteration_bounds = array<i64: 1>, scalar_prefetch = 0 : i64, scratch_operands = 1 : i64, tpu.core_type = #tpu.core_type<tc>, window_params = [{transform_indices = @transform_0, window_bounds = array<i64: 1, 64, 32>}, {pipeline_mode = #tpu.pipeline_mode<synchronous>, transform_indices = @transform_1, window_bounds = array<i64: 32, 64>}, {pipeline_mode = #tpu.pipeline_mode<synchronous>, transform_indices = @transform_2, window_bounds = array<i64: 32, 64>}, {pipeline_mode = #tpu.pipeline_mode<synchronous>, transform_indices = @transform_3, window_bounds = array<i64: 64, 8>}, {pipeline_mode = #tpu.pipeline_mode<synchronous>, transform_indices = @transform_4, window_bounds = array<i64: 64, 64>}, {pipeline_mode = #tpu.pipeline_mode<synchronous>, transform_indices = @transform_5, window_bounds = array<i64: 64, 32>}, {pipeline_mode = #tpu.pipeline_mode<synchronous>, transform_indices = @transform_6, window_bounds = array<i64: 9, 64>}, {pipeline_mode = #tpu.pipeline_mode<synchronous>, transform_indices = @transform_7, window_bounds = array<i64: 32, 8>}, {pipeline_mode = #tpu.pipeline_mode<synchronous>, transform_indices = @transform_8, window_bounds = array<i64: 8, 2>}, {pipeline_mode = #tpu.pipeline_mode<synchronous>, transform_indices = @transform_9, window_bounds = array<i64: 2, 1>}, {pipeline_mode = #tpu.pipeline_mode<synchronous>, transform_indices = @transform_10, window_bounds = array<i64: 3, 8>}, {transform_indices = @transform_11, window_bounds = array<i64: 1, 8, 32>}]} {
    %c0 = arith.constant 0 : index
    %c0_0 = arith.constant 0 : index
    %c0_1 = arith.constant 0 : index
    %0 = vector.load %arg1[%c0, %c0_0, %c0_1] : memref<1x64x32xf32, #tpu.memory_space<vmem>>, vector<1x64x32xf32>
    %1 = vector.shape_cast %0 : vector<1x64x32xf32> to vector<64x32xf32>
    %2 = arith.truncf %1 : vector<64x32xf32> to vector<64x32xbf16>
    %c0_2 = arith.constant 0 : index
    %c0_3 = arith.constant 0 : index
    %3 = vector.load %arg7[%c0_2, %c0_3] : memref<9x64xf32, #tpu.memory_space<vmem>>, vector<9x64xf32>
    %4 = vector.extract_strided_slice %3 {offsets = [0, 0], sizes = [1, 64], strides = [1, 1]} : vector<9x64xf32> to vector<1x64xf32>
    %5 = vector.extract_strided_slice %3 {offsets = [1, 0], sizes = [1, 64], strides = [1, 1]} : vector<9x64xf32> to vector<1x64xf32>
    %6 = vector.extract_strided_slice %3 {offsets = [2, 0], sizes = [1, 64], strides = [1, 1]} : vector<9x64xf32> to vector<1x64xf32>
    %7 = vector.extract_strided_slice %3 {offsets = [3, 0], sizes = [4, 64], strides = [1, 1]} : vector<9x64xf32> to vector<4x64xf32>
    %8 = math.exp %7 : vector<4x64xf32>
    %cst = arith.constant 0.000000e+00 : f32
    %9 = vector.broadcast %cst : f32 to vector<4x64xf32>
    %10 = arith.subf %9, %8 : vector<4x64xf32>
    %11 = vector.extract_strided_slice %3 {offsets = [7, 0], sizes = [2, 64], strides = [1, 1]} : vector<9x64xf32> to vector<2x64xf32>
    %c0_4 = arith.constant 0 : index
    %c0_5 = arith.constant 0 : index
    %12 = vector.load %arg2[%c0_4, %c0_5] : memref<32x64xbf16, #tpu.memory_space<vmem>>, vector<32x64xbf16>
    %cst_6 = arith.constant dense<0.000000e+00> : vector<64x64xf32>
    %13 = tpu.matmul %2, %12, %cst_6 {dimension_numbers = #tpu.dot_dimension_numbers<[1], [0], [0], [1], [0, 0, 1, 1], [], []>} : vector<64x32xbf16>, vector<32x64xbf16>, vector<64x64xf32> -> vector<64x64xf32>
    %c0_7 = arith.constant 0 : index
    %c0_8 = arith.constant 0 : index
    %14 = vector.load %arg3[%c0_7, %c0_8] : memref<32x64xbf16, #tpu.memory_space<vmem>>, vector<32x64xbf16>
    %cst_9 = arith.constant dense<0.000000e+00> : vector<64x64xf32>
    %15 = tpu.matmul %2, %14, %cst_9 {dimension_numbers = #tpu.dot_dimension_numbers<[1], [0], [0], [1], [0, 0, 1, 1], [], []>} : vector<64x32xbf16>, vector<32x64xbf16>, vector<64x64xf32> -> vector<64x64xf32>
    %16 = vector.extract_strided_slice %11 {offsets = [1, 0], sizes = [1, 64], strides = [1, 1]} : vector<2x64xf32> to vector<1x64xf32>
    %17 = vector.broadcast %16 : vector<1x64xf32> to vector<64x64xf32>
    %18 = arith.mulf %17, %13 : vector<64x64xf32>
    %19 = vector.broadcast %4 : vector<1x64xf32> to vector<64x64xf32>
    %20 = arith.addf %19, %18 : vector<64x64xf32>
    %cst_10 = arith.constant 0.000000e+00 : f32
    %21 = vector.broadcast %cst_10 : f32 to vector<8x64xf32>
    %22 = vector.extract_strided_slice %13 {offsets = [0, 0], sizes = [56, 64], strides = [1, 1]} : vector<64x64xf32> to vector<56x64xf32>
    %23 = tpu.concatenate %21, %22 in 0 : vector<8x64xf32>, vector<56x64xf32> -> vector<64x64xf32>
    %24 = vector.extract_strided_slice %11 {offsets = [0, 0], sizes = [1, 64], strides = [1, 1]} : vector<2x64xf32> to vector<1x64xf32>
    %25 = vector.broadcast %24 : vector<1x64xf32> to vector<64x64xf32>
    %26 = arith.mulf %25, %23 : vector<64x64xf32>
    %27 = arith.addf %20, %26 : vector<64x64xf32>
    %cst_11 = arith.constant 0.000000e+00 : f32
    %28 = vector.broadcast %cst_11 : f32 to vector<64x64xf32>
    %29 = arith.subf %28, %27 : vector<64x64xf32>
    %30 = math.exp %29 : vector<64x64xf32>
    %cst_12 = arith.constant 1.000000e+00 : f32
    %31 = vector.broadcast %cst_12 : f32 to vector<64x64xf32>
    %32 = arith.addf %31, %30 : vector<64x64xf32>
    %33 = tpu.reciprocal %32 {approx = true} : vector<64x64xf32> -> vector<64x64xf32>
    %34 = arith.mulf %27, %33 : vector<64x64xf32>
    %35 = arith.truncf %34 : vector<64x64xf32> to vector<64x64xbf16>
    %c0_13 = arith.constant 0 : index
    %c0_14 = arith.constant 0 : index
    %36 = vector.load %arg4[%c0_13, %c0_14] : memref<64x8xbf16, #tpu.memory_space<vmem>>, vector<64x8xbf16>
    %cst_15 = arith.constant dense<0.000000e+00> : vector<64x8xf32>
    %37 = tpu.matmul %35, %36, %cst_15 {dimension_numbers = #tpu.dot_dimension_numbers<[1], [0], [0], [1], [0, 0, 1, 1], [], []>} : vector<64x64xbf16>, vector<64x8xbf16>, vector<64x8xf32> -> vector<64x8xf32>
    %c0_16 = arith.constant 0 : index
    %c0_17 = arith.constant 0 : index
    %38 = vector.load %arg5[%c0_16, %c0_17] : memref<64x64xbf16, #tpu.memory_space<vmem>>, vector<64x64xbf16>
    %cst_18 = arith.constant dense<0.000000e+00> : vector<64x64xf32>
    %39 = tpu.matmul %35, %38, %cst_18 {dimension_numbers = #tpu.dot_dimension_numbers<[1], [0], [0], [1], [0, 0, 1, 1], [], []>} : vector<64x64xbf16>, vector<64x64xbf16>, vector<64x64xf32> -> vector<64x64xf32>
    %40 = vector.broadcast %5 : vector<1x64xf32> to vector<64x64xf32>
    %41 = arith.addf %39, %40 : vector<64x64xf32>
    %cst_19 = arith.constant 2.000000e+01 : f32
    %42 = vector.broadcast %cst_19 : f32 to vector<64x64xf32>
    %43 = arith.cmpf ogt, %41, %42 : vector<64x64xf32>
    %cst_20 = arith.constant 2.000000e+01 : f32
    %44 = vector.broadcast %cst_20 : f32 to vector<64x64xf32>
    %45 = arith.minimumf %41, %44 : vector<64x64xf32>
    %46 = math.exp %45 : vector<64x64xf32>
    %cst_21 = arith.constant 1.000000e+00 : f32
    %47 = vector.broadcast %cst_21 : f32 to vector<64x64xf32>
    %48 = arith.addf %47, %46 : vector<64x64xf32>
    %49 = math.log %48 : vector<64x64xf32>
    %50 = arith.select %43, %41, %49 : vector<64x64xi1>, vector<64x64xf32>
    %cst_22 = arith.constant 0.000000e+00 : f32
    %51 = vector.broadcast %cst_22 : f32 to vector<64x64xf32>
    %52 = arith.subf %51, %15 : vector<64x64xf32>
    %53 = math.exp %52 : vector<64x64xf32>
    %cst_23 = arith.constant 1.000000e+00 : f32
    %54 = vector.broadcast %cst_23 : f32 to vector<64x64xf32>
    %55 = arith.addf %54, %53 : vector<64x64xf32>
    %56 = tpu.reciprocal %55 {approx = true} : vector<64x64xf32> -> vector<64x64xf32>
    %57 = arith.mulf %15, %56 : vector<64x64xf32>
    %cst_24 = arith.constant 0.000000e+00 : f32
    %58 = vector.broadcast %cst_24 : f32 to vector<8x64xf32>
    %cst_25 = arith.constant 0.000000e+00 : f32
    %59 = vector.broadcast %cst_25 : f32 to vector<8x64xf32>
    %cst_26 = arith.constant 0.000000e+00 : f32
    %60 = vector.broadcast %cst_26 : f32 to vector<8x64xf32>
    %cst_27 = arith.constant 0.000000e+00 : f32
    %61 = vector.broadcast %cst_27 : f32 to vector<8x64xf32>
    %62 = vector.extract_strided_slice %34 {offsets = [0, 0], sizes = [8, 64], strides = [1, 1]} : vector<64x64xf32> to vector<8x64xf32>
    %63 = vector.extract_strided_slice %50 {offsets = [0, 0], sizes = [8, 64], strides = [1, 1]} : vector<64x64xf32> to vector<8x64xf32>
    %64 = arith.mulf %63, %62 : vector<8x64xf32>
    %65 = vector.extract_strided_slice %37 {offsets = [0, 0], sizes = [8, 4], strides = [1, 1]} : vector<64x8xf32> to vector<8x4xf32>
    %66 = vector.extract_strided_slice %37 {offsets = [0, 4], sizes = [8, 4], strides = [1, 1]} : vector<64x8xf32> to vector<8x4xf32>
    %67 = vector.broadcast %6 : vector<1x64xf32> to vector<8x64xf32>
    %68 = arith.mulf %67, %62 : vector<8x64xf32>
    %69 = vector.extract_strided_slice %10 {offsets = [0, 0], sizes = [1, 64], strides = [1, 1]} : vector<4x64xf32> to vector<1x64xf32>
    %70 = vector.broadcast %69 : vector<1x64xf32> to vector<8x64xf32>
    %71 = arith.mulf %63, %70 : vector<8x64xf32>
    %72 = math.exp %71 : vector<8x64xf32>
    %73 = arith.mulf %72, %58 : vector<8x64xf32>
    %74 = vector.extract_strided_slice %65 {offsets = [0, 0], sizes = [8, 1], strides = [1, 1]} : vector<8x4xf32> to vector<8x1xf32>
    %75 = vector.broadcast %74 : vector<8x1xf32> to vector<8x64xf32>
    %76 = arith.mulf %64, %75 : vector<8x64xf32>
    %77 = arith.addf %73, %76 : vector<8x64xf32>
    %78 = vector.extract_strided_slice %66 {offsets = [0, 0], sizes = [8, 1], strides = [1, 1]} : vector<8x4xf32> to vector<8x1xf32>
    %79 = vector.broadcast %78 : vector<8x1xf32> to vector<8x64xf32>
    %80 = arith.mulf %77, %79 : vector<8x64xf32>
    %81 = arith.addf %68, %80 : vector<8x64xf32>
    %82 = vector.extract_strided_slice %10 {offsets = [1, 0], sizes = [1, 64], strides = [1, 1]} : vector<4x64xf32> to vector<1x64xf32>
    %83 = vector.broadcast %82 : vector<1x64xf32> to vector<8x64xf32>
    %84 = arith.mulf %63, %83 : vector<8x64xf32>
    %85 = math.exp %84 : vector<8x64xf32>
    %86 = arith.mulf %85, %59 : vector<8x64xf32>
    %87 = vector.extract_strided_slice %65 {offsets = [0, 1], sizes = [8, 1], strides = [1, 1]} : vector<8x4xf32> to vector<8x1xf32>
    %88 = vector.broadcast %87 : vector<8x1xf32> to vector<8x64xf32>
    %89 = arith.mulf %64, %88 : vector<8x64xf32>
    %90 = arith.addf %86, %89 : vector<8x64xf32>
    %91 = vector.extract_strided_slice %66 {offsets = [0, 1], sizes = [8, 1], strides = [1, 1]} : vector<8x4xf32> to vector<8x1xf32>
    %92 = vector.broadcast %91 : vector<8x1xf32> to vector<8x64xf32>
    %93 = arith.mulf %90, %92 : vector<8x64xf32>
    %94 = arith.addf %81, %93 : vector<8x64xf32>
    %95 = vector.extract_strided_slice %10 {offsets = [2, 0], sizes = [1, 64], strides = [1, 1]} : vector<4x64xf32> to vector<1x64xf32>
    %96 = vector.broadcast %95 : vector<1x64xf32> to vector<8x64xf32>
    %97 = arith.mulf %63, %96 : vector<8x64xf32>
    %98 = math.exp %97 : vector<8x64xf32>
    %99 = arith.mulf %98, %60 : vector<8x64xf32>
    %100 = vector.extract_strided_slice %65 {offsets = [0, 2], sizes = [8, 1], strides = [1, 1]} : vector<8x4xf32> to vector<8x1xf32>
    %101 = vector.broadcast %100 : vector<8x1xf32> to vector<8x64xf32>
    %102 = arith.mulf %64, %101 : vector<8x64xf32>
    %103 = arith.addf %99, %102 : vector<8x64xf32>
    %104 = vector.extract_strided_slice %66 {offsets = [0, 2], sizes = [8, 1], strides = [1, 1]} : vector<8x4xf32> to vector<8x1xf32>
    %105 = vector.broadcast %104 : vector<8x1xf32> to vector<8x64xf32>
    %106 = arith.mulf %103, %105 : vector<8x64xf32>
    %107 = arith.addf %94, %106 : vector<8x64xf32>
    %108 = vector.extract_strided_slice %10 {offsets = [3, 0], sizes = [1, 64], strides = [1, 1]} : vector<4x64xf32> to vector<1x64xf32>
    %109 = vector.broadcast %108 : vector<1x64xf32> to vector<8x64xf32>
    %110 = arith.mulf %63, %109 : vector<8x64xf32>
    %111 = math.exp %110 : vector<8x64xf32>
    %112 = arith.mulf %111, %61 : vector<8x64xf32>
    %113 = vector.extract_strided_slice %65 {offsets = [0, 3], sizes = [8, 1], strides = [1, 1]} : vector<8x4xf32> to vector<8x1xf32>
    %114 = vector.broadcast %113 : vector<8x1xf32> to vector<8x64xf32>
    %115 = arith.mulf %64, %114 : vector<8x64xf32>
    %116 = arith.addf %112, %115 : vector<8x64xf32>
    %117 = vector.extract_strided_slice %66 {offsets = [0, 3], sizes = [8, 1], strides = [1, 1]} : vector<8x4xf32> to vector<8x1xf32>
    %118 = vector.broadcast %117 : vector<8x1xf32> to vector<8x64xf32>
    %119 = arith.mulf %116, %118 : vector<8x64xf32>
    %120 = arith.addf %107, %119 : vector<8x64xf32>
    %121 = vector.extract_strided_slice %57 {offsets = [0, 0], sizes = [8, 64], strides = [1, 1]} : vector<64x64xf32> to vector<8x64xf32>
    %122 = arith.mulf %120, %121 : vector<8x64xf32>
    %c0_28 = arith.constant 0 : index
    %c0_29 = arith.constant 0 : index
    %123 = vector.load %arg13[%c0_28, %c0_29] : memref<64x64xf32, #tpu.memory_space<vmem>>, vector<8x64xf32>
    tpu.vector_store %arg13[%c0_28, %c0_29], %122 {strides = array<i32>} : memref<64x64xf32, #tpu.memory_space<vmem>>, vector<8x64xf32>,
    %124 = vector.extract_strided_slice %34 {offsets = [8, 0], sizes = [8, 64], strides = [1, 1]} : vector<64x64xf32> to vector<8x64xf32>
    %125 = vector.extract_strided_slice %50 {offsets = [8, 0], sizes = [8, 64], strides = [1, 1]} : vector<64x64xf32> to vector<8x64xf32>
    %126 = arith.mulf %125, %124 : vector<8x64xf32>
    %127 = vector.extract_strided_slice %37 {offsets = [8, 0], sizes = [8, 4], strides = [1, 1]} : vector<64x8xf32> to vector<8x4xf32>
    %128 = vector.extract_strided_slice %37 {offsets = [8, 4], sizes = [8, 4], strides = [1, 1]} : vector<64x8xf32> to vector<8x4xf32>
    %129 = vector.broadcast %6 : vector<1x64xf32> to vector<8x64xf32>
    %130 = arith.mulf %129, %124 : vector<8x64xf32>
    %131 = vector.extract_strided_slice %10 {offsets = [0, 0], sizes = [1, 64], strides = [1, 1]} : vector<4x64xf32> to vector<1x64xf32>
    %132 = vector.broadcast %131 : vector<1x64xf32> to vector<8x64xf32>
    %133 = arith.mulf %125, %132 : vector<8x64xf32>
    %134 = math.exp %133 : vector<8x64xf32>
    %135 = arith.mulf %134, %77 : vector<8x64xf32>
    %136 = vector.extract_strided_slice %127 {offsets = [0, 0], sizes = [8, 1], strides = [1, 1]} : vector<8x4xf32> to vector<8x1xf32>
    %137 = vector.broadcast %136 : vector<8x1xf32> to vector<8x64xf32>
    %138 = arith.mulf %126, %137 : vector<8x64xf32>
    %139 = arith.addf %135, %138 : vector<8x64xf32>
    %140 = vector.extract_strided_slice %128 {offsets = [0, 0], sizes = [8, 1], strides = [1, 1]} : vector<8x4xf32> to vector<8x1xf32>
    %141 = vector.broadcast %140 : vector<8x1xf32> to vector<8x64xf32>
    %142 = arith.mulf %139, %141 : vector<8x64xf32>
    %143 = arith.addf %130, %142 : vector<8x64xf32>
    %144 = vector.extract_strided_slice %10 {offsets = [1, 0], sizes = [1, 64], strides = [1, 1]} : vector<4x64xf32> to vector<1x64xf32>
    %145 = vector.broadcast %144 : vector<1x64xf32> to vector<8x64xf32>
    %146 = arith.mulf %125, %145 : vector<8x64xf32>
    %147 = math.exp %146 : vector<8x64xf32>
    %148 = arith.mulf %147, %90 : vector<8x64xf32>
    %149 = vector.extract_strided_slice %127 {offsets = [0, 1], sizes = [8, 1], strides = [1, 1]} : vector<8x4xf32> to vector<8x1xf32>
    %150 = vector.broadcast %149 : vector<8x1xf32> to vector<8x64xf32>
    %151 = arith.mulf %126, %150 : vector<8x64xf32>
    %152 = arith.addf %148, %151 : vector<8x64xf32>
    %153 = vector.extract_strided_slice %128 {offsets = [0, 1], sizes = [8, 1], strides = [1, 1]} : vector<8x4xf32> to vector<8x1xf32>
    %154 = vector.broadcast %153 : vector<8x1xf32> to vector<8x64xf32>
    %155 = arith.mulf %152, %154 : vector<8x64xf32>
    %156 = arith.addf %143, %155 : vector<8x64xf32>
    %157 = vector.extract_strided_slice %10 {offsets = [2, 0], sizes = [1, 64], strides = [1, 1]} : vector<4x64xf32> to vector<1x64xf32>
    %158 = vector.broadcast %157 : vector<1x64xf32> to vector<8x64xf32>
    %159 = arith.mulf %125, %158 : vector<8x64xf32>
    %160 = math.exp %159 : vector<8x64xf32>
    %161 = arith.mulf %160, %103 : vector<8x64xf32>
    %162 = vector.extract_strided_slice %127 {offsets = [0, 2], sizes = [8, 1], strides = [1, 1]} : vector<8x4xf32> to vector<8x1xf32>
    %163 = vector.broadcast %162 : vector<8x1xf32> to vector<8x64xf32>
    %164 = arith.mulf %126, %163 : vector<8x64xf32>
    %165 = arith.addf %161, %164 : vector<8x64xf32>
    %166 = vector.extract_strided_slice %128 {offsets = [0, 2], sizes = [8, 1], strides = [1, 1]} : vector<8x4xf32> to vector<8x1xf32>
    %167 = vector.broadcast %166 : vector<8x1xf32> to vector<8x64xf32>
    %168 = arith.mulf %165, %167 : vector<8x64xf32>
    %169 = arith.addf %156, %168 : vector<8x64xf32>
    %170 = vector.extract_strided_slice %10 {offsets = [3, 0], sizes = [1, 64], strides = [1, 1]} : vector<4x64xf32> to vector<1x64xf32>
    %171 = vector.broadcast %170 : vector<1x64xf32> to vector<8x64xf32>
    %172 = arith.mulf %125, %171 : vector<8x64xf32>
    %173 = math.exp %172 : vector<8x64xf32>
    %174 = arith.mulf %173, %116 : vector<8x64xf32>
    %175 = vector.extract_strided_slice %127 {offsets = [0, 3], sizes = [8, 1], strides = [1, 1]} : vector<8x4xf32> to vector<8x1xf32>
    %176 = vector.broadcast %175 : vector<8x1xf32> to vector<8x64xf32>
    %177 = arith.mulf %126, %176 : vector<8x64xf32>
    %178 = arith.addf %174, %177 : vector<8x64xf32>
    %179 = vector.extract_strided_slice %128 {offsets = [0, 3], sizes = [8, 1], strides = [1, 1]} : vector<8x4xf32> to vector<8x1xf32>
    %180 = vector.broadcast %179 : vector<8x1xf32> to vector<8x64xf32>
    %181 = arith.mulf %178, %180 : vector<8x64xf32>
    %182 = arith.addf %169, %181 : vector<8x64xf32>
    %183 = vector.extract_strided_slice %57 {offsets = [8, 0], sizes = [8, 64], strides = [1, 1]} : vector<64x64xf32> to vector<8x64xf32>
    %184 = arith.mulf %182, %183 : vector<8x64xf32>
    %c8 = arith.constant 8 : index
    %c0_30 = arith.constant 0 : index
    %185 = vector.load %arg13[%c8, %c0_30] : memref<64x64xf32, #tpu.memory_space<vmem>>, vector<8x64xf32>
    tpu.vector_store %arg13[%c8, %c0_30], %184 {strides = array<i32>} : memref<64x64xf32, #tpu.memory_space<vmem>>, vector<8x64xf32>,
    %186 = vector.extract_strided_slice %34 {offsets = [16, 0], sizes = [8, 64], strides = [1, 1]} : vector<64x64xf32> to vector<8x64xf32>
    %187 = vector.extract_strided_slice %50 {offsets = [16, 0], sizes = [8, 64], strides = [1, 1]} : vector<64x64xf32> to vector<8x64xf32>
    %188 = arith.mulf %187, %186 : vector<8x64xf32>
    %189 = vector.extract_strided_slice %37 {offsets = [16, 0], sizes = [8, 4], strides = [1, 1]} : vector<64x8xf32> to vector<8x4xf32>
    %190 = vector.extract_strided_slice %37 {offsets = [16, 4], sizes = [8, 4], strides = [1, 1]} : vector<64x8xf32> to vector<8x4xf32>
    %191 = vector.broadcast %6 : vector<1x64xf32> to vector<8x64xf32>
    %192 = arith.mulf %191, %186 : vector<8x64xf32>
    %193 = vector.extract_strided_slice %10 {offsets = [0, 0], sizes = [1, 64], strides = [1, 1]} : vector<4x64xf32> to vector<1x64xf32>
    %194 = vector.broadcast %193 : vector<1x64xf32> to vector<8x64xf32>
    %195 = arith.mulf %187, %194 : vector<8x64xf32>
    %196 = math.exp %195 : vector<8x64xf32>
    %197 = arith.mulf %196, %139 : vector<8x64xf32>
    %198 = vector.extract_strided_slice %189 {offsets = [0, 0], sizes = [8, 1], strides = [1, 1]} : vector<8x4xf32> to vector<8x1xf32>
    %199 = vector.broadcast %198 : vector<8x1xf32> to vector<8x64xf32>
    %200 = arith.mulf %188, %199 : vector<8x64xf32>
    %201 = arith.addf %197, %200 : vector<8x64xf32>
    %202 = vector.extract_strided_slice %190 {offsets = [0, 0], sizes = [8, 1], strides = [1, 1]} : vector<8x4xf32> to vector<8x1xf32>
    %203 = vector.broadcast %202 : vector<8x1xf32> to vector<8x64xf32>
    %204 = arith.mulf %201, %203 : vector<8x64xf32>
    %205 = arith.addf %192, %204 : vector<8x64xf32>
    %206 = vector.extract_strided_slice %10 {offsets = [1, 0], sizes = [1, 64], strides = [1, 1]} : vector<4x64xf32> to vector<1x64xf32>
    %207 = vector.broadcast %206 : vector<1x64xf32> to vector<8x64xf32>
    %208 = arith.mulf %187, %207 : vector<8x64xf32>
    %209 = math.exp %208 : vector<8x64xf32>
    %210 = arith.mulf %209, %152 : vector<8x64xf32>
    %211 = vector.extract_strided_slice %189 {offsets = [0, 1], sizes = [8, 1], strides = [1, 1]} : vector<8x4xf32> to vector<8x1xf32>
    %212 = vector.broadcast %211 : vector<8x1xf32> to vector<8x64xf32>
    %213 = arith.mulf %188, %212 : vector<8x64xf32>
    %214 = arith.addf %210, %213 : vector<8x64xf32>
    %215 = vector.extract_strided_slice %190 {offsets = [0, 1], sizes = [8, 1], strides = [1, 1]} : vector<8x4xf32> to vector<8x1xf32>
    %216 = vector.broadcast %215 : vector<8x1xf32> to vector<8x64xf32>
    %217 = arith.mulf %214, %216 : vector<8x64xf32>
    %218 = arith.addf %205, %217 : vector<8x64xf32>
    %219 = vector.extract_strided_slice %10 {offsets = [2, 0], sizes = [1, 64], strides = [1, 1]} : vector<4x64xf32> to vector<1x64xf32>
    %220 = vector.broadcast %219 : vector<1x64xf32> to vector<8x64xf32>
    %221 = arith.mulf %187, %220 : vector<8x64xf32>
    %222 = math.exp %221 : vector<8x64xf32>
    %223 = arith.mulf %222, %165 : vector<8x64xf32>
    %224 = vector.extract_strided_slice %189 {offsets = [0, 2], sizes = [8, 1], strides = [1, 1]} : vector<8x4xf32> to vector<8x1xf32>
    %225 = vector.broadcast %224 : vector<8x1xf32> to vector<8x64xf32>
    %226 = arith.mulf %188, %225 : vector<8x64xf32>
    %227 = arith.addf %223, %226 : vector<8x64xf32>
    %228 = vector.extract_strided_slice %190 {offsets = [0, 2], sizes = [8, 1], strides = [1, 1]} : vector<8x4xf32> to vector<8x1xf32>
    %229 = vector.broadcast %228 : vector<8x1xf32> to vector<8x64xf32>
    %230 = arith.mulf %227, %229 : vector<8x64xf32>
    %231 = arith.addf %218, %230 : vector<8x64xf32>
    %232 = vector.extract_strided_slice %10 {offsets = [3, 0], sizes = [1, 64], strides = [1, 1]} : vector<4x64xf32> to vector<1x64xf32>
    %233 = vector.broadcast %232 : vector<1x64xf32> to vector<8x64xf32>
    %234 = arith.mulf %187, %233 : vector<8x64xf32>
    %235 = math.exp %234 : vector<8x64xf32>
    %236 = arith.mulf %235, %178 : vector<8x64xf32>
    %237 = vector.extract_strided_slice %189 {offsets = [0, 3], sizes = [8, 1], strides = [1, 1]} : vector<8x4xf32> to vector<8x1xf32>
    %238 = vector.broadcast %237 : vector<8x1xf32> to vector<8x64xf32>
    %239 = arith.mulf %188, %238 : vector<8x64xf32>
    %240 = arith.addf %236, %239 : vector<8x64xf32>
    %241 = vector.extract_strided_slice %190 {offsets = [0, 3], sizes = [8, 1], strides = [1, 1]} : vector<8x4xf32> to vector<8x1xf32>
    %242 = vector.broadcast %241 : vector<8x1xf32> to vector<8x64xf32>
    %243 = arith.mulf %240, %242 : vector<8x64xf32>
    %244 = arith.addf %231, %243 : vector<8x64xf32>
    %245 = vector.extract_strided_slice %57 {offsets = [16, 0], sizes = [8, 64], strides = [1, 1]} : vector<64x64xf32> to vector<8x64xf32>
    %246 = arith.mulf %244, %245 : vector<8x64xf32>
    %c16 = arith.constant 16 : index
    %c0_31 = arith.constant 0 : index
    %247 = vector.load %arg13[%c16, %c0_31] : memref<64x64xf32, #tpu.memory_space<vmem>>, vector<8x64xf32>
    tpu.vector_store %arg13[%c16, %c0_31], %246 {strides = array<i32>} : memref<64x64xf32, #tpu.memory_space<vmem>>, vector<8x64xf32>,
    %248 = vector.extract_strided_slice %34 {offsets = [24, 0], sizes = [8, 64], strides = [1, 1]} : vector<64x64xf32> to vector<8x64xf32>
    %249 = vector.extract_strided_slice %50 {offsets = [24, 0], sizes = [8, 64], strides = [1, 1]} : vector<64x64xf32> to vector<8x64xf32>
    %250 = arith.mulf %249, %248 : vector<8x64xf32>
    %251 = vector.extract_strided_slice %37 {offsets = [24, 0], sizes = [8, 4], strides = [1, 1]} : vector<64x8xf32> to vector<8x4xf32>
    %252 = vector.extract_strided_slice %37 {offsets = [24, 4], sizes = [8, 4], strides = [1, 1]} : vector<64x8xf32> to vector<8x4xf32>
    %253 = vector.broadcast %6 : vector<1x64xf32> to vector<8x64xf32>
    %254 = arith.mulf %253, %248 : vector<8x64xf32>
    %255 = vector.extract_strided_slice %10 {offsets = [0, 0], sizes = [1, 64], strides = [1, 1]} : vector<4x64xf32> to vector<1x64xf32>
    %256 = vector.broadcast %255 : vector<1x64xf32> to vector<8x64xf32>
    %257 = arith.mulf %249, %256 : vector<8x64xf32>
    %258 = math.exp %257 : vector<8x64xf32>
    %259 = arith.mulf %258, %201 : vector<8x64xf32>
    %260 = vector.extract_strided_slice %251 {offsets = [0, 0], sizes = [8, 1], strides = [1, 1]} : vector<8x4xf32> to vector<8x1xf32>
    %261 = vector.broadcast %260 : vector<8x1xf32> to vector<8x64xf32>
    %262 = arith.mulf %250, %261 : vector<8x64xf32>
    %263 = arith.addf %259, %262 : vector<8x64xf32>
    %264 = vector.extract_strided_slice %252 {offsets = [0, 0], sizes = [8, 1], strides = [1, 1]} : vector<8x4xf32> to vector<8x1xf32>
    %265 = vector.broadcast %264 : vector<8x1xf32> to vector<8x64xf32>
    %266 = arith.mulf %263, %265 : vector<8x64xf32>
    %267 = arith.addf %254, %266 : vector<8x64xf32>
    %268 = vector.extract_strided_slice %10 {offsets = [1, 0], sizes = [1, 64], strides = [1, 1]} : vector<4x64xf32> to vector<1x64xf32>
    %269 = vector.broadcast %268 : vector<1x64xf32> to vector<8x64xf32>
    %270 = arith.mulf %249, %269 : vector<8x64xf32>
    %271 = math.exp %270 : vector<8x64xf32>
    %272 = arith.mulf %271, %214 : vector<8x64xf32>
    %273 = vector.extract_strided_slice %251 {offsets = [0, 1], sizes = [8, 1], strides = [1, 1]} : vector<8x4xf32> to vector<8x1xf32>
    %274 = vector.broadcast %273 : vector<8x1xf32> to vector<8x64xf32>
    %275 = arith.mulf %250, %274 : vector<8x64xf32>
    %276 = arith.addf %272, %275 : vector<8x64xf32>
    %277 = vector.extract_strided_slice %252 {offsets = [0, 1], sizes = [8, 1], strides = [1, 1]} : vector<8x4xf32> to vector<8x1xf32>
    %278 = vector.broadcast %277 : vector<8x1xf32> to vector<8x64xf32>
    %279 = arith.mulf %276, %278 : vector<8x64xf32>
    %280 = arith.addf %267, %279 : vector<8x64xf32>
    %281 = vector.extract_strided_slice %10 {offsets = [2, 0], sizes = [1, 64], strides = [1, 1]} : vector<4x64xf32> to vector<1x64xf32>
    %282 = vector.broadcast %281 : vector<1x64xf32> to vector<8x64xf32>
    %283 = arith.mulf %249, %282 : vector<8x64xf32>
    %284 = math.exp %283 : vector<8x64xf32>
    %285 = arith.mulf %284, %227 : vector<8x64xf32>
    %286 = vector.extract_strided_slice %251 {offsets = [0, 2], sizes = [8, 1], strides = [1, 1]} : vector<8x4xf32> to vector<8x1xf32>
    %287 = vector.broadcast %286 : vector<8x1xf32> to vector<8x64xf32>
    %288 = arith.mulf %250, %287 : vector<8x64xf32>
    %289 = arith.addf %285, %288 : vector<8x64xf32>
    %290 = vector.extract_strided_slice %252 {offsets = [0, 2], sizes = [8, 1], strides = [1, 1]} : vector<8x4xf32> to vector<8x1xf32>
    %291 = vector.broadcast %290 : vector<8x1xf32> to vector<8x64xf32>
    %292 = arith.mulf %289, %291 : vector<8x64xf32>
    %293 = arith.addf %280, %292 : vector<8x64xf32>
    %294 = vector.extract_strided_slice %10 {offsets = [3, 0], sizes = [1, 64], strides = [1, 1]} : vector<4x64xf32> to vector<1x64xf32>
    %295 = vector.broadcast %294 : vector<1x64xf32> to vector<8x64xf32>
    %296 = arith.mulf %249, %295 : vector<8x64xf32>
    %297 = math.exp %296 : vector<8x64xf32>
    %298 = arith.mulf %297, %240 : vector<8x64xf32>
    %299 = vector.extract_strided_slice %251 {offsets = [0, 3], sizes = [8, 1], strides = [1, 1]} : vector<8x4xf32> to vector<8x1xf32>
    %300 = vector.broadcast %299 : vector<8x1xf32> to vector<8x64xf32>
    %301 = arith.mulf %250, %300 : vector<8x64xf32>
    %302 = arith.addf %298, %301 : vector<8x64xf32>
    %303 = vector.extract_strided_slice %252 {offsets = [0, 3], sizes = [8, 1], strides = [1, 1]} : vector<8x4xf32> to vector<8x1xf32>
    %304 = vector.broadcast %303 : vector<8x1xf32> to vector<8x64xf32>
    %305 = arith.mulf %302, %304 : vector<8x64xf32>
    %306 = arith.addf %293, %305 : vector<8x64xf32>
    %307 = vector.extract_strided_slice %57 {offsets = [24, 0], sizes = [8, 64], strides = [1, 1]} : vector<64x64xf32> to vector<8x64xf32>
    %308 = arith.mulf %306, %307 : vector<8x64xf32>
    %c24 = arith.constant 24 : index
    %c0_32 = arith.constant 0 : index
    %309 = vector.load %arg13[%c24, %c0_32] : memref<64x64xf32, #tpu.memory_space<vmem>>, vector<8x64xf32>
    tpu.vector_store %arg13[%c24, %c0_32], %308 {strides = array<i32>} : memref<64x64xf32, #tpu.memory_space<vmem>>, vector<8x64xf32>,
    %310 = vector.extract_strided_slice %34 {offsets = [32, 0], sizes = [8, 64], strides = [1, 1]} : vector<64x64xf32> to vector<8x64xf32>
    %311 = vector.extract_strided_slice %50 {offsets = [32, 0], sizes = [8, 64], strides = [1, 1]} : vector<64x64xf32> to vector<8x64xf32>
    %312 = arith.mulf %311, %310 : vector<8x64xf32>
    %313 = vector.extract_strided_slice %37 {offsets = [32, 0], sizes = [8, 4], strides = [1, 1]} : vector<64x8xf32> to vector<8x4xf32>
    %314 = vector.extract_strided_slice %37 {offsets = [32, 4], sizes = [8, 4], strides = [1, 1]} : vector<64x8xf32> to vector<8x4xf32>
    %315 = vector.broadcast %6 : vector<1x64xf32> to vector<8x64xf32>
    %316 = arith.mulf %315, %310 : vector<8x64xf32>
    %317 = vector.extract_strided_slice %10 {offsets = [0, 0], sizes = [1, 64], strides = [1, 1]} : vector<4x64xf32> to vector<1x64xf32>
    %318 = vector.broadcast %317 : vector<1x64xf32> to vector<8x64xf32>
    %319 = arith.mulf %311, %318 : vector<8x64xf32>
    %320 = math.exp %319 : vector<8x64xf32>
    %321 = arith.mulf %320, %263 : vector<8x64xf32>
    %322 = vector.extract_strided_slice %313 {offsets = [0, 0], sizes = [8, 1], strides = [1, 1]} : vector<8x4xf32> to vector<8x1xf32>
    %323 = vector.broadcast %322 : vector<8x1xf32> to vector<8x64xf32>
    %324 = arith.mulf %312, %323 : vector<8x64xf32>
    %325 = arith.addf %321, %324 : vector<8x64xf32>
    %326 = vector.extract_strided_slice %314 {offsets = [0, 0], sizes = [8, 1], strides = [1, 1]} : vector<8x4xf32> to vector<8x1xf32>
    %327 = vector.broadcast %326 : vector<8x1xf32> to vector<8x64xf32>
    %328 = arith.mulf %325, %327 : vector<8x64xf32>
    %329 = arith.addf %316, %328 : vector<8x64xf32>
    %330 = vector.extract_strided_slice %10 {offsets = [1, 0], sizes = [1, 64], strides = [1, 1]} : vector<4x64xf32> to vector<1x64xf32>
    %331 = vector.broadcast %330 : vector<1x64xf32> to vector<8x64xf32>
    %332 = arith.mulf %311, %331 : vector<8x64xf32>
    %333 = math.exp %332 : vector<8x64xf32>
    %334 = arith.mulf %333, %276 : vector<8x64xf32>
    %335 = vector.extract_strided_slice %313 {offsets = [0, 1], sizes = [8, 1], strides = [1, 1]} : vector<8x4xf32> to vector<8x1xf32>
    %336 = vector.broadcast %335 : vector<8x1xf32> to vector<8x64xf32>
    %337 = arith.mulf %312, %336 : vector<8x64xf32>
    %338 = arith.addf %334, %337 : vector<8x64xf32>
    %339 = vector.extract_strided_slice %314 {offsets = [0, 1], sizes = [8, 1], strides = [1, 1]} : vector<8x4xf32> to vector<8x1xf32>
    %340 = vector.broadcast %339 : vector<8x1xf32> to vector<8x64xf32>
    %341 = arith.mulf %338, %340 : vector<8x64xf32>
    %342 = arith.addf %329, %341 : vector<8x64xf32>
    %343 = vector.extract_strided_slice %10 {offsets = [2, 0], sizes = [1, 64], strides = [1, 1]} : vector<4x64xf32> to vector<1x64xf32>
    %344 = vector.broadcast %343 : vector<1x64xf32> to vector<8x64xf32>
    %345 = arith.mulf %311, %344 : vector<8x64xf32>
    %346 = math.exp %345 : vector<8x64xf32>
    %347 = arith.mulf %346, %289 : vector<8x64xf32>
    %348 = vector.extract_strided_slice %313 {offsets = [0, 2], sizes = [8, 1], strides = [1, 1]} : vector<8x4xf32> to vector<8x1xf32>
    %349 = vector.broadcast %348 : vector<8x1xf32> to vector<8x64xf32>
    %350 = arith.mulf %312, %349 : vector<8x64xf32>
    %351 = arith.addf %347, %350 : vector<8x64xf32>
    %352 = vector.extract_strided_slice %314 {offsets = [0, 2], sizes = [8, 1], strides = [1, 1]} : vector<8x4xf32> to vector<8x1xf32>
    %353 = vector.broadcast %352 : vector<8x1xf32> to vector<8x64xf32>
    %354 = arith.mulf %351, %353 : vector<8x64xf32>
    %355 = arith.addf %342, %354 : vector<8x64xf32>
    %356 = vector.extract_strided_slice %10 {offsets = [3, 0], sizes = [1, 64], strides = [1, 1]} : vector<4x64xf32> to vector<1x64xf32>
    %357 = vector.broadcast %356 : vector<1x64xf32> to vector<8x64xf32>
    %358 = arith.mulf %311, %357 : vector<8x64xf32>
    %359 = math.exp %358 : vector<8x64xf32>
    %360 = arith.mulf %359, %302 : vector<8x64xf32>
    %361 = vector.extract_strided_slice %313 {offsets = [0, 3], sizes = [8, 1], strides = [1, 1]} : vector<8x4xf32> to vector<8x1xf32>
    %362 = vector.broadcast %361 : vector<8x1xf32> to vector<8x64xf32>
    %363 = arith.mulf %312, %362 : vector<8x64xf32>
    %364 = arith.addf %360, %363 : vector<8x64xf32>
    %365 = vector.extract_strided_slice %314 {offsets = [0, 3], sizes = [8, 1], strides = [1, 1]} : vector<8x4xf32> to vector<8x1xf32>
    %366 = vector.broadcast %365 : vector<8x1xf32> to vector<8x64xf32>
    %367 = arith.mulf %364, %366 : vector<8x64xf32>
    %368 = arith.addf %355, %367 : vector<8x64xf32>
    %369 = vector.extract_strided_slice %57 {offsets = [32, 0], sizes = [8, 64], strides = [1, 1]} : vector<64x64xf32> to vector<8x64xf32>
    %370 = arith.mulf %368, %369 : vector<8x64xf32>
    %c32 = arith.constant 32 : index
    %c0_33 = arith.constant 0 : index
    %371 = vector.load %arg13[%c32, %c0_33] : memref<64x64xf32, #tpu.memory_space<vmem>>, vector<8x64xf32>
    tpu.vector_store %arg13[%c32, %c0_33], %370 {strides = array<i32>} : memref<64x64xf32, #tpu.memory_space<vmem>>, vector<8x64xf32>,
    %372 = vector.extract_strided_slice %34 {offsets = [40, 0], sizes = [8, 64], strides = [1, 1]} : vector<64x64xf32> to vector<8x64xf32>
    %373 = vector.extract_strided_slice %50 {offsets = [40, 0], sizes = [8, 64], strides = [1, 1]} : vector<64x64xf32> to vector<8x64xf32>
    %374 = arith.mulf %373, %372 : vector<8x64xf32>
    %375 = vector.extract_strided_slice %37 {offsets = [40, 0], sizes = [8, 4], strides = [1, 1]} : vector<64x8xf32> to vector<8x4xf32>
    %376 = vector.extract_strided_slice %37 {offsets = [40, 4], sizes = [8, 4], strides = [1, 1]} : vector<64x8xf32> to vector<8x4xf32>
    %377 = vector.broadcast %6 : vector<1x64xf32> to vector<8x64xf32>
    %378 = arith.mulf %377, %372 : vector<8x64xf32>
    %379 = vector.extract_strided_slice %10 {offsets = [0, 0], sizes = [1, 64], strides = [1, 1]} : vector<4x64xf32> to vector<1x64xf32>
    %380 = vector.broadcast %379 : vector<1x64xf32> to vector<8x64xf32>
    %381 = arith.mulf %373, %380 : vector<8x64xf32>
    %382 = math.exp %381 : vector<8x64xf32>
    %383 = arith.mulf %382, %325 : vector<8x64xf32>
    %384 = vector.extract_strided_slice %375 {offsets = [0, 0], sizes = [8, 1], strides = [1, 1]} : vector<8x4xf32> to vector<8x1xf32>
    %385 = vector.broadcast %384 : vector<8x1xf32> to vector<8x64xf32>
    %386 = arith.mulf %374, %385 : vector<8x64xf32>
    %387 = arith.addf %383, %386 : vector<8x64xf32>
    %388 = vector.extract_strided_slice %376 {offsets = [0, 0], sizes = [8, 1], strides = [1, 1]} : vector<8x4xf32> to vector<8x1xf32>
    %389 = vector.broadcast %388 : vector<8x1xf32> to vector<8x64xf32>
    %390 = arith.mulf %387, %389 : vector<8x64xf32>
    %391 = arith.addf %378, %390 : vector<8x64xf32>
    %392 = vector.extract_strided_slice %10 {offsets = [1, 0], sizes = [1, 64], strides = [1, 1]} : vector<4x64xf32> to vector<1x64xf32>
    %393 = vector.broadcast %392 : vector<1x64xf32> to vector<8x64xf32>
    %394 = arith.mulf %373, %393 : vector<8x64xf32>
    %395 = math.exp %394 : vector<8x64xf32>
    %396 = arith.mulf %395, %338 : vector<8x64xf32>
    %397 = vector.extract_strided_slice %375 {offsets = [0, 1], sizes = [8, 1], strides = [1, 1]} : vector<8x4xf32> to vector<8x1xf32>
    %398 = vector.broadcast %397 : vector<8x1xf32> to vector<8x64xf32>
    %399 = arith.mulf %374, %398 : vector<8x64xf32>
    %400 = arith.addf %396, %399 : vector<8x64xf32>
    %401 = vector.extract_strided_slice %376 {offsets = [0, 1], sizes = [8, 1], strides = [1, 1]} : vector<8x4xf32> to vector<8x1xf32>
    %402 = vector.broadcast %401 : vector<8x1xf32> to vector<8x64xf32>
    %403 = arith.mulf %400, %402 : vector<8x64xf32>
    %404 = arith.addf %391, %403 : vector<8x64xf32>
    %405 = vector.extract_strided_slice %10 {offsets = [2, 0], sizes = [1, 64], strides = [1, 1]} : vector<4x64xf32> to vector<1x64xf32>
    %406 = vector.broadcast %405 : vector<1x64xf32> to vector<8x64xf32>
    %407 = arith.mulf %373, %406 : vector<8x64xf32>
    %408 = math.exp %407 : vector<8x64xf32>
    %409 = arith.mulf %408, %351 : vector<8x64xf32>
    %410 = vector.extract_strided_slice %375 {offsets = [0, 2], sizes = [8, 1], strides = [1, 1]} : vector<8x4xf32> to vector<8x1xf32>
    %411 = vector.broadcast %410 : vector<8x1xf32> to vector<8x64xf32>
    %412 = arith.mulf %374, %411 : vector<8x64xf32>
    %413 = arith.addf %409, %412 : vector<8x64xf32>
    %414 = vector.extract_strided_slice %376 {offsets = [0, 2], sizes = [8, 1], strides = [1, 1]} : vector<8x4xf32> to vector<8x1xf32>
    %415 = vector.broadcast %414 : vector<8x1xf32> to vector<8x64xf32>
    %416 = arith.mulf %413, %415 : vector<8x64xf32>
    %417 = arith.addf %404, %416 : vector<8x64xf32>
    %418 = vector.extract_strided_slice %10 {offsets = [3, 0], sizes = [1, 64], strides = [1, 1]} : vector<4x64xf32> to vector<1x64xf32>
    %419 = vector.broadcast %418 : vector<1x64xf32> to vector<8x64xf32>
    %420 = arith.mulf %373, %419 : vector<8x64xf32>
    %421 = math.exp %420 : vector<8x64xf32>
    %422 = arith.mulf %421, %364 : vector<8x64xf32>
    %423 = vector.extract_strided_slice %375 {offsets = [0, 3], sizes = [8, 1], strides = [1, 1]} : vector<8x4xf32> to vector<8x1xf32>
    %424 = vector.broadcast %423 : vector<8x1xf32> to vector<8x64xf32>
    %425 = arith.mulf %374, %424 : vector<8x64xf32>
    %426 = arith.addf %422, %425 : vector<8x64xf32>
    %427 = vector.extract_strided_slice %376 {offsets = [0, 3], sizes = [8, 1], strides = [1, 1]} : vector<8x4xf32> to vector<8x1xf32>
    %428 = vector.broadcast %427 : vector<8x1xf32> to vector<8x64xf32>
    %429 = arith.mulf %426, %428 : vector<8x64xf32>
    %430 = arith.addf %417, %429 : vector<8x64xf32>
    %431 = vector.extract_strided_slice %57 {offsets = [40, 0], sizes = [8, 64], strides = [1, 1]} : vector<64x64xf32> to vector<8x64xf32>
    %432 = arith.mulf %430, %431 : vector<8x64xf32>
    %c40 = arith.constant 40 : index
    %c0_34 = arith.constant 0 : index
    %433 = vector.load %arg13[%c40, %c0_34] : memref<64x64xf32, #tpu.memory_space<vmem>>, vector<8x64xf32>
    tpu.vector_store %arg13[%c40, %c0_34], %432 {strides = array<i32>} : memref<64x64xf32, #tpu.memory_space<vmem>>, vector<8x64xf32>,
    %434 = vector.extract_strided_slice %34 {offsets = [48, 0], sizes = [8, 64], strides = [1, 1]} : vector<64x64xf32> to vector<8x64xf32>
    %435 = vector.extract_strided_slice %50 {offsets = [48, 0], sizes = [8, 64], strides = [1, 1]} : vector<64x64xf32> to vector<8x64xf32>
    %436 = arith.mulf %435, %434 : vector<8x64xf32>
    %437 = vector.extract_strided_slice %37 {offsets = [48, 0], sizes = [8, 4], strides = [1, 1]} : vector<64x8xf32> to vector<8x4xf32>
    %438 = vector.extract_strided_slice %37 {offsets = [48, 4], sizes = [8, 4], strides = [1, 1]} : vector<64x8xf32> to vector<8x4xf32>
    %439 = vector.broadcast %6 : vector<1x64xf32> to vector<8x64xf32>
    %440 = arith.mulf %439, %434 : vector<8x64xf32>
    %441 = vector.extract_strided_slice %10 {offsets = [0, 0], sizes = [1, 64], strides = [1, 1]} : vector<4x64xf32> to vector<1x64xf32>
    %442 = vector.broadcast %441 : vector<1x64xf32> to vector<8x64xf32>
    %443 = arith.mulf %435, %442 : vector<8x64xf32>
    %444 = math.exp %443 : vector<8x64xf32>
    %445 = arith.mulf %444, %387 : vector<8x64xf32>
    %446 = vector.extract_strided_slice %437 {offsets = [0, 0], sizes = [8, 1], strides = [1, 1]} : vector<8x4xf32> to vector<8x1xf32>
    %447 = vector.broadcast %446 : vector<8x1xf32> to vector<8x64xf32>
    %448 = arith.mulf %436, %447 : vector<8x64xf32>
    %449 = arith.addf %445, %448 : vector<8x64xf32>
    %450 = vector.extract_strided_slice %438 {offsets = [0, 0], sizes = [8, 1], strides = [1, 1]} : vector<8x4xf32> to vector<8x1xf32>
    %451 = vector.broadcast %450 : vector<8x1xf32> to vector<8x64xf32>
    %452 = arith.mulf %449, %451 : vector<8x64xf32>
    %453 = arith.addf %440, %452 : vector<8x64xf32>
    %454 = vector.extract_strided_slice %10 {offsets = [1, 0], sizes = [1, 64], strides = [1, 1]} : vector<4x64xf32> to vector<1x64xf32>
    %455 = vector.broadcast %454 : vector<1x64xf32> to vector<8x64xf32>
    %456 = arith.mulf %435, %455 : vector<8x64xf32>
    %457 = math.exp %456 : vector<8x64xf32>
    %458 = arith.mulf %457, %400 : vector<8x64xf32>
    %459 = vector.extract_strided_slice %437 {offsets = [0, 1], sizes = [8, 1], strides = [1, 1]} : vector<8x4xf32> to vector<8x1xf32>
    %460 = vector.broadcast %459 : vector<8x1xf32> to vector<8x64xf32>
    %461 = arith.mulf %436, %460 : vector<8x64xf32>
    %462 = arith.addf %458, %461 : vector<8x64xf32>
    %463 = vector.extract_strided_slice %438 {offsets = [0, 1], sizes = [8, 1], strides = [1, 1]} : vector<8x4xf32> to vector<8x1xf32>
    %464 = vector.broadcast %463 : vector<8x1xf32> to vector<8x64xf32>
    %465 = arith.mulf %462, %464 : vector<8x64xf32>
    %466 = arith.addf %453, %465 : vector<8x64xf32>
    %467 = vector.extract_strided_slice %10 {offsets = [2, 0], sizes = [1, 64], strides = [1, 1]} : vector<4x64xf32> to vector<1x64xf32>
    %468 = vector.broadcast %467 : vector<1x64xf32> to vector<8x64xf32>
    %469 = arith.mulf %435, %468 : vector<8x64xf32>
    %470 = math.exp %469 : vector<8x64xf32>
    %471 = arith.mulf %470, %413 : vector<8x64xf32>
    %472 = vector.extract_strided_slice %437 {offsets = [0, 2], sizes = [8, 1], strides = [1, 1]} : vector<8x4xf32> to vector<8x1xf32>
    %473 = vector.broadcast %472 : vector<8x1xf32> to vector<8x64xf32>
    %474 = arith.mulf %436, %473 : vector<8x64xf32>
    %475 = arith.addf %471, %474 : vector<8x64xf32>
    %476 = vector.extract_strided_slice %438 {offsets = [0, 2], sizes = [8, 1], strides = [1, 1]} : vector<8x4xf32> to vector<8x1xf32>
    %477 = vector.broadcast %476 : vector<8x1xf32> to vector<8x64xf32>
    %478 = arith.mulf %475, %477 : vector<8x64xf32>
    %479 = arith.addf %466, %478 : vector<8x64xf32>
    %480 = vector.extract_strided_slice %10 {offsets = [3, 0], sizes = [1, 64], strides = [1, 1]} : vector<4x64xf32> to vector<1x64xf32>
    %481 = vector.broadcast %480 : vector<1x64xf32> to vector<8x64xf32>
    %482 = arith.mulf %435, %481 : vector<8x64xf32>
    %483 = math.exp %482 : vector<8x64xf32>
    %484 = arith.mulf %483, %426 : vector<8x64xf32>
    %485 = vector.extract_strided_slice %437 {offsets = [0, 3], sizes = [8, 1], strides = [1, 1]} : vector<8x4xf32> to vector<8x1xf32>
    %486 = vector.broadcast %485 : vector<8x1xf32> to vector<8x64xf32>
    %487 = arith.mulf %436, %486 : vector<8x64xf32>
    %488 = arith.addf %484, %487 : vector<8x64xf32>
    %489 = vector.extract_strided_slice %438 {offsets = [0, 3], sizes = [8, 1], strides = [1, 1]} : vector<8x4xf32> to vector<8x1xf32>
    %490 = vector.broadcast %489 : vector<8x1xf32> to vector<8x64xf32>
    %491 = arith.mulf %488, %490 : vector<8x64xf32>
    %492 = arith.addf %479, %491 : vector<8x64xf32>
    %493 = vector.extract_strided_slice %57 {offsets = [48, 0], sizes = [8, 64], strides = [1, 1]} : vector<64x64xf32> to vector<8x64xf32>
    %494 = arith.mulf %492, %493 : vector<8x64xf32>
    %c48 = arith.constant 48 : index
    %c0_35 = arith.constant 0 : index
    %495 = vector.load %arg13[%c48, %c0_35] : memref<64x64xf32, #tpu.memory_space<vmem>>, vector<8x64xf32>
    tpu.vector_store %arg13[%c48, %c0_35], %494 {strides = array<i32>} : memref<64x64xf32, #tpu.memory_space<vmem>>, vector<8x64xf32>,
    %496 = vector.extract_strided_slice %34 {offsets = [56, 0], sizes = [8, 64], strides = [1, 1]} : vector<64x64xf32> to vector<8x64xf32>
    %497 = vector.extract_strided_slice %50 {offsets = [56, 0], sizes = [8, 64], strides = [1, 1]} : vector<64x64xf32> to vector<8x64xf32>
    %498 = arith.mulf %497, %496 : vector<8x64xf32>
    %499 = vector.extract_strided_slice %37 {offsets = [56, 0], sizes = [8, 4], strides = [1, 1]} : vector<64x8xf32> to vector<8x4xf32>
    %500 = vector.extract_strided_slice %37 {offsets = [56, 4], sizes = [8, 4], strides = [1, 1]} : vector<64x8xf32> to vector<8x4xf32>
    %501 = vector.broadcast %6 : vector<1x64xf32> to vector<8x64xf32>
    %502 = arith.mulf %501, %496 : vector<8x64xf32>
    %503 = vector.extract_strided_slice %10 {offsets = [0, 0], sizes = [1, 64], strides = [1, 1]} : vector<4x64xf32> to vector<1x64xf32>
    %504 = vector.broadcast %503 : vector<1x64xf32> to vector<8x64xf32>
    %505 = arith.mulf %497, %504 : vector<8x64xf32>
    %506 = math.exp %505 : vector<8x64xf32>
    %507 = arith.mulf %506, %449 : vector<8x64xf32>
    %508 = vector.extract_strided_slice %499 {offsets = [0, 0], sizes = [8, 1], strides = [1, 1]} : vector<8x4xf32> to vector<8x1xf32>
    %509 = vector.broadcast %508 : vector<8x1xf32> to vector<8x64xf32>
    %510 = arith.mulf %498, %509 : vector<8x64xf32>
    %511 = arith.addf %507, %510 : vector<8x64xf32>
    %512 = vector.extract_strided_slice %500 {offsets = [0, 0], sizes = [8, 1], strides = [1, 1]} : vector<8x4xf32> to vector<8x1xf32>
    %513 = vector.broadcast %512 : vector<8x1xf32> to vector<8x64xf32>
    %514 = arith.mulf %511, %513 : vector<8x64xf32>
    %515 = arith.addf %502, %514 : vector<8x64xf32>
    %516 = vector.extract_strided_slice %10 {offsets = [1, 0], sizes = [1, 64], strides = [1, 1]} : vector<4x64xf32> to vector<1x64xf32>
    %517 = vector.broadcast %516 : vector<1x64xf32> to vector<8x64xf32>
    %518 = arith.mulf %497, %517 : vector<8x64xf32>
    %519 = math.exp %518 : vector<8x64xf32>
    %520 = arith.mulf %519, %462 : vector<8x64xf32>
    %521 = vector.extract_strided_slice %499 {offsets = [0, 1], sizes = [8, 1], strides = [1, 1]} : vector<8x4xf32> to vector<8x1xf32>
    %522 = vector.broadcast %521 : vector<8x1xf32> to vector<8x64xf32>
    %523 = arith.mulf %498, %522 : vector<8x64xf32>
    %524 = arith.addf %520, %523 : vector<8x64xf32>
    %525 = vector.extract_strided_slice %500 {offsets = [0, 1], sizes = [8, 1], strides = [1, 1]} : vector<8x4xf32> to vector<8x1xf32>
    %526 = vector.broadcast %525 : vector<8x1xf32> to vector<8x64xf32>
    %527 = arith.mulf %524, %526 : vector<8x64xf32>
    %528 = arith.addf %515, %527 : vector<8x64xf32>
    %529 = vector.extract_strided_slice %10 {offsets = [2, 0], sizes = [1, 64], strides = [1, 1]} : vector<4x64xf32> to vector<1x64xf32>
    %530 = vector.broadcast %529 : vector<1x64xf32> to vector<8x64xf32>
    %531 = arith.mulf %497, %530 : vector<8x64xf32>
    %532 = math.exp %531 : vector<8x64xf32>
    %533 = arith.mulf %532, %475 : vector<8x64xf32>
    %534 = vector.extract_strided_slice %499 {offsets = [0, 2], sizes = [8, 1], strides = [1, 1]} : vector<8x4xf32> to vector<8x1xf32>
    %535 = vector.broadcast %534 : vector<8x1xf32> to vector<8x64xf32>
    %536 = arith.mulf %498, %535 : vector<8x64xf32>
    %537 = arith.addf %533, %536 : vector<8x64xf32>
    %538 = vector.extract_strided_slice %500 {offsets = [0, 2], sizes = [8, 1], strides = [1, 1]} : vector<8x4xf32> to vector<8x1xf32>
    %539 = vector.broadcast %538 : vector<8x1xf32> to vector<8x64xf32>
    %540 = arith.mulf %537, %539 : vector<8x64xf32>
    %541 = arith.addf %528, %540 : vector<8x64xf32>
    %542 = vector.extract_strided_slice %10 {offsets = [3, 0], sizes = [1, 64], strides = [1, 1]} : vector<4x64xf32> to vector<1x64xf32>
    %543 = vector.broadcast %542 : vector<1x64xf32> to vector<8x64xf32>
    %544 = arith.mulf %497, %543 : vector<8x64xf32>
    %545 = math.exp %544 : vector<8x64xf32>
    %546 = arith.mulf %545, %488 : vector<8x64xf32>
    %547 = vector.extract_strided_slice %499 {offsets = [0, 3], sizes = [8, 1], strides = [1, 1]} : vector<8x4xf32> to vector<8x1xf32>
    %548 = vector.broadcast %547 : vector<8x1xf32> to vector<8x64xf32>
    %549 = arith.mulf %498, %548 : vector<8x64xf32>
    %550 = arith.addf %546, %549 : vector<8x64xf32>
    %551 = vector.extract_strided_slice %500 {offsets = [0, 3], sizes = [8, 1], strides = [1, 1]} : vector<8x4xf32> to vector<8x1xf32>
    %552 = vector.broadcast %551 : vector<8x1xf32> to vector<8x64xf32>
    %553 = arith.mulf %550, %552 : vector<8x64xf32>
    %554 = arith.addf %541, %553 : vector<8x64xf32>
    %555 = vector.extract_strided_slice %57 {offsets = [56, 0], sizes = [8, 64], strides = [1, 1]} : vector<64x64xf32> to vector<8x64xf32>
    %556 = arith.mulf %554, %555 : vector<8x64xf32>
    %c56 = arith.constant 56 : index
    %c0_36 = arith.constant 0 : index
    %557 = vector.load %arg13[%c56, %c0_36] : memref<64x64xf32, #tpu.memory_space<vmem>>, vector<8x64xf32>
    tpu.vector_store %arg13[%c56, %c0_36], %556 {strides = array<i32>} : memref<64x64xf32, #tpu.memory_space<vmem>>, vector<8x64xf32>,
    %c0_37 = arith.constant 0 : index
    %c0_38 = arith.constant 0 : index
    %558 = vector.load %arg13[%c0_37, %c0_38] : memref<64x64xf32, #tpu.memory_space<vmem>>, vector<64x64xf32>
    %559 = arith.truncf %558 : vector<64x64xf32> to vector<64x64xbf16>
    %c0_39 = arith.constant 0 : index
    %c0_40 = arith.constant 0 : index
    %560 = vector.load %arg6[%c0_39, %c0_40] : memref<64x32xbf16, #tpu.memory_space<vmem>>, vector<64x32xbf16>
    %cst_41 = arith.constant dense<0.000000e+00> : vector<64x32xf32>
    %561 = tpu.matmul %559, %560, %cst_41 {dimension_numbers = #tpu.dot_dimension_numbers<[1], [0], [0], [1], [0, 0, 1, 1], [], []>} : vector<64x64xbf16>, vector<64x32xbf16>, vector<64x32xf32> -> vector<64x32xf32>
    %c0_42 = arith.constant 0 : index
    %c0_43 = arith.constant 0 : index
    %562 = vector.load %arg11[%c0_42, %c0_43] : memref<3x8xf32, #tpu.memory_space<vmem>>, vector<3x8xf32>
    %c0_44 = arith.constant 0 : index
    %c0_45 = arith.constant 0 : index
    %563 = vector.load %arg8[%c0_44, %c0_45] : memref<32x8xf32, #tpu.memory_space<vmem>>, vector<32x8xf32>
    %cst_46 = arith.constant dense<0.000000e+00> : vector<64x8xf32>
    %564 = tpu.matmul %561, %563, %cst_46 {dimension_numbers = #tpu.dot_dimension_numbers<[1], [0], [0], [1], [0, 0, 1, 1], [], []>} : vector<64x32xf32>, vector<32x8xf32>, vector<64x8xf32> -> vector<64x8xf32>
    %565 = vector.extract_strided_slice %562 {offsets = [0, 0], sizes = [1, 8], strides = [1, 1]} : vector<3x8xf32> to vector<1x8xf32>
    %566 = vector.broadcast %565 : vector<1x8xf32> to vector<64x8xf32>
    %567 = arith.addf %564, %566 : vector<64x8xf32>
    %cst_47 = arith.constant 0.000000e+00 : f32
    %568 = vector.broadcast %cst_47 : f32 to vector<64x8xf32>
    %569 = arith.maximumf %567, %568 : vector<64x8xf32>
    %c0_48 = arith.constant 0 : index
    %c0_49 = arith.constant 0 : index
    %570 = vector.load %arg9[%c0_48, %c0_49] : memref<8x2xf32, #tpu.memory_space<vmem>>, vector<8x2xf32>
    %cst_50 = arith.constant dense<0.000000e+00> : vector<64x2xf32>
    %571 = tpu.matmul %569, %570, %cst_50 {dimension_numbers = #tpu.dot_dimension_numbers<[1], [0], [0], [1], [0, 0, 1, 1], [], []>} : vector<64x8xf32>, vector<8x2xf32>, vector<64x2xf32> -> vector<64x2xf32>
    %572 = vector.extract_strided_slice %562 {offsets = [1, 0], sizes = [1, 2], strides = [1, 1]} : vector<3x8xf32> to vector<1x2xf32>
    %573 = vector.broadcast %572 : vector<1x2xf32> to vector<64x2xf32>
    %574 = arith.addf %571, %573 : vector<64x2xf32>
    %cst_51 = arith.constant 0.000000e+00 : f32
    %575 = vector.broadcast %cst_51 : f32 to vector<64x2xf32>
    %576 = arith.maximumf %574, %575 : vector<64x2xf32>
    %c0_52 = arith.constant 0 : index
    %c0_53 = arith.constant 0 : index
    %577 = vector.load %arg10[%c0_52, %c0_53] : memref<2x1xf32, #tpu.memory_space<vmem>>, vector<2x1xf32>
    %cst_54 = arith.constant dense<0.000000e+00> : vector<64x1xf32>
    %578 = tpu.matmul %576, %577, %cst_54 {dimension_numbers = #tpu.dot_dimension_numbers<[1], [0], [0], [1], [0, 0, 1, 1], [], []>} : vector<64x2xf32>, vector<2x1xf32>, vector<64x1xf32> -> vector<64x1xf32>
    %579 = vector.extract_strided_slice %562 {offsets = [2, 0], sizes = [1, 1], strides = [1, 1]} : vector<3x8xf32> to vector<1x1xf32>
    %580 = vector.broadcast %579 : vector<1x1xf32> to vector<64x1xf32>
    %581 = arith.addf %578, %580 : vector<64x1xf32>
    %cst_55 = arith.constant 0.000000e+00 : f32
    %582 = vector.broadcast %cst_55 : f32 to vector<64x1xf32>
    %583 = arith.maximumf %581, %582 : vector<64x1xf32>
    %584 = vector.extract_strided_slice %583 {offsets = [0, 0], sizes = [8, 1], strides = [1, 1]} : vector<64x1xf32> to vector<8x1xf32>
    %585 = vector.extract_strided_slice %583 {offsets = [8, 0], sizes = [8, 1], strides = [1, 1]} : vector<64x1xf32> to vector<8x1xf32>
    %586 = arith.maximumf %584, %585 : vector<8x1xf32>
    %587 = vector.extract_strided_slice %583 {offsets = [16, 0], sizes = [8, 1], strides = [1, 1]} : vector<64x1xf32> to vector<8x1xf32>
    %588 = arith.maximumf %586, %587 : vector<8x1xf32>
    %589 = vector.extract_strided_slice %583 {offsets = [24, 0], sizes = [8, 1], strides = [1, 1]} : vector<64x1xf32> to vector<8x1xf32>
    %590 = arith.maximumf %588, %589 : vector<8x1xf32>
    %591 = vector.extract_strided_slice %583 {offsets = [32, 0], sizes = [8, 1], strides = [1, 1]} : vector<64x1xf32> to vector<8x1xf32>
    %592 = arith.maximumf %590, %591 : vector<8x1xf32>
    %593 = vector.extract_strided_slice %583 {offsets = [40, 0], sizes = [8, 1], strides = [1, 1]} : vector<64x1xf32> to vector<8x1xf32>
    %594 = arith.maximumf %592, %593 : vector<8x1xf32>
    %595 = vector.extract_strided_slice %583 {offsets = [48, 0], sizes = [8, 1], strides = [1, 1]} : vector<64x1xf32> to vector<8x1xf32>
    %596 = arith.maximumf %594, %595 : vector<8x1xf32>
    %597 = vector.extract_strided_slice %583 {offsets = [56, 0], sizes = [8, 1], strides = [1, 1]} : vector<64x1xf32> to vector<8x1xf32>
    %598 = arith.maximumf %596, %597 : vector<8x1xf32>
    %cst_56 = arith.constant 0.000000e+00 : f32
    %599 = vector.broadcast %cst_56 : f32 to vector<8x1xf32>
    %cst_57 = arith.constant 0.000000e+00 : f32
    %600 = vector.broadcast %cst_57 : f32 to vector<8x32xf32>
    %601 = vector.extract_strided_slice %583 {offsets = [0, 0], sizes = [8, 1], strides = [1, 1]} : vector<64x1xf32> to vector<8x1xf32>
    %602 = arith.subf %601, %598 : vector<8x1xf32>
    %603 = math.exp %602 : vector<8x1xf32>
    %604 = arith.addf %599, %603 : vector<8x1xf32>
    %605 = vector.extract_strided_slice %1 {offsets = [0, 0], sizes = [8, 32], strides = [1, 1]} : vector<64x32xf32> to vector<8x32xf32>
    %606 = vector.broadcast %603 : vector<8x1xf32> to vector<8x32xf32>
    %607 = arith.mulf %606, %605 : vector<8x32xf32>
    %608 = arith.addf %600, %607 : vector<8x32xf32>
    %609 = vector.extract_strided_slice %583 {offsets = [8, 0], sizes = [8, 1], strides = [1, 1]} : vector<64x1xf32> to vector<8x1xf32>
    %610 = arith.subf %609, %598 : vector<8x1xf32>
    %611 = math.exp %610 : vector<8x1xf32>
    %612 = arith.addf %604, %611 : vector<8x1xf32>
    %613 = vector.extract_strided_slice %1 {offsets = [8, 0], sizes = [8, 32], strides = [1, 1]} : vector<64x32xf32> to vector<8x32xf32>
    %614 = vector.broadcast %611 : vector<8x1xf32> to vector<8x32xf32>
    %615 = arith.mulf %614, %613 : vector<8x32xf32>
    %616 = arith.addf %608, %615 : vector<8x32xf32>
    %617 = vector.extract_strided_slice %583 {offsets = [16, 0], sizes = [8, 1], strides = [1, 1]} : vector<64x1xf32> to vector<8x1xf32>
    %618 = arith.subf %617, %598 : vector<8x1xf32>
    %619 = math.exp %618 : vector<8x1xf32>
    %620 = arith.addf %612, %619 : vector<8x1xf32>
    %621 = vector.extract_strided_slice %1 {offsets = [16, 0], sizes = [8, 32], strides = [1, 1]} : vector<64x32xf32> to vector<8x32xf32>
    %622 = vector.broadcast %619 : vector<8x1xf32> to vector<8x32xf32>
    %623 = arith.mulf %622, %621 : vector<8x32xf32>
    %624 = arith.addf %616, %623 : vector<8x32xf32>
    %625 = vector.extract_strided_slice %583 {offsets = [24, 0], sizes = [8, 1], strides = [1, 1]} : vector<64x1xf32> to vector<8x1xf32>
    %626 = arith.subf %625, %598 : vector<8x1xf32>
    %627 = math.exp %626 : vector<8x1xf32>
    %628 = arith.addf %620, %627 : vector<8x1xf32>
    %629 = vector.extract_strided_slice %1 {offsets = [24, 0], sizes = [8, 32], strides = [1, 1]} : vector<64x32xf32> to vector<8x32xf32>
    %630 = vector.broadcast %627 : vector<8x1xf32> to vector<8x32xf32>
    %631 = arith.mulf %630, %629 : vector<8x32xf32>
    %632 = arith.addf %624, %631 : vector<8x32xf32>
    %633 = vector.extract_strided_slice %583 {offsets = [32, 0], sizes = [8, 1], strides = [1, 1]} : vector<64x1xf32> to vector<8x1xf32>
    %634 = arith.subf %633, %598 : vector<8x1xf32>
    %635 = math.exp %634 : vector<8x1xf32>
    %636 = arith.addf %628, %635 : vector<8x1xf32>
    %637 = vector.extract_strided_slice %1 {offsets = [32, 0], sizes = [8, 32], strides = [1, 1]} : vector<64x32xf32> to vector<8x32xf32>
    %638 = vector.broadcast %635 : vector<8x1xf32> to vector<8x32xf32>
    %639 = arith.mulf %638, %637 : vector<8x32xf32>
    %640 = arith.addf %632, %639 : vector<8x32xf32>
    %641 = vector.extract_strided_slice %583 {offsets = [40, 0], sizes = [8, 1], strides = [1, 1]} : vector<64x1xf32> to vector<8x1xf32>
    %642 = arith.subf %641, %598 : vector<8x1xf32>
    %643 = math.exp %642 : vector<8x1xf32>
    %644 = arith.addf %636, %643 : vector<8x1xf32>
    %645 = vector.extract_strided_slice %1 {offsets = [40, 0], sizes = [8, 32], strides = [1, 1]} : vector<64x32xf32> to vector<8x32xf32>
    %646 = vector.broadcast %643 : vector<8x1xf32> to vector<8x32xf32>
    %647 = arith.mulf %646, %645 : vector<8x32xf32>
    %648 = arith.addf %640, %647 : vector<8x32xf32>
    %649 = vector.extract_strided_slice %583 {offsets = [48, 0], sizes = [8, 1], strides = [1, 1]} : vector<64x1xf32> to vector<8x1xf32>
    %650 = arith.subf %649, %598 : vector<8x1xf32>
    %651 = math.exp %650 : vector<8x1xf32>
    %652 = arith.addf %644, %651 : vector<8x1xf32>
    %653 = vector.extract_strided_slice %1 {offsets = [48, 0], sizes = [8, 32], strides = [1, 1]} : vector<64x32xf32> to vector<8x32xf32>
    %654 = vector.broadcast %651 : vector<8x1xf32> to vector<8x32xf32>
    %655 = arith.mulf %654, %653 : vector<8x32xf32>
    %656 = arith.addf %648, %655 : vector<8x32xf32>
    %657 = vector.extract_strided_slice %583 {offsets = [56, 0], sizes = [8, 1], strides = [1, 1]} : vector<64x1xf32> to vector<8x1xf32>
    %658 = arith.subf %657, %598 : vector<8x1xf32>
    %659 = math.exp %658 : vector<8x1xf32>
    %660 = arith.addf %652, %659 : vector<8x1xf32>
    %661 = vector.extract_strided_slice %1 {offsets = [56, 0], sizes = [8, 32], strides = [1, 1]} : vector<64x32xf32> to vector<8x32xf32>
    %662 = vector.broadcast %659 : vector<8x1xf32> to vector<8x32xf32>
    %663 = arith.mulf %662, %661 : vector<8x32xf32>
    %664 = arith.addf %656, %663 : vector<8x32xf32>
    %665 = vector.broadcast %660 : vector<8x1xf32> to vector<8x32xf32>
    %666 = arith.divf %664, %665 : vector<8x32xf32>
    %c0_58 = arith.constant 0 : index
    %c0_59 = arith.constant 0 : index
    %c0_60 = arith.constant 0 : index
    %667 = vector.load %arg12[%c0_58, %c0_59, %c0_60] : memref<1x8x32xf32, #tpu.memory_space<vmem>>, vector<1x8x32xf32>
    %668 = vector.shape_cast %667 : vector<1x8x32xf32> to vector<8x32xf32>
    %669 = vector.shape_cast %666 : vector<8x32xf32> to vector<1x8x32xf32>
    tpu.vector_store %arg12[%c0_58, %c0_59, %c0_60], %669 {strides = array<i32>} : memref<1x8x32xf32, #tpu.memory_space<vmem>>, vector<1x8x32xf32>,
    return
  }
  func.func @transform_0(%arg0: i32) -> (i32, i32, i32) {
    %c0_i32 = arith.constant 0 : i32
    %c0_i32_0 = arith.constant 0 : i32
    %c0_i32_1 = arith.constant 0 : i32
    return %arg0, %c0_i32, %c0_i32_0 : i32, i32, i32
  }
  func.func @transform_1(%arg0: i32) -> (i32, i32) {
    %c0_i32 = arith.constant 0 : i32
    %c0_i32_0 = arith.constant 0 : i32
    %c0_i32_1 = arith.constant 0 : i32
    return %c0_i32, %c0_i32_0 : i32, i32
  }
  func.func @transform_2(%arg0: i32) -> (i32, i32) {
    %c0_i32 = arith.constant 0 : i32
    %c0_i32_0 = arith.constant 0 : i32
    %c0_i32_1 = arith.constant 0 : i32
    return %c0_i32, %c0_i32_0 : i32, i32
  }
  func.func @transform_3(%arg0: i32) -> (i32, i32) {
    %c0_i32 = arith.constant 0 : i32
    %c0_i32_0 = arith.constant 0 : i32
    %c0_i32_1 = arith.constant 0 : i32
    return %c0_i32, %c0_i32_0 : i32, i32
  }
  func.func @transform_4(%arg0: i32) -> (i32, i32) {
    %c0_i32 = arith.constant 0 : i32
    %c0_i32_0 = arith.constant 0 : i32
    %c0_i32_1 = arith.constant 0 : i32
    return %c0_i32, %c0_i32_0 : i32, i32
  }
  func.func @transform_5(%arg0: i32) -> (i32, i32) {
    %c0_i32 = arith.constant 0 : i32
    %c0_i32_0 = arith.constant 0 : i32
    %c0_i32_1 = arith.constant 0 : i32
    return %c0_i32, %c0_i32_0 : i32, i32
  }
  func.func @transform_6(%arg0: i32) -> (i32, i32) {
    %c0_i32 = arith.constant 0 : i32
    %c0_i32_0 = arith.constant 0 : i32
    %c0_i32_1 = arith.constant 0 : i32
    return %c0_i32, %c0_i32_0 : i32, i32
  }
  func.func @transform_7(%arg0: i32) -> (i32, i32) {
    %c0_i32 = arith.constant 0 : i32
    %c0_i32_0 = arith.constant 0 : i32
    %c0_i32_1 = arith.constant 0 : i32
    return %c0_i32, %c0_i32_0 : i32, i32
  }
  func.func @transform_8(%arg0: i32) -> (i32, i32) {
    %c0_i32 = arith.constant 0 : i32
    %c0_i32_0 = arith.constant 0 : i32
    %c0_i32_1 = arith.constant 0 : i32
    return %c0_i32, %c0_i32_0 : i32, i32
  }
  func.func @transform_9(%arg0: i32) -> (i32, i32) {
    %c0_i32 = arith.constant 0 : i32
    %c0_i32_0 = arith.constant 0 : i32
    %c0_i32_1 = arith.constant 0 : i32
    return %c0_i32, %c0_i32_0 : i32, i32
  }
  func.func @transform_10(%arg0: i32) -> (i32, i32) {
    %c0_i32 = arith.constant 0 : i32
    %c0_i32_0 = arith.constant 0 : i32
    %c0_i32_1 = arith.constant 0 : i32
    return %c0_i32, %c0_i32_0 : i32, i32
  }
  func.func @transform_11(%arg0: i32) -> (i32, i32, i32) {
    %c0_i32 = arith.constant 0 : i32
    %c0_i32_0 = arith.constant 0 : i32
    %c0_i32_1 = arith.constant 0 : i32
    return %arg0, %c0_i32, %c0_i32_0 : i32, i32, i32
  }
}

module attributes {stable_mosaic.version = 11 : i64} {
  func.func @kernel(%arg0: i32, %arg1: memref<1x64x32xf32, #tpu.memory_space<vmem>>, %arg2: memref<32x64xbf16, #tpu.memory_space<vmem>>, %arg3: memref<32x64xbf16, #tpu.memory_space<vmem>>, %arg4: memref<64x8xbf16, #tpu.memory_space<vmem>>, %arg5: memref<64x64xbf16, #tpu.memory_space<vmem>>, %arg6: memref<64x32xbf16, #tpu.memory_space<vmem>>, %arg7: memref<9x64xf32, #tpu.memory_space<vmem>>, %arg8: memref<32x8xf32, #tpu.memory_space<vmem>>, %arg9: memref<8x2xf32, #tpu.memory_space<vmem>>, %arg10: memref<2x1xf32, #tpu.memory_space<vmem>>, %arg11: memref<3x8xf32, #tpu.memory_space<vmem>>, %arg12: memref<1x8x32xf32, #tpu.memory_space<vmem>>, %arg13: memref<64x64xf32, #tpu.memory_space<vmem>>) attributes {dimension_semantics = [#tpu.dimension_semantics<parallel>], iteration_bounds = array<i64: 1>, scalar_prefetch = 0 : i64, scratch_operands = 1 : i64, tpu.core_type = #tpu.core_type<tc>, window_params = [{transform_indices = @transform_0, window_bounds = array<i64: 1, 64, 32>}, {pipeline_mode = #tpu.pipeline_mode<synchronous>, transform_indices = @transform_1, window_bounds = array<i64: 32, 64>}, {pipeline_mode = #tpu.pipeline_mode<synchronous>, transform_indices = @transform_2, window_bounds = array<i64: 32, 64>}, {pipeline_mode = #tpu.pipeline_mode<synchronous>, transform_indices = @transform_3, window_bounds = array<i64: 64, 8>}, {pipeline_mode = #tpu.pipeline_mode<synchronous>, transform_indices = @transform_4, window_bounds = array<i64: 64, 64>}, {pipeline_mode = #tpu.pipeline_mode<synchronous>, transform_indices = @transform_5, window_bounds = array<i64: 64, 32>}, {pipeline_mode = #tpu.pipeline_mode<synchronous>, transform_indices = @transform_6, window_bounds = array<i64: 9, 64>}, {pipeline_mode = #tpu.pipeline_mode<synchronous>, transform_indices = @transform_7, window_bounds = array<i64: 32, 8>}, {pipeline_mode = #tpu.pipeline_mode<synchronous>, transform_indices = @transform_8, window_bounds = array<i64: 8, 2>}, {pipeline_mode = #tpu.pipeline_mode<synchronous>, transform_indices = @transform_9, window_bounds = array<i64: 2, 1>}, {pipeline_mode = #tpu.pipeline_mode<synchronous>, transform_indices = @transform_10, window_bounds = array<i64: 3, 8>}, {transform_indices = @transform_11, window_bounds = array<i64: 1, 8, 32>}]} {
    %c0 = arith.constant 0 : index
    %c0_0 = arith.constant 0 : index
    %c0_1 = arith.constant 0 : index
    %0 = vector.load %arg1[%c0, %c0_0, %c0_1] : memref<1x64x32xf32, #tpu.memory_space<vmem>>, vector<1x64x32xf32>
    %1 = vector.shape_cast %0 : vector<1x64x32xf32> to vector<64x32xf32>
    %2 = arith.truncf %1 : vector<64x32xf32> to vector<64x32xbf16>
    %c0_2 = arith.constant 0 : index
    %c0_3 = arith.constant 0 : index
    %3 = vector.load %arg7[%c0_2, %c0_3] : memref<9x64xf32, #tpu.memory_space<vmem>>, vector<9x64xf32>
    %4 = vector.extract_strided_slice %3 {offsets = [0, 0], sizes = [1, 64], strides = [1, 1]} : vector<9x64xf32> to vector<1x64xf32>
    %5 = vector.extract_strided_slice %3 {offsets = [1, 0], sizes = [1, 64], strides = [1, 1]} : vector<9x64xf32> to vector<1x64xf32>
    %6 = vector.extract_strided_slice %3 {offsets = [2, 0], sizes = [1, 64], strides = [1, 1]} : vector<9x64xf32> to vector<1x64xf32>
    %7 = vector.extract_strided_slice %3 {offsets = [3, 0], sizes = [4, 64], strides = [1, 1]} : vector<9x64xf32> to vector<4x64xf32>
    %8 = math.exp %7 : vector<4x64xf32>
    %cst = arith.constant 0.000000e+00 : f32
    %9 = vector.broadcast %cst : f32 to vector<4x64xf32>
    %10 = arith.subf %9, %8 : vector<4x64xf32>
    %11 = vector.extract_strided_slice %3 {offsets = [7, 0], sizes = [2, 64], strides = [1, 1]} : vector<9x64xf32> to vector<2x64xf32>
    %c0_4 = arith.constant 0 : index
    %c0_5 = arith.constant 0 : index
    %12 = vector.load %arg2[%c0_4, %c0_5] : memref<32x64xbf16, #tpu.memory_space<vmem>>, vector<32x64xbf16>
    %cst_6 = arith.constant dense<0.000000e+00> : vector<64x64xf32>
    %13 = tpu.matmul %2, %12, %cst_6 {dimension_numbers = #tpu.dot_dimension_numbers<[1], [0], [0], [1], [0, 0, 1, 1], [], []>} : vector<64x32xbf16>, vector<32x64xbf16>, vector<64x64xf32> -> vector<64x64xf32>
    %c0_7 = arith.constant 0 : index
    %c0_8 = arith.constant 0 : index
    %14 = vector.load %arg3[%c0_7, %c0_8] : memref<32x64xbf16, #tpu.memory_space<vmem>>, vector<32x64xbf16>
    %cst_9 = arith.constant dense<0.000000e+00> : vector<64x64xf32>
    %15 = tpu.matmul %2, %14, %cst_9 {dimension_numbers = #tpu.dot_dimension_numbers<[1], [0], [0], [1], [0, 0, 1, 1], [], []>} : vector<64x32xbf16>, vector<32x64xbf16>, vector<64x64xf32> -> vector<64x64xf32>
    %16 = vector.extract_strided_slice %11 {offsets = [1, 0], sizes = [1, 64], strides = [1, 1]} : vector<2x64xf32> to vector<1x64xf32>
    %17 = vector.broadcast %16 : vector<1x64xf32> to vector<64x64xf32>
    %18 = arith.mulf %17, %13 : vector<64x64xf32>
    %19 = vector.broadcast %4 : vector<1x64xf32> to vector<64x64xf32>
    %20 = arith.addf %19, %18 : vector<64x64xf32>
    %cst_10 = arith.constant 0.000000e+00 : f32
    %21 = vector.broadcast %cst_10 : f32 to vector<8x64xf32>
    %22 = vector.extract_strided_slice %13 {offsets = [0, 0], sizes = [56, 64], strides = [1, 1]} : vector<64x64xf32> to vector<56x64xf32>
    %23 = tpu.concatenate %21, %22 in 0 : vector<8x64xf32>, vector<56x64xf32> -> vector<64x64xf32>
    %24 = vector.extract_strided_slice %11 {offsets = [0, 0], sizes = [1, 64], strides = [1, 1]} : vector<2x64xf32> to vector<1x64xf32>
    %25 = vector.broadcast %24 : vector<1x64xf32> to vector<64x64xf32>
    %26 = arith.mulf %25, %23 : vector<64x64xf32>
    %27 = arith.addf %20, %26 : vector<64x64xf32>
    %cst_11 = arith.constant 0.000000e+00 : f32
    %28 = vector.broadcast %cst_11 : f32 to vector<64x64xf32>
    %29 = arith.subf %28, %27 : vector<64x64xf32>
    %30 = math.exp %29 : vector<64x64xf32>
    %cst_12 = arith.constant 1.000000e+00 : f32
    %31 = vector.broadcast %cst_12 : f32 to vector<64x64xf32>
    %32 = arith.addf %31, %30 : vector<64x64xf32>
    %33 = tpu.reciprocal %32 {approx = true} : vector<64x64xf32> -> vector<64x64xf32>
    %34 = arith.mulf %27, %33 : vector<64x64xf32>
    %35 = arith.truncf %34 : vector<64x64xf32> to vector<64x64xbf16>
    %c0_13 = arith.constant 0 : index
    %c0_14 = arith.constant 0 : index
    %36 = vector.load %arg4[%c0_13, %c0_14] : memref<64x8xbf16, #tpu.memory_space<vmem>>, vector<64x8xbf16>
    %cst_15 = arith.constant dense<0.000000e+00> : vector<64x8xf32>
    %37 = tpu.matmul %35, %36, %cst_15 {dimension_numbers = #tpu.dot_dimension_numbers<[1], [0], [0], [1], [0, 0, 1, 1], [], []>} : vector<64x64xbf16>, vector<64x8xbf16>, vector<64x8xf32> -> vector<64x8xf32>
    %c0_16 = arith.constant 0 : index
    %c0_17 = arith.constant 0 : index
    %38 = vector.load %arg5[%c0_16, %c0_17] : memref<64x64xbf16, #tpu.memory_space<vmem>>, vector<64x64xbf16>
    %cst_18 = arith.constant dense<0.000000e+00> : vector<64x64xf32>
    %39 = tpu.matmul %35, %38, %cst_18 {dimension_numbers = #tpu.dot_dimension_numbers<[1], [0], [0], [1], [0, 0, 1, 1], [], []>} : vector<64x64xbf16>, vector<64x64xbf16>, vector<64x64xf32> -> vector<64x64xf32>
    %40 = vector.broadcast %5 : vector<1x64xf32> to vector<64x64xf32>
    %41 = arith.addf %39, %40 : vector<64x64xf32>
    %cst_19 = arith.constant 2.000000e+01 : f32
    %42 = vector.broadcast %cst_19 : f32 to vector<64x64xf32>
    %43 = arith.cmpf ogt, %41, %42 : vector<64x64xf32>
    %cst_20 = arith.constant 2.000000e+01 : f32
    %44 = vector.broadcast %cst_20 : f32 to vector<64x64xf32>
    %45 = arith.minimumf %41, %44 : vector<64x64xf32>
    %46 = math.exp %45 : vector<64x64xf32>
    %cst_21 = arith.constant 1.000000e+00 : f32
    %47 = vector.broadcast %cst_21 : f32 to vector<64x64xf32>
    %48 = arith.addf %47, %46 : vector<64x64xf32>
    %49 = math.log %48 : vector<64x64xf32>
    %50 = arith.select %43, %41, %49 : vector<64x64xi1>, vector<64x64xf32>
    %cst_22 = arith.constant 0.000000e+00 : f32
    %51 = vector.broadcast %cst_22 : f32 to vector<64x64xf32>
    %52 = arith.subf %51, %15 : vector<64x64xf32>
    %53 = math.exp %52 : vector<64x64xf32>
    %cst_23 = arith.constant 1.000000e+00 : f32
    %54 = vector.broadcast %cst_23 : f32 to vector<64x64xf32>
    %55 = arith.addf %54, %53 : vector<64x64xf32>
    %56 = tpu.reciprocal %55 {approx = true} : vector<64x64xf32> -> vector<64x64xf32>
    %57 = arith.mulf %15, %56 : vector<64x64xf32>
    %cst_24 = arith.constant 0.000000e+00 : f32
    %58 = vector.broadcast %cst_24 : f32 to vector<8x64xf32>
    %cst_25 = arith.constant 0.000000e+00 : f32
    %59 = vector.broadcast %cst_25 : f32 to vector<8x64xf32>
    %cst_26 = arith.constant 0.000000e+00 : f32
    %60 = vector.broadcast %cst_26 : f32 to vector<8x64xf32>
    %cst_27 = arith.constant 0.000000e+00 : f32
    %61 = vector.broadcast %cst_27 : f32 to vector<8x64xf32>
    %62 = vector.extract_strided_slice %34 {offsets = [0, 0], sizes = [8, 64], strides = [1, 1]} : vector<64x64xf32> to vector<8x64xf32>
    %63 = vector.extract_strided_slice %50 {offsets = [0, 0], sizes = [8, 64], strides = [1, 1]} : vector<64x64xf32> to vector<8x64xf32>
    %64 = arith.mulf %63, %62 : vector<8x64xf32>
    %65 = vector.extract_strided_slice %37 {offsets = [0, 0], sizes = [8, 4], strides = [1, 1]} : vector<64x8xf32> to vector<8x4xf32>
    %66 = vector.extract_strided_slice %37 {offsets = [0, 4], sizes = [8, 4], strides = [1, 1]} : vector<64x8xf32> to vector<8x4xf32>
    %67 = vector.broadcast %6 : vector<1x64xf32> to vector<8x64xf32>
    %68 = arith.mulf %67, %62 : vector<8x64xf32>
    %69 = vector.extract_strided_slice %10 {offsets = [0, 0], sizes = [1, 64], strides = [1, 1]} : vector<4x64xf32> to vector<1x64xf32>
    %70 = vector.broadcast %69 : vector<1x64xf32> to vector<8x64xf32>
    %71 = arith.mulf %63, %70 : vector<8x64xf32>
    %72 = math.exp %71 : vector<8x64xf32>
    %73 = arith.mulf %72, %58 : vector<8x64xf32>
    %74 = vector.extract_strided_slice %65 {offsets = [0, 0], sizes = [8, 1], strides = [1, 1]} : vector<8x4xf32> to vector<8x1xf32>
    %75 = vector.broadcast %74 : vector<8x1xf32> to vector<8x64xf32>
    %76 = arith.mulf %64, %75 : vector<8x64xf32>
    %77 = arith.addf %73, %76 : vector<8x64xf32>
    %78 = vector.extract_strided_slice %66 {offsets = [0, 0], sizes = [8, 1], strides = [1, 1]} : vector<8x4xf32> to vector<8x1xf32>
    %79 = vector.broadcast %78 : vector<8x1xf32> to vector<8x64xf32>
    %80 = arith.mulf %77, %79 : vector<8x64xf32>
    %81 = arith.addf %68, %80 : vector<8x64xf32>
    %82 = vector.extract_strided_slice %10 {offsets = [1, 0], sizes = [1, 64], strides = [1, 1]} : vector<4x64xf32> to vector<1x64xf32>
    %83 = vector.broadcast %82 : vector<1x64xf32> to vector<8x64xf32>
    %84 = arith.mulf %63, %83 : vector<8x64xf32>
    %85 = math.exp %84 : vector<8x64xf32>
    %86 = arith.mulf %85, %59 : vector<8x64xf32>
    %87 = vector.extract_strided_slice %65 {offsets = [0, 1], sizes = [8, 1], strides = [1, 1]} : vector<8x4xf32> to vector<8x1xf32>
    %88 = vector.broadcast %87 : vector<8x1xf32> to vector<8x64xf32>
    %89 = arith.mulf %64, %88 : vector<8x64xf32>
    %90 = arith.addf %86, %89 : vector<8x64xf32>
    %91 = vector.extract_strided_slice %66 {offsets = [0, 1], sizes = [8, 1], strides = [1, 1]} : vector<8x4xf32> to vector<8x1xf32>
    %92 = vector.broadcast %91 : vector<8x1xf32> to vector<8x64xf32>
    %93 = arith.mulf %90, %92 : vector<8x64xf32>
    %94 = arith.addf %81, %93 : vector<8x64xf32>
    %95 = vector.extract_strided_slice %10 {offsets = [2, 0], sizes = [1, 64], strides = [1, 1]} : vector<4x64xf32> to vector<1x64xf32>
    %96 = vector.broadcast %95 : vector<1x64xf32> to vector<8x64xf32>
    %97 = arith.mulf %63, %96 : vector<8x64xf32>
    %98 = math.exp %97 : vector<8x64xf32>
    %99 = arith.mulf %98, %60 : vector<8x64xf32>
    %100 = vector.extract_strided_slice %65 {offsets = [0, 2], sizes = [8, 1], strides = [1, 1]} : vector<8x4xf32> to vector<8x1xf32>
    %101 = vector.broadcast %100 : vector<8x1xf32> to vector<8x64xf32>
    %102 = arith.mulf %64, %101 : vector<8x64xf32>
    %103 = arith.addf %99, %102 : vector<8x64xf32>
    %104 = vector.extract_strided_slice %66 {offsets = [0, 2], sizes = [8, 1], strides = [1, 1]} : vector<8x4xf32> to vector<8x1xf32>
    %105 = vector.broadcast %104 : vector<8x1xf32> to vector<8x64xf32>
    %106 = arith.mulf %103, %105 : vector<8x64xf32>
    %107 = arith.addf %94, %106 : vector<8x64xf32>
    %108 = vector.extract_strided_slice %10 {offsets = [3, 0], sizes = [1, 64], strides = [1, 1]} : vector<4x64xf32> to vector<1x64xf32>
    %109 = vector.broadcast %108 : vector<1x64xf32> to vector<8x64xf32>
    %110 = arith.mulf %63, %109 : vector<8x64xf32>
    %111 = math.exp %110 : vector<8x64xf32>
    %112 = arith.mulf %111, %61 : vector<8x64xf32>
    %113 = vector.extract_strided_slice %65 {offsets = [0, 3], sizes = [8, 1], strides = [1, 1]} : vector<8x4xf32> to vector<8x1xf32>
    %114 = vector.broadcast %113 : vector<8x1xf32> to vector<8x64xf32>
    %115 = arith.mulf %64, %114 : vector<8x64xf32>
    %116 = arith.addf %112, %115 : vector<8x64xf32>
    %117 = vector.extract_strided_slice %66 {offsets = [0, 3], sizes = [8, 1], strides = [1, 1]} : vector<8x4xf32> to vector<8x1xf32>
    %118 = vector.broadcast %117 : vector<8x1xf32> to vector<8x64xf32>
    %119 = arith.mulf %116, %118 : vector<8x64xf32>
    %120 = arith.addf %107, %119 : vector<8x64xf32>
    %121 = vector.extract_strided_slice %57 {offsets = [0, 0], sizes = [8, 64], strides = [1, 1]} : vector<64x64xf32> to vector<8x64xf32>
    %122 = arith.mulf %120, %121 : vector<8x64xf32>
    %c0_28 = arith.constant 0 : index
    %c0_29 = arith.constant 0 : index
    %123 = vector.load %arg13[%c0_28, %c0_29] : memref<64x64xf32, #tpu.memory_space<vmem>>, vector<8x64xf32>
    tpu.vector_store %arg13[%c0_28, %c0_29], %122 {strides = array<i32>} : memref<64x64xf32, #tpu.memory_space<vmem>>, vector<8x64xf32>,
    %124 = vector.extract_strided_slice %34 {offsets = [8, 0], sizes = [8, 64], strides = [1, 1]} : vector<64x64xf32> to vector<8x64xf32>
    %125 = vector.extract_strided_slice %50 {offsets = [8, 0], sizes = [8, 64], strides = [1, 1]} : vector<64x64xf32> to vector<8x64xf32>
    %126 = arith.mulf %125, %124 : vector<8x64xf32>
    %127 = vector.extract_strided_slice %37 {offsets = [8, 0], sizes = [8, 4], strides = [1, 1]} : vector<64x8xf32> to vector<8x4xf32>
    %128 = vector.extract_strided_slice %37 {offsets = [8, 4], sizes = [8, 4], strides = [1, 1]} : vector<64x8xf32> to vector<8x4xf32>
    %129 = vector.broadcast %6 : vector<1x64xf32> to vector<8x64xf32>
    %130 = arith.mulf %129, %124 : vector<8x64xf32>
    %131 = vector.extract_strided_slice %10 {offsets = [0, 0], sizes = [1, 64], strides = [1, 1]} : vector<4x64xf32> to vector<1x64xf32>
    %132 = vector.broadcast %131 : vector<1x64xf32> to vector<8x64xf32>
    %133 = arith.mulf %125, %132 : vector<8x64xf32>
    %134 = math.exp %133 : vector<8x64xf32>
    %135 = arith.mulf %134, %77 : vector<8x64xf32>
    %136 = vector.extract_strided_slice %127 {offsets = [0, 0], sizes = [8, 1], strides = [1, 1]} : vector<8x4xf32> to vector<8x1xf32>
    %137 = vector.broadcast %136 : vector<8x1xf32> to vector<8x64xf32>
    %138 = arith.mulf %126, %137 : vector<8x64xf32>
    %139 = arith.addf %135, %138 : vector<8x64xf32>
    %140 = vector.extract_strided_slice %128 {offsets = [0, 0], sizes = [8, 1], strides = [1, 1]} : vector<8x4xf32> to vector<8x1xf32>
    %141 = vector.broadcast %140 : vector<8x1xf32> to vector<8x64xf32>
    %142 = arith.mulf %139, %141 : vector<8x64xf32>
    %143 = arith.addf %130, %142 : vector<8x64xf32>
    %144 = vector.extract_strided_slice %10 {offsets = [1, 0], sizes = [1, 64], strides = [1, 1]} : vector<4x64xf32> to vector<1x64xf32>
    %145 = vector.broadcast %144 : vector<1x64xf32> to vector<8x64xf32>
    %146 = arith.mulf %125, %145 : vector<8x64xf32>
    %147 = math.exp %146 : vector<8x64xf32>
    %148 = arith.mulf %147, %90 : vector<8x64xf32>
    %149 = vector.extract_strided_slice %127 {offsets = [0, 1], sizes = [8, 1], strides = [1, 1]} : vector<8x4xf32> to vector<8x1xf32>
    %150 = vector.broadcast %149 : vector<8x1xf32> to vector<8x64xf32>
    %151 = arith.mulf %126, %150 : vector<8x64xf32>
    %152 = arith.addf %148, %151 : vector<8x64xf32>
    %153 = vector.extract_strided_slice %128 {offsets = [0, 1], sizes = [8, 1], strides = [1, 1]} : vector<8x4xf32> to vector<8x1xf32>
    %154 = vector.broadcast %153 : vector<8x1xf32> to vector<8x64xf32>
    %155 = arith.mulf %152, %154 : vector<8x64xf32>
    %156 = arith.addf %143, %155 : vector<8x64xf32>
    %157 = vector.extract_strided_slice %10 {offsets = [2, 0], sizes = [1, 64], strides = [1, 1]} : vector<4x64xf32> to vector<1x64xf32>
    %158 = vector.broadcast %157 : vector<1x64xf32> to vector<8x64xf32>
    %159 = arith.mulf %125, %158 : vector<8x64xf32>
    %160 = math.exp %159 : vector<8x64xf32>
    %161 = arith.mulf %160, %103 : vector<8x64xf32>
    %162 = vector.extract_strided_slice %127 {offsets = [0, 2], sizes = [8, 1], strides = [1, 1]} : vector<8x4xf32> to vector<8x1xf32>
    %163 = vector.broadcast %162 : vector<8x1xf32> to vector<8x64xf32>
    %164 = arith.mulf %126, %163 : vector<8x64xf32>
    %165 = arith.addf %161, %164 : vector<8x64xf32>
    %166 = vector.extract_strided_slice %128 {offsets = [0, 2], sizes = [8, 1], strides = [1, 1]} : vector<8x4xf32> to vector<8x1xf32>
    %167 = vector.broadcast %166 : vector<8x1xf32> to vector<8x64xf32>
    %168 = arith.mulf %165, %167 : vector<8x64xf32>
    %169 = arith.addf %156, %168 : vector<8x64xf32>
    %170 = vector.extract_strided_slice %10 {offsets = [3, 0], sizes = [1, 64], strides = [1, 1]} : vector<4x64xf32> to vector<1x64xf32>
    %171 = vector.broadcast %170 : vector<1x64xf32> to vector<8x64xf32>
    %172 = arith.mulf %125, %171 : vector<8x64xf32>
    %173 = math.exp %172 : vector<8x64xf32>
    %174 = arith.mulf %173, %116 : vector<8x64xf32>
    %175 = vector.extract_strided_slice %127 {offsets = [0, 3], sizes = [8, 1], strides = [1, 1]} : vector<8x4xf32> to vector<8x1xf32>
    %176 = vector.broadcast %175 : vector<8x1xf32> to vector<8x64xf32>
    %177 = arith.mulf %126, %176 : vector<8x64xf32>
    %178 = arith.addf %174, %177 : vector<8x64xf32>
    %179 = vector.extract_strided_slice %128 {offsets = [0, 3], sizes = [8, 1], strides = [1, 1]} : vector<8x4xf32> to vector<8x1xf32>
    %180 = vector.broadcast %179 : vector<8x1xf32> to vector<8x64xf32>
    %181 = arith.mulf %178, %180 : vector<8x64xf32>
    %182 = arith.addf %169, %181 : vector<8x64xf32>
    %183 = vector.extract_strided_slice %57 {offsets = [8, 0], sizes = [8, 64], strides = [1, 1]} : vector<64x64xf32> to vector<8x64xf32>
    %184 = arith.mulf %182, %183 : vector<8x64xf32>
    %c8 = arith.constant 8 : index
    %c0_30 = arith.constant 0 : index
    %185 = vector.load %arg13[%c8, %c0_30] : memref<64x64xf32, #tpu.memory_space<vmem>>, vector<8x64xf32>
    tpu.vector_store %arg13[%c8, %c0_30], %184 {strides = array<i32>} : memref<64x64xf32, #tpu.memory_space<vmem>>, vector<8x64xf32>,
    %186 = vector.extract_strided_slice %34 {offsets = [16, 0], sizes = [8, 64], strides = [1, 1]} : vector<64x64xf32> to vector<8x64xf32>
    %187 = vector.extract_strided_slice %50 {offsets = [16, 0], sizes = [8, 64], strides = [1, 1]} : vector<64x64xf32> to vector<8x64xf32>
    %188 = arith.mulf %187, %186 : vector<8x64xf32>
    %189 = vector.extract_strided_slice %37 {offsets = [16, 0], sizes = [8, 4], strides = [1, 1]} : vector<64x8xf32> to vector<8x4xf32>
    %190 = vector.extract_strided_slice %37 {offsets = [16, 4], sizes = [8, 4], strides = [1, 1]} : vector<64x8xf32> to vector<8x4xf32>
    %191 = vector.broadcast %6 : vector<1x64xf32> to vector<8x64xf32>
    %192 = arith.mulf %191, %186 : vector<8x64xf32>
    %193 = vector.extract_strided_slice %10 {offsets = [0, 0], sizes = [1, 64], strides = [1, 1]} : vector<4x64xf32> to vector<1x64xf32>
    %194 = vector.broadcast %193 : vector<1x64xf32> to vector<8x64xf32>
    %195 = arith.mulf %187, %194 : vector<8x64xf32>
    %196 = math.exp %195 : vector<8x64xf32>
    %197 = arith.mulf %196, %139 : vector<8x64xf32>
    %198 = vector.extract_strided_slice %189 {offsets = [0, 0], sizes = [8, 1], strides = [1, 1]} : vector<8x4xf32> to vector<8x1xf32>
    %199 = vector.broadcast %198 : vector<8x1xf32> to vector<8x64xf32>
    %200 = arith.mulf %188, %199 : vector<8x64xf32>
    %201 = arith.addf %197, %200 : vector<8x64xf32>
    %202 = vector.extract_strided_slice %190 {offsets = [0, 0], sizes = [8, 1], strides = [1, 1]} : vector<8x4xf32> to vector<8x1xf32>
    %203 = vector.broadcast %202 : vector<8x1xf32> to vector<8x64xf32>
    %204 = arith.mulf %201, %203 : vector<8x64xf32>
    %205 = arith.addf %192, %204 : vector<8x64xf32>
    %206 = vector.extract_strided_slice %10 {offsets = [1, 0], sizes = [1, 64], strides = [1, 1]} : vector<4x64xf32> to vector<1x64xf32>
    %207 = vector.broadcast %206 : vector<1x64xf32> to vector<8x64xf32>
    %208 = arith.mulf %187, %207 : vector<8x64xf32>
    %209 = math.exp %208 : vector<8x64xf32>
    %210 = arith.mulf %209, %152 : vector<8x64xf32>
    %211 = vector.extract_strided_slice %189 {offsets = [0, 1], sizes = [8, 1], strides = [1, 1]} : vector<8x4xf32> to vector<8x1xf32>
    %212 = vector.broadcast %211 : vector<8x1xf32> to vector<8x64xf32>
    %213 = arith.mulf %188, %212 : vector<8x64xf32>
    %214 = arith.addf %210, %213 : vector<8x64xf32>
    %215 = vector.extract_strided_slice %190 {offsets = [0, 1], sizes = [8, 1], strides = [1, 1]} : vector<8x4xf32> to vector<8x1xf32>
    %216 = vector.broadcast %215 : vector<8x1xf32> to vector<8x64xf32>
    %217 = arith.mulf %214, %216 : vector<8x64xf32>
    %218 = arith.addf %205, %217 : vector<8x64xf32>
    %219 = vector.extract_strided_slice %10 {offsets = [2, 0], sizes = [1, 64], strides = [1, 1]} : vector<4x64xf32> to vector<1x64xf32>
    %220 = vector.broadcast %219 : vector<1x64xf32> to vector<8x64xf32>
    %221 = arith.mulf %187, %220 : vector<8x64xf32>
    %222 = math.exp %221 : vector<8x64xf32>
    %223 = arith.mulf %222, %165 : vector<8x64xf32>
    %224 = vector.extract_strided_slice %189 {offsets = [0, 2], sizes = [8, 1], strides = [1, 1]} : vector<8x4xf32> to vector<8x1xf32>
    %225 = vector.broadcast %224 : vector<8x1xf32> to vector<8x64xf32>
    %226 = arith.mulf %188, %225 : vector<8x64xf32>
    %227 = arith.addf %223, %226 : vector<8x64xf32>
    %228 = vector.extract_strided_slice %190 {offsets = [0, 2], sizes = [8, 1], strides = [1, 1]} : vector<8x4xf32> to vector<8x1xf32>
    %229 = vector.broadcast %228 : vector<8x1xf32> to vector<8x64xf32>
    %230 = arith.mulf %227, %229 : vector<8x64xf32>
    %231 = arith.addf %218, %230 : vector<8x64xf32>
    %232 = vector.extract_strided_slice %10 {offsets = [3, 0], sizes = [1, 64], strides = [1, 1]} : vector<4x64xf32> to vector<1x64xf32>
    %233 = vector.broadcast %232 : vector<1x64xf32> to vector<8x64xf32>
    %234 = arith.mulf %187, %233 : vector<8x64xf32>
    %235 = math.exp %234 : vector<8x64xf32>
    %236 = arith.mulf %235, %178 : vector<8x64xf32>
    %237 = vector.extract_strided_slice %189 {offsets = [0, 3], sizes = [8, 1], strides = [1, 1]} : vector<8x4xf32> to vector<8x1xf32>
    %238 = vector.broadcast %237 : vector<8x1xf32> to vector<8x64xf32>
    %239 = arith.mulf %188, %238 : vector<8x64xf32>
    %240 = arith.addf %236, %239 : vector<8x64xf32>
    %241 = vector.extract_strided_slice %190 {offsets = [0, 3], sizes = [8, 1], strides = [1, 1]} : vector<8x4xf32> to vector<8x1xf32>
    %242 = vector.broadcast %241 : vector<8x1xf32> to vector<8x64xf32>
    %243 = arith.mulf %240, %242 : vector<8x64xf32>
    %244 = arith.addf %231, %243 : vector<8x64xf32>
    %245 = vector.extract_strided_slice %57 {offsets = [16, 0], sizes = [8, 64], strides = [1, 1]} : vector<64x64xf32> to vector<8x64xf32>
    %246 = arith.mulf %244, %245 : vector<8x64xf32>
    %c16 = arith.constant 16 : index
    %c0_31 = arith.constant 0 : index
    %247 = vector.load %arg13[%c16, %c0_31] : memref<64x64xf32, #tpu.memory_space<vmem>>, vector<8x64xf32>
    tpu.vector_store %arg13[%c16, %c0_31], %246 {strides = array<i32>} : memref<64x64xf32, #tpu.memory_space<vmem>>, vector<8x64xf32>,
    %248 = vector.extract_strided_slice %34 {offsets = [24, 0], sizes = [8, 64], strides = [1, 1]} : vector<64x64xf32> to vector<8x64xf32>
    %249 = vector.extract_strided_slice %50 {offsets = [24, 0], sizes = [8, 64], strides = [1, 1]} : vector<64x64xf32> to vector<8x64xf32>
    %250 = arith.mulf %249, %248 : vector<8x64xf32>
    %251 = vector.extract_strided_slice %37 {offsets = [24, 0], sizes = [8, 4], strides = [1, 1]} : vector<64x8xf32> to vector<8x4xf32>
    %252 = vector.extract_strided_slice %37 {offsets = [24, 4], sizes = [8, 4], strides = [1, 1]} : vector<64x8xf32> to vector<8x4xf32>
    %253 = vector.broadcast %6 : vector<1x64xf32> to vector<8x64xf32>
    %254 = arith.mulf %253, %248 : vector<8x64xf32>
    %255 = vector.extract_strided_slice %10 {offsets = [0, 0], sizes = [1, 64], strides = [1, 1]} : vector<4x64xf32> to vector<1x64xf32>
    %256 = vector.broadcast %255 : vector<1x64xf32> to vector<8x64xf32>
    %257 = arith.mulf %249, %256 : vector<8x64xf32>
    %258 = math.exp %257 : vector<8x64xf32>
    %259 = arith.mulf %258, %201 : vector<8x64xf32>
    %260 = vector.extract_strided_slice %251 {offsets = [0, 0], sizes = [8, 1], strides = [1, 1]} : vector<8x4xf32> to vector<8x1xf32>
    %261 = vector.broadcast %260 : vector<8x1xf32> to vector<8x64xf32>
    %262 = arith.mulf %250, %261 : vector<8x64xf32>
    %263 = arith.addf %259, %262 : vector<8x64xf32>
    %264 = vector.extract_strided_slice %252 {offsets = [0, 0], sizes = [8, 1], strides = [1, 1]} : vector<8x4xf32> to vector<8x1xf32>
    %265 = vector.broadcast %264 : vector<8x1xf32> to vector<8x64xf32>
    %266 = arith.mulf %263, %265 : vector<8x64xf32>
    %267 = arith.addf %254, %266 : vector<8x64xf32>
    %268 = vector.extract_strided_slice %10 {offsets = [1, 0], sizes = [1, 64], strides = [1, 1]} : vector<4x64xf32> to vector<1x64xf32>
    %269 = vector.broadcast %268 : vector<1x64xf32> to vector<8x64xf32>
    %270 = arith.mulf %249, %269 : vector<8x64xf32>
    %271 = math.exp %270 : vector<8x64xf32>
    %272 = arith.mulf %271, %214 : vector<8x64xf32>
    %273 = vector.extract_strided_slice %251 {offsets = [0, 1], sizes = [8, 1], strides = [1, 1]} : vector<8x4xf32> to vector<8x1xf32>
    %274 = vector.broadcast %273 : vector<8x1xf32> to vector<8x64xf32>
    %275 = arith.mulf %250, %274 : vector<8x64xf32>
    %276 = arith.addf %272, %275 : vector<8x64xf32>
    %277 = vector.extract_strided_slice %252 {offsets = [0, 1], sizes = [8, 1], strides = [1, 1]} : vector<8x4xf32> to vector<8x1xf32>
    %278 = vector.broadcast %277 : vector<8x1xf32> to vector<8x64xf32>
    %279 = arith.mulf %276, %278 : vector<8x64xf32>
    %280 = arith.addf %267, %279 : vector<8x64xf32>
    %281 = vector.extract_strided_slice %10 {offsets = [2, 0], sizes = [1, 64], strides = [1, 1]} : vector<4x64xf32> to vector<1x64xf32>
    %282 = vector.broadcast %281 : vector<1x64xf32> to vector<8x64xf32>
    %283 = arith.mulf %249, %282 : vector<8x64xf32>
    %284 = math.exp %283 : vector<8x64xf32>
    %285 = arith.mulf %284, %227 : vector<8x64xf32>
    %286 = vector.extract_strided_slice %251 {offsets = [0, 2], sizes = [8, 1], strides = [1, 1]} : vector<8x4xf32> to vector<8x1xf32>
    %287 = vector.broadcast %286 : vector<8x1xf32> to vector<8x64xf32>
    %288 = arith.mulf %250, %287 : vector<8x64xf32>
    %289 = arith.addf %285, %288 : vector<8x64xf32>
    %290 = vector.extract_strided_slice %252 {offsets = [0, 2], sizes = [8, 1], strides = [1, 1]} : vector<8x4xf32> to vector<8x1xf32>
    %291 = vector.broadcast %290 : vector<8x1xf32> to vector<8x64xf32>
    %292 = arith.mulf %289, %291 : vector<8x64xf32>
    %293 = arith.addf %280, %292 : vector<8x64xf32>
    %294 = vector.extract_strided_slice %10 {offsets = [3, 0], sizes = [1, 64], strides = [1, 1]} : vector<4x64xf32> to vector<1x64xf32>
    %295 = vector.broadcast %294 : vector<1x64xf32> to vector<8x64xf32>
    %296 = arith.mulf %249, %295 : vector<8x64xf32>
    %297 = math.exp %296 : vector<8x64xf32>
    %298 = arith.mulf %297, %240 : vector<8x64xf32>
    %299 = vector.extract_strided_slice %251 {offsets = [0, 3], sizes = [8, 1], strides = [1, 1]} : vector<8x4xf32> to vector<8x1xf32>
    %300 = vector.broadcast %299 : vector<8x1xf32> to vector<8x64xf32>
    %301 = arith.mulf %250, %300 : vector<8x64xf32>
    %302 = arith.addf %298, %301 : vector<8x64xf32>
    %303 = vector.extract_strided_slice %252 {offsets = [0, 3], sizes = [8, 1], strides = [1, 1]} : vector<8x4xf32> to vector<8x1xf32>
    %304 = vector.broadcast %303 : vector<8x1xf32> to vector<8x64xf32>
    %305 = arith.mulf %302, %304 : vector<8x64xf32>
    %306 = arith.addf %293, %305 : vector<8x64xf32>
    %307 = vector.extract_strided_slice %57 {offsets = [24, 0], sizes = [8, 64], strides = [1, 1]} : vector<64x64xf32> to vector<8x64xf32>
    %308 = arith.mulf %306, %307 : vector<8x64xf32>
    %c24 = arith.constant 24 : index
    %c0_32 = arith.constant 0 : index
    %309 = vector.load %arg13[%c24, %c0_32] : memref<64x64xf32, #tpu.memory_space<vmem>>, vector<8x64xf32>
    tpu.vector_store %arg13[%c24, %c0_32], %308 {strides = array<i32>} : memref<64x64xf32, #tpu.memory_space<vmem>>, vector<8x64xf32>,
    %310 = vector.extract_strided_slice %34 {offsets = [32, 0], sizes = [8, 64], strides = [1, 1]} : vector<64x64xf32> to vector<8x64xf32>
    %311 = vector.extract_strided_slice %50 {offsets = [32, 0], sizes = [8, 64], strides = [1, 1]} : vector<64x64xf32> to vector<8x64xf32>
    %312 = arith.mulf %311, %310 : vector<8x64xf32>
    %313 = vector.extract_strided_slice %37 {offsets = [32, 0], sizes = [8, 4], strides = [1, 1]} : vector<64x8xf32> to vector<8x4xf32>
    %314 = vector.extract_strided_slice %37 {offsets = [32, 4], sizes = [8, 4], strides = [1, 1]} : vector<64x8xf32> to vector<8x4xf32>
    %315 = vector.broadcast %6 : vector<1x64xf32> to vector<8x64xf32>
    %316 = arith.mulf %315, %310 : vector<8x64xf32>
    %317 = vector.extract_strided_slice %10 {offsets = [0, 0], sizes = [1, 64], strides = [1, 1]} : vector<4x64xf32> to vector<1x64xf32>
    %318 = vector.broadcast %317 : vector<1x64xf32> to vector<8x64xf32>
    %319 = arith.mulf %311, %318 : vector<8x64xf32>
    %320 = math.exp %319 : vector<8x64xf32>
    %321 = arith.mulf %320, %263 : vector<8x64xf32>
    %322 = vector.extract_strided_slice %313 {offsets = [0, 0], sizes = [8, 1], strides = [1, 1]} : vector<8x4xf32> to vector<8x1xf32>
    %323 = vector.broadcast %322 : vector<8x1xf32> to vector<8x64xf32>
    %324 = arith.mulf %312, %323 : vector<8x64xf32>
    %325 = arith.addf %321, %324 : vector<8x64xf32>
    %326 = vector.extract_strided_slice %314 {offsets = [0, 0], sizes = [8, 1], strides = [1, 1]} : vector<8x4xf32> to vector<8x1xf32>
    %327 = vector.broadcast %326 : vector<8x1xf32> to vector<8x64xf32>
    %328 = arith.mulf %325, %327 : vector<8x64xf32>
    %329 = arith.addf %316, %328 : vector<8x64xf32>
    %330 = vector.extract_strided_slice %10 {offsets = [1, 0], sizes = [1, 64], strides = [1, 1]} : vector<4x64xf32> to vector<1x64xf32>
    %331 = vector.broadcast %330 : vector<1x64xf32> to vector<8x64xf32>
    %332 = arith.mulf %311, %331 : vector<8x64xf32>
    %333 = math.exp %332 : vector<8x64xf32>
    %334 = arith.mulf %333, %276 : vector<8x64xf32>
    %335 = vector.extract_strided_slice %313 {offsets = [0, 1], sizes = [8, 1], strides = [1, 1]} : vector<8x4xf32> to vector<8x1xf32>
    %336 = vector.broadcast %335 : vector<8x1xf32> to vector<8x64xf32>
    %337 = arith.mulf %312, %336 : vector<8x64xf32>
    %338 = arith.addf %334, %337 : vector<8x64xf32>
    %339 = vector.extract_strided_slice %314 {offsets = [0, 1], sizes = [8, 1], strides = [1, 1]} : vector<8x4xf32> to vector<8x1xf32>
    %340 = vector.broadcast %339 : vector<8x1xf32> to vector<8x64xf32>
    %341 = arith.mulf %338, %340 : vector<8x64xf32>
    %342 = arith.addf %329, %341 : vector<8x64xf32>
    %343 = vector.extract_strided_slice %10 {offsets = [2, 0], sizes = [1, 64], strides = [1, 1]} : vector<4x64xf32> to vector<1x64xf32>
    %344 = vector.broadcast %343 : vector<1x64xf32> to vector<8x64xf32>
    %345 = arith.mulf %311, %344 : vector<8x64xf32>
    %346 = math.exp %345 : vector<8x64xf32>
    %347 = arith.mulf %346, %289 : vector<8x64xf32>
    %348 = vector.extract_strided_slice %313 {offsets = [0, 2], sizes = [8, 1], strides = [1, 1]} : vector<8x4xf32> to vector<8x1xf32>
    %349 = vector.broadcast %348 : vector<8x1xf32> to vector<8x64xf32>
    %350 = arith.mulf %312, %349 : vector<8x64xf32>
    %351 = arith.addf %347, %350 : vector<8x64xf32>
    %352 = vector.extract_strided_slice %314 {offsets = [0, 2], sizes = [8, 1], strides = [1, 1]} : vector<8x4xf32> to vector<8x1xf32>
    %353 = vector.broadcast %352 : vector<8x1xf32> to vector<8x64xf32>
    %354 = arith.mulf %351, %353 : vector<8x64xf32>
    %355 = arith.addf %342, %354 : vector<8x64xf32>
    %356 = vector.extract_strided_slice %10 {offsets = [3, 0], sizes = [1, 64], strides = [1, 1]} : vector<4x64xf32> to vector<1x64xf32>
    %357 = vector.broadcast %356 : vector<1x64xf32> to vector<8x64xf32>
    %358 = arith.mulf %311, %357 : vector<8x64xf32>
    %359 = math.exp %358 : vector<8x64xf32>
    %360 = arith.mulf %359, %302 : vector<8x64xf32>
    %361 = vector.extract_strided_slice %313 {offsets = [0, 3], sizes = [8, 1], strides = [1, 1]} : vector<8x4xf32> to vector<8x1xf32>
    %362 = vector.broadcast %361 : vector<8x1xf32> to vector<8x64xf32>
    %363 = arith.mulf %312, %362 : vector<8x64xf32>
    %364 = arith.addf %360, %363 : vector<8x64xf32>
    %365 = vector.extract_strided_slice %314 {offsets = [0, 3], sizes = [8, 1], strides = [1, 1]} : vector<8x4xf32> to vector<8x1xf32>
    %366 = vector.broadcast %365 : vector<8x1xf32> to vector<8x64xf32>
    %367 = arith.mulf %364, %366 : vector<8x64xf32>
    %368 = arith.addf %355, %367 : vector<8x64xf32>
    %369 = vector.extract_strided_slice %57 {offsets = [32, 0], sizes = [8, 64], strides = [1, 1]} : vector<64x64xf32> to vector<8x64xf32>
    %370 = arith.mulf %368, %369 : vector<8x64xf32>
    %c32 = arith.constant 32 : index
    %c0_33 = arith.constant 0 : index
    %371 = vector.load %arg13[%c32, %c0_33] : memref<64x64xf32, #tpu.memory_space<vmem>>, vector<8x64xf32>
    tpu.vector_store %arg13[%c32, %c0_33], %370 {strides = array<i32>} : memref<64x64xf32, #tpu.memory_space<vmem>>, vector<8x64xf32>,
    %372 = vector.extract_strided_slice %34 {offsets = [40, 0], sizes = [8, 64], strides = [1, 1]} : vector<64x64xf32> to vector<8x64xf32>
    %373 = vector.extract_strided_slice %50 {offsets = [40, 0], sizes = [8, 64], strides = [1, 1]} : vector<64x64xf32> to vector<8x64xf32>
    %374 = arith.mulf %373, %372 : vector<8x64xf32>
    %375 = vector.extract_strided_slice %37 {offsets = [40, 0], sizes = [8, 4], strides = [1, 1]} : vector<64x8xf32> to vector<8x4xf32>
    %376 = vector.extract_strided_slice %37 {offsets = [40, 4], sizes = [8, 4], strides = [1, 1]} : vector<64x8xf32> to vector<8x4xf32>
    %377 = vector.broadcast %6 : vector<1x64xf32> to vector<8x64xf32>
    %378 = arith.mulf %377, %372 : vector<8x64xf32>
    %379 = vector.extract_strided_slice %10 {offsets = [0, 0], sizes = [1, 64], strides = [1, 1]} : vector<4x64xf32> to vector<1x64xf32>
    %380 = vector.broadcast %379 : vector<1x64xf32> to vector<8x64xf32>
    %381 = arith.mulf %373, %380 : vector<8x64xf32>
    %382 = math.exp %381 : vector<8x64xf32>
    %383 = arith.mulf %382, %325 : vector<8x64xf32>
    %384 = vector.extract_strided_slice %375 {offsets = [0, 0], sizes = [8, 1], strides = [1, 1]} : vector<8x4xf32> to vector<8x1xf32>
    %385 = vector.broadcast %384 : vector<8x1xf32> to vector<8x64xf32>
    %386 = arith.mulf %374, %385 : vector<8x64xf32>
    %387 = arith.addf %383, %386 : vector<8x64xf32>
    %388 = vector.extract_strided_slice %376 {offsets = [0, 0], sizes = [8, 1], strides = [1, 1]} : vector<8x4xf32> to vector<8x1xf32>
    %389 = vector.broadcast %388 : vector<8x1xf32> to vector<8x64xf32>
    %390 = arith.mulf %387, %389 : vector<8x64xf32>
    %391 = arith.addf %378, %390 : vector<8x64xf32>
    %392 = vector.extract_strided_slice %10 {offsets = [1, 0], sizes = [1, 64], strides = [1, 1]} : vector<4x64xf32> to vector<1x64xf32>
    %393 = vector.broadcast %392 : vector<1x64xf32> to vector<8x64xf32>
    %394 = arith.mulf %373, %393 : vector<8x64xf32>
    %395 = math.exp %394 : vector<8x64xf32>
    %396 = arith.mulf %395, %338 : vector<8x64xf32>
    %397 = vector.extract_strided_slice %375 {offsets = [0, 1], sizes = [8, 1], strides = [1, 1]} : vector<8x4xf32> to vector<8x1xf32>
    %398 = vector.broadcast %397 : vector<8x1xf32> to vector<8x64xf32>
    %399 = arith.mulf %374, %398 : vector<8x64xf32>
    %400 = arith.addf %396, %399 : vector<8x64xf32>
    %401 = vector.extract_strided_slice %376 {offsets = [0, 1], sizes = [8, 1], strides = [1, 1]} : vector<8x4xf32> to vector<8x1xf32>
    %402 = vector.broadcast %401 : vector<8x1xf32> to vector<8x64xf32>
    %403 = arith.mulf %400, %402 : vector<8x64xf32>
    %404 = arith.addf %391, %403 : vector<8x64xf32>
    %405 = vector.extract_strided_slice %10 {offsets = [2, 0], sizes = [1, 64], strides = [1, 1]} : vector<4x64xf32> to vector<1x64xf32>
    %406 = vector.broadcast %405 : vector<1x64xf32> to vector<8x64xf32>
    %407 = arith.mulf %373, %406 : vector<8x64xf32>
    %408 = math.exp %407 : vector<8x64xf32>
    %409 = arith.mulf %408, %351 : vector<8x64xf32>
    %410 = vector.extract_strided_slice %375 {offsets = [0, 2], sizes = [8, 1], strides = [1, 1]} : vector<8x4xf32> to vector<8x1xf32>
    %411 = vector.broadcast %410 : vector<8x1xf32> to vector<8x64xf32>
    %412 = arith.mulf %374, %411 : vector<8x64xf32>
    %413 = arith.addf %409, %412 : vector<8x64xf32>
    %414 = vector.extract_strided_slice %376 {offsets = [0, 2], sizes = [8, 1], strides = [1, 1]} : vector<8x4xf32> to vector<8x1xf32>
    %415 = vector.broadcast %414 : vector<8x1xf32> to vector<8x64xf32>
    %416 = arith.mulf %413, %415 : vector<8x64xf32>
    %417 = arith.addf %404, %416 : vector<8x64xf32>
    %418 = vector.extract_strided_slice %10 {offsets = [3, 0], sizes = [1, 64], strides = [1, 1]} : vector<4x64xf32> to vector<1x64xf32>
    %419 = vector.broadcast %418 : vector<1x64xf32> to vector<8x64xf32>
    %420 = arith.mulf %373, %419 : vector<8x64xf32>
    %421 = math.exp %420 : vector<8x64xf32>
    %422 = arith.mulf %421, %364 : vector<8x64xf32>
    %423 = vector.extract_strided_slice %375 {offsets = [0, 3], sizes = [8, 1], strides = [1, 1]} : vector<8x4xf32> to vector<8x1xf32>
    %424 = vector.broadcast %423 : vector<8x1xf32> to vector<8x64xf32>
    %425 = arith.mulf %374, %424 : vector<8x64xf32>
    %426 = arith.addf %422, %425 : vector<8x64xf32>
    %427 = vector.extract_strided_slice %376 {offsets = [0, 3], sizes = [8, 1], strides = [1, 1]} : vector<8x4xf32> to vector<8x1xf32>
    %428 = vector.broadcast %427 : vector<8x1xf32> to vector<8x64xf32>
    %429 = arith.mulf %426, %428 : vector<8x64xf32>
    %430 = arith.addf %417, %429 : vector<8x64xf32>
    %431 = vector.extract_strided_slice %57 {offsets = [40, 0], sizes = [8, 64], strides = [1, 1]} : vector<64x64xf32> to vector<8x64xf32>
    %432 = arith.mulf %430, %431 : vector<8x64xf32>
    %c40 = arith.constant 40 : index
    %c0_34 = arith.constant 0 : index
    %433 = vector.load %arg13[%c40, %c0_34] : memref<64x64xf32, #tpu.memory_space<vmem>>, vector<8x64xf32>
    tpu.vector_store %arg13[%c40, %c0_34], %432 {strides = array<i32>} : memref<64x64xf32, #tpu.memory_space<vmem>>, vector<8x64xf32>,
    %434 = vector.extract_strided_slice %34 {offsets = [48, 0], sizes = [8, 64], strides = [1, 1]} : vector<64x64xf32> to vector<8x64xf32>
    %435 = vector.extract_strided_slice %50 {offsets = [48, 0], sizes = [8, 64], strides = [1, 1]} : vector<64x64xf32> to vector<8x64xf32>
    %436 = arith.mulf %435, %434 : vector<8x64xf32>
    %437 = vector.extract_strided_slice %37 {offsets = [48, 0], sizes = [8, 4], strides = [1, 1]} : vector<64x8xf32> to vector<8x4xf32>
    %438 = vector.extract_strided_slice %37 {offsets = [48, 4], sizes = [8, 4], strides = [1, 1]} : vector<64x8xf32> to vector<8x4xf32>
    %439 = vector.broadcast %6 : vector<1x64xf32> to vector<8x64xf32>
    %440 = arith.mulf %439, %434 : vector<8x64xf32>
    %441 = vector.extract_strided_slice %10 {offsets = [0, 0], sizes = [1, 64], strides = [1, 1]} : vector<4x64xf32> to vector<1x64xf32>
    %442 = vector.broadcast %441 : vector<1x64xf32> to vector<8x64xf32>
    %443 = arith.mulf %435, %442 : vector<8x64xf32>
    %444 = math.exp %443 : vector<8x64xf32>
    %445 = arith.mulf %444, %387 : vector<8x64xf32>
    %446 = vector.extract_strided_slice %437 {offsets = [0, 0], sizes = [8, 1], strides = [1, 1]} : vector<8x4xf32> to vector<8x1xf32>
    %447 = vector.broadcast %446 : vector<8x1xf32> to vector<8x64xf32>
    %448 = arith.mulf %436, %447 : vector<8x64xf32>
    %449 = arith.addf %445, %448 : vector<8x64xf32>
    %450 = vector.extract_strided_slice %438 {offsets = [0, 0], sizes = [8, 1], strides = [1, 1]} : vector<8x4xf32> to vector<8x1xf32>
    %451 = vector.broadcast %450 : vector<8x1xf32> to vector<8x64xf32>
    %452 = arith.mulf %449, %451 : vector<8x64xf32>
    %453 = arith.addf %440, %452 : vector<8x64xf32>
    %454 = vector.extract_strided_slice %10 {offsets = [1, 0], sizes = [1, 64], strides = [1, 1]} : vector<4x64xf32> to vector<1x64xf32>
    %455 = vector.broadcast %454 : vector<1x64xf32> to vector<8x64xf32>
    %456 = arith.mulf %435, %455 : vector<8x64xf32>
    %457 = math.exp %456 : vector<8x64xf32>
    %458 = arith.mulf %457, %400 : vector<8x64xf32>
    %459 = vector.extract_strided_slice %437 {offsets = [0, 1], sizes = [8, 1], strides = [1, 1]} : vector<8x4xf32> to vector<8x1xf32>
    %460 = vector.broadcast %459 : vector<8x1xf32> to vector<8x64xf32>
    %461 = arith.mulf %436, %460 : vector<8x64xf32>
    %462 = arith.addf %458, %461 : vector<8x64xf32>
    %463 = vector.extract_strided_slice %438 {offsets = [0, 1], sizes = [8, 1], strides = [1, 1]} : vector<8x4xf32> to vector<8x1xf32>
    %464 = vector.broadcast %463 : vector<8x1xf32> to vector<8x64xf32>
    %465 = arith.mulf %462, %464 : vector<8x64xf32>
    %466 = arith.addf %453, %465 : vector<8x64xf32>
    %467 = vector.extract_strided_slice %10 {offsets = [2, 0], sizes = [1, 64], strides = [1, 1]} : vector<4x64xf32> to vector<1x64xf32>
    %468 = vector.broadcast %467 : vector<1x64xf32> to vector<8x64xf32>
    %469 = arith.mulf %435, %468 : vector<8x64xf32>
    %470 = math.exp %469 : vector<8x64xf32>
    %471 = arith.mulf %470, %413 : vector<8x64xf32>
    %472 = vector.extract_strided_slice %437 {offsets = [0, 2], sizes = [8, 1], strides = [1, 1]} : vector<8x4xf32> to vector<8x1xf32>
    %473 = vector.broadcast %472 : vector<8x1xf32> to vector<8x64xf32>
    %474 = arith.mulf %436, %473 : vector<8x64xf32>
    %475 = arith.addf %471, %474 : vector<8x64xf32>
    %476 = vector.extract_strided_slice %438 {offsets = [0, 2], sizes = [8, 1], strides = [1, 1]} : vector<8x4xf32> to vector<8x1xf32>
    %477 = vector.broadcast %476 : vector<8x1xf32> to vector<8x64xf32>
    %478 = arith.mulf %475, %477 : vector<8x64xf32>
    %479 = arith.addf %466, %478 : vector<8x64xf32>
    %480 = vector.extract_strided_slice %10 {offsets = [3, 0], sizes = [1, 64], strides = [1, 1]} : vector<4x64xf32> to vector<1x64xf32>
    %481 = vector.broadcast %480 : vector<1x64xf32> to vector<8x64xf32>
    %482 = arith.mulf %435, %481 : vector<8x64xf32>
    %483 = math.exp %482 : vector<8x64xf32>
    %484 = arith.mulf %483, %426 : vector<8x64xf32>
    %485 = vector.extract_strided_slice %437 {offsets = [0, 3], sizes = [8, 1], strides = [1, 1]} : vector<8x4xf32> to vector<8x1xf32>
    %486 = vector.broadcast %485 : vector<8x1xf32> to vector<8x64xf32>
    %487 = arith.mulf %436, %486 : vector<8x64xf32>
    %488 = arith.addf %484, %487 : vector<8x64xf32>
    %489 = vector.extract_strided_slice %438 {offsets = [0, 3], sizes = [8, 1], strides = [1, 1]} : vector<8x4xf32> to vector<8x1xf32>
    %490 = vector.broadcast %489 : vector<8x1xf32> to vector<8x64xf32>
    %491 = arith.mulf %488, %490 : vector<8x64xf32>
    %492 = arith.addf %479, %491 : vector<8x64xf32>
    %493 = vector.extract_strided_slice %57 {offsets = [48, 0], sizes = [8, 64], strides = [1, 1]} : vector<64x64xf32> to vector<8x64xf32>
    %494 = arith.mulf %492, %493 : vector<8x64xf32>
    %c48 = arith.constant 48 : index
    %c0_35 = arith.constant 0 : index
    %495 = vector.load %arg13[%c48, %c0_35] : memref<64x64xf32, #tpu.memory_space<vmem>>, vector<8x64xf32>
    tpu.vector_store %arg13[%c48, %c0_35], %494 {strides = array<i32>} : memref<64x64xf32, #tpu.memory_space<vmem>>, vector<8x64xf32>,
    %496 = vector.extract_strided_slice %34 {offsets = [56, 0], sizes = [8, 64], strides = [1, 1]} : vector<64x64xf32> to vector<8x64xf32>
    %497 = vector.extract_strided_slice %50 {offsets = [56, 0], sizes = [8, 64], strides = [1, 1]} : vector<64x64xf32> to vector<8x64xf32>
    %498 = arith.mulf %497, %496 : vector<8x64xf32>
    %499 = vector.extract_strided_slice %37 {offsets = [56, 0], sizes = [8, 4], strides = [1, 1]} : vector<64x8xf32> to vector<8x4xf32>
    %500 = vector.extract_strided_slice %37 {offsets = [56, 4], sizes = [8, 4], strides = [1, 1]} : vector<64x8xf32> to vector<8x4xf32>
    %501 = vector.broadcast %6 : vector<1x64xf32> to vector<8x64xf32>
    %502 = arith.mulf %501, %496 : vector<8x64xf32>
    %503 = vector.extract_strided_slice %10 {offsets = [0, 0], sizes = [1, 64], strides = [1, 1]} : vector<4x64xf32> to vector<1x64xf32>
    %504 = vector.broadcast %503 : vector<1x64xf32> to vector<8x64xf32>
    %505 = arith.mulf %497, %504 : vector<8x64xf32>
    %506 = math.exp %505 : vector<8x64xf32>
    %507 = arith.mulf %506, %449 : vector<8x64xf32>
    %508 = vector.extract_strided_slice %499 {offsets = [0, 0], sizes = [8, 1], strides = [1, 1]} : vector<8x4xf32> to vector<8x1xf32>
    %509 = vector.broadcast %508 : vector<8x1xf32> to vector<8x64xf32>
    %510 = arith.mulf %498, %509 : vector<8x64xf32>
    %511 = arith.addf %507, %510 : vector<8x64xf32>
    %512 = vector.extract_strided_slice %500 {offsets = [0, 0], sizes = [8, 1], strides = [1, 1]} : vector<8x4xf32> to vector<8x1xf32>
    %513 = vector.broadcast %512 : vector<8x1xf32> to vector<8x64xf32>
    %514 = arith.mulf %511, %513 : vector<8x64xf32>
    %515 = arith.addf %502, %514 : vector<8x64xf32>
    %516 = vector.extract_strided_slice %10 {offsets = [1, 0], sizes = [1, 64], strides = [1, 1]} : vector<4x64xf32> to vector<1x64xf32>
    %517 = vector.broadcast %516 : vector<1x64xf32> to vector<8x64xf32>
    %518 = arith.mulf %497, %517 : vector<8x64xf32>
    %519 = math.exp %518 : vector<8x64xf32>
    %520 = arith.mulf %519, %462 : vector<8x64xf32>
    %521 = vector.extract_strided_slice %499 {offsets = [0, 1], sizes = [8, 1], strides = [1, 1]} : vector<8x4xf32> to vector<8x1xf32>
    %522 = vector.broadcast %521 : vector<8x1xf32> to vector<8x64xf32>
    %523 = arith.mulf %498, %522 : vector<8x64xf32>
    %524 = arith.addf %520, %523 : vector<8x64xf32>
    %525 = vector.extract_strided_slice %500 {offsets = [0, 1], sizes = [8, 1], strides = [1, 1]} : vector<8x4xf32> to vector<8x1xf32>
    %526 = vector.broadcast %525 : vector<8x1xf32> to vector<8x64xf32>
    %527 = arith.mulf %524, %526 : vector<8x64xf32>
    %528 = arith.addf %515, %527 : vector<8x64xf32>
    %529 = vector.extract_strided_slice %10 {offsets = [2, 0], sizes = [1, 64], strides = [1, 1]} : vector<4x64xf32> to vector<1x64xf32>
    %530 = vector.broadcast %529 : vector<1x64xf32> to vector<8x64xf32>
    %531 = arith.mulf %497, %530 : vector<8x64xf32>
    %532 = math.exp %531 : vector<8x64xf32>
    %533 = arith.mulf %532, %475 : vector<8x64xf32>
    %534 = vector.extract_strided_slice %499 {offsets = [0, 2], sizes = [8, 1], strides = [1, 1]} : vector<8x4xf32> to vector<8x1xf32>
    %535 = vector.broadcast %534 : vector<8x1xf32> to vector<8x64xf32>
    %536 = arith.mulf %498, %535 : vector<8x64xf32>
    %537 = arith.addf %533, %536 : vector<8x64xf32>
    %538 = vector.extract_strided_slice %500 {offsets = [0, 2], sizes = [8, 1], strides = [1, 1]} : vector<8x4xf32> to vector<8x1xf32>
    %539 = vector.broadcast %538 : vector<8x1xf32> to vector<8x64xf32>
    %540 = arith.mulf %537, %539 : vector<8x64xf32>
    %541 = arith.addf %528, %540 : vector<8x64xf32>
    %542 = vector.extract_strided_slice %10 {offsets = [3, 0], sizes = [1, 64], strides = [1, 1]} : vector<4x64xf32> to vector<1x64xf32>
    %543 = vector.broadcast %542 : vector<1x64xf32> to vector<8x64xf32>
    %544 = arith.mulf %497, %543 : vector<8x64xf32>
    %545 = math.exp %544 : vector<8x64xf32>
    %546 = arith.mulf %545, %488 : vector<8x64xf32>
    %547 = vector.extract_strided_slice %499 {offsets = [0, 3], sizes = [8, 1], strides = [1, 1]} : vector<8x4xf32> to vector<8x1xf32>
    %548 = vector.broadcast %547 : vector<8x1xf32> to vector<8x64xf32>
    %549 = arith.mulf %498, %548 : vector<8x64xf32>
    %550 = arith.addf %546, %549 : vector<8x64xf32>
    %551 = vector.extract_strided_slice %500 {offsets = [0, 3], sizes = [8, 1], strides = [1, 1]} : vector<8x4xf32> to vector<8x1xf32>
    %552 = vector.broadcast %551 : vector<8x1xf32> to vector<8x64xf32>
    %553 = arith.mulf %550, %552 : vector<8x64xf32>
    %554 = arith.addf %541, %553 : vector<8x64xf32>
    %555 = vector.extract_strided_slice %57 {offsets = [56, 0], sizes = [8, 64], strides = [1, 1]} : vector<64x64xf32> to vector<8x64xf32>
    %556 = arith.mulf %554, %555 : vector<8x64xf32>
    %c56 = arith.constant 56 : index
    %c0_36 = arith.constant 0 : index
    %557 = vector.load %arg13[%c56, %c0_36] : memref<64x64xf32, #tpu.memory_space<vmem>>, vector<8x64xf32>
    tpu.vector_store %arg13[%c56, %c0_36], %556 {strides = array<i32>} : memref<64x64xf32, #tpu.memory_space<vmem>>, vector<8x64xf32>,
    %c0_37 = arith.constant 0 : index
    %c0_38 = arith.constant 0 : index
    %558 = vector.load %arg13[%c0_37, %c0_38] : memref<64x64xf32, #tpu.memory_space<vmem>>, vector<64x64xf32>
    %559 = arith.truncf %558 : vector<64x64xf32> to vector<64x64xbf16>
    %c0_39 = arith.constant 0 : index
    %c0_40 = arith.constant 0 : index
    %560 = vector.load %arg6[%c0_39, %c0_40] : memref<64x32xbf16, #tpu.memory_space<vmem>>, vector<64x32xbf16>
    %cst_41 = arith.constant dense<0.000000e+00> : vector<64x32xf32>
    %561 = tpu.matmul %559, %560, %cst_41 {dimension_numbers = #tpu.dot_dimension_numbers<[1], [0], [0], [1], [0, 0, 1, 1], [], []>} : vector<64x64xbf16>, vector<64x32xbf16>, vector<64x32xf32> -> vector<64x32xf32>
    %c0_42 = arith.constant 0 : index
    %c0_43 = arith.constant 0 : index
    %562 = vector.load %arg11[%c0_42, %c0_43] : memref<3x8xf32, #tpu.memory_space<vmem>>, vector<3x8xf32>
    %c0_44 = arith.constant 0 : index
    %c0_45 = arith.constant 0 : index
    %563 = vector.load %arg8[%c0_44, %c0_45] : memref<32x8xf32, #tpu.memory_space<vmem>>, vector<32x8xf32>
    %cst_46 = arith.constant dense<0.000000e+00> : vector<64x8xf32>
    %564 = tpu.matmul %561, %563, %cst_46 {dimension_numbers = #tpu.dot_dimension_numbers<[1], [0], [0], [1], [0, 0, 1, 1], [], []>} : vector<64x32xf32>, vector<32x8xf32>, vector<64x8xf32> -> vector<64x8xf32>
    %565 = vector.extract_strided_slice %562 {offsets = [0, 0], sizes = [1, 8], strides = [1, 1]} : vector<3x8xf32> to vector<1x8xf32>
    %566 = vector.broadcast %565 : vector<1x8xf32> to vector<64x8xf32>
    %567 = arith.addf %564, %566 : vector<64x8xf32>
    %cst_47 = arith.constant 0.000000e+00 : f32
    %568 = vector.broadcast %cst_47 : f32 to vector<64x8xf32>
    %569 = arith.maximumf %567, %568 : vector<64x8xf32>
    %c0_48 = arith.constant 0 : index
    %c0_49 = arith.constant 0 : index
    %570 = vector.load %arg9[%c0_48, %c0_49] : memref<8x2xf32, #tpu.memory_space<vmem>>, vector<8x2xf32>
    %cst_50 = arith.constant dense<0.000000e+00> : vector<64x2xf32>
    %571 = tpu.matmul %569, %570, %cst_50 {dimension_numbers = #tpu.dot_dimension_numbers<[1], [0], [0], [1], [0, 0, 1, 1], [], []>} : vector<64x8xf32>, vector<8x2xf32>, vector<64x2xf32> -> vector<64x2xf32>
    %572 = vector.extract_strided_slice %562 {offsets = [1, 0], sizes = [1, 2], strides = [1, 1]} : vector<3x8xf32> to vector<1x2xf32>
    %573 = vector.broadcast %572 : vector<1x2xf32> to vector<64x2xf32>
    %574 = arith.addf %571, %573 : vector<64x2xf32>
    %cst_51 = arith.constant 0.000000e+00 : f32
    %575 = vector.broadcast %cst_51 : f32 to vector<64x2xf32>
    %576 = arith.maximumf %574, %575 : vector<64x2xf32>
    %c0_52 = arith.constant 0 : index
    %c0_53 = arith.constant 0 : index
    %577 = vector.load %arg10[%c0_52, %c0_53] : memref<2x1xf32, #tpu.memory_space<vmem>>, vector<2x1xf32>
    %cst_54 = arith.constant dense<0.000000e+00> : vector<64x1xf32>
    %578 = tpu.matmul %576, %577, %cst_54 {dimension_numbers = #tpu.dot_dimension_numbers<[1], [0], [0], [1], [0, 0, 1, 1], [], []>} : vector<64x2xf32>, vector<2x1xf32>, vector<64x1xf32> -> vector<64x1xf32>
    %579 = vector.extract_strided_slice %562 {offsets = [2, 0], sizes = [1, 1], strides = [1, 1]} : vector<3x8xf32> to vector<1x1xf32>
    %580 = vector.broadcast %579 : vector<1x1xf32> to vector<64x1xf32>
    %581 = arith.addf %578, %580 : vector<64x1xf32>
    %cst_55 = arith.constant 0.000000e+00 : f32
    %582 = vector.broadcast %cst_55 : f32 to vector<64x1xf32>
    %583 = arith.maximumf %581, %582 : vector<64x1xf32>
    %584 = vector.extract_strided_slice %583 {offsets = [0, 0], sizes = [8, 1], strides = [1, 1]} : vector<64x1xf32> to vector<8x1xf32>
    %585 = vector.extract_strided_slice %583 {offsets = [8, 0], sizes = [8, 1], strides = [1, 1]} : vector<64x1xf32> to vector<8x1xf32>
    %586 = arith.maximumf %584, %585 : vector<8x1xf32>
    %587 = vector.extract_strided_slice %583 {offsets = [16, 0], sizes = [8, 1], strides = [1, 1]} : vector<64x1xf32> to vector<8x1xf32>
    %588 = arith.maximumf %586, %587 : vector<8x1xf32>
    %589 = vector.extract_strided_slice %583 {offsets = [24, 0], sizes = [8, 1], strides = [1, 1]} : vector<64x1xf32> to vector<8x1xf32>
    %590 = arith.maximumf %588, %589 : vector<8x1xf32>
    %591 = vector.extract_strided_slice %583 {offsets = [32, 0], sizes = [8, 1], strides = [1, 1]} : vector<64x1xf32> to vector<8x1xf32>
    %592 = arith.maximumf %590, %591 : vector<8x1xf32>
    %593 = vector.extract_strided_slice %583 {offsets = [40, 0], sizes = [8, 1], strides = [1, 1]} : vector<64x1xf32> to vector<8x1xf32>
    %594 = arith.maximumf %592, %593 : vector<8x1xf32>
    %595 = vector.extract_strided_slice %583 {offsets = [48, 0], sizes = [8, 1], strides = [1, 1]} : vector<64x1xf32> to vector<8x1xf32>
    %596 = arith.maximumf %594, %595 : vector<8x1xf32>
    %597 = vector.extract_strided_slice %583 {offsets = [56, 0], sizes = [8, 1], strides = [1, 1]} : vector<64x1xf32> to vector<8x1xf32>
    %598 = arith.maximumf %596, %597 : vector<8x1xf32>
    %cst_56 = arith.constant 0.000000e+00 : f32
    %599 = vector.broadcast %cst_56 : f32 to vector<8x1xf32>
    %cst_57 = arith.constant 0.000000e+00 : f32
    %600 = vector.broadcast %cst_57 : f32 to vector<8x32xf32>
    %601 = vector.extract_strided_slice %583 {offsets = [0, 0], sizes = [8, 1], strides = [1, 1]} : vector<64x1xf32> to vector<8x1xf32>
    %602 = arith.subf %601, %598 : vector<8x1xf32>
    %603 = math.exp %602 : vector<8x1xf32>
    %604 = arith.addf %599, %603 : vector<8x1xf32>
    %605 = vector.extract_strided_slice %1 {offsets = [0, 0], sizes = [8, 32], strides = [1, 1]} : vector<64x32xf32> to vector<8x32xf32>
    %606 = vector.broadcast %603 : vector<8x1xf32> to vector<8x32xf32>
    %607 = arith.mulf %606, %605 : vector<8x32xf32>
    %608 = arith.addf %600, %607 : vector<8x32xf32>
    %609 = vector.extract_strided_slice %583 {offsets = [8, 0], sizes = [8, 1], strides = [1, 1]} : vector<64x1xf32> to vector<8x1xf32>
    %610 = arith.subf %609, %598 : vector<8x1xf32>
    %611 = math.exp %610 : vector<8x1xf32>
    %612 = arith.addf %604, %611 : vector<8x1xf32>
    %613 = vector.extract_strided_slice %1 {offsets = [8, 0], sizes = [8, 32], strides = [1, 1]} : vector<64x32xf32> to vector<8x32xf32>
    %614 = vector.broadcast %611 : vector<8x1xf32> to vector<8x32xf32>
    %615 = arith.mulf %614, %613 : vector<8x32xf32>
    %616 = arith.addf %608, %615 : vector<8x32xf32>
    %617 = vector.extract_strided_slice %583 {offsets = [16, 0], sizes = [8, 1], strides = [1, 1]} : vector<64x1xf32> to vector<8x1xf32>
    %618 = arith.subf %617, %598 : vector<8x1xf32>
    %619 = math.exp %618 : vector<8x1xf32>
    %620 = arith.addf %612, %619 : vector<8x1xf32>
    %621 = vector.extract_strided_slice %1 {offsets = [16, 0], sizes = [8, 32], strides = [1, 1]} : vector<64x32xf32> to vector<8x32xf32>
    %622 = vector.broadcast %619 : vector<8x1xf32> to vector<8x32xf32>
    %623 = arith.mulf %622, %621 : vector<8x32xf32>
    %624 = arith.addf %616, %623 : vector<8x32xf32>
    %625 = vector.extract_strided_slice %583 {offsets = [24, 0], sizes = [8, 1], strides = [1, 1]} : vector<64x1xf32> to vector<8x1xf32>
    %626 = arith.subf %625, %598 : vector<8x1xf32>
    %627 = math.exp %626 : vector<8x1xf32>
    %628 = arith.addf %620, %627 : vector<8x1xf32>
    %629 = vector.extract_strided_slice %1 {offsets = [24, 0], sizes = [8, 32], strides = [1, 1]} : vector<64x32xf32> to vector<8x32xf32>
    %630 = vector.broadcast %627 : vector<8x1xf32> to vector<8x32xf32>
    %631 = arith.mulf %630, %629 : vector<8x32xf32>
    %632 = arith.addf %624, %631 : vector<8x32xf32>
    %633 = vector.extract_strided_slice %583 {offsets = [32, 0], sizes = [8, 1], strides = [1, 1]} : vector<64x1xf32> to vector<8x1xf32>
    %634 = arith.subf %633, %598 : vector<8x1xf32>
    %635 = math.exp %634 : vector<8x1xf32>
    %636 = arith.addf %628, %635 : vector<8x1xf32>
    %637 = vector.extract_strided_slice %1 {offsets = [32, 0], sizes = [8, 32], strides = [1, 1]} : vector<64x32xf32> to vector<8x32xf32>
    %638 = vector.broadcast %635 : vector<8x1xf32> to vector<8x32xf32>
    %639 = arith.mulf %638, %637 : vector<8x32xf32>
    %640 = arith.addf %632, %639 : vector<8x32xf32>
    %641 = vector.extract_strided_slice %583 {offsets = [40, 0], sizes = [8, 1], strides = [1, 1]} : vector<64x1xf32> to vector<8x1xf32>
    %642 = arith.subf %641, %598 : vector<8x1xf32>
    %643 = math.exp %642 : vector<8x1xf32>
    %644 = arith.addf %636, %643 : vector<8x1xf32>
    %645 = vector.extract_strided_slice %1 {offsets = [40, 0], sizes = [8, 32], strides = [1, 1]} : vector<64x32xf32> to vector<8x32xf32>
    %646 = vector.broadcast %643 : vector<8x1xf32> to vector<8x32xf32>
    %647 = arith.mulf %646, %645 : vector<8x32xf32>
    %648 = arith.addf %640, %647 : vector<8x32xf32>
    %649 = vector.extract_strided_slice %583 {offsets = [48, 0], sizes = [8, 1], strides = [1, 1]} : vector<64x1xf32> to vector<8x1xf32>
    %650 = arith.subf %649, %598 : vector<8x1xf32>
    %651 = math.exp %650 : vector<8x1xf32>
    %652 = arith.addf %644, %651 : vector<8x1xf32>
    %653 = vector.extract_strided_slice %1 {offsets = [48, 0], sizes = [8, 32], strides = [1, 1]} : vector<64x32xf32> to vector<8x32xf32>
    %654 = vector.broadcast %651 : vector<8x1xf32> to vector<8x32xf32>
    %655 = arith.mulf %654, %653 : vector<8x32xf32>
    %656 = arith.addf %648, %655 : vector<8x32xf32>
    %657 = vector.extract_strided_slice %583 {offsets = [56, 0], sizes = [8, 1], strides = [1, 1]} : vector<64x1xf32> to vector<8x1xf32>
    %658 = arith.subf %657, %598 : vector<8x1xf32>
    %659 = math.exp %658 : vector<8x1xf32>
    %660 = arith.addf %652, %659 : vector<8x1xf32>
    %661 = vector.extract_strided_slice %1 {offsets = [56, 0], sizes = [8, 32], strides = [1, 1]} : vector<64x32xf32> to vector<8x32xf32>
    %662 = vector.broadcast %659 : vector<8x1xf32> to vector<8x32xf32>
    %663 = arith.mulf %662, %661 : vector<8x32xf32>
    %664 = arith.addf %656, %663 : vector<8x32xf32>
    %665 = vector.broadcast %660 : vector<8x1xf32> to vector<8x32xf32>
    %666 = arith.divf %664, %665 : vector<8x32xf32>
    %c0_58 = arith.constant 0 : index
    %c0_59 = arith.constant 0 : index
    %c0_60 = arith.constant 0 : index
    %667 = vector.load %arg12[%c0_58, %c0_59, %c0_60] : memref<1x8x32xf32, #tpu.memory_space<vmem>>, vector<1x8x32xf32>
    %668 = vector.shape_cast %667 : vector<1x8x32xf32> to vector<8x32xf32>
    %669 = vector.shape_cast %666 : vector<8x32xf32> to vector<1x8x32xf32>
    tpu.vector_store %arg12[%c0_58, %c0_59, %c0_60], %669 {strides = array<i32>} : memref<1x8x32xf32, #tpu.memory_space<vmem>>, vector<1x8x32xf32>,
    return
  }
  func.func @transform_0(%arg0: i32) -> (i32, i32, i32) {
    %c0_i32 = arith.constant 0 : i32
    %c0_i32_0 = arith.constant 0 : i32
    %c0_i32_1 = arith.constant 0 : i32
    return %arg0, %c0_i32, %c0_i32_0 : i32, i32, i32
  }
  func.func @transform_1(%arg0: i32) -> (i32, i32) {
    %c0_i32 = arith.constant 0 : i32
    %c0_i32_0 = arith.constant 0 : i32
    %c0_i32_1 = arith.constant 0 : i32
    return %c0_i32, %c0_i32_0 : i32, i32
  }
  func.func @transform_2(%arg0: i32) -> (i32, i32) {
    %c0_i32 = arith.constant 0 : i32
    %c0_i32_0 = arith.constant 0 : i32
    %c0_i32_1 = arith.constant 0 : i32
    return %c0_i32, %c0_i32_0 : i32, i32
  }
  func.func @transform_3(%arg0: i32) -> (i32, i32) {
    %c0_i32 = arith.constant 0 : i32
    %c0_i32_0 = arith.constant 0 : i32
    %c0_i32_1 = arith.constant 0 : i32
    return %c0_i32, %c0_i32_0 : i32, i32
  }
  func.func @transform_4(%arg0: i32) -> (i32, i32) {
    %c0_i32 = arith.constant 0 : i32
    %c0_i32_0 = arith.constant 0 : i32
    %c0_i32_1 = arith.constant 0 : i32
    return %c0_i32, %c0_i32_0 : i32, i32
  }
  func.func @transform_5(%arg0: i32) -> (i32, i32) {
    %c0_i32 = arith.constant 0 : i32
    %c0_i32_0 = arith.constant 0 : i32
    %c0_i32_1 = arith.constant 0 : i32
    return %c0_i32, %c0_i32_0 : i32, i32
  }
  func.func @transform_6(%arg0: i32) -> (i32, i32) {
    %c0_i32 = arith.constant 0 : i32
    %c0_i32_0 = arith.constant 0 : i32
    %c0_i32_1 = arith.constant 0 : i32
    return %c0_i32, %c0_i32_0 : i32, i32
  }
  func.func @transform_7(%arg0: i32) -> (i32, i32) {
    %c0_i32 = arith.constant 0 : i32
    %c0_i32_0 = arith.constant 0 : i32
    %c0_i32_1 = arith.constant 0 : i32
    return %c0_i32, %c0_i32_0 : i32, i32
  }
  func.func @transform_8(%arg0: i32) -> (i32, i32) {
    %c0_i32 = arith.constant 0 : i32
    %c0_i32_0 = arith.constant 0 : i32
    %c0_i32_1 = arith.constant 0 : i32
    return %c0_i32, %c0_i32_0 : i32, i32
  }
  func.func @transform_9(%arg0: i32) -> (i32, i32) {
    %c0_i32 = arith.constant 0 : i32
    %c0_i32_0 = arith.constant 0 : i32
    %c0_i32_1 = arith.constant 0 : i32
    return %c0_i32, %c0_i32_0 : i32, i32
  }
  func.func @transform_10(%arg0: i32) -> (i32, i32) {
    %c0_i32 = arith.constant 0 : i32
    %c0_i32_0 = arith.constant 0 : i32
    %c0_i32_1 = arith.constant 0 : i32
    return %c0_i32, %c0_i32_0 : i32, i32
  }
  func.func @transform_11(%arg0: i32) -> (i32, i32, i32) {
    %c0_i32 = arith.constant 0 : i32
    %c0_i32_0 = arith.constant 0 : i32
    %c0_i32_1 = arith.constant 0 : i32
    return %arg0, %c0_i32, %c0_i32_0 : i32, i32, i32
  }
}

</mosaic_0001>

<llo_original>
// kernel: tpu_custom_call.1
$region0: #{tpu_custom_call.1}
  #allocation0 [shape = 'u32[]', space=smem, size = 0x4, offset = 0x4, fixed_abs, tag = 'smem constant byte address 0x4 - core index']
  #allocation1 [shape = 'u32[144,128]{1,0:T(1,128)}', space=vmem, size = 0x12000, scoped, tag = 'internal scratch']
  #allocation2 [shape = 'f32[64,64]{1,0:T(8,128)}', space=vmem, size = 0x8000, scoped, tag = 'scratch operand']
  %s0 = inlined_call_operand.hbm [shape: f32[1,64,32], index: 0, kind: input, shape index: {}]
  %s1 = inlined_call_operand.hbm [shape: bf16[32,64], index: 1, kind: input, shape index: {}]
  %s2 = inlined_call_operand.hbm [shape: bf16[32,64], index: 2, kind: input, shape index: {}]
  %s3 = inlined_call_operand.hbm [shape: bf16[64,8], index: 3, kind: input, shape index: {}]
  %s4 = inlined_call_operand.hbm [shape: bf16[64,64], index: 4, kind: input, shape index: {}]
  %s5 = inlined_call_operand.hbm [shape: bf16[64,32], index: 5, kind: input, shape index: {}]
  %s6 = inlined_call_operand.hbm [shape: f32[9,64], index: 6, kind: input, shape index: {}]
  %s7 = inlined_call_operand.hbm [shape: f32[32,8], index: 7, kind: input, shape index: {}]
  %s8 = inlined_call_operand.hbm [shape: f32[8,2], index: 8, kind: input, shape index: {}]
  %s9 = inlined_call_operand.hbm [shape: f32[2,1], index: 9, kind: input, shape index: {}]
  %s10 = inlined_call_operand.hbm [shape: f32[3,8], index: 10, kind: input, shape index: {}]
  %s11 = inlined_call_operand.hbm [shape: f32[1,8,32], index: 11, kind: output, shape index: {}]
  %s12 = sld [smem:[#allocation0]]
  $region98: #{tpu_custom_call.1} parent=0
    _
  %s14 = ssub.s32 1, %s12
  %s15 = scalar_select 0, %s14, %s12
  $region1: #{tpu_custom_call.1} parent=0
    #allocation3 [shape = 'u8[32768]{0}', space=vmem, size = 0x8000, scoped, tag = 'input window, operand 0, single buffered']
    #allocation4 [shape = 's32[1]{0}', space=sflag, size = 0x4, scoped, tag = 'scoped memory for tpu_custom_call.1']
    #allocation5 [shape = 's32[1]{0}', space=sflag, size = 0x4, scoped, tag = 'scoped memory for tpu_custom_call.1']
    #allocation6 [shape = 'u8[8192]{0}', space=vmem, size = 0x2000, scoped, tag = 'input window, operand 1, single buffered']
    #allocation7 [shape = 's32[1]{0}', space=sflag, size = 0x4, scoped, tag = 'scoped memory for tpu_custom_call.1']
    #allocation8 [shape = 'u8[8192]{0}', space=vmem, size = 0x2000, scoped, tag = 'input window, operand 2, single buffered']
    #allocation9 [shape = 'u8[16384]{0}', space=vmem, size = 0x4000, scoped, tag = 'input window, operand 3, single buffered']
    #allocation10 [shape = 's32[1]{0}', space=sflag, size = 0x4, scoped, tag = 'scoped memory for tpu_custom_call.1']
    #allocation11 [shape = 'u8[16384]{0}', space=vmem, size = 0x4000, scoped, tag = 'input window, operand 4, single buffered']
    #allocation12 [shape = 'u8[16384]{0}', space=vmem, size = 0x4000, scoped, tag = 'input window, operand 5, single buffered']
    #allocation13 [shape = 's32[1]{0}', space=sflag, size = 0x4, scoped, tag = 'scoped memory for tpu_custom_call.1']
    #allocation14 [shape = 'u8[8192]{0}', space=vmem, size = 0x2000, scoped, tag = 'input window, operand 6, single buffered']
    #allocation15 [shape = 'u8[16384]{0}', space=vmem, size = 0x4000, scoped, tag = 'input window, operand 7, single buffered']
    #allocation16 [shape = 's32[1]{0}', space=sflag, size = 0x4, scoped, tag = 'scoped memory for tpu_custom_call.1']
    #allocation17 [shape = 'u8[4096]{0}', space=vmem, size = 0x1000, scoped, tag = 'input window, operand 8, single buffered']
    #allocation18 [shape = 'u8[1024]{0}', space=vmem, size = 0x400, scoped, tag = 'input window, operand 9, single buffered']
    #allocation19 [shape = 's32[1]{0}', space=sflag, size = 0x4, scoped, tag = 'scoped memory for tpu_custom_call.1']
    #allocation20 [shape = 'u8[2048]{0}', space=vmem, size = 0x800, scoped, tag = 'input window, operand 10, single buffered']
    #allocation21 [shape = 'u8[4096]{0}', space=vmem, size = 0x1000, scoped, tag = 'output window, operand 0, single buffered']
    %16 = vsyncpa [#allocation4], 0
    %17 = vsyncpa [#allocation7], 0
    %18 = vsyncpa [#allocation10], 0
    %19 = vsyncpa [#allocation13], 0
    %20 = vsyncpa [#allocation16], 0
    %21 = vsyncpa [#allocation19], 0
    %22 = vsyncpa [#allocation5], 0
    // Predicated region
    $region2: #{tpu_custom_call.1} parent=1 // pred_check
      _
    $region3: #{tpu_custom_call.1} parent=1 // pred_check_branch
      %24 = sbr.rel (0) target = $region5
    $region4: #{tpu_custom_call.1} parent=1 // pred_region
      %s26 = ssub.s32 1024, 1024
      %27 = vsyncadd [#allocation4], %s26
      %s28 = sshll.u32 [#allocation3], 4
      %s29 = int_to_ptr.vmem [resolvable:$true] %s28
      %34 = dma.hbm_to_vmem [thread:$0]  %s0, 1024, %s29, [#allocation4], 128, 128, 8
    $region5: #{tpu_custom_call.1} parent=1 // pred_fallthru
      _
    // Predicated region
    $region6: #{tpu_custom_call.1} parent=1 // pred_check
      _
    $region7: #{tpu_custom_call.1} parent=1 // pred_check_branch
      %36 = sbr.rel (0) target = $region9
    $region8: #{tpu_custom_call.1} parent=1 // pred_region
      %s38 = ssub.s32 256, 256
      %39 = vsyncadd [#allocation7], %s38
      %s40 = sshll.u32 [#allocation6], 4
      %s41 = int_to_ptr.vmem [resolvable:$true] %s40
      %46 = dma.hbm_to_vmem [thread:$0]  %s1, 256, %s41, [#allocation7], 64, 64, 4
    $region9: #{tpu_custom_call.1} parent=1 // pred_fallthru
      _
    // Predicated region
    $region10: #{tpu_custom_call.1} parent=1 // pred_check
      _
    $region11: #{tpu_custom_call.1} parent=1 // pred_check_branch
      %48 = sbr.rel (0) target = $region13
    $region12: #{tpu_custom_call.1} parent=1 // pred_region
      %s50 = ssub.s32 256, 256
      %51 = vsyncadd [#allocation7], %s50
      %s52 = sshll.u32 [#allocation8], 4
      %s53 = int_to_ptr.vmem [resolvable:$true] %s52
      %58 = dma.hbm_to_vmem [thread:$0]  %s2, 256, %s53, [#allocation7], 64, 64, 4
    $region13: #{tpu_custom_call.1} parent=1 // pred_fallthru
      _
    // Predicated region
    $region14: #{tpu_custom_call.1} parent=1 // pred_check
      _
    $region15: #{tpu_custom_call.1} parent=1 // pred_check_branch
      %60 = sbr.rel (0) target = $region17
    $region16: #{tpu_custom_call.1} parent=1 // pred_region
      %s62 = ssub.s32 512, 512
      %63 = vsyncadd [#allocation10], %s62
      %s64 = sshll.u32 [#allocation9], 4
      %s65 = int_to_ptr.vmem [resolvable:$true] %s64
      %70 = dma.hbm_to_vmem [thread:$0]  %s3, 512, %s65, [#allocation10], 64, 64, 4
    $region17: #{tpu_custom_call.1} parent=1 // pred_fallthru
      _
    // Predicated region
    $region18: #{tpu_custom_call.1} parent=1 // pred_check
      _
    $region19: #{tpu_custom_call.1} parent=1 // pred_check_branch
      %72 = sbr.rel (0) target = $region21
    $region20: #{tpu_custom_call.1} parent=1 // pred_region
      %s74 = ssub.s32 512, 512
      %75 = vsyncadd [#allocation10], %s74
      %s76 = sshll.u32 [#allocation11], 4
      %s77 = int_to_ptr.vmem [resolvable:$true] %s76
      %82 = dma.hbm_to_vmem [thread:$0]  %s4, 512, %s77, [#allocation10], 64, 64, 4
    $region21: #{tpu_custom_call.1} parent=1 // pred_fallthru
      _
    // Predicated region
    $region22: #{tpu_custom_call.1} parent=1 // pred_check
      _
    $region23: #{tpu_custom_call.1} parent=1 // pred_check_branch
      %84 = sbr.rel (0) target = $region25
    $region24: #{tpu_custom_call.1} parent=1 // pred_region
      %s86 = ssub.s32 512, 512
      %87 = vsyncadd [#allocation13], %s86
      %s88 = sshll.u32 [#allocation12], 4
      %s89 = int_to_ptr.vmem [resolvable:$true] %s88
      %94 = dma.hbm_to_vmem [thread:$0]  %s5, 512, %s89, [#allocation13], 64, 64, 4
    $region25: #{tpu_custom_call.1} parent=1 // pred_fallthru
      _
    // Predicated region
    $region26: #{tpu_custom_call.1} parent=1 // pred_check
      _
    $region27: #{tpu_custom_call.1} parent=1 // pred_check_branch
      %96 = sbr.rel (0) target = $region29
    $region28: #{tpu_custom_call.1} parent=1 // pred_region
      %s98 = ssub.s32 256, 256
      %99 = vsyncadd [#allocation13], %s98
      %s100 = sshll.u32 [#allocation14], 4
      %s101 = int_to_ptr.vmem [resolvable:$true] %s100
      %106 = dma.hbm_to_vmem [thread:$0]  %s6, 256, %s101, [#allocation13], 128, 128, 8
    $region29: #{tpu_custom_call.1} parent=1 // pred_fallthru
      _
    // Predicated region
    $region30: #{tpu_custom_call.1} parent=1 // pred_check
      _
    $region31: #{tpu_custom_call.1} parent=1 // pred_check_branch
      %108 = sbr.rel (0) target = $region33
    $region32: #{tpu_custom_call.1} parent=1 // pred_region
      %s110 = ssub.s32 512, 512
      %111 = vsyncadd [#allocation16], %s110
      %s112 = sshll.u32 [#allocation15], 4
      %s113 = int_to_ptr.vmem [resolvable:$true] %s112
      %118 = dma.hbm_to_vmem [thread:$0]  %s7, 512, %s113, [#allocation16], 128, 128, 8
    $region33: #{tpu_custom_call.1} parent=1 // pred_fallthru
      _
    // Predicated region
    $region34: #{tpu_custom_call.1} parent=1 // pred_check
      _
    $region35: #{tpu_custom_call.1} parent=1 // pred_check_branch
      %120 = sbr.rel (0) target = $region37
    $region36: #{tpu_custom_call.1} parent=1 // pred_region
      %s122 = ssub.s32 128, 128
      %123 = vsyncadd [#allocation16], %s122
      %s125 = sshll.u32 [#allocation17], 4
      %s126 = int_to_ptr.vmem [resolvable:$true] %s125
      %128 = dma.hbm_to_vmem [thread:$0]  %s8, 128, %s126, [#allocation16]
    $region37: #{tpu_custom_call.1} parent=1 // pred_fallthru
      _
    // Predicated region
    $region38: #{tpu_custom_call.1} parent=1 // pred_check
      _
    $region39: #{tpu_custom_call.1} parent=1 // pred_check_branch
      %130 = sbr.rel (0) target = $region41
    $region40: #{tpu_custom_call.1} parent=1 // pred_region
      %s132 = ssub.s32 32, 32
      %133 = vsyncadd [#allocation19], %s132
      %s135 = sshll.u32 [#allocation18], 4
      %s136 = int_to_ptr.vmem [resolvable:$true] %s135
      %138 = dma.hbm_to_vmem [thread:$0]  %s9, 32, %s136, [#allocation19]
    $region41: #{tpu_custom_call.1} parent=1 // pred_fallthru
      _
    // Predicated region
    $region42: #{tpu_custom_call.1} parent=1 // pred_check
      _
    $region43: #{tpu_custom_call.1} parent=1 // pred_check_branch
      %140 = sbr.rel (0) target = $region45
    $region44: #{tpu_custom_call.1} parent=1 // pred_region
      %s142 = ssub.s32 64, 64
      %143 = vsyncadd [#allocation19], %s142
      %s145 = sshll.u32 [#allocation20], 4
      %s146 = int_to_ptr.vmem [resolvable:$true] %s145
      %148 = dma.hbm_to_vmem [thread:$0]  %s10, 64, %s146, [#allocation19]
    $region45: #{tpu_custom_call.1} parent=1 // pred_fallthru
      _
    // Predicated region
    $region46: #{tpu_custom_call.1} parent=1 // pred_check
      _
    $region47: #{tpu_custom_call.1} parent=1 // pred_check_branch
      %150 = sbr.rel (0) target = $region49
    $region48: #{tpu_custom_call.1} parent=1 // pred_region
      %151 = dma.done [#allocation4], 1024
    $region49: #{tpu_custom_call.1} parent=1 // pred_fallthru
      _
    // Predicated region
    $region50: #{tpu_custom_call.1} parent=1 // pred_check
      _
    $region51: #{tpu_custom_call.1} parent=1 // pred_check_branch
      %153 = sbr.rel (0) target = $region53
    $region52: #{tpu_custom_call.1} parent=1 // pred_region
      %154 = dma.done [#allocation7], 256
    $region53: #{tpu_custom_call.1} parent=1 // pred_fallthru
      _
    // Predicated region
    $region54: #{tpu_custom_call.1} parent=1 // pred_check
      _
    $region55: #{tpu_custom_call.1} parent=1 // pred_check_branch
      %156 = sbr.rel (0) target = $region57
    $region56: #{tpu_custom_call.1} parent=1 // pred_region
      %157 = dma.done [#allocation7], 256
    $region57: #{tpu_custom_call.1} parent=1 // pred_fallthru
      _
    // Predicated region
    $region58: #{tpu_custom_call.1} parent=1 // pred_check
      _
    $region59: #{tpu_custom_call.1} parent=1 // pred_check_branch
      %159 = sbr.rel (0) target = $region61
    $region60: #{tpu_custom_call.1} parent=1 // pred_region
      %160 = dma.done [#allocation10], 512
    $region61: #{tpu_custom_call.1} parent=1 // pred_fallthru
      _
    // Predicated region
    $region62: #{tpu_custom_call.1} parent=1 // pred_check
      _
    $region63: #{tpu_custom_call.1} parent=1 // pred_check_branch
      %162 = sbr.rel (0) target = $region65
    $region64: #{tpu_custom_call.1} parent=1 // pred_region
      %163 = dma.done [#allocation10], 512
    $region65: #{tpu_custom_call.1} parent=1 // pred_fallthru
      _
    // Predicated region
    $region66: #{tpu_custom_call.1} parent=1 // pred_check
      _
    $region67: #{tpu_custom_call.1} parent=1 // pred_check_branch
      %165 = sbr.rel (0) target = $region69
    $region68: #{tpu_custom_call.1} parent=1 // pred_region
      %166 = dma.done [#allocation13], 512
    $region69: #{tpu_custom_call.1} parent=1 // pred_fallthru
      _
    // Predicated region
    $region70: #{tpu_custom_call.1} parent=1 // pred_check
      _
    $region71: #{tpu_custom_call.1} parent=1 // pred_check_branch
      %168 = sbr.rel (0) target = $region73
    $region72: #{tpu_custom_call.1} parent=1 // pred_region
      %169 = dma.done [#allocation13], 256
    $region73: #{tpu_custom_call.1} parent=1 // pred_fallthru
      _
    // Predicated region
    $region74: #{tpu_custom_call.1} parent=1 // pred_check
      _
    $region75: #{tpu_custom_call.1} parent=1 // pred_check_branch
      %171 = sbr.rel (0) target = $region77
    $region76: #{tpu_custom_call.1} parent=1 // pred_region
      %172 = dma.done [#allocation16], 512
    $region77: #{tpu_custom_call.1} parent=1 // pred_fallthru
      _
    // Predicated region
    $region78: #{tpu_custom_call.1} parent=1 // pred_check
      _
    $region79: #{tpu_custom_call.1} parent=1 // pred_check_branch
      %174 = sbr.rel (0) target = $region81
    $region80: #{tpu_custom_call.1} parent=1 // pred_region
      %175 = dma.done [#allocation16], 128
    $region81: #{tpu_custom_call.1} parent=1 // pred_fallthru
      _
    // Predicated region
    $region82: #{tpu_custom_call.1} parent=1 // pred_check
      _
    $region83: #{tpu_custom_call.1} parent=1 // pred_check_branch
      %177 = sbr.rel (0) target = $region85
    $region84: #{tpu_custom_call.1} parent=1 // pred_region
      %178 = dma.done [#allocation19], 32
    $region85: #{tpu_custom_call.1} parent=1 // pred_fallthru
      _
    // Predicated region
    $region86: #{tpu_custom_call.1} parent=1 // pred_check
      _
    $region87: #{tpu_custom_call.1} parent=1 // pred_check_branch
      %180 = sbr.rel (0) target = $region89
    $region88: #{tpu_custom_call.1} parent=1 // pred_region
      %181 = dma.done [#allocation19], 64
    $region89: #{tpu_custom_call.1} parent=1 // pred_fallthru
      _
    %v183 = vld [vmem:[#allocation3] sm:$0xff]
    %v184 = vld [vmem:[#allocation3 + $0x8] sm:$0xff]
    %v185 = vld [vmem:[#allocation3 + $0x10] sm:$0xff]
    %v186 = vld [vmem:[#allocation3 + $0x18] sm:$0xff]
    %v187 = vld [vmem:[#allocation3 + $0x20] sm:$0xff]
    %v188 = vld [vmem:[#allocation3 + $0x28] sm:$0xff]
    %v189 = vld [vmem:[#allocation3 + $0x30] sm:$0xff]
    %v190 = vld [vmem:[#allocation3 + $0x38] sm:$0xff]
    %v191 = vpack.c.bf16 %v184, %v183
    %v192 = vpack.c.bf16 %v186, %v185
    %v193 = vpack.c.bf16 %v188, %v187
    %v194 = vpack.c.bf16 %v190, %v189
    %v195 = vld [vmem:[#allocation14] sm:$0xff]
    %v196 = vld [vmem:[#allocation14 + $0x8] sm:$0x1]
    %v197 = vmul.f32 %v195, 1.442695
    %v198 = vpow.pop %v197
    %v199 = vsub.f32 0.0, %v198
    %v200 = vld [vmem:[#allocation6] sm:$0xf]
    %v201 = vld [vmem:[#allocation6 + $0x4] sm:$0xf]
    %v202 = vld [vmem:[#allocation6 + $0x8] sm:$0xf]
    %v203 = vld [vmem:[#allocation6 + $0xc] sm:$0xf]
    %v208 = vunpack.c.l.b16 %v200
    %v209 = vunpack.c.l.b16 %v201
    %v210 = vunpack.c.l.b16 %v202
    %v211 = vunpack.c.l.b16 %v203
    %v212 = vpack.c.b16 %v209, %v208
    %v213 = vpack.c.b16 %v211, %v210
    %vm216 = vcmask 261120
    %v218 = vsel %vm216, %v191, 0
    %v221 = vsel %vm216, %v192, 0
    %v224 = vsel %vm216, %v193, 0
    %v227 = vsel %vm216, %v194, 0
    %229 = vmatprep.subr.bf16.mxu0 0
    %230 = vmatpush1.bf16.msra.mxu0 %v212
    %231 = vmatprep.subr.bf16.mxu0 0
    %232 = vmatpush1.bf16.msra.mxu0 %v213
    %233 = vmatprep.subr.bf16.mxu0 0
    %234 = vmatpush1.bf16.msra.mxu0 0
    %235 = vmatprep.subr.bf16.mxu0 0
    %236 = vmatpush1.bf16.msra.mxu0 0
    %237 = vmatprep.subr.bf16.mxu0 0
    %238 = vmatpush1.bf16.msra.mxu0 0
    %239 = vmatprep.subr.bf16.mxu0 0
    %240 = vmatpush1.bf16.msra.mxu0 0
    %241 = vmatprep.subr.bf16.mxu0 0
    %242 = vmatpush1.bf16.msra.mxu0 0
    %243 = vmatprep.subr.bf16.mxu0 0
    %244 = vmatpush1.bf16.msra.mxu0 0
    %245 = vmatprep.subr.bf16.mxu0 0
    %246 = vmatpush1.bf16.msra.mxu0 0
    %247 = vmatprep.subr.bf16.mxu0 0
    %248 = vmatpush1.bf16.msra.mxu0 0
    %249 = vmatprep.subr.bf16.mxu0 0
    %250 = vmatpush1.bf16.msra.mxu0 0
    %251 = vmatprep.subr.bf16.mxu0 0
    %252 = vmatpush1.bf16.msra.mxu0 0
    %253 = vmatprep.subr.bf16.mxu0 0
    %254 = vmatpush1.bf16.msra.mxu0 0
    %255 = vmatprep.subr.bf16.mxu0 0
    %256 = vmatpush1.bf16.msra.mxu0 0
    %257 = vmatprep.subr.bf16.mxu0 0
    %258 = vmatpush1.bf16.msra.mxu0 0
    %259 = vmatprep.subr.bf16.mxu0 0
    %260 = vmatpush1.bf16.msra.mxu0 0
    %261 = vmatprep.mubr.bf16.mxu0 0
    %262 = vmatmul.mubr.bf16.gmra.mrb[0].mxu0 %v218
    %v263 = vpop.f32.mrb[0].mxu0
    %v264 = vadd.f32 0.0, %v263
    %v265 = vpop.f32.mrb[0].mxu0
    %v266 = vpop.f32.mrb[0].mxu0
    %v267 = vadd.f32 0.0, %v266
    %v268 = vpop.f32.mrb[0].mxu0
    %269 = vmatprep.mubr.bf16.mxu0 0
    %270 = vmatmul.mubr.bf16.gmra.mrb[0].mxu0 %v221
    %v271 = vpop.f32.mrb[0].mxu0
    %v272 = vadd.f32 0.0, %v271
    %v273 = vpop.f32.mrb[0].mxu0
    %v274 = vpop.f32.mrb[0].mxu0
    %v275 = vadd.f32 0.0, %v274
    %v276 = vpop.f32.mrb[0].mxu0
    %277 = vmatprep.mubr.bf16.mxu0 0
    %278 = vmatmul.mubr.bf16.gmra.mrb[0].mxu0 %v224
    %v279 = vpop.f32.mrb[0].mxu0
    %v280 = vadd.f32 0.0, %v279
    %v281 = vpop.f32.mrb[0].mxu0
    %v282 = vpop.f32.mrb[0].mxu0
    %v283 = vadd.f32 0.0, %v282
    %v284 = vpop.f32.mrb[0].mxu0
    %285 = vmatprep.mubr.bf16.mxu0 0
    %286 = vmatmul.mubr.bf16.gmra.mrb[0].mxu0 %v227
    %v287 = vpop.f32.mrb[0].mxu0
    %v288 = vadd.f32 0.0, %v287
    %v289 = vpop.f32.mrb[0].mxu0
    %v290 = vpop.f32.mrb[0].mxu0
    %v291 = vadd.f32 0.0, %v290
    %v292 = vpop.f32.mrb[0].mxu0
    %293 = vdwg.mxu0
    %v294 = vld [vmem:[#allocation8] sm:$0xf]
    %v295 = vld [vmem:[#allocation8 + $0x4] sm:$0xf]
    %v296 = vld [vmem:[#allocation8 + $0x8] sm:$0xf]
    %v297 = vld [vmem:[#allocation8 + $0xc] sm:$0xf]
    %v302 = vunpack.c.l.b16 %v294
    %v303 = vunpack.c.l.b16 %v295
    %v304 = vunpack.c.l.b16 %v296
    %v305 = vunpack.c.l.b16 %v297
    %v306 = vpack.c.b16 %v303, %v302
    %v307 = vpack.c.b16 %v305, %v304
    %310 = vmatprep.subr.bf16.mxu0 0
    %311 = vmatpush1.bf16.msra.mxu0 %v306
    %312 = vmatprep.subr.bf16.mxu0 0
    %313 = vmatpush1.bf16.msra.mxu0 %v307
    %314 = vmatprep.subr.bf16.mxu0 0
    %315 = vmatpush1.bf16.msra.mxu0 0
    %316 = vmatprep.subr.bf16.mxu0 0
    %317 = vmatpush1.bf16.msra.mxu0 0
    %318 = vmatprep.subr.bf16.mxu0 0
    %319 = vmatpush1.bf16.msra.mxu0 0
    %320 = vmatprep.subr.bf16.mxu0 0
    %321 = vmatpush1.bf16.msra.mxu0 0
    %322 = vmatprep.subr.bf16.mxu0 0
    %323 = vmatpush1.bf16.msra.mxu0 0
    %324 = vmatprep.subr.bf16.mxu0 0
    %325 = vmatpush1.bf16.msra.mxu0 0
    %326 = vmatprep.subr.bf16.mxu0 0
    %327 = vmatpush1.bf16.msra.mxu0 0
    %328 = vmatprep.subr.bf16.mxu0 0
    %329 = vmatpush1.bf16.msra.mxu0 0
    %330 = vmatprep.subr.bf16.mxu0 0
    %331 = vmatpush1.bf16.msra.mxu0 0
    %332 = vmatprep.subr.bf16.mxu0 0
    %333 = vmatpush1.bf16.msra.mxu0 0
    %334 = vmatprep.subr.bf16.mxu0 0
    %335 = vmatpush1.bf16.msra.mxu0 0
    %336 = vmatprep.subr.bf16.mxu0 0
    %337 = vmatpush1.bf16.msra.mxu0 0
    %338 = vmatprep.subr.bf16.mxu0 0
    %339 = vmatpush1.bf16.msra.mxu0 0
    %340 = vmatprep.subr.bf16.mxu0 0
    %341 = vmatpush1.bf16.msra.mxu0 0
    %342 = vmatprep.mubr.bf16.mxu0 0
    %343 = vmatmul.mubr.bf16.gmra.mrb[0].mxu0 %v218
    %v344 = vpop.f32.mrb[0].mxu0
    %v345 = vadd.f32 0.0, %v344
    %v346 = vpop.f32.mrb[0].mxu0
    %v347 = vpop.f32.mrb[0].mxu0
    %v348 = vadd.f32 0.0, %v347
    %v349 = vpop.f32.mrb[0].mxu0
    %350 = vmatprep.mubr.bf16.mxu0 0
    %351 = vmatmul.mubr.bf16.gmra.mrb[0].mxu0 %v221
    %v352 = vpop.f32.mrb[0].mxu0
    %v353 = vadd.f32 0.0, %v352
    %v354 = vpop.f32.mrb[0].mxu0
    %v355 = vpop.f32.mrb[0].mxu0
    %v356 = vadd.f32 0.0, %v355
    %v357 = vpop.f32.mrb[0].mxu0
    %358 = vmatprep.mubr.bf16.mxu0 0
    %359 = vmatmul.mubr.bf16.gmra.mrb[0].mxu0 %v224
    %v360 = vpop.f32.mrb[0].mxu0
    %v361 = vadd.f32 0.0, %v360
    %v362 = vpop.f32.mrb[0].mxu0
    %v363 = vpop.f32.mrb[0].mxu0
    %v364 = vadd.f32 0.0, %v363
    %v365 = vpop.f32.mrb[0].mxu0
    %366 = vmatprep.mubr.bf16.mxu0 0
    %367 = vmatmul.mubr.bf16.gmra.mrb[0].mxu0 %v227
    %v368 = vpop.f32.mrb[0].mxu0
    %v369 = vadd.f32 0.0, %v368
    %v370 = vpop.f32.mrb[0].mxu0
    %v371 = vpop.f32.mrb[0].mxu0
    %v372 = vadd.f32 0.0, %v371
    %v373 = vpop.f32.mrb[0].mxu0
    %374 = vdwg.mxu0
    %v375 = vlaneseq
    %v376 = vshrl.u32 %v375, 7
    %v377 = vsub.s32 0, %v376
    %v378 = vrot.slane %v196, %v377
    %v379 = vmul.f32 %v378, %v264
    %v380 = vmul.f32 %v378, %v267
    %v381 = vmul.f32 %v378, %v272
    %v382 = vmul.f32 %v378, %v275
    %v383 = vmul.f32 %v378, %v280
    %v384 = vmul.f32 %v378, %v283
    %v385 = vmul.f32 %v378, %v288
    %v386 = vmul.f32 %v378, %v291
    %v387 = vlaneseq
    %v388 = vshrl.u32 %v387, 7
    %v389 = vsub.s32 0, %v388
    %v390 = vrot.slane %v195, %v389
    %v391 = vadd.f32 %v390, %v379
    %v392 = vadd.f32 %v390, %v380
    %v393 = vadd.f32 %v390, %v381
    %v394 = vadd.f32 %v390, %v382
    %v395 = vadd.f32 %v390, %v383
    %v396 = vadd.f32 %v390, %v384
    %v397 = vadd.f32 %v390, %v385
    %v398 = vadd.f32 %v390, %v386
    %v399 = vlaneseq
    %v400 = vshrl.u32 %v399, 7
    %v401 = vsub.s32 7, %v400
    %v402 = vrot.slane %v195, %v401
    %v403 = vmul.f32 %v402, 0.0
    %v404 = vmul.f32 %v402, %v264
    %v405 = vmul.f32 %v402, %v267
    %v406 = vmul.f32 %v402, %v272
    %v407 = vmul.f32 %v402, %v275
    %v408 = vmul.f32 %v402, %v280
    %v409 = vmul.f32 %v402, %v283
    %v410 = vmul.f32 %v402, %v288
    %v411 = vadd.f32 %v391, %v403
    %v412 = vadd.f32 %v392, %v404
    %v413 = vadd.f32 %v393, %v405
    %v414 = vadd.f32 %v394, %v406
    %v415 = vadd.f32 %v395, %v407
    %v416 = vadd.f32 %v396, %v408
    %v417 = vadd.f32 %v397, %v409
    %v418 = vadd.f32 %v398, %v410
    %v419 = vsub.f32 0.0, %v411
    %v420 = vsub.f32 0.0, %v412
    %v421 = vsub.f32 0.0, %v413
    %v422 = vsub.f32 0.0, %v414
    %v423 = vsub.f32 0.0, %v415
    %v424 = vsub.f32 0.0, %v416
    %v425 = vsub.f32 0.0, %v417
    %v426 = vsub.f32 0.0, %v418
    %v427 = vmul.f32 %v419, 1.442695
    %v428 = vpow.pop %v427
    %v429 = vmul.f32 %v420, 1.442695
    %v430 = vpow.pop %v429
    %v431 = vmul.f32 %v421, 1.442695
    %v432 = vpow.pop %v431
    %v433 = vmul.f32 %v422, 1.442695
    %v434 = vpow.pop %v433
    %v435 = vmul.f32 %v423, 1.442695
    %v436 = vpow.pop %v435
    %v437 = vmul.f32 %v424, 1.442695
    %v438 = vpow.pop %v437
    %v439 = vmul.f32 %v425, 1.442695
    %v440 = vpow.pop %v439
    %v441 = vmul.f32 %v426, 1.442695
    %v442 = vpow.pop %v441
    %v443 = vadd.f32 %v428, 1.0
    %v444 = vadd.f32 %v430, 1.0
    %v445 = vadd.f32 %v432, 1.0
    %v446 = vadd.f32 %v434, 1.0
    %v447 = vadd.f32 %v436, 1.0
    %v448 = vadd.f32 %v438, 1.0
    %v449 = vadd.f32 %v440, 1.0
    %v450 = vadd.f32 %v442, 1.0
    %v451 = vrcp.pop %v443
    %v452 = vrcp.pop %v444
    %v453 = vrcp.pop %v445
    %v454 = vrcp.pop %v446
    %v455 = vrcp.pop %v447
    %v456 = vrcp.pop %v448
    %v457 = vrcp.pop %v449
    %v458 = vrcp.pop %v450
    %v459 = vmul.f32 %v411, %v451
    %v460 = vmul.f32 %v412, %v452
    %v461 = vmul.f32 %v413, %v453
    %v462 = vmul.f32 %v414, %v454
    %v463 = vmul.f32 %v415, %v455
    %v464 = vmul.f32 %v416, %v456
    %v465 = vmul.f32 %v417, %v457
    %v466 = vmul.f32 %v418, %v458
    %v467 = vpack.c.bf16 %v460, %v459
    %v468 = vpack.c.bf16 %v462, %v461
    %v469 = vpack.c.bf16 %v464, %v463
    %v470 = vpack.c.bf16 %v466, %v465
    %v471 = vld [vmem:[#allocation9] sm:$0xf]
    %v472 = vld [vmem:[#allocation9 + $0x4] sm:$0xf]
    %v473 = vld [vmem:[#allocation9 + $0x8] sm:$0xf]
    %v474 = vld [vmem:[#allocation9 + $0xc] sm:$0xf]
    %v475 = vld [vmem:[#allocation9 + $0x10] sm:$0xf]
    %v476 = vld [vmem:[#allocation9 + $0x14] sm:$0xf]
    %v477 = vld [vmem:[#allocation9 + $0x18] sm:$0xf]
    %v478 = vld [vmem:[#allocation9 + $0x1c] sm:$0xf]
    %v487 = vunpack.c.l.b16 %v471
    %v488 = vunpack.c.l.b16 %v472
    %v489 = vunpack.c.l.b16 %v473
    %v490 = vunpack.c.l.b16 %v474
    %v491 = vunpack.c.l.b16 %v475
    %v492 = vunpack.c.l.b16 %v476
    %v493 = vunpack.c.l.b16 %v477
    %v494 = vunpack.c.l.b16 %v478
    %v495 = vpack.c.b16 %v488, %v487
    %v496 = vpack.c.b16 %v490, %v489
    %v497 = vpack.c.b16 %v492, %v491
    %v498 = vpack.c.b16 %v494, %v493
    %vm503 = vcmask 523264
    %v505 = vsel %vm503, %v467, 0
    %v508 = vsel %vm503, %v468, 0
    %v511 = vsel %vm503, %v469, 0
    %v514 = vsel %vm503, %v470, 0
    %516 = vmatprep.subr.bf16.mxu0 0
    %517 = vmatpush1.bf16.msra.mxu0 %v495
    %518 = vmatprep.subr.bf16.mxu0 0
    %519 = vmatpush1.bf16.msra.mxu0 %v496
    %520 = vmatprep.subr.bf16.mxu0 0
    %521 = vmatpush1.bf16.msra.mxu0 %v497
    %522 = vmatprep.subr.bf16.mxu0 0
    %523 = vmatpush1.bf16.msra.mxu0 %v498
    %524 = vmatprep.subr.bf16.mxu0 0
    %525 = vmatpush1.bf16.msra.mxu0 0
    %526 = vmatprep.subr.bf16.mxu0 0
    %527 = vmatpush1.bf16.msra.mxu0 0
    %528 = vmatprep.subr.bf16.mxu0 0
    %529 = vmatpush1.bf16.msra.mxu0 0
    %530 = vmatprep.subr.bf16.mxu0 0
    %531 = vmatpush1.bf16.msra.mxu0 0
    %532 = vmatprep.subr.bf16.mxu0 0
    %533 = vmatpush1.bf16.msra.mxu0 0
    %534 = vmatprep.subr.bf16.mxu0 0
    %535 = vmatpush1.bf16.msra.mxu0 0
    %536 = vmatprep.subr.bf16.mxu0 0
    %537 = vmatpush1.bf16.msra.mxu0 0
    %538 = vmatprep.subr.bf16.mxu0 0
    %539 = vmatpush1.bf16.msra.mxu0 0
    %540 = vmatprep.subr.bf16.mxu0 0
    %541 = vmatpush1.bf16.msra.mxu0 0
    %542 = vmatprep.subr.bf16.mxu0 0
    %543 = vmatpush1.bf16.msra.mxu0 0
    %544 = vmatprep.subr.bf16.mxu0 0
    %545 = vmatpush1.bf16.msra.mxu0 0
    %546 = vmatprep.subr.bf16.mxu0 0
    %547 = vmatpush1.bf16.msra.mxu0 0
    %548 = vmatprep.mubr.bf16.mxu0 0
    %549 = vmatmul.mubr.bf16.gmra.mrb[0].mxu0 %v505
    %v550 = vpop.f32.mrb[0].mxu0
    %v551 = vadd.f32 0.0, %v550
    %v552 = vpop.f32.mrb[0].mxu0
    %v553 = vpop.f32.mrb[0].mxu0
    %v554 = vadd.f32 0.0, %v553
    %v555 = vpop.f32.mrb[0].mxu0
    %556 = vmatprep.mubr.bf16.mxu0 0
    %557 = vmatmul.mubr.bf16.gmra.mrb[0].mxu0 %v508
    %v558 = vpop.f32.mrb[0].mxu0
    %v559 = vadd.f32 0.0, %v558
    %v560 = vpop.f32.mrb[0].mxu0
    %v561 = vpop.f32.mrb[0].mxu0
    %v562 = vadd.f32 0.0, %v561
    %v563 = vpop.f32.mrb[0].mxu0
    %564 = vmatprep.mubr.bf16.mxu0 0
    %565 = vmatmul.mubr.bf16.gmra.mrb[0].mxu0 %v511
    %v566 = vpop.f32.mrb[0].mxu0
    %v567 = vadd.f32 0.0, %v566
    %v568 = vpop.f32.mrb[0].mxu0
    %v569 = vpop.f32.mrb[0].mxu0
    %v570 = vadd.f32 0.0, %v569
    %v571 = vpop.f32.mrb[0].mxu0
    %572 = vmatprep.mubr.bf16.mxu0 0
    %573 = vmatmul.mubr.bf16.gmra.mrb[0].mxu0 %v514
    %v574 = vpop.f32.mrb[0].mxu0
    %v575 = vadd.f32 0.0, %v574
    %v576 = vpop.f32.mrb[0].mxu0
    %v577 = vpop.f32.mrb[0].mxu0
    %v578 = vadd.f32 0.0, %v577
    %v579 = vpop.f32.mrb[0].mxu0
    %580 = vdwg.mxu0
    %v581 = vld [vmem:[#allocation11] sm:$0xf]
    %v582 = vld [vmem:[#allocation11 + $0x4] sm:$0xf]
    %v583 = vld [vmem:[#allocation11 + $0x8] sm:$0xf]
    %v584 = vld [vmem:[#allocation11 + $0xc] sm:$0xf]
    %v585 = vld [vmem:[#allocation11 + $0x10] sm:$0xf]
    %v586 = vld [vmem:[#allocation11 + $0x14] sm:$0xf]
    %v587 = vld [vmem:[#allocation11 + $0x18] sm:$0xf]
    %v588 = vld [vmem:[#allocation11 + $0x1c] sm:$0xf]
    %v589 = vlaneseq
    %v590 = vshrl.u32 %v589, 7
    %v591 = vsub.s32 1, %v590
    %v592 = vrot.slane %v195, %v591
    %v601 = vunpack.c.l.b16 %v581
    %v602 = vunpack.c.l.b16 %v582
    %v603 = vunpack.c.l.b16 %v583
    %v604 = vunpack.c.l.b16 %v584
    %v605 = vunpack.c.l.b16 %v585
    %v606 = vunpack.c.l.b16 %v586
    %v607 = vunpack.c.l.b16 %v587
    %v608 = vunpack.c.l.b16 %v588
    %v609 = vpack.c.b16 %v602, %v601
    %v610 = vpack.c.b16 %v604, %v603
    %v611 = vpack.c.b16 %v606, %v605
    %v612 = vpack.c.b16 %v608, %v607
    %617 = vmatprep.subr.bf16.mxu0 0
    %618 = vmatpush1.bf16.msra.mxu0 %v609
    %619 = vmatprep.subr.bf16.mxu0 0
    %620 = vmatpush1.bf16.msra.mxu0 %v610
    %621 = vmatprep.subr.bf16.mxu0 0
    %622 = vmatpush1.bf16.msra.mxu0 %v611
    %623 = vmatprep.subr.bf16.mxu0 0
    %624 = vmatpush1.bf16.msra.mxu0 %v612
    %625 = vmatprep.subr.bf16.mxu0 0
    %626 = vmatpush1.bf16.msra.mxu0 0
    %627 = vmatprep.subr.bf16.mxu0 0
    %628 = vmatpush1.bf16.msra.mxu0 0
    %629 = vmatprep.subr.bf16.mxu0 0
    %630 = vmatpush1.bf16.msra.mxu0 0
    %631 = vmatprep.subr.bf16.mxu0 0
    %632 = vmatpush1.bf16.msra.mxu0 0
    %633 = vmatprep.subr.bf16.mxu0 0
    %634 = vmatpush1.bf16.msra.mxu0 0
    %635 = vmatprep.subr.bf16.mxu0 0
    %636 = vmatpush1.bf16.msra.mxu0 0
    %637 = vmatprep.subr.bf16.mxu0 0
    %638 = vmatpush1.bf16.msra.mxu0 0
    %639 = vmatprep.subr.bf16.mxu0 0
    %640 = vmatpush1.bf16.msra.mxu0 0
    %641 = vmatprep.subr.bf16.mxu0 0
    %642 = vmatpush1.bf16.msra.mxu0 0
    %643 = vmatprep.subr.bf16.mxu0 0
    %644 = vmatpush1.bf16.msra.mxu0 0
    %645 = vmatprep.subr.bf16.mxu0 0
    %646 = vmatpush1.bf16.msra.mxu0 0
    %647 = vmatprep.subr.bf16.mxu0 0
    %648 = vmatpush1.bf16.msra.mxu0 0
    %649 = vmatprep.mubr.bf16.mxu0 0
    %650 = vmatmul.mubr.bf16.gmra.mrb[0].mxu0 %v505
    %v651 = vpop.f32.mrb[0].mxu0
    %v652 = vadd.f32 %v592, %v651
    %v653 = vpop.f32.mrb[0].mxu0
    %v654 = vpop.f32.mrb[0].mxu0
    %v655 = vadd.f32 %v592, %v654
    %v656 = vpop.f32.mrb[0].mxu0
    %657 = vmatprep.mubr.bf16.mxu0 0
    %658 = vmatmul.mubr.bf16.gmra.mrb[0].mxu0 %v508
    %v659 = vpop.f32.mrb[0].mxu0
    %v660 = vadd.f32 %v592, %v659
    %v661 = vpop.f32.mrb[0].mxu0
    %v662 = vpop.f32.mrb[0].mxu0
    %v663 = vadd.f32 %v592, %v662
    %v664 = vpop.f32.mrb[0].mxu0
    %665 = vmatprep.mubr.bf16.mxu0 0
    %666 = vmatmul.mubr.bf16.gmra.mrb[0].mxu0 %v511
    %v667 = vpop.f32.mrb[0].mxu0
    %v668 = vadd.f32 %v592, %v667
    %v669 = vpop.f32.mrb[0].mxu0
    %v670 = vpop.f32.mrb[0].mxu0
    %v671 = vadd.f32 %v592, %v670
    %v672 = vpop.f32.mrb[0].mxu0
    %673 = vmatprep.mubr.bf16.mxu0 0
    %674 = vmatmul.mubr.bf16.gmra.mrb[0].mxu0 %v514
    %v675 = vpop.f32.mrb[0].mxu0
    %v676 = vadd.f32 %v592, %v675
    %v677 = vpop.f32.mrb[0].mxu0
    %v678 = vpop.f32.mrb[0].mxu0
    %v679 = vadd.f32 %v592, %v678
    %v680 = vpop.f32.mrb[0].mxu0
    %681 = vdwg.mxu0
    %vm682 = vcmp.gt.f32.partialorder %v652, 20.0
    %vm683 = vcmp.gt.f32.partialorder %v655, 20.0
    %vm684 = vcmp.gt.f32.partialorder %v660, 20.0
    %vm685 = vcmp.gt.f32.partialorder %v663, 20.0
    %vm686 = vcmp.gt.f32.partialorder %v668, 20.0
    %vm687 = vcmp.gt.f32.partialorder %v671, 20.0
    %vm688 = vcmp.gt.f32.partialorder %v676, 20.0
    %vm689 = vcmp.gt.f32.partialorder %v679, 20.0
    %v690 = vmin.f32 %v652, 20.0
    %v691 = vmin.f32 %v655, 20.0
    %v692 = vmin.f32 %v660, 20.0
    %v693 = vmin.f32 %v663, 20.0
    %v694 = vmin.f32 %v668, 20.0
    %v695 = vmin.f32 %v671, 20.0
    %v696 = vmin.f32 %v676, 20.0
    %v697 = vmin.f32 %v679, 20.0
    %v698 = vmul.f32 %v690, 1.442695
    %v699 = vpow.pop %v698
    %v700 = vmul.f32 %v691, 1.442695
    %v701 = vpow.pop %v700
    %v702 = vmul.f32 %v692, 1.442695
    %v703 = vpow.pop %v702
    %v704 = vmul.f32 %v693, 1.442695
    %v705 = vpow.pop %v704
    %v706 = vmul.f32 %v694, 1.442695
    %v707 = vpow.pop %v706
    %v708 = vmul.f32 %v695, 1.442695
    %v709 = vpow.pop %v708
    %v710 = vmul.f32 %v696, 1.442695
    %v711 = vpow.pop %v710
    %v712 = vmul.f32 %v697, 1.442695
    %v713 = vpow.pop %v712
    %v714 = vadd.f32 %v699, 1.0
    %v715 = vadd.f32 %v701, 1.0
    %v716 = vadd.f32 %v703, 1.0
    %v717 = vadd.f32 %v705, 1.0
    %v718 = vadd.f32 %v707, 1.0
    %v719 = vadd.f32 %v709, 1.0
    %v720 = vadd.f32 %v711, 1.0
    %v721 = vadd.f32 %v713, 1.0
    %v722 = vlog2.pop %v714
    %v723 = vmul.f32 %v722, 0.6931472
    %v724 = vlog2.pop %v715
    %v725 = vmul.f32 %v724, 0.6931472
    %v726 = vlog2.pop %v716
    %v727 = vmul.f32 %v726, 0.6931472
    %v728 = vlog2.pop %v717
    %v729 = vmul.f32 %v728, 0.6931472
    %v730 = vlog2.pop %v718
    %v731 = vmul.f32 %v730, 0.6931472
    %v732 = vlog2.pop %v719
    %v733 = vmul.f32 %v732, 0.6931472
    %v734 = vlog2.pop %v720
    %v735 = vmul.f32 %v734, 0.6931472
    %v736 = vlog2.pop %v721
    %v737 = vmul.f32 %v736, 0.6931472
    %v738 = vsel %vm682, %v652, %v723
    %v739 = vsel %vm683, %v655, %v725
    %v740 = vsel %vm684, %v660, %v727
    %v741 = vsel %vm685, %v663, %v729
    %v742 = vsel %vm686, %v668, %v731
    %v743 = vsel %vm687, %v671, %v733
    %v744 = vsel %vm688, %v676, %v735
    %v745 = vsel %vm689, %v679, %v737
    %v746 = vsub.f32 0.0, %v345
    %v747 = vsub.f32 0.0, %v348
    %v748 = vsub.f32 0.0, %v353
    %v749 = vsub.f32 0.0, %v356
    %v750 = vsub.f32 0.0, %v361
    %v751 = vsub.f32 0.0, %v364
    %v752 = vsub.f32 0.0, %v369
    %v753 = vsub.f32 0.0, %v372
    %v754 = vmul.f32 %v746, 1.442695
    %v755 = vpow.pop %v754
    %v756 = vmul.f32 %v747, 1.442695
    %v757 = vpow.pop %v756
    %v758 = vmul.f32 %v748, 1.442695
    %v759 = vpow.pop %v758
    %v760 = vmul.f32 %v749, 1.442695
    %v761 = vpow.pop %v760
    %v762 = vmul.f32 %v750, 1.442695
    %v763 = vpow.pop %v762
    %v764 = vmul.f32 %v751, 1.442695
    %v765 = vpow.pop %v764
    %v766 = vmul.f32 %v752, 1.442695
    %v767 = vpow.pop %v766
    %v768 = vmul.f32 %v753, 1.442695
    %v769 = vpow.pop %v768
    %v770 = vadd.f32 %v755, 1.0
    %v771 = vadd.f32 %v757, 1.0
    %v772 = vadd.f32 %v759, 1.0
    %v773 = vadd.f32 %v761, 1.0
    %v774 = vadd.f32 %v763, 1.0
    %v775 = vadd.f32 %v765, 1.0
    %v776 = vadd.f32 %v767, 1.0
    %v777 = vadd.f32 %v769, 1.0
    %v778 = vrcp.pop %v770
    %v779 = vrcp.pop %v771
    %v780 = vrcp.pop %v772
    %v781 = vrcp.pop %v773
    %v782 = vrcp.pop %v774
    %v783 = vrcp.pop %v775
    %v784 = vrcp.pop %v776
    %v785 = vrcp.pop %v777
    %v786 = vmul.f32 %v345, %v778
    %v787 = vmul.f32 %v348, %v779
    %v788 = vmul.f32 %v353, %v780
    %v789 = vmul.f32 %v356, %v781
    %v790 = vmul.f32 %v361, %v782
    %v791 = vmul.f32 %v364, %v783
    %v792 = vmul.f32 %v369, %v784
    %v793 = vmul.f32 %v372, %v785
    %v794 = vmul.f32 %v738, %v459
    %v795 = vlaneseq
    %v796 = vshrl.u32 %v795, 7
    %v797 = vsub.s32 2, %v796
    %v798 = vrot.slane %v195, %v797
    %v799 = vmul.f32 %v798, %v459
    %v800 = vlaneseq
    %v801 = vshrl.u32 %v800, 7
    %v802 = vsub.s32 3, %v801
    %v803 = vrot.slane %v199, %v802
    %v804 = vmul.f32 %v738, %v803
    %v805 = vmul.f32 %v804, 1.442695
    %v806 = vpow.pop %v805
    %v807 = vmul.f32 %v806, 0.0
    %809 = vset.pattern.permute.xlu0 0
    %810 = vperm.xlu0 %809, %v551
    %v811 = vpop.permute.xlu0 %810
    %v813 = vmul.f32 %v794, %v811
    %v814 = vadd.f32 %v807, %v813
    %815 = vset.pattern.permute.xlu0 4
    %816 = vperm.xlu0 %815, %v551
    %v817 = vpop.permute.xlu0 %816
    %v819 = vmul.f32 %v814, %v817
    %v820 = vadd.f32 %v799, %v819
    %v821 = vlaneseq
    %v822 = vshrl.u32 %v821, 7
    %v823 = vsub.s32 4, %v822
    %v824 = vrot.slane %v199, %v823
    %v825 = vmul.f32 %v738, %v824
    %v826 = vmul.f32 %v825, 1.442695
    %v827 = vpow.pop %v826
    %v828 = vmul.f32 %v827, 0.0
    %829 = vset.pattern.permute.xlu0 1
    %830 = vperm.xlu0 %829, %v551
    %v831 = vpop.permute.xlu0 %830
    %v833 = vmul.f32 %v794, %v831
    %v834 = vadd.f32 %v828, %v833
    %835 = vset.pattern.permute.xlu0 5
    %836 = vperm.xlu0 %835, %v551
    %v837 = vpop.permute.xlu0 %836
    %v839 = vmul.f32 %v834, %v837
    %v840 = vadd.f32 %v820, %v839
    %v841 = vlaneseq
    %v842 = vshrl.u32 %v841, 7
    %v843 = vsub.s32 5, %v842
    %v844 = vrot.slane %v199, %v843
    %v845 = vmul.f32 %v738, %v844
    %v846 = vmul.f32 %v845, 1.442695
    %v847 = vpow.pop %v846
    %v848 = vmul.f32 %v847, 0.0
    %849 = vset.pattern.permute.xlu0 2
    %850 = vperm.xlu0 %849, %v551
    %v851 = vpop.permute.xlu0 %850
    %v853 = vmul.f32 %v794, %v851
    %v854 = vadd.f32 %v848, %v853
    %855 = vset.pattern.permute.xlu0 6
    %856 = vperm.xlu0 %855, %v551
    %v857 = vpop.permute.xlu0 %856
    %v859 = vmul.f32 %v854, %v857
    %v860 = vadd.f32 %v840, %v859
    %v861 = vlaneseq
    %v862 = vshrl.u32 %v861, 7
    %v863 = vsub.s32 6, %v862
    %v864 = vrot.slane %v199, %v863
    %v865 = vmul.f32 %v738, %v864
    %v866 = vmul.f32 %v865, 1.442695
    %v867 = vpow.pop %v866
    %v868 = vmul.f32 %v867, 0.0
    %869 = vset.pattern.permute.xlu0 3
    %870 = vperm.xlu0 %869, %v551
    %v871 = vpop.permute.xlu0 %870
    %v873 = vmul.f32 %v794, %v871
    %v874 = vadd.f32 %v868, %v873
    %875 = vset.pattern.permute.xlu0 7
    %876 = vperm.xlu0 %875, %v551
    %v877 = vpop.permute.xlu0 %876
    %v879 = vmul.f32 %v874, %v877
    %v880 = vadd.f32 %v860, %v879
    %v881 = vmul.f32 %v880, %v786
    %882 = vst.msk [vmem:[#allocation2] sm:$0xff] %vm503, %v881
    %v883 = vmul.f32 %v739, %v460
    %v884 = vmul.f32 %v798, %v460
    %v885 = vmul.f32 %v739, %v803
    %v886 = vmul.f32 %v885, 1.442695
    %v887 = vpow.pop %v886
    %v888 = vmul.f32 %v887, %v814
    %890 = vset.pattern.permute.xlu0 0
    %891 = vperm.xlu0 %890, %v554
    %v892 = vpop.permute.xlu0 %891
    %v894 = vmul.f32 %v883, %v892
    %v895 = vadd.f32 %v888, %v894
    %896 = vset.pattern.permute.xlu0 4
    %897 = vperm.xlu0 %896, %v554
    %v898 = vpop.permute.xlu0 %897
    %v900 = vmul.f32 %v895, %v898
    %v901 = vadd.f32 %v884, %v900
    %v902 = vmul.f32 %v739, %v824
    %v903 = vmul.f32 %v902, 1.442695
    %v904 = vpow.pop %v903
    %v905 = vmul.f32 %v904, %v834
    %906 = vset.pattern.permute.xlu0 1
    %907 = vperm.xlu0 %906, %v554
    %v908 = vpop.permute.xlu0 %907
    %v910 = vmul.f32 %v883, %v908
    %v911 = vadd.f32 %v905, %v910
    %912 = vset.pattern.permute.xlu0 5
    %913 = vperm.xlu0 %912, %v554
    %v914 = vpop.permute.xlu0 %913
    %v916 = vmul.f32 %v911, %v914
    %v917 = vadd.f32 %v901, %v916
    %v918 = vmul.f32 %v739, %v844
    %v919 = vmul.f32 %v918, 1.442695
    %v920 = vpow.pop %v919
    %v921 = vmul.f32 %v920, %v854
    %922 = vset.pattern.permute.xlu0 2
    %923 = vperm.xlu0 %922, %v554
    %v924 = vpop.permute.xlu0 %923
    %v926 = vmul.f32 %v883, %v924
    %v927 = vadd.f32 %v921, %v926
    %928 = vset.pattern.permute.xlu0 6
    %929 = vperm.xlu0 %928, %v554
    %v930 = vpop.permute.xlu0 %929
    %v932 = vmul.f32 %v927, %v930
    %v933 = vadd.f32 %v917, %v932
    %v934 = vmul.f32 %v739, %v864
    %v935 = vmul.f32 %v934, 1.442695
    %v936 = vpow.pop %v935
    %v937 = vmul.f32 %v936, %v874
    %938 = vset.pattern.permute.xlu0 3
    %939 = vperm.xlu0 %938, %v554
    %v940 = vpop.permute.xlu0 %939
    %v942 = vmul.f32 %v883, %v940
    %v943 = vadd.f32 %v937, %v942
    %944 = vset.pattern.permute.xlu0 7
    %945 = vperm.xlu0 %944, %v554
    %v946 = vpop.permute.xlu0 %945
    %v948 = vmul.f32 %v943, %v946
    %v949 = vadd.f32 %v933, %v948
    %v950 = vmul.f32 %v949, %v787
    %951 = vst.msk [vmem:[#allocation2 + $0x8] sm:$0xff] %vm503, %v950
    %v952 = vmul.f32 %v740, %v461
    %v953 = vmul.f32 %v798, %v461
    %v954 = vmul.f32 %v740, %v803
    %v955 = vmul.f32 %v954, 1.442695
    %v956 = vpow.pop %v955
    %v957 = vmul.f32 %v956, %v895
    %959 = vset.pattern.permute.xlu0 0
    %960 = vperm.xlu0 %959, %v559
    %v961 = vpop.permute.xlu0 %960
    %v963 = vmul.f32 %v952, %v961
    %v964 = vadd.f32 %v957, %v963
    %965 = vset.pattern.permute.xlu0 4
    %966 = vperm.xlu0 %965, %v559
    %v967 = vpop.permute.xlu0 %966
    %v969 = vmul.f32 %v964, %v967
    %v970 = vadd.f32 %v953, %v969
    %v971 = vmul.f32 %v740, %v824
    %v972 = vmul.f32 %v971, 1.442695
    %v973 = vpow.pop %v972
    %v974 = vmul.f32 %v973, %v911
    %975 = vset.pattern.permute.xlu0 1
    %976 = vperm.xlu0 %975, %v559
    %v977 = vpop.permute.xlu0 %976
    %v979 = vmul.f32 %v952, %v977
    %v980 = vadd.f32 %v974, %v979
    %981 = vset.pattern.permute.xlu0 5
    %982 = vperm.xlu0 %981, %v559
    %v983 = vpop.permute.xlu0 %982
    %v985 = vmul.f32 %v980, %v983
    %v986 = vadd.f32 %v970, %v985
    %v987 = vmul.f32 %v740, %v844
    %v988 = vmul.f32 %v987, 1.442695
    %v989 = vpow.pop %v988
    %v990 = vmul.f32 %v989, %v927
    %991 = vset.pattern.permute.xlu0 2
    %992 = vperm.xlu0 %991, %v559
    %v993 = vpop.permute.xlu0 %992
    %v995 = vmul.f32 %v952, %v993
    %v996 = vadd.f32 %v990, %v995
    %997 = vset.pattern.permute.xlu0 6
    %998 = vperm.xlu0 %997, %v559
    %v999 = vpop.permute.xlu0 %998
    %v1001 = vmul.f32 %v996, %v999
    %v1002 = vadd.f32 %v986, %v1001
    %v1003 = vmul.f32 %v740, %v864
    %v1004 = vmul.f32 %v1003, 1.442695
    %v1005 = vpow.pop %v1004
    %v1006 = vmul.f32 %v1005, %v943
    %1007 = vset.pattern.permute.xlu0 3
    %1008 = vperm.xlu0 %1007, %v559
    %v1009 = vpop.permute.xlu0 %1008
    %v1011 = vmul.f32 %v952, %v1009
    %v1012 = vadd.f32 %v1006, %v1011
    %1013 = vset.pattern.permute.xlu0 7
    %1014 = vperm.xlu0 %1013, %v559
    %v1015 = vpop.permute.xlu0 %1014
    %v1017 = vmul.f32 %v1012, %v1015
    %v1018 = vadd.f32 %v1002, %v1017
    %v1019 = vmul.f32 %v1018, %v788
    %1020 = vst.msk [vmem:[#allocation2 + $0x10] sm:$0xff] %vm503, %v1019
    %v1021 = vmul.f32 %v741, %v462
    %v1022 = vmul.f32 %v798, %v462
    %v1023 = vmul.f32 %v741, %v803
    %v1024 = vmul.f32 %v1023, 1.442695
    %v1025 = vpow.pop %v1024
    %v1026 = vmul.f32 %v1025, %v964
    %1028 = vset.pattern.permute.xlu0 0
    %1029 = vperm.xlu0 %1028, %v562
    %v1030 = vpop.permute.xlu0 %1029
    %v1032 = vmul.f32 %v1021, %v1030
    %v1033 = vadd.f32 %v1026, %v1032
    %1034 = vset.pattern.permute.xlu0 4
    %1035 = vperm.xlu0 %1034, %v562
    %v1036 = vpop.permute.xlu0 %1035
    %v1038 = vmul.f32 %v1033, %v1036
    %v1039 = vadd.f32 %v1022, %v1038
    %v1040 = vmul.f32 %v741, %v824
    %v1041 = vmul.f32 %v1040, 1.442695
    %v1042 = vpow.pop %v1041
    %v1043 = vmul.f32 %v1042, %v980
    %1044 = vset.pattern.permute.xlu0 1
    %1045 = vperm.xlu0 %1044, %v562
    %v1046 = vpop.permute.xlu0 %1045
    %v1048 = vmul.f32 %v1021, %v1046
    %v1049 = vadd.f32 %v1043, %v1048
    %1050 = vset.pattern.permute.xlu0 5
    %1051 = vperm.xlu0 %1050, %v562
    %v1052 = vpop.permute.xlu0 %1051
    %v1054 = vmul.f32 %v1049, %v1052
    %v1055 = vadd.f32 %v1039, %v1054
    %v1056 = vmul.f32 %v741, %v844
    %v1057 = vmul.f32 %v1056, 1.442695
    %v1058 = vpow.pop %v1057
    %v1059 = vmul.f32 %v1058, %v996
    %1060 = vset.pattern.permute.xlu0 2
    %1061 = vperm.xlu0 %1060, %v562
    %v1062 = vpop.permute.xlu0 %1061
    %v1064 = vmul.f32 %v1021, %v1062
    %v1065 = vadd.f32 %v1059, %v1064
    %1066 = vset.pattern.permute.xlu0 6
    %1067 = vperm.xlu0 %1066, %v562
    %v1068 = vpop.permute.xlu0 %1067
    %v1070 = vmul.f32 %v1065, %v1068
    %v1071 = vadd.f32 %v1055, %v1070
    %v1072 = vmul.f32 %v741, %v864
    %v1073 = vmul.f32 %v1072, 1.442695
    %v1074 = vpow.pop %v1073
    %v1075 = vmul.f32 %v1074, %v1012
    %1076 = vset.pattern.permute.xlu0 3
    %1077 = vperm.xlu0 %1076, %v562
    %v1078 = vpop.permute.xlu0 %1077
    %v1080 = vmul.f32 %v1021, %v1078
    %v1081 = vadd.f32 %v1075, %v1080
    %1082 = vset.pattern.permute.xlu0 7
    %1083 = vperm.xlu0 %1082, %v562
    %v1084 = vpop.permute.xlu0 %1083
    %v1086 = vmul.f32 %v1081, %v1084
    %v1087 = vadd.f32 %v1071, %v1086
    %v1088 = vmul.f32 %v1087, %v789
    %1089 = vst.msk [vmem:[#allocation2 + $0x18] sm:$0xff] %vm503, %v1088
    %v1090 = vmul.f32 %v742, %v463
    %v1091 = vmul.f32 %v798, %v463
    %v1092 = vmul.f32 %v742, %v803
    %v1093 = vmul.f32 %v1092, 1.442695
    %v1094 = vpow.pop %v1093
    %v1095 = vmul.f32 %v1094, %v1033
    %1097 = vset.pattern.permute.xlu0 0
    %1098 = vperm.xlu0 %1097, %v567
    %v1099 = vpop.permute.xlu0 %1098
    %v1101 = vmul.f32 %v1090, %v1099
    %v1102 = vadd.f32 %v1095, %v1101
    %1103 = vset.pattern.permute.xlu0 4
    %1104 = vperm.xlu0 %1103, %v567
    %v1105 = vpop.permute.xlu0 %1104
    %v1107 = vmul.f32 %v1102, %v1105
    %v1108 = vadd.f32 %v1091, %v1107
    %v1109 = vmul.f32 %v742, %v824
    %v1110 = vmul.f32 %v1109, 1.442695
    %v1111 = vpow.pop %v1110
    %v1112 = vmul.f32 %v1111, %v1049
    %1113 = vset.pattern.permute.xlu0 1
    %1114 = vperm.xlu0 %1113, %v567
    %v1115 = vpop.permute.xlu0 %1114
    %v1117 = vmul.f32 %v1090, %v1115
    %v1118 = vadd.f32 %v1112, %v1117
    %1119 = vset.pattern.permute.xlu0 5
    %1120 = vperm.xlu0 %1119, %v567
    %v1121 = vpop.permute.xlu0 %1120
    %v1123 = vmul.f32 %v1118, %v1121
    %v1124 = vadd.f32 %v1108, %v1123
    %v1125 = vmul.f32 %v742, %v844
    %v1126 = vmul.f32 %v1125, 1.442695
    %v1127 = vpow.pop %v1126
    %v1128 = vmul.f32 %v1127, %v1065
    %1129 = vset.pattern.permute.xlu0 2
    %1130 = vperm.xlu0 %1129, %v567
    %v1131 = vpop.permute.xlu0 %1130
    %v1133 = vmul.f32 %v1090, %v1131
    %v1134 = vadd.f32 %v1128, %v1133
    %1135 = vset.pattern.permute.xlu0 6
    %1136 = vperm.xlu0 %1135, %v567
    %v1137 = vpop.permute.xlu0 %1136
    %v1139 = vmul.f32 %v1134, %v1137
    %v1140 = vadd.f32 %v1124, %v1139
    %v1141 = vmul.f32 %v742, %v864
    %v1142 = vmul.f32 %v1141, 1.442695
    %v1143 = vpow.pop %v1142
    %v1144 = vmul.f32 %v1143, %v1081
    %1145 = vset.pattern.permute.xlu0 3
    %1146 = vperm.xlu0 %1145, %v567
    %v1147 = vpop.permute.xlu0 %1146
    %v1149 = vmul.f32 %v1090, %v1147
    %v1150 = vadd.f32 %v1144, %v1149
    %1151 = vset.pattern.permute.xlu0 7
    %1152 = vperm.xlu0 %1151, %v567
    %v1153 = vpop.permute.xlu0 %1152
    %v1155 = vmul.f32 %v1150, %v1153
    %v1156 = vadd.f32 %v1140, %v1155
    %v1157 = vmul.f32 %v1156, %v790
    %1158 = vst.msk [vmem:[#allocation2 + $0x20] sm:$0xff] %vm503, %v1157
    %v1159 = vmul.f32 %v743, %v464
    %v1160 = vmul.f32 %v798, %v464
    %v1161 = vmul.f32 %v743, %v803
    %v1162 = vmul.f32 %v1161, 1.442695
    %v1163 = vpow.pop %v1162
    %v1164 = vmul.f32 %v1163, %v1102
    %1166 = vset.pattern.permute.xlu0 0
    %1167 = vperm.xlu0 %1166, %v570
    %v1168 = vpop.permute.xlu0 %1167
    %v1170 = vmul.f32 %v1159, %v1168
    %v1171 = vadd.f32 %v1164, %v1170
    %1172 = vset.pattern.permute.xlu0 4
    %1173 = vperm.xlu0 %1172, %v570
    %v1174 = vpop.permute.xlu0 %1173
    %v1176 = vmul.f32 %v1171, %v1174
    %v1177 = vadd.f32 %v1160, %v1176
    %v1178 = vmul.f32 %v743, %v824
    %v1179 = vmul.f32 %v1178, 1.442695
    %v1180 = vpow.pop %v1179
    %v1181 = vmul.f32 %v1180, %v1118
    %1182 = vset.pattern.permute.xlu0 1
    %1183 = vperm.xlu0 %1182, %v570
    %v1184 = vpop.permute.xlu0 %1183
    %v1186 = vmul.f32 %v1159, %v1184
    %v1187 = vadd.f32 %v1181, %v1186
    %1188 = vset.pattern.permute.xlu0 5
    %1189 = vperm.xlu0 %1188, %v570
    %v1190 = vpop.permute.xlu0 %1189
    %v1192 = vmul.f32 %v1187, %v1190
    %v1193 = vadd.f32 %v1177, %v1192
    %v1194 = vmul.f32 %v743, %v844
    %v1195 = vmul.f32 %v1194, 1.442695
    %v1196 = vpow.pop %v1195
    %v1197 = vmul.f32 %v1196, %v1134
    %1198 = vset.pattern.permute.xlu0 2
    %1199 = vperm.xlu0 %1198, %v570
    %v1200 = vpop.permute.xlu0 %1199
    %v1202 = vmul.f32 %v1159, %v1200
    %v1203 = vadd.f32 %v1197, %v1202
    %1204 = vset.pattern.permute.xlu0 6
    %1205 = vperm.xlu0 %1204, %v570
    %v1206 = vpop.permute.xlu0 %1205
    %v1208 = vmul.f32 %v1203, %v1206
    %v1209 = vadd.f32 %v1193, %v1208
    %v1210 = vmul.f32 %v743, %v864
    %v1211 = vmul.f32 %v1210, 1.442695
    %v1212 = vpow.pop %v1211
    %v1213 = vmul.f32 %v1212, %v1150
    %1214 = vset.pattern.permute.xlu0 3
    %1215 = vperm.xlu0 %1214, %v570
    %v1216 = vpop.permute.xlu0 %1215
    %v1218 = vmul.f32 %v1159, %v1216
    %v1219 = vadd.f32 %v1213, %v1218
    %1220 = vset.pattern.permute.xlu0 7
    %1221 = vperm.xlu0 %1220, %v570
    %v1222 = vpop.permute.xlu0 %1221
    %v1224 = vmul.f32 %v1219, %v1222
    %v1225 = vadd.f32 %v1209, %v1224
    %v1226 = vmul.f32 %v1225, %v791
    %1227 = vst.msk [vmem:[#allocation2 + $0x28] sm:$0xff] %vm503, %v1226
    %v1228 = vmul.f32 %v744, %v465
    %v1229 = vmul.f32 %v798, %v465
    %v1230 = vmul.f32 %v744, %v803
    %v1231 = vmul.f32 %v1230, 1.442695
    %v1232 = vpow.pop %v1231
    %v1233 = vmul.f32 %v1232, %v1171
    %1235 = vset.pattern.permute.xlu0 0
    %1236 = vperm.xlu0 %1235, %v575
    %v1237 = vpop.permute.xlu0 %1236
    %v1239 = vmul.f32 %v1228, %v1237
    %v1240 = vadd.f32 %v1233, %v1239
    %1241 = vset.pattern.permute.xlu0 4
    %1242 = vperm.xlu0 %1241, %v575
    %v1243 = vpop.permute.xlu0 %1242
    %v1245 = vmul.f32 %v1240, %v1243
    %v1246 = vadd.f32 %v1229, %v1245
    %v1247 = vmul.f32 %v744, %v824
    %v1248 = vmul.f32 %v1247, 1.442695
    %v1249 = vpow.pop %v1248
    %v1250 = vmul.f32 %v1249, %v1187
    %1251 = vset.pattern.permute.xlu0 1
    %1252 = vperm.xlu0 %1251, %v575
    %v1253 = vpop.permute.xlu0 %1252
    %v1255 = vmul.f32 %v1228, %v1253
    %v1256 = vadd.f32 %v1250, %v1255
    %1257 = vset.pattern.permute.xlu0 5
    %1258 = vperm.xlu0 %1257, %v575
    %v1259 = vpop.permute.xlu0 %1258
    %v1261 = vmul.f32 %v1256, %v1259
    %v1262 = vadd.f32 %v1246, %v1261
    %v1263 = vmul.f32 %v744, %v844
    %v1264 = vmul.f32 %v1263, 1.442695
    %v1265 = vpow.pop %v1264
    %v1266 = vmul.f32 %v1265, %v1203
    %1267 = vset.pattern.permute.xlu0 2
    %1268 = vperm.xlu0 %1267, %v575
    %v1269 = vpop.permute.xlu0 %1268
    %v1271 = vmul.f32 %v1228, %v1269
    %v1272 = vadd.f32 %v1266, %v1271
    %1273 = vset.pattern.permute.xlu0 6
    %1274 = vperm.xlu0 %1273, %v575
    %v1275 = vpop.permute.xlu0 %1274
    %v1277 = vmul.f32 %v1272, %v1275
    %v1278 = vadd.f32 %v1262, %v1277
    %v1279 = vmul.f32 %v744, %v864
    %v1280 = vmul.f32 %v1279, 1.442695
    %v1281 = vpow.pop %v1280
    %v1282 = vmul.f32 %v1281, %v1219
    %1283 = vset.pattern.permute.xlu0 3
    %1284 = vperm.xlu0 %1283, %v575
    %v1285 = vpop.permute.xlu0 %1284
    %v1287 = vmul.f32 %v1228, %v1285
    %v1288 = vadd.f32 %v1282, %v1287
    %1289 = vset.pattern.permute.xlu0 7
    %1290 = vperm.xlu0 %1289, %v575
    %v1291 = vpop.permute.xlu0 %1290
    %v1293 = vmul.f32 %v1288, %v1291
    %v1294 = vadd.f32 %v1278, %v1293
    %v1295 = vmul.f32 %v1294, %v792
    %1296 = vst.msk [vmem:[#allocation2 + $0x30] sm:$0xff] %vm503, %v1295
    %v1297 = vmul.f32 %v745, %v466
    %v1298 = vmul.f32 %v798, %v466
    %v1299 = vmul.f32 %v745, %v803
    %v1300 = vmul.f32 %v1299, 1.442695
    %v1301 = vpow.pop %v1300
    %v1302 = vmul.f32 %v1301, %v1240
    %1304 = vset.pattern.permute.xlu0 0
    %1305 = vperm.xlu0 %1304, %v578
    %v1306 = vpop.permute.xlu0 %1305
    %v1308 = vmul.f32 %v1297, %v1306
    %v1309 = vadd.f32 %v1302, %v1308
    %1310 = vset.pattern.permute.xlu0 4
    %1311 = vperm.xlu0 %1310, %v578
    %v1312 = vpop.permute.xlu0 %1311
    %v1314 = vmul.f32 %v1309, %v1312
    %v1315 = vadd.f32 %v1298, %v1314
    %v1316 = vmul.f32 %v745, %v824
    %v1317 = vmul.f32 %v1316, 1.442695
    %v1318 = vpow.pop %v1317
    %v1319 = vmul.f32 %v1318, %v1256
    %1320 = vset.pattern.permute.xlu0 1
    %1321 = vperm.xlu0 %1320, %v578
    %v1322 = vpop.permute.xlu0 %1321
    %v1324 = vmul.f32 %v1297, %v1322
    %v1325 = vadd.f32 %v1319, %v1324
    %1326 = vset.pattern.permute.xlu0 5
    %1327 = vperm.xlu0 %1326, %v578
    %v1328 = vpop.permute.xlu0 %1327
    %v1330 = vmul.f32 %v1325, %v1328
    %v1331 = vadd.f32 %v1315, %v1330
    %v1332 = vmul.f32 %v745, %v844
    %v1333 = vmul.f32 %v1332, 1.442695
    %v1334 = vpow.pop %v1333
    %v1335 = vmul.f32 %v1334, %v1272
    %1336 = vset.pattern.permute.xlu0 2
    %1337 = vperm.xlu0 %1336, %v578
    %v1338 = vpop.permute.xlu0 %1337
    %v1340 = vmul.f32 %v1297, %v1338
    %v1341 = vadd.f32 %v1335, %v1340
    %1342 = vset.pattern.permute.xlu0 6
    %1343 = vperm.xlu0 %1342, %v578
    %v1344 = vpop.permute.xlu0 %1343
    %v1346 = vmul.f32 %v1341, %v1344
    %v1347 = vadd.f32 %v1331, %v1346
    %v1348 = vmul.f32 %v745, %v864
    %v1349 = vmul.f32 %v1348, 1.442695
    %v1350 = vpow.pop %v1349
    %v1351 = vmul.f32 %v1350, %v1288
    %1352 = vset.pattern.permute.xlu0 3
    %1353 = vperm.xlu0 %1352, %v578
    %v1354 = vpop.permute.xlu0 %1353
    %v1356 = vmul.f32 %v1297, %v1354
    %v1357 = vadd.f32 %v1351, %v1356
    %1358 = vset.pattern.permute.xlu0 7
    %1359 = vperm.xlu0 %1358, %v578
    %v1360 = vpop.permute.xlu0 %1359
    %v1362 = vmul.f32 %v1357, %v1360
    %v1363 = vadd.f32 %v1347, %v1362
    %v1364 = vmul.f32 %v1363, %v793
    %1365 = vst.msk [vmem:[#allocation2 + $0x38] sm:$0xff] %vm503, %v1364
    %v1366 = vld [vmem:[#allocation2] sm:$0xff]
    %v1367 = vld [vmem:[#allocation2 + $0x8] sm:$0xff]
    %v1368 = vld [vmem:[#allocation2 + $0x10] sm:$0xff]
    %v1369 = vld [vmem:[#allocation2 + $0x18] sm:$0xff]
    %v1370 = vld [vmem:[#allocation2 + $0x20] sm:$0xff]
    %v1371 = vld [vmem:[#allocation2 + $0x28] sm:$0xff]
    %v1372 = vld [vmem:[#allocation2 + $0x30] sm:$0xff]
    %v1373 = vld [vmem:[#allocation2 + $0x38] sm:$0xff]
    %v1374 = vpack.c.bf16 %v1367, %v1366
    %v1375 = vpack.c.bf16 %v1369, %v1368
    %v1376 = vpack.c.bf16 %v1371, %v1370
    %v1377 = vpack.c.bf16 %v1373, %v1372
    %v1378 = vld [vmem:[#allocation12] sm:$0xf]
    %v1379 = vld [vmem:[#allocation12 + $0x4] sm:$0xf]
    %v1380 = vld [vmem:[#allocation12 + $0x8] sm:$0xf]
    %v1381 = vld [vmem:[#allocation12 + $0xc] sm:$0xf]
    %v1382 = vld [vmem:[#allocation12 + $0x10] sm:$0xf]
    %v1383 = vld [vmem:[#allocation12 + $0x14] sm:$0xf]
    %v1384 = vld [vmem:[#allocation12 + $0x18] sm:$0xf]
    %v1385 = vld [vmem:[#allocation12 + $0x1c] sm:$0xf]
    %v1394 = vunpack.c.l.b16 %v1378
    %v1395 = vunpack.c.l.b16 %v1379
    %v1396 = vunpack.c.l.b16 %v1380
    %v1397 = vunpack.c.l.b16 %v1381
    %v1398 = vunpack.c.l.b16 %v1382
    %v1399 = vunpack.c.l.b16 %v1383
    %v1400 = vunpack.c.l.b16 %v1384
    %v1401 = vunpack.c.l.b16 %v1385
    %v1402 = vpack.c.b16 %v1395, %v1394
    %v1403 = vpack.c.b16 %v1397, %v1396
    %v1404 = vpack.c.b16 %v1399, %v1398
    %v1405 = vpack.c.b16 %v1401, %v1400
    %v1411 = vsel %vm503, %v1374, 0
    %v1414 = vsel %vm503, %v1375, 0
    %v1417 = vsel %vm503, %v1376, 0
    %v1420 = vsel %vm503, %v1377, 0
    %1422 = vmatprep.subr.bf16.mxu0 0
    %1423 = vmatpush1.bf16.msra.mxu0 %v1402
    %1424 = vmatprep.subr.bf16.mxu0 0
    %1425 = vmatpush1.bf16.msra.mxu0 %v1403
    %1426 = vmatprep.subr.bf16.mxu0 0
    %1427 = vmatpush1.bf16.msra.mxu0 %v1404
    %1428 = vmatprep.subr.bf16.mxu0 0
    %1429 = vmatpush1.bf16.msra.mxu0 %v1405
    %1430 = vmatprep.subr.bf16.mxu0 0
    %1431 = vmatpush1.bf16.msra.mxu0 0
    %1432 = vmatprep.subr.bf16.mxu0 0
    %1433 = vmatpush1.bf16.msra.mxu0 0
    %1434 = vmatprep.subr.bf16.mxu0 0
    %1435 = vmatpush1.bf16.msra.mxu0 0
    %1436 = vmatprep.subr.bf16.mxu0 0
    %1437 = vmatpush1.bf16.msra.mxu0 0
    %1438 = vmatprep.subr.bf16.mxu0 0
    %1439 = vmatpush1.bf16.msra.mxu0 0
    %1440 = vmatprep.subr.bf16.mxu0 0
    %1441 = vmatpush1.bf16.msra.mxu0 0
    %1442 = vmatprep.subr.bf16.mxu0 0
    %1443 = vmatpush1.bf16.msra.mxu0 0
    %1444 = vmatprep.subr.bf16.mxu0 0
    %1445 = vmatpush1.bf16.msra.mxu0 0
    %1446 = vmatprep.subr.bf16.mxu0 0
    %1447 = vmatpush1.bf16.msra.mxu0 0
    %1448 = vmatprep.subr.bf16.mxu0 0
    %1449 = vmatpush1.bf16.msra.mxu0 0
    %1450 = vmatprep.subr.bf16.mxu0 0
    %1451 = vmatpush1.bf16.msra.mxu0 0
    %1452 = vmatprep.subr.bf16.mxu0 0
    %1453 = vmatpush1.bf16.msra.mxu0 0
    %1454 = vmatprep.mubr.bf16.mxu0 0
    %1455 = vmatmul.mubr.bf16.gmra.mrb[0].mxu0 %v1411
    %v1456 = vpop.f32.mrb[0].mxu0
    %v1457 = vadd.f32 0.0, %v1456
    %v1458 = vpop.f32.mrb[0].mxu0
    %v1459 = vpop.f32.mrb[0].mxu0
    %v1460 = vadd.f32 0.0, %v1459
    %v1461 = vpop.f32.mrb[0].mxu0
    %1462 = vmatprep.mubr.bf16.mxu0 0
    %1463 = vmatmul.mubr.bf16.gmra.mrb[0].mxu0 %v1414
    %v1464 = vpop.f32.mrb[0].mxu0
    %v1465 = vadd.f32 0.0, %v1464
    %v1466 = vpop.f32.mrb[0].mxu0
    %v1467 = vpop.f32.mrb[0].mxu0
    %v1468 = vadd.f32 0.0, %v1467
    %v1469 = vpop.f32.mrb[0].mxu0
    %1470 = vmatprep.mubr.bf16.mxu0 0
    %1471 = vmatmul.mubr.bf16.gmra.mrb[0].mxu0 %v1417
    %v1472 = vpop.f32.mrb[0].mxu0
    %v1473 = vadd.f32 0.0, %v1472
    %v1474 = vpop.f32.mrb[0].mxu0
    %v1475 = vpop.f32.mrb[0].mxu0
    %v1476 = vadd.f32 0.0, %v1475
    %v1477 = vpop.f32.mrb[0].mxu0
    %1478 = vmatprep.mubr.bf16.mxu0 0
    %1479 = vmatmul.mubr.bf16.gmra.mrb[0].mxu0 %v1420
    %v1480 = vpop.f32.mrb[0].mxu0
    %v1481 = vadd.f32 0.0, %v1480
    %v1482 = vpop.f32.mrb[0].mxu0
    %v1483 = vpop.f32.mrb[0].mxu0
    %v1484 = vadd.f32 0.0, %v1483
    %v1485 = vpop.f32.mrb[0].mxu0
    %1486 = vdwg.mxu0
    %v1487 = vld [vmem:[#allocation20] sm:$0x7]
    %v1488 = vld [vmem:[#allocation15] sm:$0xff]
    %v1489 = vld [vmem:[#allocation15 + $0x8] sm:$0xff]
    %v1490 = vld [vmem:[#allocation15 + $0x10] sm:$0xff]
    %v1491 = vld [vmem:[#allocation15 + $0x18] sm:$0xff]
    %v1492 = vlaneseq
    %v1493 = vshrl.u32 %v1492, 7
    %v1494 = vsub.s32 0, %v1493
    %v1495 = vrot.slane %v1487, %v1494
    %v1497 = vsel %vm216, %v1457, 0
    %v1500 = vsel %vm216, %v1460, 0
    %v1503 = vsel %vm216, %v1465, 0
    %v1506 = vsel %vm216, %v1468, 0
    %v1509 = vsel %vm216, %v1473, 0
    %v1512 = vsel %vm216, %v1476, 0
    %v1515 = vsel %vm216, %v1481, 0
    %v1518 = vsel %vm216, %v1484, 0
    %1520 = vmatprep.subr.mxu0 0.0
    %1521 = vmatpush1.msra.mxu0 %v1488
    %1522 = vmatprep.subr.mxu0 0.0
    %1523 = vmatpush1.msra.mxu0 %v1489
    %1524 = vmatprep.subr.mxu0 0.0
    %1525 = vmatpush1.msra.mxu0 %v1490
    %1526 = vmatprep.subr.mxu0 0.0
    %1527 = vmatpush1.msra.mxu0 %v1491
    %1528 = vmatprep.subr.mxu0 0.0
    %1529 = vmatpush1.msra.mxu0 0.0
    %1530 = vmatprep.subr.mxu0 0.0
    %1531 = vmatpush1.msra.mxu0 0.0
    %1532 = vmatprep.subr.mxu0 0.0
    %1533 = vmatpush1.msra.mxu0 0.0
    %1534 = vmatprep.subr.mxu0 0.0
    %1535 = vmatpush1.msra.mxu0 0.0
    %1536 = vmatprep.subr.mxu0 0.0
    %1537 = vmatpush1.msra.mxu0 0.0
    %1538 = vmatprep.subr.mxu0 0.0
    %1539 = vmatpush1.msra.mxu0 0.0
    %1540 = vmatprep.subr.mxu0 0.0
    %1541 = vmatpush1.msra.mxu0 0.0
    %1542 = vmatprep.subr.mxu0 0.0
    %1543 = vmatpush1.msra.mxu0 0.0
    %1544 = vmatprep.subr.mxu0 0.0
    %1545 = vmatpush1.msra.mxu0 0.0
    %1546 = vmatprep.subr.mxu0 0.0
    %1547 = vmatpush1.msra.mxu0 0.0
    %1548 = vmatprep.subr.mxu0 0.0
    %1549 = vmatpush1.msra.mxu0 0.0
    %1550 = vmatprep.subr.mxu0 0.0
    %1551 = vmatpush1.msra.mxu0 0.0
    %1552 = vmatprep.subr.mxu0 0.0
    %1553 = vmatpush1.msra.mxu0 0.0
    %1554 = vmatprep.subr.mxu0 0.0
    %1555 = vmatpush1.msra.mxu0 0.0
    %1556 = vmatprep.subr.mxu0 0.0
    %1557 = vmatpush1.msra.mxu0 0.0
    %1558 = vmatprep.subr.mxu0 0.0
    %1559 = vmatpush1.msra.mxu0 0.0
    %1560 = vmatprep.subr.mxu0 0.0
    %1561 = vmatpush1.msra.mxu0 0.0
    %1562 = vmatprep.subr.mxu0 0.0
    %1563 = vmatpush1.msra.mxu0 0.0
    %1564 = vmatprep.subr.mxu0 0.0
    %1565 = vmatpush1.msra.mxu0 0.0
    %1566 = vmatprep.subr.mxu0 0.0
    %1567 = vmatpush1.msra.mxu0 0.0
    %1568 = vmatprep.subr.mxu0 0.0
    %1569 = vmatpush1.msra.mxu0 0.0
    %1570 = vmatprep.subr.mxu0 0.0
    %1571 = vmatpush1.msra.mxu0 0.0
    %1572 = vmatprep.subr.mxu0 0.0
    %1573 = vmatpush1.msra.mxu0 0.0
    %1574 = vmatprep.subr.mxu0 0.0
    %1575 = vmatpush1.msra.mxu0 0.0
    %1576 = vmatprep.subr.mxu0 0.0
    %1577 = vmatpush1.msra.mxu0 0.0
    %1578 = vmatprep.subr.mxu0 0.0
    %1579 = vmatpush1.msra.mxu0 0.0
    %1580 = vmatprep.subr.mxu0 0.0
    %1581 = vmatpush1.msra.mxu0 0.0
    %1582 = vmatprep.subr.mxu0 0.0
    %1583 = vmatpush1.msra.mxu0 0.0
    %1584 = vmatprep.mubr.f32.mxu0 0.0
    %1585 = vmatmul.mubr.f32.gmra.mrb[0].mxu0 %v1497
    %v1586 = vpop.f32.mrb[0].mxu0
    %v1587 = vadd.f32 %v1495, %v1586
    %v1588 = vpop.f32.mrb[0].mxu0
    %1589 = vmatprep.mubr.f32.mxu0 0.0
    %1590 = vmatmul.mubr.f32.gmra.mrb[0].mxu0 %v1500
    %v1591 = vpop.f32.mrb[0].mxu0
    %v1592 = vadd.f32 %v1495, %v1591
    %v1593 = vpop.f32.mrb[0].mxu0
    %1594 = vmatprep.mubr.f32.mxu0 0.0
    %1595 = vmatmul.mubr.f32.gmra.mrb[0].mxu0 %v1503
    %v1596 = vpop.f32.mrb[0].mxu0
    %v1597 = vadd.f32 %v1495, %v1596
    %v1598 = vpop.f32.mrb[0].mxu0
    %1599 = vmatprep.mubr.f32.mxu0 0.0
    %1600 = vmatmul.mubr.f32.gmra.mrb[0].mxu0 %v1506
    %v1601 = vpop.f32.mrb[0].mxu0
    %v1602 = vadd.f32 %v1495, %v1601
    %v1603 = vpop.f32.mrb[0].mxu0
    %1604 = vmatprep.mubr.f32.mxu0 0.0
    %1605 = vmatmul.mubr.f32.gmra.mrb[0].mxu0 %v1509
    %v1606 = vpop.f32.mrb[0].mxu0
    %v1607 = vadd.f32 %v1495, %v1606
    %v1608 = vpop.f32.mrb[0].mxu0
    %1609 = vmatprep.mubr.f32.mxu0 0.0
    %1610 = vmatmul.mubr.f32.gmra.mrb[0].mxu0 %v1512
    %v1611 = vpop.f32.mrb[0].mxu0
    %v1612 = vadd.f32 %v1495, %v1611
    %v1613 = vpop.f32.mrb[0].mxu0
    %1614 = vmatprep.mubr.f32.mxu0 0.0
    %1615 = vmatmul.mubr.f32.gmra.mrb[0].mxu0 %v1515
    %v1616 = vpop.f32.mrb[0].mxu0
    %v1617 = vadd.f32 %v1495, %v1616
    %v1618 = vpop.f32.mrb[0].mxu0
    %1619 = vmatprep.mubr.f32.mxu0 0.0
    %1620 = vmatmul.mubr.f32.gmra.mrb[0].mxu0 %v1518
    %v1621 = vpop.f32.mrb[0].mxu0
    %v1622 = vadd.f32 %v1495, %v1621
    %v1623 = vpop.f32.mrb[0].mxu0
    %1624 = vdwg.mxu0
    %v1625 = vmax.f32 %v1587, 0.0
    %v1626 = vmax.f32 %v1592, 0.0
    %v1627 = vmax.f32 %v1597, 0.0
    %v1628 = vmax.f32 %v1602, 0.0
    %v1629 = vmax.f32 %v1607, 0.0
    %v1630 = vmax.f32 %v1612, 0.0
    %v1631 = vmax.f32 %v1617, 0.0
    %v1632 = vmax.f32 %v1622, 0.0
    %v1633 = vld [vmem:[#allocation17] sm:$0xff]
    %v1634 = vlaneseq
    %v1635 = vshrl.u32 %v1634, 7
    %v1636 = vsub.s32 1, %v1635
    %v1637 = vrot.slane %v1487, %v1636
    %vm1638 = vcmask 64512
    %v1640 = vsel %vm1638, %v1625, 0
    %v1643 = vsel %vm1638, %v1626, 0
    %v1646 = vsel %vm1638, %v1627, 0
    %v1649 = vsel %vm1638, %v1628, 0
    %v1652 = vsel %vm1638, %v1629, 0
    %v1655 = vsel %vm1638, %v1630, 0
    %v1658 = vsel %vm1638, %v1631, 0
    %v1661 = vsel %vm1638, %v1632, 0
    %1663 = vmatprep.subr.mxu0 0.0
    %1664 = vmatpush1.msra.mxu0 %v1633
    %1665 = vmatprep.subr.mxu0 0.0
    %1666 = vmatpush1.msra.mxu0 0.0
    %1667 = vmatprep.subr.mxu0 0.0
    %1668 = vmatpush1.msra.mxu0 0.0
    %1669 = vmatprep.subr.mxu0 0.0
    %1670 = vmatpush1.msra.mxu0 0.0
    %1671 = vmatprep.subr.mxu0 0.0
    %1672 = vmatpush1.msra.mxu0 0.0
    %1673 = vmatprep.subr.mxu0 0.0
    %1674 = vmatpush1.msra.mxu0 0.0
    %1675 = vmatprep.subr.mxu0 0.0
    %1676 = vmatpush1.msra.mxu0 0.0
    %1677 = vmatprep.subr.mxu0 0.0
    %1678 = vmatpush1.msra.mxu0 0.0
    %1679 = vmatprep.subr.mxu0 0.0
    %1680 = vmatpush1.msra.mxu0 0.0
    %1681 = vmatprep.subr.mxu0 0.0
    %1682 = vmatpush1.msra.mxu0 0.0
    %1683 = vmatprep.subr.mxu0 0.0
    %1684 = vmatpush1.msra.mxu0 0.0
    %1685 = vmatprep.subr.mxu0 0.0
    %1686 = vmatpush1.msra.mxu0 0.0
    %1687 = vmatprep.subr.mxu0 0.0
    %1688 = vmatpush1.msra.mxu0 0.0
    %1689 = vmatprep.subr.mxu0 0.0
    %1690 = vmatpush1.msra.mxu0 0.0
    %1691 = vmatprep.subr.mxu0 0.0
    %1692 = vmatpush1.msra.mxu0 0.0
    %1693 = vmatprep.subr.mxu0 0.0
    %1694 = vmatpush1.msra.mxu0 0.0
    %1695 = vmatprep.subr.mxu0 0.0
    %1696 = vmatpush1.msra.mxu0 0.0
    %1697 = vmatprep.subr.mxu0 0.0
    %1698 = vmatpush1.msra.mxu0 0.0
    %1699 = vmatprep.subr.mxu0 0.0
    %1700 = vmatpush1.msra.mxu0 0.0
    %1701 = vmatprep.subr.mxu0 0.0
    %1702 = vmatpush1.msra.mxu0 0.0
    %1703 = vmatprep.subr.mxu0 0.0
    %1704 = vmatpush1.msra.mxu0 0.0
    %1705 = vmatprep.subr.mxu0 0.0
    %1706 = vmatpush1.msra.mxu0 0.0
    %1707 = vmatprep.subr.mxu0 0.0
    %1708 = vmatpush1.msra.mxu0 0.0
    %1709 = vmatprep.subr.mxu0 0.0
    %1710 = vmatpush1.msra.mxu0 0.0
    %1711 = vmatprep.subr.mxu0 0.0
    %1712 = vmatpush1.msra.mxu0 0.0
    %1713 = vmatprep.subr.mxu0 0.0
    %1714 = vmatpush1.msra.mxu0 0.0
    %1715 = vmatprep.subr.mxu0 0.0
    %1716 = vmatpush1.msra.mxu0 0.0
    %1717 = vmatprep.subr.mxu0 0.0
    %1718 = vmatpush1.msra.mxu0 0.0
    %1719 = vmatprep.subr.mxu0 0.0
    %1720 = vmatpush1.msra.mxu0 0.0
    %1721 = vmatprep.subr.mxu0 0.0
    %1722 = vmatpush1.msra.mxu0 0.0
    %1723 = vmatprep.subr.mxu0 0.0
    %1724 = vmatpush1.msra.mxu0 0.0
    %1725 = vmatprep.subr.mxu0 0.0
    %1726 = vmatpush1.msra.mxu0 0.0
    %1727 = vmatprep.mubr.f32.mxu0 0.0
    %1728 = vmatmul.mubr.f32.gmra.mrb[0].mxu0 %v1640
    %v1729 = vpop.f32.mrb[0].mxu0
    %v1730 = vadd.f32 %v1637, %v1729
    %v1731 = vpop.f32.mrb[0].mxu0
    %1732 = vmatprep.mubr.f32.mxu0 0.0
    %1733 = vmatmul.mubr.f32.gmra.mrb[0].mxu0 %v1643
    %v1734 = vpop.f32.mrb[0].mxu0
    %v1735 = vadd.f32 %v1637, %v1734
    %v1736 = vpop.f32.mrb[0].mxu0
    %1737 = vmatprep.mubr.f32.mxu0 0.0
    %1738 = vmatmul.mubr.f32.gmra.mrb[0].mxu0 %v1646
    %v1739 = vpop.f32.mrb[0].mxu0
    %v1740 = vadd.f32 %v1637, %v1739
    %v1741 = vpop.f32.mrb[0].mxu0
    %1742 = vmatprep.mubr.f32.mxu0 0.0
    %1743 = vmatmul.mubr.f32.gmra.mrb[0].mxu0 %v1649
    %v1744 = vpop.f32.mrb[0].mxu0
    %v1745 = vadd.f32 %v1637, %v1744
    %v1746 = vpop.f32.mrb[0].mxu0
    %1747 = vmatprep.mubr.f32.mxu0 0.0
    %1748 = vmatmul.mubr.f32.gmra.mrb[0].mxu0 %v1652
    %v1749 = vpop.f32.mrb[0].mxu0
    %v1750 = vadd.f32 %v1637, %v1749
    %v1751 = vpop.f32.mrb[0].mxu0
    %1752 = vmatprep.mubr.f32.mxu0 0.0
    %1753 = vmatmul.mubr.f32.gmra.mrb[0].mxu0 %v1655
    %v1754 = vpop.f32.mrb[0].mxu0
    %v1755 = vadd.f32 %v1637, %v1754
    %v1756 = vpop.f32.mrb[0].mxu0
    %1757 = vmatprep.mubr.f32.mxu0 0.0
    %1758 = vmatmul.mubr.f32.gmra.mrb[0].mxu0 %v1658
    %v1759 = vpop.f32.mrb[0].mxu0
    %v1760 = vadd.f32 %v1637, %v1759
    %v1761 = vpop.f32.mrb[0].mxu0
    %1762 = vmatprep.mubr.f32.mxu0 0.0
    %1763 = vmatmul.mubr.f32.gmra.mrb[0].mxu0 %v1661
    %v1764 = vpop.f32.mrb[0].mxu0
    %v1765 = vadd.f32 %v1637, %v1764
    %v1766 = vpop.f32.mrb[0].mxu0
    %1767 = vdwg.mxu0
    %v1768 = vmax.f32 %v1730, 0.0
    %v1769 = vmax.f32 %v1735, 0.0
    %v1770 = vmax.f32 %v1740, 0.0
    %v1771 = vmax.f32 %v1745, 0.0
    %v1772 = vmax.f32 %v1750, 0.0
    %v1773 = vmax.f32 %v1755, 0.0
    %v1774 = vmax.f32 %v1760, 0.0
    %v1775 = vmax.f32 %v1765, 0.0
    %v1776 = vld [vmem:[#allocation18] sm:$0x3]
    %v1777 = vlaneseq
    %v1778 = vshrl.u32 %v1777, 7
    %v1779 = vsub.s32 2, %v1778
    %v1780 = vrot.slane %v1487, %v1779
    %vm1781 = vcmask 15360
    %v1783 = vsel %vm1781, %v1768, 0
    %v1786 = vsel %vm1781, %v1769, 0
    %v1789 = vsel %vm1781, %v1770, 0
    %v1792 = vsel %vm1781, %v1771, 0
    %v1795 = vsel %vm1781, %v1772, 0
    %v1798 = vsel %vm1781, %v1773, 0
    %v1801 = vsel %vm1781, %v1774, 0
    %v1804 = vsel %vm1781, %v1775, 0
    %vm1806 = vcmask 1041408
    %v1808 = vsel %vm1806, %v1776, 0
    %1810 = vmatprep.subr.mxu0 0.0
    %1811 = vmatpush1.msra.mxu0 %v1808
    %1812 = vmatprep.subr.mxu0 0.0
    %1813 = vmatpush1.msra.mxu0 0.0
    %1814 = vmatprep.subr.mxu0 0.0
    %1815 = vmatpush1.msra.mxu0 0.0
    %1816 = vmatprep.subr.mxu0 0.0
    %1817 = vmatpush1.msra.mxu0 0.0
    %1818 = vmatprep.subr.mxu0 0.0
    %1819 = vmatpush1.msra.mxu0 0.0
    %1820 = vmatprep.subr.mxu0 0.0
    %1821 = vmatpush1.msra.mxu0 0.0
    %1822 = vmatprep.subr.mxu0 0.0
    %1823 = vmatpush1.msra.mxu0 0.0
    %1824 = vmatprep.subr.mxu0 0.0
    %1825 = vmatpush1.msra.mxu0 0.0
    %1826 = vmatprep.subr.mxu0 0.0
    %1827 = vmatpush1.msra.mxu0 0.0
    %1828 = vmatprep.subr.mxu0 0.0
    %1829 = vmatpush1.msra.mxu0 0.0
    %1830 = vmatprep.subr.mxu0 0.0
    %1831 = vmatpush1.msra.mxu0 0.0
    %1832 = vmatprep.subr.mxu0 0.0
    %1833 = vmatpush1.msra.mxu0 0.0
    %1834 = vmatprep.subr.mxu0 0.0
    %1835 = vmatpush1.msra.mxu0 0.0
    %1836 = vmatprep.subr.mxu0 0.0
    %1837 = vmatpush1.msra.mxu0 0.0
    %1838 = vmatprep.subr.mxu0 0.0
    %1839 = vmatpush1.msra.mxu0 0.0
    %1840 = vmatprep.subr.mxu0 0.0
    %1841 = vmatpush1.msra.mxu0 0.0
    %1842 = vmatprep.subr.mxu0 0.0
    %1843 = vmatpush1.msra.mxu0 0.0
    %1844 = vmatprep.subr.mxu0 0.0
    %1845 = vmatpush1.msra.mxu0 0.0
    %1846 = vmatprep.subr.mxu0 0.0
    %1847 = vmatpush1.msra.mxu0 0.0
    %1848 = vmatprep.subr.mxu0 0.0
    %1849 = vmatpush1.msra.mxu0 0.0
    %1850 = vmatprep.subr.mxu0 0.0
    %1851 = vmatpush1.msra.mxu0 0.0
    %1852 = vmatprep.subr.mxu0 0.0
    %1853 = vmatpush1.msra.mxu0 0.0
    %1854 = vmatprep.subr.mxu0 0.0
    %1855 = vmatpush1.msra.mxu0 0.0
    %1856 = vmatprep.subr.mxu0 0.0
    %1857 = vmatpush1.msra.mxu0 0.0
    %1858 = vmatprep.subr.mxu0 0.0
    %1859 = vmatpush1.msra.mxu0 0.0
    %1860 = vmatprep.subr.mxu0 0.0
    %1861 = vmatpush1.msra.mxu0 0.0
    %1862 = vmatprep.subr.mxu0 0.0
    %1863 = vmatpush1.msra.mxu0 0.0
    %1864 = vmatprep.subr.mxu0 0.0
    %1865 = vmatpush1.msra.mxu0 0.0
    %1866 = vmatprep.subr.mxu0 0.0
    %1867 = vmatpush1.msra.mxu0 0.0
    %1868 = vmatprep.subr.mxu0 0.0
    %1869 = vmatpush1.msra.mxu0 0.0
    %1870 = vmatprep.subr.mxu0 0.0
    %1871 = vmatpush1.msra.mxu0 0.0
    %1872 = vmatprep.subr.mxu0 0.0
    %1873 = vmatpush1.msra.mxu0 0.0
    %1874 = vmatprep.mubr.f32.mxu0 0.0
    %1875 = vmatmul.mubr.f32.gmra.mrb[0].mxu0 %v1783
    %v1876 = vpop.f32.mrb[0].mxu0
    %v1877 = vadd.f32 %v1780, %v1876
    %v1878 = vpop.f32.mrb[0].mxu0
    %1879 = vmatprep.mubr.f32.mxu0 0.0
    %1880 = vmatmul.mubr.f32.gmra.mrb[0].mxu0 %v1786
    %v1881 = vpop.f32.mrb[0].mxu0
    %v1882 = vadd.f32 %v1780, %v1881
    %v1883 = vpop.f32.mrb[0].mxu0
    %1884 = vmatprep.mubr.f32.mxu0 0.0
    %1885 = vmatmul.mubr.f32.gmra.mrb[0].mxu0 %v1789
    %v1886 = vpop.f32.mrb[0].mxu0
    %v1887 = vadd.f32 %v1780, %v1886
    %v1888 = vpop.f32.mrb[0].mxu0
    %1889 = vmatprep.mubr.f32.mxu0 0.0
    %1890 = vmatmul.mubr.f32.gmra.mrb[0].mxu0 %v1792
    %v1891 = vpop.f32.mrb[0].mxu0
    %v1892 = vadd.f32 %v1780, %v1891
    %v1893 = vpop.f32.mrb[0].mxu0
    %1894 = vmatprep.mubr.f32.mxu0 0.0
    %1895 = vmatmul.mubr.f32.gmra.mrb[0].mxu0 %v1795
    %v1896 = vpop.f32.mrb[0].mxu0
    %v1897 = vadd.f32 %v1780, %v1896
    %v1898 = vpop.f32.mrb[0].mxu0
    %1899 = vmatprep.mubr.f32.mxu0 0.0
    %1900 = vmatmul.mubr.f32.gmra.mrb[0].mxu0 %v1798
    %v1901 = vpop.f32.mrb[0].mxu0
    %v1902 = vadd.f32 %v1780, %v1901
    %v1903 = vpop.f32.mrb[0].mxu0
    %1904 = vmatprep.mubr.f32.mxu0 0.0
    %1905 = vmatmul.mubr.f32.gmra.mrb[0].mxu0 %v1801
    %v1906 = vpop.f32.mrb[0].mxu0
    %v1907 = vadd.f32 %v1780, %v1906
    %v1908 = vpop.f32.mrb[0].mxu0
    %1909 = vmatprep.mubr.f32.mxu0 0.0
    %1910 = vmatmul.mubr.f32.gmra.mrb[0].mxu0 %v1804
    %v1911 = vpop.f32.mrb[0].mxu0
    %v1912 = vadd.f32 %v1780, %v1911
    %v1913 = vpop.f32.mrb[0].mxu0
    %1914 = vdwg.mxu0
    %v1915 = vmax.f32 %v1877, 0.0
    %v1916 = vmax.f32 %v1882, 0.0
    %v1917 = vmax.f32 %v1887, 0.0
    %v1918 = vmax.f32 %v1892, 0.0
    %v1919 = vmax.f32 %v1897, 0.0
    %v1920 = vmax.f32 %v1902, 0.0
    %v1921 = vmax.f32 %v1907, 0.0
    %v1922 = vmax.f32 %v1912, 0.0
    %v1923 = vmax.f32 %v1915, %v1916
    %v1924 = vmax.f32 %v1923, %v1917
    %v1925 = vmax.f32 %v1924, %v1918
    %v1926 = vmax.f32 %v1925, %v1919
    %v1927 = vmax.f32 %v1926, %v1920
    %v1928 = vmax.f32 %v1927, %v1921
    %v1929 = vmax.f32 %v1928, %v1922
    %v1930 = vsub.f32 %v1915, %v1929
    %v1931 = vmul.f32 %v1930, 1.442695
    %v1932 = vpow.pop %v1931
    %v1933 = vadd.f32 %v1932, 0.0
    %1935 = vset.pattern.permute.xlu0 0
    %1936 = vperm.xlu0 %1935, %v1932
    %v1937 = vpop.permute.xlu0 %1936
    %v1939 = vmul.f32 %v1937, %v183
    %v1940 = vadd.f32 %v1939, 0.0
    %v1941 = vsub.f32 %v1916, %v1929
    %v1942 = vmul.f32 %v1941, 1.442695
    %v1943 = vpow.pop %v1942
    %v1944 = vadd.f32 %v1933, %v1943
    %1946 = vset.pattern.permute.xlu0 0
    %1947 = vperm.xlu0 %1946, %v1943
    %v1948 = vpop.permute.xlu0 %1947
    %v1950 = vmul.f32 %v1948, %v184
    %v1951 = vadd.f32 %v1940, %v1950
    %v1952 = vsub.f32 %v1917, %v1929
    %v1953 = vmul.f32 %v1952, 1.442695
    %v1954 = vpow.pop %v1953
    %v1955 = vadd.f32 %v1944, %v1954
    %1957 = vset.pattern.permute.xlu0 0
    %1958 = vperm.xlu0 %1957, %v1954
    %v1959 = vpop.permute.xlu0 %1958
    %v1961 = vmul.f32 %v1959, %v185
    %v1962 = vadd.f32 %v1951, %v1961
    %v1963 = vsub.f32 %v1918, %v1929
    %v1964 = vmul.f32 %v1963, 1.442695
    %v1965 = vpow.pop %v1964
    %v1966 = vadd.f32 %v1955, %v1965
    %1968 = vset.pattern.permute.xlu0 0
    %1969 = vperm.xlu0 %1968, %v1965
    %v1970 = vpop.permute.xlu0 %1969
    %v1972 = vmul.f32 %v1970, %v186
    %v1973 = vadd.f32 %v1962, %v1972
    %v1974 = vsub.f32 %v1919, %v1929
    %v1975 = vmul.f32 %v1974, 1.442695
    %v1976 = vpow.pop %v1975
    %v1977 = vadd.f32 %v1966, %v1976
    %1979 = vset.pattern.permute.xlu0 0
    %1980 = vperm.xlu0 %1979, %v1976
    %v1981 = vpop.permute.xlu0 %1980
    %v1983 = vmul.f32 %v1981, %v187
    %v1984 = vadd.f32 %v1973, %v1983
    %v1985 = vsub.f32 %v1920, %v1929
    %v1986 = vmul.f32 %v1985, 1.442695
    %v1987 = vpow.pop %v1986
    %v1988 = vadd.f32 %v1977, %v1987
    %1990 = vset.pattern.permute.xlu0 0
    %1991 = vperm.xlu0 %1990, %v1987
    %v1992 = vpop.permute.xlu0 %1991
    %v1994 = vmul.f32 %v1992, %v188
    %v1995 = vadd.f32 %v1984, %v1994
    %v1996 = vsub.f32 %v1921, %v1929
    %v1997 = vmul.f32 %v1996, 1.442695
    %v1998 = vpow.pop %v1997
    %v1999 = vadd.f32 %v1988, %v1998
    %2001 = vset.pattern.permute.xlu0 0
    %2002 = vperm.xlu0 %2001, %v1998
    %v2003 = vpop.permute.xlu0 %2002
    %v2005 = vmul.f32 %v2003, %v189
    %v2006 = vadd.f32 %v1995, %v2005
    %v2007 = vsub.f32 %v1922, %v1929
    %v2008 = vmul.f32 %v2007, 1.442695
    %v2009 = vpow.pop %v2008
    %v2010 = vadd.f32 %v1999, %v2009
    %2012 = vset.pattern.permute.xlu0 0
    %2013 = vperm.xlu0 %2012, %v2009
    %v2014 = vpop.permute.xlu0 %2013
    %v2016 = vmul.f32 %v2014, %v190
    %v2017 = vadd.f32 %v2006, %v2016
    %2019 = vset.pattern.permute.xlu0 0
    %2020 = vperm.xlu0 %2019, %v2010
    %v2021 = vpop.permute.xlu0 %2020
    %v2023 = vrcp.pop %v2021
    %v2024 = vmul.f32 %v2017, %v2023
    %2025 = vst.msk [vmem:[#allocation21] sm:$0xff] %vm216, %v2024
    // Predicated region
    $region90: #{tpu_custom_call.1} parent=1 // pred_check
      _
    $region91: #{tpu_custom_call.1} parent=1 // pred_check_branch
      %2027 = sbr.rel (0) target = $region93
    $region92: #{tpu_custom_call.1} parent=1 // pred_region
      %s2029 = ssub.s32 128, 128
      %2030 = vsyncadd [#allocation5], %s2029
      %s2032 = sshll.u32 [#allocation21], 4
      %s2033 = int_to_ptr.vmem [resolvable:$true] %s2032
      %2035 = dma.vmem_to_hbm [thread:$0]  %s2033, 128, %s11, [#allocation5]
    $region93: #{tpu_custom_call.1} parent=1 // pred_fallthru
      _
    // Predicated region
    $region94: #{tpu_custom_call.1} parent=1 // pred_check
      _
    $region95: #{tpu_custom_call.1} parent=1 // pred_check_branch
      %2037 = sbr.rel (0) target = $region97
    $region96: #{tpu_custom_call.1} parent=1 // pred_region
      %2038 = dma.done [#allocation5], 128
    $region97: #{tpu_custom_call.1} parent=1 // pred_fallthru
      _
    %2039 = vsyncpa [#allocation4], 1
    %2040 = vsyncpa [#allocation7], 1
    %2041 = vsyncpa [#allocation10], 1
    %2042 = vsyncpa [#allocation13], 1
    %2043 = vsyncpa [#allocation16], 1
    %2044 = vsyncpa [#allocation19], 1
    %2045 = vsyncpa [#allocation5], 1

// kernel: tpu_custom_call.1
$region0: #{tpu_custom_call.1}
  #allocation0 [shape = 'u32[]', space=smem, size = 0x4, offset = 0x4, fixed_abs, tag = 'smem constant byte address 0x4 - core index']
  #allocation1 [shape = 'u32[144,128]{1,0:T(1,128)}', space=vmem, size = 0x12000, scoped, tag = 'internal scratch']
  #allocation2 [shape = 'f32[64,64]{1,0:T(8,128)}', space=vmem, size = 0x8000, scoped, tag = 'scratch operand']
  %s0 = inlined_call_operand.hbm [shape: f32[1,64,32], index: 0, kind: input, shape index: {}]
  %s1 = inlined_call_operand.hbm [shape: bf16[32,64], index: 1, kind: input, shape index: {}]
  %s2 = inlined_call_operand.hbm [shape: bf16[32,64], index: 2, kind: input, shape index: {}]
  %s3 = inlined_call_operand.hbm [shape: bf16[64,8], index: 3, kind: input, shape index: {}]
  %s4 = inlined_call_operand.hbm [shape: bf16[64,64], index: 4, kind: input, shape index: {}]
  %s5 = inlined_call_operand.hbm [shape: bf16[64,32], index: 5, kind: input, shape index: {}]
  %s6 = inlined_call_operand.hbm [shape: f32[9,64], index: 6, kind: input, shape index: {}]
  %s7 = inlined_call_operand.hbm [shape: f32[32,8], index: 7, kind: input, shape index: {}]
  %s8 = inlined_call_operand.hbm [shape: f32[8,2], index: 8, kind: input, shape index: {}]
  %s9 = inlined_call_operand.hbm [shape: f32[2,1], index: 9, kind: input, shape index: {}]
  %s10 = inlined_call_operand.hbm [shape: f32[3,8], index: 10, kind: input, shape index: {}]
  %s11 = inlined_call_operand.hbm [shape: f32[1,8,32], index: 11, kind: output, shape index: {}]
  %s12 = sld [smem:[#allocation0]]
  $region98: #{tpu_custom_call.1} parent=0
    _
  %s14 = ssub.s32 1, %s12
  %s15 = scalar_select 0, %s14, %s12
  $region1: #{tpu_custom_call.1} parent=0
    #allocation3 [shape = 'u8[32768]{0}', space=vmem, size = 0x8000, scoped, tag = 'input window, operand 0, single buffered']
    #allocation4 [shape = 's32[1]{0}', space=sflag, size = 0x4, scoped, tag = 'scoped memory for tpu_custom_call.1']
    #allocation5 [shape = 's32[1]{0}', space=sflag, size = 0x4, scoped, tag = 'scoped memory for tpu_custom_call.1']
    #allocation6 [shape = 'u8[8192]{0}', space=vmem, size = 0x2000, scoped, tag = 'input window, operand 1, single buffered']
    #allocation7 [shape = 's32[1]{0}', space=sflag, size = 0x4, scoped, tag = 'scoped memory for tpu_custom_call.1']
    #allocation8 [shape = 'u8[8192]{0}', space=vmem, size = 0x2000, scoped, tag = 'input window, operand 2, single buffered']
    #allocation9 [shape = 'u8[16384]{0}', space=vmem, size = 0x4000, scoped, tag = 'input window, operand 3, single buffered']
    #allocation10 [shape = 's32[1]{0}', space=sflag, size = 0x4, scoped, tag = 'scoped memory for tpu_custom_call.1']
    #allocation11 [shape = 'u8[16384]{0}', space=vmem, size = 0x4000, scoped, tag = 'input window, operand 4, single buffered']
    #allocation12 [shape = 'u8[16384]{0}', space=vmem, size = 0x4000, scoped, tag = 'input window, operand 5, single buffered']
    #allocation13 [shape = 's32[1]{0}', space=sflag, size = 0x4, scoped, tag = 'scoped memory for tpu_custom_call.1']
    #allocation14 [shape = 'u8[8192]{0}', space=vmem, size = 0x2000, scoped, tag = 'input window, operand 6, single buffered']
    #allocation15 [shape = 'u8[16384]{0}', space=vmem, size = 0x4000, scoped, tag = 'input window, operand 7, single buffered']
    #allocation16 [shape = 's32[1]{0}', space=sflag, size = 0x4, scoped, tag = 'scoped memory for tpu_custom_call.1']
    #allocation17 [shape = 'u8[4096]{0}', space=vmem, size = 0x1000, scoped, tag = 'input window, operand 8, single buffered']
    #allocation18 [shape = 'u8[1024]{0}', space=vmem, size = 0x400, scoped, tag = 'input window, operand 9, single buffered']
    #allocation19 [shape = 's32[1]{0}', space=sflag, size = 0x4, scoped, tag = 'scoped memory for tpu_custom_call.1']
    #allocation20 [shape = 'u8[2048]{0}', space=vmem, size = 0x800, scoped, tag = 'input window, operand 10, single buffered']
    #allocation21 [shape = 'u8[4096]{0}', space=vmem, size = 0x1000, scoped, tag = 'output window, operand 0, single buffered']
    %16 = vsyncpa [#allocation4], 0
    %17 = vsyncpa [#allocation7], 0
    %18 = vsyncpa [#allocation10], 0
    %19 = vsyncpa [#allocation13], 0
    %20 = vsyncpa [#allocation16], 0
    %21 = vsyncpa [#allocation19], 0
    %22 = vsyncpa [#allocation5], 0
    // Predicated region
    $region2: #{tpu_custom_call.1} parent=1 // pred_check
      _
    $region3: #{tpu_custom_call.1} parent=1 // pred_check_branch
      %24 = sbr.rel (0) target = $region5
    $region4: #{tpu_custom_call.1} parent=1 // pred_region
      %s26 = ssub.s32 1024, 1024
      %27 = vsyncadd [#allocation4], %s26
      %s28 = sshll.u32 [#allocation3], 4
      %s29 = int_to_ptr.vmem [resolvable:$true] %s28
      %34 = dma.hbm_to_vmem [thread:$0]  %s0, 1024, %s29, [#allocation4], 128, 128, 8
    $region5: #{tpu_custom_call.1} parent=1 // pred_fallthru
      _
    // Predicated region
    $region6: #{tpu_custom_call.1} parent=1 // pred_check
      _
    $region7: #{tpu_custom_call.1} parent=1 // pred_check_branch
      %36 = sbr.rel (0) target = $region9
    $region8: #{tpu_custom_call.1} parent=1 // pred_region
      %s38 = ssub.s32 256, 256
      %39 = vsyncadd [#allocation7], %s38
      %s40 = sshll.u32 [#allocation6], 4
      %s41 = int_to_ptr.vmem [resolvable:$true] %s40
      %46 = dma.hbm_to_vmem [thread:$0]  %s1, 256, %s41, [#allocation7], 64, 64, 4
    $region9: #{tpu_custom_call.1} parent=1 // pred_fallthru
      _
    // Predicated region
    $region10: #{tpu_custom_call.1} parent=1 // pred_check
      _
    $region11: #{tpu_custom_call.1} parent=1 // pred_check_branch
      %48 = sbr.rel (0) target = $region13
    $region12: #{tpu_custom_call.1} parent=1 // pred_region
      %s50 = ssub.s32 256, 256
      %51 = vsyncadd [#allocation7], %s50
      %s52 = sshll.u32 [#allocation8], 4
      %s53 = int_to_ptr.vmem [resolvable:$true] %s52
      %58 = dma.hbm_to_vmem [thread:$0]  %s2, 256, %s53, [#allocation7], 64, 64, 4
    $region13: #{tpu_custom_call.1} parent=1 // pred_fallthru
      _
    // Predicated region
    $region14: #{tpu_custom_call.1} parent=1 // pred_check
      _
    $region15: #{tpu_custom_call.1} parent=1 // pred_check_branch
      %60 = sbr.rel (0) target = $region17
    $region16: #{tpu_custom_call.1} parent=1 // pred_region
      %s62 = ssub.s32 512, 512
      %63 = vsyncadd [#allocation10], %s62
      %s64 = sshll.u32 [#allocation9], 4
      %s65 = int_to_ptr.vmem [resolvable:$true] %s64
      %70 = dma.hbm_to_vmem [thread:$0]  %s3, 512, %s65, [#allocation10], 64, 64, 4
    $region17: #{tpu_custom_call.1} parent=1 // pred_fallthru
      _
    // Predicated region
    $region18: #{tpu_custom_call.1} parent=1 // pred_check
      _
    $region19: #{tpu_custom_call.1} parent=1 // pred_check_branch
      %72 = sbr.rel (0) target = $region21
    $region20: #{tpu_custom_call.1} parent=1 // pred_region
      %s74 = ssub.s32 512, 512
      %75 = vsyncadd [#allocation10], %s74
      %s76 = sshll.u32 [#allocation11], 4
      %s77 = int_to_ptr.vmem [resolvable:$true] %s76
      %82 = dma.hbm_to_vmem [thread:$0]  %s4, 512, %s77, [#allocation10], 64, 64, 4
    $region21: #{tpu_custom_call.1} parent=1 // pred_fallthru
      _
    // Predicated region
    $region22: #{tpu_custom_call.1} parent=1 // pred_check
      _
    $region23: #{tpu_custom_call.1} parent=1 // pred_check_branch
      %84 = sbr.rel (0) target = $region25
    $region24: #{tpu_custom_call.1} parent=1 // pred_region
      %s86 = ssub.s32 512, 512
      %87 = vsyncadd [#allocation13], %s86
      %s88 = sshll.u32 [#allocation12], 4
      %s89 = int_to_ptr.vmem [resolvable:$true] %s88
      %94 = dma.hbm_to_vmem [thread:$0]  %s5, 512, %s89, [#allocation13], 64, 64, 4
    $region25: #{tpu_custom_call.1} parent=1 // pred_fallthru
      _
    // Predicated region
    $region26: #{tpu_custom_call.1} parent=1 // pred_check
      _
    $region27: #{tpu_custom_call.1} parent=1 // pred_check_branch
      %96 = sbr.rel (0) target = $region29
    $region28: #{tpu_custom_call.1} parent=1 // pred_region
      %s98 = ssub.s32 256, 256
      %99 = vsyncadd [#allocation13], %s98
      %s100 = sshll.u32 [#allocation14], 4
      %s101 = int_to_ptr.vmem [resolvable:$true] %s100
      %106 = dma.hbm_to_vmem [thread:$0]  %s6, 256, %s101, [#allocation13], 128, 128, 8
    $region29: #{tpu_custom_call.1} parent=1 // pred_fallthru
      _
    // Predicated region
    $region30: #{tpu_custom_call.1} parent=1 // pred_check
      _
    $region31: #{tpu_custom_call.1} parent=1 // pred_check_branch
      %108 = sbr.rel (0) target = $region33
    $region32: #{tpu_custom_call.1} parent=1 // pred_region
      %s110 = ssub.s32 512, 512
      %111 = vsyncadd [#allocation16], %s110
      %s112 = sshll.u32 [#allocation15], 4
      %s113 = int_to_ptr.vmem [resolvable:$true] %s112
      %118 = dma.hbm_to_vmem [thread:$0]  %s7, 512, %s113, [#allocation16], 128, 128, 8
    $region33: #{tpu_custom_call.1} parent=1 // pred_fallthru
      _
    // Predicated region
    $region34: #{tpu_custom_call.1} parent=1 // pred_check
      _
    $region35: #{tpu_custom_call.1} parent=1 // pred_check_branch
      %120 = sbr.rel (0) target = $region37
    $region36: #{tpu_custom_call.1} parent=1 // pred_region
      %s122 = ssub.s32 128, 128
      %123 = vsyncadd [#allocation16], %s122
      %s125 = sshll.u32 [#allocation17], 4
      %s126 = int_to_ptr.vmem [resolvable:$true] %s125
      %128 = dma.hbm_to_vmem [thread:$0]  %s8, 128, %s126, [#allocation16]
    $region37: #{tpu_custom_call.1} parent=1 // pred_fallthru
      _
    // Predicated region
    $region38: #{tpu_custom_call.1} parent=1 // pred_check
      _
    $region39: #{tpu_custom_call.1} parent=1 // pred_check_branch
      %130 = sbr.rel (0) target = $region41
    $region40: #{tpu_custom_call.1} parent=1 // pred_region
      %s132 = ssub.s32 32, 32
      %133 = vsyncadd [#allocation19], %s132
      %s135 = sshll.u32 [#allocation18], 4
      %s136 = int_to_ptr.vmem [resolvable:$true] %s135
      %138 = dma.hbm_to_vmem [thread:$0]  %s9, 32, %s136, [#allocation19]
    $region41: #{tpu_custom_call.1} parent=1 // pred_fallthru
      _
    // Predicated region
    $region42: #{tpu_custom_call.1} parent=1 // pred_check
      _
    $region43: #{tpu_custom_call.1} parent=1 // pred_check_branch
      %140 = sbr.rel (0) target = $region45
    $region44: #{tpu_custom_call.1} parent=1 // pred_region
      %s142 = ssub.s32 64, 64
      %143 = vsyncadd [#allocation19], %s142
      %s145 = sshll.u32 [#allocation20], 4
      %s146 = int_to_ptr.vmem [resolvable:$true] %s145
      %148 = dma.hbm_to_vmem [thread:$0]  %s10, 64, %s146, [#allocation19]
    $region45: #{tpu_custom_call.1} parent=1 // pred_fallthru
      _
    // Predicated region
    $region46: #{tpu_custom_call.1} parent=1 // pred_check
      _
    $region47: #{tpu_custom_call.1} parent=1 // pred_check_branch
      %150 = sbr.rel (0) target = $region49
    $region48: #{tpu_custom_call.1} parent=1 // pred_region
      %151 = dma.done [#allocation4], 1024
    $region49: #{tpu_custom_call.1} parent=1 // pred_fallthru
      _
    // Predicated region
    $region50: #{tpu_custom_call.1} parent=1 // pred_check
      _
    $region51: #{tpu_custom_call.1} parent=1 // pred_check_branch
      %153 = sbr.rel (0) target = $region53
    $region52: #{tpu_custom_call.1} parent=1 // pred_region
      %154 = dma.done [#allocation7], 256
    $region53: #{tpu_custom_call.1} parent=1 // pred_fallthru
      _
    // Predicated region
    $region54: #{tpu_custom_call.1} parent=1 // pred_check
      _
    $region55: #{tpu_custom_call.1} parent=1 // pred_check_branch
      %156 = sbr.rel (0) target = $region57
    $region56: #{tpu_custom_call.1} parent=1 // pred_region
      %157 = dma.done [#allocation7], 256
    $region57: #{tpu_custom_call.1} parent=1 // pred_fallthru
      _
    // Predicated region
    $region58: #{tpu_custom_call.1} parent=1 // pred_check
      _
    $region59: #{tpu_custom_call.1} parent=1 // pred_check_branch
      %159 = sbr.rel (0) target = $region61
    $region60: #{tpu_custom_call.1} parent=1 // pred_region
      %160 = dma.done [#allocation10], 512
    $region61: #{tpu_custom_call.1} parent=1 // pred_fallthru
      _
    // Predicated region
    $region62: #{tpu_custom_call.1} parent=1 // pred_check
      _
    $region63: #{tpu_custom_call.1} parent=1 // pred_check_branch
      %162 = sbr.rel (0) target = $region65
    $region64: #{tpu_custom_call.1} parent=1 // pred_region
      %163 = dma.done [#allocation10], 512
    $region65: #{tpu_custom_call.1} parent=1 // pred_fallthru
      _
    // Predicated region
    $region66: #{tpu_custom_call.1} parent=1 // pred_check
      _
    $region67: #{tpu_custom_call.1} parent=1 // pred_check_branch
      %165 = sbr.rel (0) target = $region69
    $region68: #{tpu_custom_call.1} parent=1 // pred_region
      %166 = dma.done [#allocation13], 512
    $region69: #{tpu_custom_call.1} parent=1 // pred_fallthru
      _
    // Predicated region
    $region70: #{tpu_custom_call.1} parent=1 // pred_check
      _
    $region71: #{tpu_custom_call.1} parent=1 // pred_check_branch
      %168 = sbr.rel (0) target = $region73
    $region72: #{tpu_custom_call.1} parent=1 // pred_region
      %169 = dma.done [#allocation13], 256
    $region73: #{tpu_custom_call.1} parent=1 // pred_fallthru
      _
    // Predicated region
    $region74: #{tpu_custom_call.1} parent=1 // pred_check
      _
    $region75: #{tpu_custom_call.1} parent=1 // pred_check_branch
      %171 = sbr.rel (0) target = $region77
    $region76: #{tpu_custom_call.1} parent=1 // pred_region
      %172 = dma.done [#allocation16], 512
    $region77: #{tpu_custom_call.1} parent=1 // pred_fallthru
      _
    // Predicated region
    $region78: #{tpu_custom_call.1} parent=1 // pred_check
      _
    $region79: #{tpu_custom_call.1} parent=1 // pred_check_branch
      %174 = sbr.rel (0) target = $region81
    $region80: #{tpu_custom_call.1} parent=1 // pred_region
      %175 = dma.done [#allocation16], 128
    $region81: #{tpu_custom_call.1} parent=1 // pred_fallthru
      _
    // Predicated region
    $region82: #{tpu_custom_call.1} parent=1 // pred_check
      _
    $region83: #{tpu_custom_call.1} parent=1 // pred_check_branch
      %177 = sbr.rel (0) target = $region85
    $region84: #{tpu_custom_call.1} parent=1 // pred_region
      %178 = dma.done [#allocation19], 32
    $region85: #{tpu_custom_call.1} parent=1 // pred_fallthru
      _
    // Predicated region
    $region86: #{tpu_custom_call.1} parent=1 // pred_check
      _
    $region87: #{tpu_custom_call.1} parent=1 // pred_check_branch
      %180 = sbr.rel (0) target = $region89
    $region88: #{tpu_custom_call.1} parent=1 // pred_region
      %181 = dma.done [#allocation19], 64
    $region89: #{tpu_custom_call.1} parent=1 // pred_fallthru
      _
    %v183 = vld [vmem:[#allocation3] sm:$0xff]
    %v184 = vld [vmem:[#allocation3 + $0x8] sm:$0xff]
    %v185 = vld [vmem:[#allocation3 + $0x10] sm:$0xff]
    %v186 = vld [vmem:[#allocation3 + $0x18] sm:$0xff]
    %v187 = vld [vmem:[#allocation3 + $0x20] sm:$0xff]
    %v188 = vld [vmem:[#allocation3 + $0x28] sm:$0xff]
    %v189 = vld [vmem:[#allocation3 + $0x30] sm:$0xff]
    %v190 = vld [vmem:[#allocation3 + $0x38] sm:$0xff]
    %v191 = vpack.c.bf16 %v184, %v183
    %v192 = vpack.c.bf16 %v186, %v185
    %v193 = vpack.c.bf16 %v188, %v187
    %v194 = vpack.c.bf16 %v190, %v189
    %v195 = vld [vmem:[#allocation14] sm:$0xff]
    %v196 = vld [vmem:[#allocation14 + $0x8] sm:$0x1]
    %v197 = vmul.f32 %v195, 1.442695
    %v198 = vpow.pop %v197
    %v199 = vsub.f32 0.0, %v198
    %v200 = vld [vmem:[#allocation6] sm:$0xf]
    %v201 = vld [vmem:[#allocation6 + $0x4] sm:$0xf]
    %v202 = vld [vmem:[#allocation6 + $0x8] sm:$0xf]
    %v203 = vld [vmem:[#allocation6 + $0xc] sm:$0xf]
    %v208 = vunpack.c.l.b16 %v200
    %v209 = vunpack.c.l.b16 %v201
    %v210 = vunpack.c.l.b16 %v202
    %v211 = vunpack.c.l.b16 %v203
    %v212 = vpack.c.b16 %v209, %v208
    %v213 = vpack.c.b16 %v211, %v210
    %vm216 = vcmask 261120
    %v218 = vsel %vm216, %v191, 0
    %v221 = vsel %vm216, %v192, 0
    %v224 = vsel %vm216, %v193, 0
    %v227 = vsel %vm216, %v194, 0
    %229 = vmatprep.subr.bf16.mxu0 0
    %230 = vmatpush1.bf16.msra.mxu0 %v212
    %231 = vmatprep.subr.bf16.mxu0 0
    %232 = vmatpush1.bf16.msra.mxu0 %v213
    %233 = vmatprep.subr.bf16.mxu0 0
    %234 = vmatpush1.bf16.msra.mxu0 0
    %235 = vmatprep.subr.bf16.mxu0 0
    %236 = vmatpush1.bf16.msra.mxu0 0
    %237 = vmatprep.subr.bf16.mxu0 0
    %238 = vmatpush1.bf16.msra.mxu0 0
    %239 = vmatprep.subr.bf16.mxu0 0
    %240 = vmatpush1.bf16.msra.mxu0 0
    %241 = vmatprep.subr.bf16.mxu0 0
    %242 = vmatpush1.bf16.msra.mxu0 0
    %243 = vmatprep.subr.bf16.mxu0 0
    %244 = vmatpush1.bf16.msra.mxu0 0
    %245 = vmatprep.subr.bf16.mxu0 0
    %246 = vmatpush1.bf16.msra.mxu0 0
    %247 = vmatprep.subr.bf16.mxu0 0
    %248 = vmatpush1.bf16.msra.mxu0 0
    %249 = vmatprep.subr.bf16.mxu0 0
    %250 = vmatpush1.bf16.msra.mxu0 0
    %251 = vmatprep.subr.bf16.mxu0 0
    %252 = vmatpush1.bf16.msra.mxu0 0
    %253 = vmatprep.subr.bf16.mxu0 0
    %254 = vmatpush1.bf16.msra.mxu0 0
    %255 = vmatprep.subr.bf16.mxu0 0
    %256 = vmatpush1.bf16.msra.mxu0 0
    %257 = vmatprep.subr.bf16.mxu0 0
    %258 = vmatpush1.bf16.msra.mxu0 0
    %259 = vmatprep.subr.bf16.mxu0 0
    %260 = vmatpush1.bf16.msra.mxu0 0
    %261 = vmatprep.mubr.bf16.mxu0 0
    %262 = vmatmul.mubr.bf16.gmra.mrb[0].mxu0 %v218
    %v263 = vpop.f32.mrb[0].mxu0
    %v264 = vadd.f32 0.0, %v263
    %v265 = vpop.f32.mrb[0].mxu0
    %v266 = vpop.f32.mrb[0].mxu0
    %v267 = vadd.f32 0.0, %v266
    %v268 = vpop.f32.mrb[0].mxu0
    %269 = vmatprep.mubr.bf16.mxu0 0
    %270 = vmatmul.mubr.bf16.gmra.mrb[0].mxu0 %v221
    %v271 = vpop.f32.mrb[0].mxu0
    %v272 = vadd.f32 0.0, %v271
    %v273 = vpop.f32.mrb[0].mxu0
    %v274 = vpop.f32.mrb[0].mxu0
    %v275 = vadd.f32 0.0, %v274
    %v276 = vpop.f32.mrb[0].mxu0
    %277 = vmatprep.mubr.bf16.mxu0 0
    %278 = vmatmul.mubr.bf16.gmra.mrb[0].mxu0 %v224
    %v279 = vpop.f32.mrb[0].mxu0
    %v280 = vadd.f32 0.0, %v279
    %v281 = vpop.f32.mrb[0].mxu0
    %v282 = vpop.f32.mrb[0].mxu0
    %v283 = vadd.f32 0.0, %v282
    %v284 = vpop.f32.mrb[0].mxu0
    %285 = vmatprep.mubr.bf16.mxu0 0
    %286 = vmatmul.mubr.bf16.gmra.mrb[0].mxu0 %v227
    %v287 = vpop.f32.mrb[0].mxu0
    %v288 = vadd.f32 0.0, %v287
    %v289 = vpop.f32.mrb[0].mxu0
    %v290 = vpop.f32.mrb[0].mxu0
    %v291 = vadd.f32 0.0, %v290
    %v292 = vpop.f32.mrb[0].mxu0
    %293 = vdwg.mxu0
    %v294 = vld [vmem:[#allocation8] sm:$0xf]
    %v295 = vld [vmem:[#allocation8 + $0x4] sm:$0xf]
    %v296 = vld [vmem:[#allocation8 + $0x8] sm:$0xf]
    %v297 = vld [vmem:[#allocation8 + $0xc] sm:$0xf]
    %v302 = vunpack.c.l.b16 %v294
    %v303 = vunpack.c.l.b16 %v295
    %v304 = vunpack.c.l.b16 %v296
    %v305 = vunpack.c.l.b16 %v297
    %v306 = vpack.c.b16 %v303, %v302
    %v307 = vpack.c.b16 %v305, %v304
    %310 = vmatprep.subr.bf16.mxu0 0
    %311 = vmatpush1.bf16.msra.mxu0 %v306
    %312 = vmatprep.subr.bf16.mxu0 0
    %313 = vmatpush1.bf16.msra.mxu0 %v307
    %314 = vmatprep.subr.bf16.mxu0 0
    %315 = vmatpush1.bf16.msra.mxu0 0
    %316 = vmatprep.subr.bf16.mxu0 0
    %317 = vmatpush1.bf16.msra.mxu0 0
    %318 = vmatprep.subr.bf16.mxu0 0
    %319 = vmatpush1.bf16.msra.mxu0 0
    %320 = vmatprep.subr.bf16.mxu0 0
    %321 = vmatpush1.bf16.msra.mxu0 0
    %322 = vmatprep.subr.bf16.mxu0 0
    %323 = vmatpush1.bf16.msra.mxu0 0
    %324 = vmatprep.subr.bf16.mxu0 0
    %325 = vmatpush1.bf16.msra.mxu0 0
    %326 = vmatprep.subr.bf16.mxu0 0
    %327 = vmatpush1.bf16.msra.mxu0 0
    %328 = vmatprep.subr.bf16.mxu0 0
    %329 = vmatpush1.bf16.msra.mxu0 0
    %330 = vmatprep.subr.bf16.mxu0 0
    %331 = vmatpush1.bf16.msra.mxu0 0
    %332 = vmatprep.subr.bf16.mxu0 0
    %333 = vmatpush1.bf16.msra.mxu0 0
    %334 = vmatprep.subr.bf16.mxu0 0
    %335 = vmatpush1.bf16.msra.mxu0 0
    %336 = vmatprep.subr.bf16.mxu0 0
    %337 = vmatpush1.bf16.msra.mxu0 0
    %338 = vmatprep.subr.bf16.mxu0 0
    %339 = vmatpush1.bf16.msra.mxu0 0
    %340 = vmatprep.subr.bf16.mxu0 0
    %341 = vmatpush1.bf16.msra.mxu0 0
    %342 = vmatprep.mubr.bf16.mxu0 0
    %343 = vmatmul.mubr.bf16.gmra.mrb[0].mxu0 %v218
    %v344 = vpop.f32.mrb[0].mxu0
    %v345 = vadd.f32 0.0, %v344
    %v346 = vpop.f32.mrb[0].mxu0
    %v347 = vpop.f32.mrb[0].mxu0
    %v348 = vadd.f32 0.0, %v347
    %v349 = vpop.f32.mrb[0].mxu0
    %350 = vmatprep.mubr.bf16.mxu0 0
    %351 = vmatmul.mubr.bf16.gmra.mrb[0].mxu0 %v221
    %v352 = vpop.f32.mrb[0].mxu0
    %v353 = vadd.f32 0.0, %v352
    %v354 = vpop.f32.mrb[0].mxu0
    %v355 = vpop.f32.mrb[0].mxu0
    %v356 = vadd.f32 0.0, %v355
    %v357 = vpop.f32.mrb[0].mxu0
    %358 = vmatprep.mubr.bf16.mxu0 0
    %359 = vmatmul.mubr.bf16.gmra.mrb[0].mxu0 %v224
    %v360 = vpop.f32.mrb[0].mxu0
    %v361 = vadd.f32 0.0, %v360
    %v362 = vpop.f32.mrb[0].mxu0
    %v363 = vpop.f32.mrb[0].mxu0
    %v364 = vadd.f32 0.0, %v363
    %v365 = vpop.f32.mrb[0].mxu0
    %366 = vmatprep.mubr.bf16.mxu0 0
    %367 = vmatmul.mubr.bf16.gmra.mrb[0].mxu0 %v227
    %v368 = vpop.f32.mrb[0].mxu0
    %v369 = vadd.f32 0.0, %v368
    %v370 = vpop.f32.mrb[0].mxu0
    %v371 = vpop.f32.mrb[0].mxu0
    %v372 = vadd.f32 0.0, %v371
    %v373 = vpop.f32.mrb[0].mxu0
    %374 = vdwg.mxu0
    %v375 = vlaneseq
    %v376 = vshrl.u32 %v375, 7
    %v377 = vsub.s32 0, %v376
    %v378 = vrot.slane %v196, %v377
    %v379 = vmul.f32 %v378, %v264
    %v380 = vmul.f32 %v378, %v267
    %v381 = vmul.f32 %v378, %v272
    %v382 = vmul.f32 %v378, %v275
    %v383 = vmul.f32 %v378, %v280
    %v384 = vmul.f32 %v378, %v283
    %v385 = vmul.f32 %v378, %v288
    %v386 = vmul.f32 %v378, %v291
    %v387 = vlaneseq
    %v388 = vshrl.u32 %v387, 7
    %v389 = vsub.s32 0, %v388
    %v390 = vrot.slane %v195, %v389
    %v391 = vadd.f32 %v390, %v379
    %v392 = vadd.f32 %v390, %v380
    %v393 = vadd.f32 %v390, %v381
    %v394 = vadd.f32 %v390, %v382
    %v395 = vadd.f32 %v390, %v383
    %v396 = vadd.f32 %v390, %v384
    %v397 = vadd.f32 %v390, %v385
    %v398 = vadd.f32 %v390, %v386
    %v399 = vlaneseq
    %v400 = vshrl.u32 %v399, 7
    %v401 = vsub.s32 7, %v400
    %v402 = vrot.slane %v195, %v401
    %v403 = vmul.f32 %v402, 0.0
    %v404 = vmul.f32 %v402, %v264
    %v405 = vmul.f32 %v402, %v267
    %v406 = vmul.f32 %v402, %v272
    %v407 = vmul.f32 %v402, %v275
    %v408 = vmul.f32 %v402, %v280
    %v409 = vmul.f32 %v402, %v283
    %v410 = vmul.f32 %v402, %v288
    %v411 = vadd.f32 %v391, %v403
    %v412 = vadd.f32 %v392, %v404
    %v413 = vadd.f32 %v393, %v405
    %v414 = vadd.f32 %v394, %v406
    %v415 = vadd.f32 %v395, %v407
    %v416 = vadd.f32 %v396, %v408
    %v417 = vadd.f32 %v397, %v409
    %v418 = vadd.f32 %v398, %v410
    %v419 = vsub.f32 0.0, %v411
    %v420 = vsub.f32 0.0, %v412
    %v421 = vsub.f32 0.0, %v413
    %v422 = vsub.f32 0.0, %v414
    %v423 = vsub.f32 0.0, %v415
    %v424 = vsub.f32 0.0, %v416
    %v425 = vsub.f32 0.0, %v417
    %v426 = vsub.f32 0.0, %v418
    %v427 = vmul.f32 %v419, 1.442695
    %v428 = vpow.pop %v427
    %v429 = vmul.f32 %v420, 1.442695
    %v430 = vpow.pop %v429
    %v431 = vmul.f32 %v421, 1.442695
    %v432 = vpow.pop %v431
    %v433 = vmul.f32 %v422, 1.442695
    %v434 = vpow.pop %v433
    %v435 = vmul.f32 %v423, 1.442695
    %v436 = vpow.pop %v435
    %v437 = vmul.f32 %v424, 1.442695
    %v438 = vpow.pop %v437
    %v439 = vmul.f32 %v425, 1.442695
    %v440 = vpow.pop %v439
    %v441 = vmul.f32 %v426, 1.442695
    %v442 = vpow.pop %v441
    %v443 = vadd.f32 %v428, 1.0
    %v444 = vadd.f32 %v430, 1.0
    %v445 = vadd.f32 %v432, 1.0
    %v446 = vadd.f32 %v434, 1.0
    %v447 = vadd.f32 %v436, 1.0
    %v448 = vadd.f32 %v438, 1.0
    %v449 = vadd.f32 %v440, 1.0
    %v450 = vadd.f32 %v442, 1.0
    %v451 = vrcp.pop %v443
    %v452 = vrcp.pop %v444
    %v453 = vrcp.pop %v445
    %v454 = vrcp.pop %v446
    %v455 = vrcp.pop %v447
    %v456 = vrcp.pop %v448
    %v457 = vrcp.pop %v449
    %v458 = vrcp.pop %v450
    %v459 = vmul.f32 %v411, %v451
    %v460 = vmul.f32 %v412, %v452
    %v461 = vmul.f32 %v413, %v453
    %v462 = vmul.f32 %v414, %v454
    %v463 = vmul.f32 %v415, %v455
    %v464 = vmul.f32 %v416, %v456
    %v465 = vmul.f32 %v417, %v457
    %v466 = vmul.f32 %v418, %v458
    %v467 = vpack.c.bf16 %v460, %v459
    %v468 = vpack.c.bf16 %v462, %v461
    %v469 = vpack.c.bf16 %v464, %v463
    %v470 = vpack.c.bf16 %v466, %v465
    %v471 = vld [vmem:[#allocation9] sm:$0xf]
    %v472 = vld [vmem:[#allocation9 + $0x4] sm:$0xf]
    %v473 = vld [vmem:[#allocation9 + $0x8] sm:$0xf]
    %v474 = vld [vmem:[#allocation9 + $0xc] sm:$0xf]
    %v475 = vld [vmem:[#allocation9 + $0x10] sm:$0xf]
    %v476 = vld [vmem:[#allocation9 + $0x14] sm:$0xf]
    %v477 = vld [vmem:[#allocation9 + $0x18] sm:$0xf]
    %v478 = vld [vmem:[#allocation9 + $0x1c] sm:$0xf]
    %v487 = vunpack.c.l.b16 %v471
    %v488 = vunpack.c.l.b16 %v472
    %v489 = vunpack.c.l.b16 %v473
    %v490 = vunpack.c.l.b16 %v474
    %v491 = vunpack.c.l.b16 %v475
    %v492 = vunpack.c.l.b16 %v476
    %v493 = vunpack.c.l.b16 %v477
    %v494 = vunpack.c.l.b16 %v478
    %v495 = vpack.c.b16 %v488, %v487
    %v496 = vpack.c.b16 %v490, %v489
    %v497 = vpack.c.b16 %v492, %v491
    %v498 = vpack.c.b16 %v494, %v493
    %vm503 = vcmask 523264
    %v505 = vsel %vm503, %v467, 0
    %v508 = vsel %vm503, %v468, 0
    %v511 = vsel %vm503, %v469, 0
    %v514 = vsel %vm503, %v470, 0
    %516 = vmatprep.subr.bf16.mxu0 0
    %517 = vmatpush1.bf16.msra.mxu0 %v495
    %518 = vmatprep.subr.bf16.mxu0 0
    %519 = vmatpush1.bf16.msra.mxu0 %v496
    %520 = vmatprep.subr.bf16.mxu0 0
    %521 = vmatpush1.bf16.msra.mxu0 %v497
    %522 = vmatprep.subr.bf16.mxu0 0
    %523 = vmatpush1.bf16.msra.mxu0 %v498
    %524 = vmatprep.subr.bf16.mxu0 0
    %525 = vmatpush1.bf16.msra.mxu0 0
    %526 = vmatprep.subr.bf16.mxu0 0
    %527 = vmatpush1.bf16.msra.mxu0 0
    %528 = vmatprep.subr.bf16.mxu0 0
    %529 = vmatpush1.bf16.msra.mxu0 0
    %530 = vmatprep.subr.bf16.mxu0 0
    %531 = vmatpush1.bf16.msra.mxu0 0
    %532 = vmatprep.subr.bf16.mxu0 0
    %533 = vmatpush1.bf16.msra.mxu0 0
    %534 = vmatprep.subr.bf16.mxu0 0
    %535 = vmatpush1.bf16.msra.mxu0 0
    %536 = vmatprep.subr.bf16.mxu0 0
    %537 = vmatpush1.bf16.msra.mxu0 0
    %538 = vmatprep.subr.bf16.mxu0 0
    %539 = vmatpush1.bf16.msra.mxu0 0
    %540 = vmatprep.subr.bf16.mxu0 0
    %541 = vmatpush1.bf16.msra.mxu0 0
    %542 = vmatprep.subr.bf16.mxu0 0
    %543 = vmatpush1.bf16.msra.mxu0 0
    %544 = vmatprep.subr.bf16.mxu0 0
    %545 = vmatpush1.bf16.msra.mxu0 0
    %546 = vmatprep.subr.bf16.mxu0 0
    %547 = vmatpush1.bf16.msra.mxu0 0
    %548 = vmatprep.mubr.bf16.mxu0 0
    %549 = vmatmul.mubr.bf16.gmra.mrb[0].mxu0 %v505
    %v550 = vpop.f32.mrb[0].mxu0
    %v551 = vadd.f32 0.0, %v550
    %v552 = vpop.f32.mrb[0].mxu0
    %v553 = vpop.f32.mrb[0].mxu0
    %v554 = vadd.f32 0.0, %v553
    %v555 = vpop.f32.mrb[0].mxu0
    %556 = vmatprep.mubr.bf16.mxu0 0
    %557 = vmatmul.mubr.bf16.gmra.mrb[0].mxu0 %v508
    %v558 = vpop.f32.mrb[0].mxu0
    %v559 = vadd.f32 0.0, %v558
    %v560 = vpop.f32.mrb[0].mxu0
    %v561 = vpop.f32.mrb[0].mxu0
    %v562 = vadd.f32 0.0, %v561
    %v563 = vpop.f32.mrb[0].mxu0
    %564 = vmatprep.mubr.bf16.mxu0 0
    %565 = vmatmul.mubr.bf16.gmra.mrb[0].mxu0 %v511
    %v566 = vpop.f32.mrb[0].mxu0
    %v567 = vadd.f32 0.0, %v566
    %v568 = vpop.f32.mrb[0].mxu0
    %v569 = vpop.f32.mrb[0].mxu0
    %v570 = vadd.f32 0.0, %v569
    %v571 = vpop.f32.mrb[0].mxu0
    %572 = vmatprep.mubr.bf16.mxu0 0
    %573 = vmatmul.mubr.bf16.gmra.mrb[0].mxu0 %v514
    %v574 = vpop.f32.mrb[0].mxu0
    %v575 = vadd.f32 0.0, %v574
    %v576 = vpop.f32.mrb[0].mxu0
    %v577 = vpop.f32.mrb[0].mxu0
    %v578 = vadd.f32 0.0, %v577
    %v579 = vpop.f32.mrb[0].mxu0
    %580 = vdwg.mxu0
    %v581 = vld [vmem:[#allocation11] sm:$0xf]
    %v582 = vld [vmem:[#allocation11 + $0x4] sm:$0xf]
    %v583 = vld [vmem:[#allocation11 + $0x8] sm:$0xf]
    %v584 = vld [vmem:[#allocation11 + $0xc] sm:$0xf]
    %v585 = vld [vmem:[#allocation11 + $0x10] sm:$0xf]
    %v586 = vld [vmem:[#allocation11 + $0x14] sm:$0xf]
    %v587 = vld [vmem:[#allocation11 + $0x18] sm:$0xf]
    %v588 = vld [vmem:[#allocation11 + $0x1c] sm:$0xf]
    %v589 = vlaneseq
    %v590 = vshrl.u32 %v589, 7
    %v591 = vsub.s32 1, %v590
    %v592 = vrot.slane %v195, %v591
    %v601 = vunpack.c.l.b16 %v581
    %v602 = vunpack.c.l.b16 %v582
    %v603 = vunpack.c.l.b16 %v583
    %v604 = vunpack.c.l.b16 %v584
    %v605 = vunpack.c.l.b16 %v585
    %v606 = vunpack.c.l.b16 %v586
    %v607 = vunpack.c.l.b16 %v587
    %v608 = vunpack.c.l.b16 %v588
    %v609 = vpack.c.b16 %v602, %v601
    %v610 = vpack.c.b16 %v604, %v603
    %v611 = vpack.c.b16 %v606, %v605
    %v612 = vpack.c.b16 %v608, %v607
    %617 = vmatprep.subr.bf16.mxu0 0
    %618 = vmatpush1.bf16.msra.mxu0 %v609
    %619 = vmatprep.subr.bf16.mxu0 0
    %620 = vmatpush1.bf16.msra.mxu0 %v610
    %621 = vmatprep.subr.bf16.mxu0 0
    %622 = vmatpush1.bf16.msra.mxu0 %v611
    %623 = vmatprep.subr.bf16.mxu0 0
    %624 = vmatpush1.bf16.msra.mxu0 %v612
    %625 = vmatprep.subr.bf16.mxu0 0
    %626 = vmatpush1.bf16.msra.mxu0 0
    %627 = vmatprep.subr.bf16.mxu0 0
    %628 = vmatpush1.bf16.msra.mxu0 0
    %629 = vmatprep.subr.bf16.mxu0 0
    %630 = vmatpush1.bf16.msra.mxu0 0
    %631 = vmatprep.subr.bf16.mxu0 0
    %632 = vmatpush1.bf16.msra.mxu0 0
    %633 = vmatprep.subr.bf16.mxu0 0
    %634 = vmatpush1.bf16.msra.mxu0 0
    %635 = vmatprep.subr.bf16.mxu0 0
    %636 = vmatpush1.bf16.msra.mxu0 0
    %637 = vmatprep.subr.bf16.mxu0 0
    %638 = vmatpush1.bf16.msra.mxu0 0
    %639 = vmatprep.subr.bf16.mxu0 0
    %640 = vmatpush1.bf16.msra.mxu0 0
    %641 = vmatprep.subr.bf16.mxu0 0
    %642 = vmatpush1.bf16.msra.mxu0 0
    %643 = vmatprep.subr.bf16.mxu0 0
    %644 = vmatpush1.bf16.msra.mxu0 0
    %645 = vmatprep.subr.bf16.mxu0 0
    %646 = vmatpush1.bf16.msra.mxu0 0
    %647 = vmatprep.subr.bf16.mxu0 0
    %648 = vmatpush1.bf16.msra.mxu0 0
    %649 = vmatprep.mubr.bf16.mxu0 0
    %650 = vmatmul.mubr.bf16.gmra.mrb[0].mxu0 %v505
    %v651 = vpop.f32.mrb[0].mxu0
    %v652 = vadd.f32 %v592, %v651
    %v653 = vpop.f32.mrb[0].mxu0
    %v654 = vpop.f32.mrb[0].mxu0
    %v655 = vadd.f32 %v592, %v654
    %v656 = vpop.f32.mrb[0].mxu0
    %657 = vmatprep.mubr.bf16.mxu0 0
    %658 = vmatmul.mubr.bf16.gmra.mrb[0].mxu0 %v508
    %v659 = vpop.f32.mrb[0].mxu0
    %v660 = vadd.f32 %v592, %v659
    %v661 = vpop.f32.mrb[0].mxu0
    %v662 = vpop.f32.mrb[0].mxu0
    %v663 = vadd.f32 %v592, %v662
    %v664 = vpop.f32.mrb[0].mxu0
    %665 = vmatprep.mubr.bf16.mxu0 0
    %666 = vmatmul.mubr.bf16.gmra.mrb[0].mxu0 %v511
    %v667 = vpop.f32.mrb[0].mxu0
    %v668 = vadd.f32 %v592, %v667
    %v669 = vpop.f32.mrb[0].mxu0
    %v670 = vpop.f32.mrb[0].mxu0
    %v671 = vadd.f32 %v592, %v670
    %v672 = vpop.f32.mrb[0].mxu0
    %673 = vmatprep.mubr.bf16.mxu0 0
    %674 = vmatmul.mubr.bf16.gmra.mrb[0].mxu0 %v514
    %v675 = vpop.f32.mrb[0].mxu0
    %v676 = vadd.f32 %v592, %v675
    %v677 = vpop.f32.mrb[0].mxu0
    %v678 = vpop.f32.mrb[0].mxu0
    %v679 = vadd.f32 %v592, %v678
    %v680 = vpop.f32.mrb[0].mxu0
    %681 = vdwg.mxu0
    %vm682 = vcmp.gt.f32.partialorder %v652, 20.0
    %vm683 = vcmp.gt.f32.partialorder %v655, 20.0
    %vm684 = vcmp.gt.f32.partialorder %v660, 20.0
    %vm685 = vcmp.gt.f32.partialorder %v663, 20.0
    %vm686 = vcmp.gt.f32.partialorder %v668, 20.0
    %vm687 = vcmp.gt.f32.partialorder %v671, 20.0
    %vm688 = vcmp.gt.f32.partialorder %v676, 20.0
    %vm689 = vcmp.gt.f32.partialorder %v679, 20.0
    %v690 = vmin.f32 %v652, 20.0
    %v691 = vmin.f32 %v655, 20.0
    %v692 = vmin.f32 %v660, 20.0
    %v693 = vmin.f32 %v663, 20.0
    %v694 = vmin.f32 %v668, 20.0
    %v695 = vmin.f32 %v671, 20.0
    %v696 = vmin.f32 %v676, 20.0
    %v697 = vmin.f32 %v679, 20.0
    %v698 = vmul.f32 %v690, 1.442695
    %v699 = vpow.pop %v698
    %v700 = vmul.f32 %v691, 1.442695
    %v701 = vpow.pop %v700
    %v702 = vmul.f32 %v692, 1.442695
    %v703 = vpow.pop %v702
    %v704 = vmul.f32 %v693, 1.442695
    %v705 = vpow.pop %v704
    %v706 = vmul.f32 %v694, 1.442695
    %v707 = vpow.pop %v706
    %v708 = vmul.f32 %v695, 1.442695
    %v709 = vpow.pop %v708
    %v710 = vmul.f32 %v696, 1.442695
    %v711 = vpow.pop %v710
    %v712 = vmul.f32 %v697, 1.442695
    %v713 = vpow.pop %v712
    %v714 = vadd.f32 %v699, 1.0
    %v715 = vadd.f32 %v701, 1.0
    %v716 = vadd.f32 %v703, 1.0
    %v717 = vadd.f32 %v705, 1.0
    %v718 = vadd.f32 %v707, 1.0
    %v719 = vadd.f32 %v709, 1.0
    %v720 = vadd.f32 %v711, 1.0
    %v721 = vadd.f32 %v713, 1.0
    %v722 = vlog2.pop %v714
    %v723 = vmul.f32 %v722, 0.6931472
    %v724 = vlog2.pop %v715
    %v725 = vmul.f32 %v724, 0.6931472
    %v726 = vlog2.pop %v716
    %v727 = vmul.f32 %v726, 0.6931472
    %v728 = vlog2.pop %v717
    %v729 = vmul.f32 %v728, 0.6931472
    %v730 = vlog2.pop %v718
    %v731 = vmul.f32 %v730, 0.6931472
    %v732 = vlog2.pop %v719
    %v733 = vmul.f32 %v732, 0.6931472
    %v734 = vlog2.pop %v720
    %v735 = vmul.f32 %v734, 0.6931472
    %v736 = vlog2.pop %v721
    %v737 = vmul.f32 %v736, 0.6931472
    %v738 = vsel %vm682, %v652, %v723
    %v739 = vsel %vm683, %v655, %v725
    %v740 = vsel %vm684, %v660, %v727
    %v741 = vsel %vm685, %v663, %v729
    %v742 = vsel %vm686, %v668, %v731
    %v743 = vsel %vm687, %v671, %v733
    %v744 = vsel %vm688, %v676, %v735
    %v745 = vsel %vm689, %v679, %v737
    %v746 = vsub.f32 0.0, %v345
    %v747 = vsub.f32 0.0, %v348
    %v748 = vsub.f32 0.0, %v353
    %v749 = vsub.f32 0.0, %v356
    %v750 = vsub.f32 0.0, %v361
    %v751 = vsub.f32 0.0, %v364
    %v752 = vsub.f32 0.0, %v369
    %v753 = vsub.f32 0.0, %v372
    %v754 = vmul.f32 %v746, 1.442695
    %v755 = vpow.pop %v754
    %v756 = vmul.f32 %v747, 1.442695
    %v757 = vpow.pop %v756
    %v758 = vmul.f32 %v748, 1.442695
    %v759 = vpow.pop %v758
    %v760 = vmul.f32 %v749, 1.442695
    %v761 = vpow.pop %v760
    %v762 = vmul.f32 %v750, 1.442695
    %v763 = vpow.pop %v762
    %v764 = vmul.f32 %v751, 1.442695
    %v765 = vpow.pop %v764
    %v766 = vmul.f32 %v752, 1.442695
    %v767 = vpow.pop %v766
    %v768 = vmul.f32 %v753, 1.442695
    %v769 = vpow.pop %v768
    %v770 = vadd.f32 %v755, 1.0
    %v771 = vadd.f32 %v757, 1.0
    %v772 = vadd.f32 %v759, 1.0
    %v773 = vadd.f32 %v761, 1.0
    %v774 = vadd.f32 %v763, 1.0
    %v775 = vadd.f32 %v765, 1.0
    %v776 = vadd.f32 %v767, 1.0
    %v777 = vadd.f32 %v769, 1.0
    %v778 = vrcp.pop %v770
    %v779 = vrcp.pop %v771
    %v780 = vrcp.pop %v772
    %v781 = vrcp.pop %v773
    %v782 = vrcp.pop %v774
    %v783 = vrcp.pop %v775
    %v784 = vrcp.pop %v776
    %v785 = vrcp.pop %v777
    %v786 = vmul.f32 %v345, %v778
    %v787 = vmul.f32 %v348, %v779
    %v788 = vmul.f32 %v353, %v780
    %v789 = vmul.f32 %v356, %v781
    %v790 = vmul.f32 %v361, %v782
    %v791 = vmul.f32 %v364, %v783
    %v792 = vmul.f32 %v369, %v784
    %v793 = vmul.f32 %v372, %v785
    %v794 = vmul.f32 %v738, %v459
    %v795 = vlaneseq
    %v796 = vshrl.u32 %v795, 7
    %v797 = vsub.s32 2, %v796
    %v798 = vrot.slane %v195, %v797
    %v799 = vmul.f32 %v798, %v459
    %v800 = vlaneseq
    %v801 = vshrl.u32 %v800, 7
    %v802 = vsub.s32 3, %v801
    %v803 = vrot.slane %v199, %v802
    %v804 = vmul.f32 %v738, %v803
    %v805 = vmul.f32 %v804, 1.442695
    %v806 = vpow.pop %v805
    %v807 = vmul.f32 %v806, 0.0
    %809 = vset.pattern.permute.xlu0 0
    %810 = vperm.xlu0 %809, %v551
    %v811 = vpop.permute.xlu0 %810
    %v813 = vmul.f32 %v794, %v811
    %v814 = vadd.f32 %v807, %v813
    %815 = vset.pattern.permute.xlu0 4
    %816 = vperm.xlu0 %815, %v551
    %v817 = vpop.permute.xlu0 %816
    %v819 = vmul.f32 %v814, %v817
    %v820 = vadd.f32 %v799, %v819
    %v821 = vlaneseq
    %v822 = vshrl.u32 %v821, 7
    %v823 = vsub.s32 4, %v822
    %v824 = vrot.slane %v199, %v823
    %v825 = vmul.f32 %v738, %v824
    %v826 = vmul.f32 %v825, 1.442695
    %v827 = vpow.pop %v826
    %v828 = vmul.f32 %v827, 0.0
    %829 = vset.pattern.permute.xlu0 1
    %830 = vperm.xlu0 %829, %v551
    %v831 = vpop.permute.xlu0 %830
    %v833 = vmul.f32 %v794, %v831
    %v834 = vadd.f32 %v828, %v833
    %835 = vset.pattern.permute.xlu0 5
    %836 = vperm.xlu0 %835, %v551
    %v837 = vpop.permute.xlu0 %836
    %v839 = vmul.f32 %v834, %v837
    %v840 = vadd.f32 %v820, %v839
    %v841 = vlaneseq
    %v842 = vshrl.u32 %v841, 7
    %v843 = vsub.s32 5, %v842
    %v844 = vrot.slane %v199, %v843
    %v845 = vmul.f32 %v738, %v844
    %v846 = vmul.f32 %v845, 1.442695
    %v847 = vpow.pop %v846
    %v848 = vmul.f32 %v847, 0.0
    %849 = vset.pattern.permute.xlu0 2
    %850 = vperm.xlu0 %849, %v551
    %v851 = vpop.permute.xlu0 %850
    %v853 = vmul.f32 %v794, %v851
    %v854 = vadd.f32 %v848, %v853
    %855 = vset.pattern.permute.xlu0 6
    %856 = vperm.xlu0 %855, %v551
    %v857 = vpop.permute.xlu0 %856
    %v859 = vmul.f32 %v854, %v857
    %v860 = vadd.f32 %v840, %v859
    %v861 = vlaneseq
    %v862 = vshrl.u32 %v861, 7
    %v863 = vsub.s32 6, %v862
    %v864 = vrot.slane %v199, %v863
    %v865 = vmul.f32 %v738, %v864
    %v866 = vmul.f32 %v865, 1.442695
    %v867 = vpow.pop %v866
    %v868 = vmul.f32 %v867, 0.0
    %869 = vset.pattern.permute.xlu0 3
    %870 = vperm.xlu0 %869, %v551
    %v871 = vpop.permute.xlu0 %870
    %v873 = vmul.f32 %v794, %v871
    %v874 = vadd.f32 %v868, %v873
    %875 = vset.pattern.permute.xlu0 7
    %876 = vperm.xlu0 %875, %v551
    %v877 = vpop.permute.xlu0 %876
    %v879 = vmul.f32 %v874, %v877
    %v880 = vadd.f32 %v860, %v879
    %v881 = vmul.f32 %v880, %v786
    %882 = vst.msk [vmem:[#allocation2] sm:$0xff] %vm503, %v881
    %v883 = vmul.f32 %v739, %v460
    %v884 = vmul.f32 %v798, %v460
    %v885 = vmul.f32 %v739, %v803
    %v886 = vmul.f32 %v885, 1.442695
    %v887 = vpow.pop %v886
    %v888 = vmul.f32 %v887, %v814
    %890 = vset.pattern.permute.xlu0 0
    %891 = vperm.xlu0 %890, %v554
    %v892 = vpop.permute.xlu0 %891
    %v894 = vmul.f32 %v883, %v892
    %v895 = vadd.f32 %v888, %v894
    %896 = vset.pattern.permute.xlu0 4
    %897 = vperm.xlu0 %896, %v554
    %v898 = vpop.permute.xlu0 %897
    %v900 = vmul.f32 %v895, %v898
    %v901 = vadd.f32 %v884, %v900
    %v902 = vmul.f32 %v739, %v824
    %v903 = vmul.f32 %v902, 1.442695
    %v904 = vpow.pop %v903
    %v905 = vmul.f32 %v904, %v834
    %906 = vset.pattern.permute.xlu0 1
    %907 = vperm.xlu0 %906, %v554
    %v908 = vpop.permute.xlu0 %907
    %v910 = vmul.f32 %v883, %v908
    %v911 = vadd.f32 %v905, %v910
    %912 = vset.pattern.permute.xlu0 5
    %913 = vperm.xlu0 %912, %v554
    %v914 = vpop.permute.xlu0 %913
    %v916 = vmul.f32 %v911, %v914
    %v917 = vadd.f32 %v901, %v916
    %v918 = vmul.f32 %v739, %v844
    %v919 = vmul.f32 %v918, 1.442695
    %v920 = vpow.pop %v919
    %v921 = vmul.f32 %v920, %v854
    %922 = vset.pattern.permute.xlu0 2
    %923 = vperm.xlu0 %922, %v554
    %v924 = vpop.permute.xlu0 %923
    %v926 = vmul.f32 %v883, %v924
    %v927 = vadd.f32 %v921, %v926
    %928 = vset.pattern.permute.xlu0 6
    %929 = vperm.xlu0 %928, %v554
    %v930 = vpop.permute.xlu0 %929
    %v932 = vmul.f32 %v927, %v930
    %v933 = vadd.f32 %v917, %v932
    %v934 = vmul.f32 %v739, %v864
    %v935 = vmul.f32 %v934, 1.442695
    %v936 = vpow.pop %v935
    %v937 = vmul.f32 %v936, %v874
    %938 = vset.pattern.permute.xlu0 3
    %939 = vperm.xlu0 %938, %v554
    %v940 = vpop.permute.xlu0 %939
    %v942 = vmul.f32 %v883, %v940
    %v943 = vadd.f32 %v937, %v942
    %944 = vset.pattern.permute.xlu0 7
    %945 = vperm.xlu0 %944, %v554
    %v946 = vpop.permute.xlu0 %945
    %v948 = vmul.f32 %v943, %v946
    %v949 = vadd.f32 %v933, %v948
    %v950 = vmul.f32 %v949, %v787
    %951 = vst.msk [vmem:[#allocation2 + $0x8] sm:$0xff] %vm503, %v950
    %v952 = vmul.f32 %v740, %v461
    %v953 = vmul.f32 %v798, %v461
    %v954 = vmul.f32 %v740, %v803
    %v955 = vmul.f32 %v954, 1.442695
    %v956 = vpow.pop %v955
    %v957 = vmul.f32 %v956, %v895
    %959 = vset.pattern.permute.xlu0 0
    %960 = vperm.xlu0 %959, %v559
    %v961 = vpop.permute.xlu0 %960
    %v963 = vmul.f32 %v952, %v961
    %v964 = vadd.f32 %v957, %v963
    %965 = vset.pattern.permute.xlu0 4
    %966 = vperm.xlu0 %965, %v559
    %v967 = vpop.permute.xlu0 %966
    %v969 = vmul.f32 %v964, %v967
    %v970 = vadd.f32 %v953, %v969
    %v971 = vmul.f32 %v740, %v824
    %v972 = vmul.f32 %v971, 1.442695
    %v973 = vpow.pop %v972
    %v974 = vmul.f32 %v973, %v911
    %975 = vset.pattern.permute.xlu0 1
    %976 = vperm.xlu0 %975, %v559
    %v977 = vpop.permute.xlu0 %976
    %v979 = vmul.f32 %v952, %v977
    %v980 = vadd.f32 %v974, %v979
    %981 = vset.pattern.permute.xlu0 5
    %982 = vperm.xlu0 %981, %v559
    %v983 = vpop.permute.xlu0 %982
    %v985 = vmul.f32 %v980, %v983
    %v986 = vadd.f32 %v970, %v985
    %v987 = vmul.f32 %v740, %v844
    %v988 = vmul.f32 %v987, 1.442695
    %v989 = vpow.pop %v988
    %v990 = vmul.f32 %v989, %v927
    %991 = vset.pattern.permute.xlu0 2
    %992 = vperm.xlu0 %991, %v559
    %v993 = vpop.permute.xlu0 %992
    %v995 = vmul.f32 %v952, %v993
    %v996 = vadd.f32 %v990, %v995
    %997 = vset.pattern.permute.xlu0 6
    %998 = vperm.xlu0 %997, %v559
    %v999 = vpop.permute.xlu0 %998
    %v1001 = vmul.f32 %v996, %v999
    %v1002 = vadd.f32 %v986, %v1001
    %v1003 = vmul.f32 %v740, %v864
    %v1004 = vmul.f32 %v1003, 1.442695
    %v1005 = vpow.pop %v1004
    %v1006 = vmul.f32 %v1005, %v943
    %1007 = vset.pattern.permute.xlu0 3
    %1008 = vperm.xlu0 %1007, %v559
    %v1009 = vpop.permute.xlu0 %1008
    %v1011 = vmul.f32 %v952, %v1009
    %v1012 = vadd.f32 %v1006, %v1011
    %1013 = vset.pattern.permute.xlu0 7
    %1014 = vperm.xlu0 %1013, %v559
    %v1015 = vpop.permute.xlu0 %1014
    %v1017 = vmul.f32 %v1012, %v1015
    %v1018 = vadd.f32 %v1002, %v1017
    %v1019 = vmul.f32 %v1018, %v788
    %1020 = vst.msk [vmem:[#allocation2 + $0x10] sm:$0xff] %vm503, %v1019
    %v1021 = vmul.f32 %v741, %v462
    %v1022 = vmul.f32 %v798, %v462
    %v1023 = vmul.f32 %v741, %v803
    %v1024 = vmul.f32 %v1023, 1.442695
    %v1025 = vpow.pop %v1024
    %v1026 = vmul.f32 %v1025, %v964
    %1028 = vset.pattern.permute.xlu0 0
    %1029 = vperm.xlu0 %1028, %v562
    %v1030 = vpop.permute.xlu0 %1029
    %v1032 = vmul.f32 %v1021, %v1030
    %v1033 = vadd.f32 %v1026, %v1032
    %1034 = vset.pattern.permute.xlu0 4
    %1035 = vperm.xlu0 %1034, %v562
    %v1036 = vpop.permute.xlu0 %1035
    %v1038 = vmul.f32 %v1033, %v1036
    %v1039 = vadd.f32 %v1022, %v1038
    %v1040 = vmul.f32 %v741, %v824
    %v1041 = vmul.f32 %v1040, 1.442695
    %v1042 = vpow.pop %v1041
    %v1043 = vmul.f32 %v1042, %v980
    %1044 = vset.pattern.permute.xlu0 1
    %1045 = vperm.xlu0 %1044, %v562
    %v1046 = vpop.permute.xlu0 %1045
    %v1048 = vmul.f32 %v1021, %v1046
    %v1049 = vadd.f32 %v1043, %v1048
    %1050 = vset.pattern.permute.xlu0 5
    %1051 = vperm.xlu0 %1050, %v562
    %v1052 = vpop.permute.xlu0 %1051
    %v1054 = vmul.f32 %v1049, %v1052
    %v1055 = vadd.f32 %v1039, %v1054
    %v1056 = vmul.f32 %v741, %v844
    %v1057 = vmul.f32 %v1056, 1.442695
    %v1058 = vpow.pop %v1057
    %v1059 = vmul.f32 %v1058, %v996
    %1060 = vset.pattern.permute.xlu0 2
    %1061 = vperm.xlu0 %1060, %v562
    %v1062 = vpop.permute.xlu0 %1061
    %v1064 = vmul.f32 %v1021, %v1062
    %v1065 = vadd.f32 %v1059, %v1064
    %1066 = vset.pattern.permute.xlu0 6
    %1067 = vperm.xlu0 %1066, %v562
    %v1068 = vpop.permute.xlu0 %1067
    %v1070 = vmul.f32 %v1065, %v1068
    %v1071 = vadd.f32 %v1055, %v1070
    %v1072 = vmul.f32 %v741, %v864
    %v1073 = vmul.f32 %v1072, 1.442695
    %v1074 = vpow.pop %v1073
    %v1075 = vmul.f32 %v1074, %v1012
    %1076 = vset.pattern.permute.xlu0 3
    %1077 = vperm.xlu0 %1076, %v562
    %v1078 = vpop.permute.xlu0 %1077
    %v1080 = vmul.f32 %v1021, %v1078
    %v1081 = vadd.f32 %v1075, %v1080
    %1082 = vset.pattern.permute.xlu0 7
    %1083 = vperm.xlu0 %1082, %v562
    %v1084 = vpop.permute.xlu0 %1083
    %v1086 = vmul.f32 %v1081, %v1084
    %v1087 = vadd.f32 %v1071, %v1086
    %v1088 = vmul.f32 %v1087, %v789
    %1089 = vst.msk [vmem:[#allocation2 + $0x18] sm:$0xff] %vm503, %v1088
    %v1090 = vmul.f32 %v742, %v463
    %v1091 = vmul.f32 %v798, %v463
    %v1092 = vmul.f32 %v742, %v803
    %v1093 = vmul.f32 %v1092, 1.442695
    %v1094 = vpow.pop %v1093
    %v1095 = vmul.f32 %v1094, %v1033
    %1097 = vset.pattern.permute.xlu0 0
    %1098 = vperm.xlu0 %1097, %v567
    %v1099 = vpop.permute.xlu0 %1098
    %v1101 = vmul.f32 %v1090, %v1099
    %v1102 = vadd.f32 %v1095, %v1101
    %1103 = vset.pattern.permute.xlu0 4
    %1104 = vperm.xlu0 %1103, %v567
    %v1105 = vpop.permute.xlu0 %1104
    %v1107 = vmul.f32 %v1102, %v1105
    %v1108 = vadd.f32 %v1091, %v1107
    %v1109 = vmul.f32 %v742, %v824
    %v1110 = vmul.f32 %v1109, 1.442695
    %v1111 = vpow.pop %v1110
    %v1112 = vmul.f32 %v1111, %v1049
    %1113 = vset.pattern.permute.xlu0 1
    %1114 = vperm.xlu0 %1113, %v567
    %v1115 = vpop.permute.xlu0 %1114
    %v1117 = vmul.f32 %v1090, %v1115
    %v1118 = vadd.f32 %v1112, %v1117
    %1119 = vset.pattern.permute.xlu0 5
    %1120 = vperm.xlu0 %1119, %v567
    %v1121 = vpop.permute.xlu0 %1120
    %v1123 = vmul.f32 %v1118, %v1121
    %v1124 = vadd.f32 %v1108, %v1123
    %v1125 = vmul.f32 %v742, %v844
    %v1126 = vmul.f32 %v1125, 1.442695
    %v1127 = vpow.pop %v1126
    %v1128 = vmul.f32 %v1127, %v1065
    %1129 = vset.pattern.permute.xlu0 2
    %1130 = vperm.xlu0 %1129, %v567
    %v1131 = vpop.permute.xlu0 %1130
    %v1133 = vmul.f32 %v1090, %v1131
    %v1134 = vadd.f32 %v1128, %v1133
    %1135 = vset.pattern.permute.xlu0 6
    %1136 = vperm.xlu0 %1135, %v567
    %v1137 = vpop.permute.xlu0 %1136
    %v1139 = vmul.f32 %v1134, %v1137
    %v1140 = vadd.f32 %v1124, %v1139
    %v1141 = vmul.f32 %v742, %v864
    %v1142 = vmul.f32 %v1141, 1.442695
    %v1143 = vpow.pop %v1142
    %v1144 = vmul.f32 %v1143, %v1081
    %1145 = vset.pattern.permute.xlu0 3
    %1146 = vperm.xlu0 %1145, %v567
    %v1147 = vpop.permute.xlu0 %1146
    %v1149 = vmul.f32 %v1090, %v1147
    %v1150 = vadd.f32 %v1144, %v1149
    %1151 = vset.pattern.permute.xlu0 7
    %1152 = vperm.xlu0 %1151, %v567
    %v1153 = vpop.permute.xlu0 %1152
    %v1155 = vmul.f32 %v1150, %v1153
    %v1156 = vadd.f32 %v1140, %v1155
    %v1157 = vmul.f32 %v1156, %v790
    %1158 = vst.msk [vmem:[#allocation2 + $0x20] sm:$0xff] %vm503, %v1157
    %v1159 = vmul.f32 %v743, %v464
    %v1160 = vmul.f32 %v798, %v464
    %v1161 = vmul.f32 %v743, %v803
    %v1162 = vmul.f32 %v1161, 1.442695
    %v1163 = vpow.pop %v1162
    %v1164 = vmul.f32 %v1163, %v1102
    %1166 = vset.pattern.permute.xlu0 0
    %1167 = vperm.xlu0 %1166, %v570
    %v1168 = vpop.permute.xlu0 %1167
    %v1170 = vmul.f32 %v1159, %v1168
    %v1171 = vadd.f32 %v1164, %v1170
    %1172 = vset.pattern.permute.xlu0 4
    %1173 = vperm.xlu0 %1172, %v570
    %v1174 = vpop.permute.xlu0 %1173
    %v1176 = vmul.f32 %v1171, %v1174
    %v1177 = vadd.f32 %v1160, %v1176
    %v1178 = vmul.f32 %v743, %v824
    %v1179 = vmul.f32 %v1178, 1.442695
    %v1180 = vpow.pop %v1179
    %v1181 = vmul.f32 %v1180, %v1118
    %1182 = vset.pattern.permute.xlu0 1
    %1183 = vperm.xlu0 %1182, %v570
    %v1184 = vpop.permute.xlu0 %1183
    %v1186 = vmul.f32 %v1159, %v1184
    %v1187 = vadd.f32 %v1181, %v1186
    %1188 = vset.pattern.permute.xlu0 5
    %1189 = vperm.xlu0 %1188, %v570
    %v1190 = vpop.permute.xlu0 %1189
    %v1192 = vmul.f32 %v1187, %v1190
    %v1193 = vadd.f32 %v1177, %v1192
    %v1194 = vmul.f32 %v743, %v844
    %v1195 = vmul.f32 %v1194, 1.442695
    %v1196 = vpow.pop %v1195
    %v1197 = vmul.f32 %v1196, %v1134
    %1198 = vset.pattern.permute.xlu0 2
    %1199 = vperm.xlu0 %1198, %v570
    %v1200 = vpop.permute.xlu0 %1199
    %v1202 = vmul.f32 %v1159, %v1200
    %v1203 = vadd.f32 %v1197, %v1202
    %1204 = vset.pattern.permute.xlu0 6
    %1205 = vperm.xlu0 %1204, %v570
    %v1206 = vpop.permute.xlu0 %1205
    %v1208 = vmul.f32 %v1203, %v1206
    %v1209 = vadd.f32 %v1193, %v1208
    %v1210 = vmul.f32 %v743, %v864
    %v1211 = vmul.f32 %v1210, 1.442695
    %v1212 = vpow.pop %v1211
    %v1213 = vmul.f32 %v1212, %v1150
    %1214 = vset.pattern.permute.xlu0 3
    %1215 = vperm.xlu0 %1214, %v570
    %v1216 = vpop.permute.xlu0 %1215
    %v1218 = vmul.f32 %v1159, %v1216
    %v1219 = vadd.f32 %v1213, %v1218
    %1220 = vset.pattern.permute.xlu0 7
    %1221 = vperm.xlu0 %1220, %v570
    %v1222 = vpop.permute.xlu0 %1221
    %v1224 = vmul.f32 %v1219, %v1222
    %v1225 = vadd.f32 %v1209, %v1224
    %v1226 = vmul.f32 %v1225, %v791
    %1227 = vst.msk [vmem:[#allocation2 + $0x28] sm:$0xff] %vm503, %v1226
    %v1228 = vmul.f32 %v744, %v465
    %v1229 = vmul.f32 %v798, %v465
    %v1230 = vmul.f32 %v744, %v803
    %v1231 = vmul.f32 %v1230, 1.442695
    %v1232 = vpow.pop %v1231
    %v1233 = vmul.f32 %v1232, %v1171
    %1235 = vset.pattern.permute.xlu0 0
    %1236 = vperm.xlu0 %1235, %v575
    %v1237 = vpop.permute.xlu0 %1236
    %v1239 = vmul.f32 %v1228, %v1237
    %v1240 = vadd.f32 %v1233, %v1239
    %1241 = vset.pattern.permute.xlu0 4
    %1242 = vperm.xlu0 %1241, %v575
    %v1243 = vpop.permute.xlu0 %1242
    %v1245 = vmul.f32 %v1240, %v1243
    %v1246 = vadd.f32 %v1229, %v1245
    %v1247 = vmul.f32 %v744, %v824
    %v1248 = vmul.f32 %v1247, 1.442695
    %v1249 = vpow.pop %v1248
    %v1250 = vmul.f32 %v1249, %v1187
    %1251 = vset.pattern.permute.xlu0 1
    %1252 = vperm.xlu0 %1251, %v575
    %v1253 = vpop.permute.xlu0 %1252
    %v1255 = vmul.f32 %v1228, %v1253
    %v1256 = vadd.f32 %v1250, %v1255
    %1257 = vset.pattern.permute.xlu0 5
    %1258 = vperm.xlu0 %1257, %v575
    %v1259 = vpop.permute.xlu0 %1258
    %v1261 = vmul.f32 %v1256, %v1259
    %v1262 = vadd.f32 %v1246, %v1261
    %v1263 = vmul.f32 %v744, %v844
    %v1264 = vmul.f32 %v1263, 1.442695
    %v1265 = vpow.pop %v1264
    %v1266 = vmul.f32 %v1265, %v1203
    %1267 = vset.pattern.permute.xlu0 2
    %1268 = vperm.xlu0 %1267, %v575
    %v1269 = vpop.permute.xlu0 %1268
    %v1271 = vmul.f32 %v1228, %v1269
    %v1272 = vadd.f32 %v1266, %v1271
    %1273 = vset.pattern.permute.xlu0 6
    %1274 = vperm.xlu0 %1273, %v575
    %v1275 = vpop.permute.xlu0 %1274
    %v1277 = vmul.f32 %v1272, %v1275
    %v1278 = vadd.f32 %v1262, %v1277
    %v1279 = vmul.f32 %v744, %v864
    %v1280 = vmul.f32 %v1279, 1.442695
    %v1281 = vpow.pop %v1280
    %v1282 = vmul.f32 %v1281, %v1219
    %1283 = vset.pattern.permute.xlu0 3
    %1284 = vperm.xlu0 %1283, %v575
    %v1285 = vpop.permute.xlu0 %1284
    %v1287 = vmul.f32 %v1228, %v1285
    %v1288 = vadd.f32 %v1282, %v1287
    %1289 = vset.pattern.permute.xlu0 7
    %1290 = vperm.xlu0 %1289, %v575
    %v1291 = vpop.permute.xlu0 %1290
    %v1293 = vmul.f32 %v1288, %v1291
    %v1294 = vadd.f32 %v1278, %v1293
    %v1295 = vmul.f32 %v1294, %v792
    %1296 = vst.msk [vmem:[#allocation2 + $0x30] sm:$0xff] %vm503, %v1295
    %v1297 = vmul.f32 %v745, %v466
    %v1298 = vmul.f32 %v798, %v466
    %v1299 = vmul.f32 %v745, %v803
    %v1300 = vmul.f32 %v1299, 1.442695
    %v1301 = vpow.pop %v1300
    %v1302 = vmul.f32 %v1301, %v1240
    %1304 = vset.pattern.permute.xlu0 0
    %1305 = vperm.xlu0 %1304, %v578
    %v1306 = vpop.permute.xlu0 %1305
    %v1308 = vmul.f32 %v1297, %v1306
    %v1309 = vadd.f32 %v1302, %v1308
    %1310 = vset.pattern.permute.xlu0 4
    %1311 = vperm.xlu0 %1310, %v578
    %v1312 = vpop.permute.xlu0 %1311
    %v1314 = vmul.f32 %v1309, %v1312
    %v1315 = vadd.f32 %v1298, %v1314
    %v1316 = vmul.f32 %v745, %v824
    %v1317 = vmul.f32 %v1316, 1.442695
    %v1318 = vpow.pop %v1317
    %v1319 = vmul.f32 %v1318, %v1256
    %1320 = vset.pattern.permute.xlu0 1
    %1321 = vperm.xlu0 %1320, %v578
    %v1322 = vpop.permute.xlu0 %1321
    %v1324 = vmul.f32 %v1297, %v1322
    %v1325 = vadd.f32 %v1319, %v1324
    %1326 = vset.pattern.permute.xlu0 5
    %1327 = vperm.xlu0 %1326, %v578
    %v1328 = vpop.permute.xlu0 %1327
    %v1330 = vmul.f32 %v1325, %v1328
    %v1331 = vadd.f32 %v1315, %v1330
    %v1332 = vmul.f32 %v745, %v844
    %v1333 = vmul.f32 %v1332, 1.442695
    %v1334 = vpow.pop %v1333
    %v1335 = vmul.f32 %v1334, %v1272
    %1336 = vset.pattern.permute.xlu0 2
    %1337 = vperm.xlu0 %1336, %v578
    %v1338 = vpop.permute.xlu0 %1337
    %v1340 = vmul.f32 %v1297, %v1338
    %v1341 = vadd.f32 %v1335, %v1340
    %1342 = vset.pattern.permute.xlu0 6
    %1343 = vperm.xlu0 %1342, %v578
    %v1344 = vpop.permute.xlu0 %1343
    %v1346 = vmul.f32 %v1341, %v1344
    %v1347 = vadd.f32 %v1331, %v1346
    %v1348 = vmul.f32 %v745, %v864
    %v1349 = vmul.f32 %v1348, 1.442695
    %v1350 = vpow.pop %v1349
    %v1351 = vmul.f32 %v1350, %v1288
    %1352 = vset.pattern.permute.xlu0 3
    %1353 = vperm.xlu0 %1352, %v578
    %v1354 = vpop.permute.xlu0 %1353
    %v1356 = vmul.f32 %v1297, %v1354
    %v1357 = vadd.f32 %v1351, %v1356
    %1358 = vset.pattern.permute.xlu0 7
    %1359 = vperm.xlu0 %1358, %v578
    %v1360 = vpop.permute.xlu0 %1359
    %v1362 = vmul.f32 %v1357, %v1360
    %v1363 = vadd.f32 %v1347, %v1362
    %v1364 = vmul.f32 %v1363, %v793
    %1365 = vst.msk [vmem:[#allocation2 + $0x38] sm:$0xff] %vm503, %v1364
    %v1366 = vld [vmem:[#allocation2] sm:$0xff]
    %v1367 = vld [vmem:[#allocation2 + $0x8] sm:$0xff]
    %v1368 = vld [vmem:[#allocation2 + $0x10] sm:$0xff]
    %v1369 = vld [vmem:[#allocation2 + $0x18] sm:$0xff]
    %v1370 = vld [vmem:[#allocation2 + $0x20] sm:$0xff]
    %v1371 = vld [vmem:[#allocation2 + $0x28] sm:$0xff]
    %v1372 = vld [vmem:[#allocation2 + $0x30] sm:$0xff]
    %v1373 = vld [vmem:[#allocation2 + $0x38] sm:$0xff]
    %v1374 = vpack.c.bf16 %v1367, %v1366
    %v1375 = vpack.c.bf16 %v1369, %v1368
    %v1376 = vpack.c.bf16 %v1371, %v1370
    %v1377 = vpack.c.bf16 %v1373, %v1372
    %v1378 = vld [vmem:[#allocation12] sm:$0xf]
    %v1379 = vld [vmem:[#allocation12 + $0x4] sm:$0xf]
    %v1380 = vld [vmem:[#allocation12 + $0x8] sm:$0xf]
    %v1381 = vld [vmem:[#allocation12 + $0xc] sm:$0xf]
    %v1382 = vld [vmem:[#allocation12 + $0x10] sm:$0xf]
    %v1383 = vld [vmem:[#allocation12 + $0x14] sm:$0xf]
    %v1384 = vld [vmem:[#allocation12 + $0x18] sm:$0xf]
    %v1385 = vld [vmem:[#allocation12 + $0x1c] sm:$0xf]
    %v1394 = vunpack.c.l.b16 %v1378
    %v1395 = vunpack.c.l.b16 %v1379
    %v1396 = vunpack.c.l.b16 %v1380
    %v1397 = vunpack.c.l.b16 %v1381
    %v1398 = vunpack.c.l.b16 %v1382
    %v1399 = vunpack.c.l.b16 %v1383
    %v1400 = vunpack.c.l.b16 %v1384
    %v1401 = vunpack.c.l.b16 %v1385
    %v1402 = vpack.c.b16 %v1395, %v1394
    %v1403 = vpack.c.b16 %v1397, %v1396
    %v1404 = vpack.c.b16 %v1399, %v1398
    %v1405 = vpack.c.b16 %v1401, %v1400
    %v1411 = vsel %vm503, %v1374, 0
    %v1414 = vsel %vm503, %v1375, 0
    %v1417 = vsel %vm503, %v1376, 0
    %v1420 = vsel %vm503, %v1377, 0
    %1422 = vmatprep.subr.bf16.mxu0 0
    %1423 = vmatpush1.bf16.msra.mxu0 %v1402
    %1424 = vmatprep.subr.bf16.mxu0 0
    %1425 = vmatpush1.bf16.msra.mxu0 %v1403
    %1426 = vmatprep.subr.bf16.mxu0 0
    %1427 = vmatpush1.bf16.msra.mxu0 %v1404
    %1428 = vmatprep.subr.bf16.mxu0 0
    %1429 = vmatpush1.bf16.msra.mxu0 %v1405
    %1430 = vmatprep.subr.bf16.mxu0 0
    %1431 = vmatpush1.bf16.msra.mxu0 0
    %1432 = vmatprep.subr.bf16.mxu0 0
    %1433 = vmatpush1.bf16.msra.mxu0 0
    %1434 = vmatprep.subr.bf16.mxu0 0
    %1435 = vmatpush1.bf16.msra.mxu0 0
    %1436 = vmatprep.subr.bf16.mxu0 0
    %1437 = vmatpush1.bf16.msra.mxu0 0
    %1438 = vmatprep.subr.bf16.mxu0 0
    %1439 = vmatpush1.bf16.msra.mxu0 0
    %1440 = vmatprep.subr.bf16.mxu0 0
    %1441 = vmatpush1.bf16.msra.mxu0 0
    %1442 = vmatprep.subr.bf16.mxu0 0
    %1443 = vmatpush1.bf16.msra.mxu0 0
    %1444 = vmatprep.subr.bf16.mxu0 0
    %1445 = vmatpush1.bf16.msra.mxu0 0
    %1446 = vmatprep.subr.bf16.mxu0 0
    %1447 = vmatpush1.bf16.msra.mxu0 0
    %1448 = vmatprep.subr.bf16.mxu0 0
    %1449 = vmatpush1.bf16.msra.mxu0 0
    %1450 = vmatprep.subr.bf16.mxu0 0
    %1451 = vmatpush1.bf16.msra.mxu0 0
    %1452 = vmatprep.subr.bf16.mxu0 0
    %1453 = vmatpush1.bf16.msra.mxu0 0
    %1454 = vmatprep.mubr.bf16.mxu0 0
    %1455 = vmatmul.mubr.bf16.gmra.mrb[0].mxu0 %v1411
    %v1456 = vpop.f32.mrb[0].mxu0
    %v1457 = vadd.f32 0.0, %v1456
    %v1458 = vpop.f32.mrb[0].mxu0
    %v1459 = vpop.f32.mrb[0].mxu0
    %v1460 = vadd.f32 0.0, %v1459
    %v1461 = vpop.f32.mrb[0].mxu0
    %1462 = vmatprep.mubr.bf16.mxu0 0
    %1463 = vmatmul.mubr.bf16.gmra.mrb[0].mxu0 %v1414
    %v1464 = vpop.f32.mrb[0].mxu0
    %v1465 = vadd.f32 0.0, %v1464
    %v1466 = vpop.f32.mrb[0].mxu0
    %v1467 = vpop.f32.mrb[0].mxu0
    %v1468 = vadd.f32 0.0, %v1467
    %v1469 = vpop.f32.mrb[0].mxu0
    %1470 = vmatprep.mubr.bf16.mxu0 0
    %1471 = vmatmul.mubr.bf16.gmra.mrb[0].mxu0 %v1417
    %v1472 = vpop.f32.mrb[0].mxu0
    %v1473 = vadd.f32 0.0, %v1472
    %v1474 = vpop.f32.mrb[0].mxu0
    %v1475 = vpop.f32.mrb[0].mxu0
    %v1476 = vadd.f32 0.0, %v1475
    %v1477 = vpop.f32.mrb[0].mxu0
    %1478 = vmatprep.mubr.bf16.mxu0 0
    %1479 = vmatmul.mubr.bf16.gmra.mrb[0].mxu0 %v1420
    %v1480 = vpop.f32.mrb[0].mxu0
    %v1481 = vadd.f32 0.0, %v1480
    %v1482 = vpop.f32.mrb[0].mxu0
    %v1483 = vpop.f32.mrb[0].mxu0
    %v1484 = vadd.f32 0.0, %v1483
    %v1485 = vpop.f32.mrb[0].mxu0
    %1486 = vdwg.mxu0
    %v1487 = vld [vmem:[#allocation20] sm:$0x7]
    %v1488 = vld [vmem:[#allocation15] sm:$0xff]
    %v1489 = vld [vmem:[#allocation15 + $0x8] sm:$0xff]
    %v1490 = vld [vmem:[#allocation15 + $0x10] sm:$0xff]
    %v1491 = vld [vmem:[#allocation15 + $0x18] sm:$0xff]
    %v1492 = vlaneseq
    %v1493 = vshrl.u32 %v1492, 7
    %v1494 = vsub.s32 0, %v1493
    %v1495 = vrot.slane %v1487, %v1494
    %v1497 = vsel %vm216, %v1457, 0
    %v1500 = vsel %vm216, %v1460, 0
    %v1503 = vsel %vm216, %v1465, 0
    %v1506 = vsel %vm216, %v1468, 0
    %v1509 = vsel %vm216, %v1473, 0
    %v1512 = vsel %vm216, %v1476, 0
    %v1515 = vsel %vm216, %v1481, 0
    %v1518 = vsel %vm216, %v1484, 0
    %1520 = vmatprep.subr.mxu0 0.0
    %1521 = vmatpush1.msra.mxu0 %v1488
    %1522 = vmatprep.subr.mxu0 0.0
    %1523 = vmatpush1.msra.mxu0 %v1489
    %1524 = vmatprep.subr.mxu0 0.0
    %1525 = vmatpush1.msra.mxu0 %v1490
    %1526 = vmatprep.subr.mxu0 0.0
    %1527 = vmatpush1.msra.mxu0 %v1491
    %1528 = vmatprep.subr.mxu0 0.0
    %1529 = vmatpush1.msra.mxu0 0.0
    %1530 = vmatprep.subr.mxu0 0.0
    %1531 = vmatpush1.msra.mxu0 0.0
    %1532 = vmatprep.subr.mxu0 0.0
    %1533 = vmatpush1.msra.mxu0 0.0
    %1534 = vmatprep.subr.mxu0 0.0
    %1535 = vmatpush1.msra.mxu0 0.0
    %1536 = vmatprep.subr.mxu0 0.0
    %1537 = vmatpush1.msra.mxu0 0.0
    %1538 = vmatprep.subr.mxu0 0.0
    %1539 = vmatpush1.msra.mxu0 0.0
    %1540 = vmatprep.subr.mxu0 0.0
    %1541 = vmatpush1.msra.mxu0 0.0
    %1542 = vmatprep.subr.mxu0 0.0
    %1543 = vmatpush1.msra.mxu0 0.0
    %1544 = vmatprep.subr.mxu0 0.0
    %1545 = vmatpush1.msra.mxu0 0.0
    %1546 = vmatprep.subr.mxu0 0.0
    %1547 = vmatpush1.msra.mxu0 0.0
    %1548 = vmatprep.subr.mxu0 0.0
    %1549 = vmatpush1.msra.mxu0 0.0
    %1550 = vmatprep.subr.mxu0 0.0
    %1551 = vmatpush1.msra.mxu0 0.0
    %1552 = vmatprep.subr.mxu0 0.0
    %1553 = vmatpush1.msra.mxu0 0.0
    %1554 = vmatprep.subr.mxu0 0.0
    %1555 = vmatpush1.msra.mxu0 0.0
    %1556 = vmatprep.subr.mxu0 0.0
    %1557 = vmatpush1.msra.mxu0 0.0
    %1558 = vmatprep.subr.mxu0 0.0
    %1559 = vmatpush1.msra.mxu0 0.0
    %1560 = vmatprep.subr.mxu0 0.0
    %1561 = vmatpush1.msra.mxu0 0.0
    %1562 = vmatprep.subr.mxu0 0.0
    %1563 = vmatpush1.msra.mxu0 0.0
    %1564 = vmatprep.subr.mxu0 0.0
    %1565 = vmatpush1.msra.mxu0 0.0
    %1566 = vmatprep.subr.mxu0 0.0
    %1567 = vmatpush1.msra.mxu0 0.0
    %1568 = vmatprep.subr.mxu0 0.0
    %1569 = vmatpush1.msra.mxu0 0.0
    %1570 = vmatprep.subr.mxu0 0.0
    %1571 = vmatpush1.msra.mxu0 0.0
    %1572 = vmatprep.subr.mxu0 0.0
    %1573 = vmatpush1.msra.mxu0 0.0
    %1574 = vmatprep.subr.mxu0 0.0
    %1575 = vmatpush1.msra.mxu0 0.0
    %1576 = vmatprep.subr.mxu0 0.0
    %1577 = vmatpush1.msra.mxu0 0.0
    %1578 = vmatprep.subr.mxu0 0.0
    %1579 = vmatpush1.msra.mxu0 0.0
    %1580 = vmatprep.subr.mxu0 0.0
    %1581 = vmatpush1.msra.mxu0 0.0
    %1582 = vmatprep.subr.mxu0 0.0
    %1583 = vmatpush1.msra.mxu0 0.0
    %1584 = vmatprep.mubr.f32.mxu0 0.0
    %1585 = vmatmul.mubr.f32.gmra.mrb[0].mxu0 %v1497
    %v1586 = vpop.f32.mrb[0].mxu0
    %v1587 = vadd.f32 %v1495, %v1586
    %v1588 = vpop.f32.mrb[0].mxu0
    %1589 = vmatprep.mubr.f32.mxu0 0.0
    %1590 = vmatmul.mubr.f32.gmra.mrb[0].mxu0 %v1500
    %v1591 = vpop.f32.mrb[0].mxu0
    %v1592 = vadd.f32 %v1495, %v1591
    %v1593 = vpop.f32.mrb[0].mxu0
    %1594 = vmatprep.mubr.f32.mxu0 0.0
    %1595 = vmatmul.mubr.f32.gmra.mrb[0].mxu0 %v1503
    %v1596 = vpop.f32.mrb[0].mxu0
    %v1597 = vadd.f32 %v1495, %v1596
    %v1598 = vpop.f32.mrb[0].mxu0
    %1599 = vmatprep.mubr.f32.mxu0 0.0
    %1600 = vmatmul.mubr.f32.gmra.mrb[0].mxu0 %v1506
    %v1601 = vpop.f32.mrb[0].mxu0
    %v1602 = vadd.f32 %v1495, %v1601
    %v1603 = vpop.f32.mrb[0].mxu0
    %1604 = vmatprep.mubr.f32.mxu0 0.0
    %1605 = vmatmul.mubr.f32.gmra.mrb[0].mxu0 %v1509
    %v1606 = vpop.f32.mrb[0].mxu0
    %v1607 = vadd.f32 %v1495, %v1606
    %v1608 = vpop.f32.mrb[0].mxu0
    %1609 = vmatprep.mubr.f32.mxu0 0.0
    %1610 = vmatmul.mubr.f32.gmra.mrb[0].mxu0 %v1512
    %v1611 = vpop.f32.mrb[0].mxu0
    %v1612 = vadd.f32 %v1495, %v1611
    %v1613 = vpop.f32.mrb[0].mxu0
    %1614 = vmatprep.mubr.f32.mxu0 0.0
    %1615 = vmatmul.mubr.f32.gmra.mrb[0].mxu0 %v1515
    %v1616 = vpop.f32.mrb[0].mxu0
    %v1617 = vadd.f32 %v1495, %v1616
    %v1618 = vpop.f32.mrb[0].mxu0
    %1619 = vmatprep.mubr.f32.mxu0 0.0
    %1620 = vmatmul.mubr.f32.gmra.mrb[0].mxu0 %v1518
    %v1621 = vpop.f32.mrb[0].mxu0
    %v1622 = vadd.f32 %v1495, %v1621
    %v1623 = vpop.f32.mrb[0].mxu0
    %1624 = vdwg.mxu0
    %v1625 = vmax.f32 %v1587, 0.0
    %v1626 = vmax.f32 %v1592, 0.0
    %v1627 = vmax.f32 %v1597, 0.0
    %v1628 = vmax.f32 %v1602, 0.0
    %v1629 = vmax.f32 %v1607, 0.0
    %v1630 = vmax.f32 %v1612, 0.0
    %v1631 = vmax.f32 %v1617, 0.0
    %v1632 = vmax.f32 %v1622, 0.0
    %v1633 = vld [vmem:[#allocation17] sm:$0xff]
    %v1634 = vlaneseq
    %v1635 = vshrl.u32 %v1634, 7
    %v1636 = vsub.s32 1, %v1635
    %v1637 = vrot.slane %v1487, %v1636
    %vm1638 = vcmask 64512
    %v1640 = vsel %vm1638, %v1625, 0
    %v1643 = vsel %vm1638, %v1626, 0
    %v1646 = vsel %vm1638, %v1627, 0
    %v1649 = vsel %vm1638, %v1628, 0
    %v1652 = vsel %vm1638, %v1629, 0
    %v1655 = vsel %vm1638, %v1630, 0
    %v1658 = vsel %vm1638, %v1631, 0
    %v1661 = vsel %vm1638, %v1632, 0
    %1663 = vmatprep.subr.mxu0 0.0
    %1664 = vmatpush1.msra.mxu0 %v1633
    %1665 = vmatprep.subr.mxu0 0.0
    %1666 = vmatpush1.msra.mxu0 0.0
    %1667 = vmatprep.subr.mxu0 0.0
    %1668 = vmatpush1.msra.mxu0 0.0
    %1669 = vmatprep.subr.mxu0 0.0
    %1670 = vmatpush1.msra.mxu0 0.0
    %1671 = vmatprep.subr.mxu0 0.0
    %1672 = vmatpush1.msra.mxu0 0.0
    %1673 = vmatprep.subr.mxu0 0.0
    %1674 = vmatpush1.msra.mxu0 0.0
    %1675 = vmatprep.subr.mxu0 0.0
    %1676 = vmatpush1.msra.mxu0 0.0
    %1677 = vmatprep.subr.mxu0 0.0
    %1678 = vmatpush1.msra.mxu0 0.0
    %1679 = vmatprep.subr.mxu0 0.0
    %1680 = vmatpush1.msra.mxu0 0.0
    %1681 = vmatprep.subr.mxu0 0.0
    %1682 = vmatpush1.msra.mxu0 0.0
    %1683 = vmatprep.subr.mxu0 0.0
    %1684 = vmatpush1.msra.mxu0 0.0
    %1685 = vmatprep.subr.mxu0 0.0
    %1686 = vmatpush1.msra.mxu0 0.0
    %1687 = vmatprep.subr.mxu0 0.0
    %1688 = vmatpush1.msra.mxu0 0.0
    %1689 = vmatprep.subr.mxu0 0.0
    %1690 = vmatpush1.msra.mxu0 0.0
    %1691 = vmatprep.subr.mxu0 0.0
    %1692 = vmatpush1.msra.mxu0 0.0
    %1693 = vmatprep.subr.mxu0 0.0
    %1694 = vmatpush1.msra.mxu0 0.0
    %1695 = vmatprep.subr.mxu0 0.0
    %1696 = vmatpush1.msra.mxu0 0.0
    %1697 = vmatprep.subr.mxu0 0.0
    %1698 = vmatpush1.msra.mxu0 0.0
    %1699 = vmatprep.subr.mxu0 0.0
    %1700 = vmatpush1.msra.mxu0 0.0
    %1701 = vmatprep.subr.mxu0 0.0
    %1702 = vmatpush1.msra.mxu0 0.0
    %1703 = vmatprep.subr.mxu0 0.0
    %1704 = vmatpush1.msra.mxu0 0.0
    %1705 = vmatprep.subr.mxu0 0.0
    %1706 = vmatpush1.msra.mxu0 0.0
    %1707 = vmatprep.subr.mxu0 0.0
    %1708 = vmatpush1.msra.mxu0 0.0
    %1709 = vmatprep.subr.mxu0 0.0
    %1710 = vmatpush1.msra.mxu0 0.0
    %1711 = vmatprep.subr.mxu0 0.0
    %1712 = vmatpush1.msra.mxu0 0.0
    %1713 = vmatprep.subr.mxu0 0.0
    %1714 = vmatpush1.msra.mxu0 0.0
    %1715 = vmatprep.subr.mxu0 0.0
    %1716 = vmatpush1.msra.mxu0 0.0
    %1717 = vmatprep.subr.mxu0 0.0
    %1718 = vmatpush1.msra.mxu0 0.0
    %1719 = vmatprep.subr.mxu0 0.0
    %1720 = vmatpush1.msra.mxu0 0.0
    %1721 = vmatprep.subr.mxu0 0.0
    %1722 = vmatpush1.msra.mxu0 0.0
    %1723 = vmatprep.subr.mxu0 0.0
    %1724 = vmatpush1.msra.mxu0 0.0
    %1725 = vmatprep.subr.mxu0 0.0
    %1726 = vmatpush1.msra.mxu0 0.0
    %1727 = vmatprep.mubr.f32.mxu0 0.0
    %1728 = vmatmul.mubr.f32.gmra.mrb[0].mxu0 %v1640
    %v1729 = vpop.f32.mrb[0].mxu0
    %v1730 = vadd.f32 %v1637, %v1729
    %v1731 = vpop.f32.mrb[0].mxu0
    %1732 = vmatprep.mubr.f32.mxu0 0.0
    %1733 = vmatmul.mubr.f32.gmra.mrb[0].mxu0 %v1643
    %v1734 = vpop.f32.mrb[0].mxu0
    %v1735 = vadd.f32 %v1637, %v1734
    %v1736 = vpop.f32.mrb[0].mxu0
    %1737 = vmatprep.mubr.f32.mxu0 0.0
    %1738 = vmatmul.mubr.f32.gmra.mrb[0].mxu0 %v1646
    %v1739 = vpop.f32.mrb[0].mxu0
    %v1740 = vadd.f32 %v1637, %v1739
    %v1741 = vpop.f32.mrb[0].mxu0
    %1742 = vmatprep.mubr.f32.mxu0 0.0
    %1743 = vmatmul.mubr.f32.gmra.mrb[0].mxu0 %v1649
    %v1744 = vpop.f32.mrb[0].mxu0
    %v1745 = vadd.f32 %v1637, %v1744
    %v1746 = vpop.f32.mrb[0].mxu0
    %1747 = vmatprep.mubr.f32.mxu0 0.0
    %1748 = vmatmul.mubr.f32.gmra.mrb[0].mxu0 %v1652
    %v1749 = vpop.f32.mrb[0].mxu0
    %v1750 = vadd.f32 %v1637, %v1749
    %v1751 = vpop.f32.mrb[0].mxu0
    %1752 = vmatprep.mubr.f32.mxu0 0.0
    %1753 = vmatmul.mubr.f32.gmra.mrb[0].mxu0 %v1655
    %v1754 = vpop.f32.mrb[0].mxu0
    %v1755 = vadd.f32 %v1637, %v1754
    %v1756 = vpop.f32.mrb[0].mxu0
    %1757 = vmatprep.mubr.f32.mxu0 0.0
    %1758 = vmatmul.mubr.f32.gmra.mrb[0].mxu0 %v1658
    %v1759 = vpop.f32.mrb[0].mxu0
    %v1760 = vadd.f32 %v1637, %v1759
    %v1761 = vpop.f32.mrb[0].mxu0
    %1762 = vmatprep.mubr.f32.mxu0 0.0
    %1763 = vmatmul.mubr.f32.gmra.mrb[0].mxu0 %v1661
    %v1764 = vpop.f32.mrb[0].mxu0
    %v1765 = vadd.f32 %v1637, %v1764
    %v1766 = vpop.f32.mrb[0].mxu0
    %1767 = vdwg.mxu0
    %v1768 = vmax.f32 %v1730, 0.0
    %v1769 = vmax.f32 %v1735, 0.0
    %v1770 = vmax.f32 %v1740, 0.0
    %v1771 = vmax.f32 %v1745, 0.0
    %v1772 = vmax.f32 %v1750, 0.0
    %v1773 = vmax.f32 %v1755, 0.0
    %v1774 = vmax.f32 %v1760, 0.0
    %v1775 = vmax.f32 %v1765, 0.0
    %v1776 = vld [vmem:[#allocation18] sm:$0x3]
    %v1777 = vlaneseq
    %v1778 = vshrl.u32 %v1777, 7
    %v1779 = vsub.s32 2, %v1778
    %v1780 = vrot.slane %v1487, %v1779
    %vm1781 = vcmask 15360
    %v1783 = vsel %vm1781, %v1768, 0
    %v1786 = vsel %vm1781, %v1769, 0
    %v1789 = vsel %vm1781, %v1770, 0
    %v1792 = vsel %vm1781, %v1771, 0
    %v1795 = vsel %vm1781, %v1772, 0
    %v1798 = vsel %vm1781, %v1773, 0
    %v1801 = vsel %vm1781, %v1774, 0
    %v1804 = vsel %vm1781, %v1775, 0
    %vm1806 = vcmask 1041408
    %v1808 = vsel %vm1806, %v1776, 0
    %1810 = vmatprep.subr.mxu0 0.0
    %1811 = vmatpush1.msra.mxu0 %v1808
    %1812 = vmatprep.subr.mxu0 0.0
    %1813 = vmatpush1.msra.mxu0 0.0
    %1814 = vmatprep.subr.mxu0 0.0
    %1815 = vmatpush1.msra.mxu0 0.0
    %1816 = vmatprep.subr.mxu0 0.0
    %1817 = vmatpush1.msra.mxu0 0.0
    %1818 = vmatprep.subr.mxu0 0.0
    %1819 = vmatpush1.msra.mxu0 0.0
    %1820 = vmatprep.subr.mxu0 0.0
    %1821 = vmatpush1.msra.mxu0 0.0
    %1822 = vmatprep.subr.mxu0 0.0
    %1823 = vmatpush1.msra.mxu0 0.0
    %1824 = vmatprep.subr.mxu0 0.0
    %1825 = vmatpush1.msra.mxu0 0.0
    %1826 = vmatprep.subr.mxu0 0.0
    %1827 = vmatpush1.msra.mxu0 0.0
    %1828 = vmatprep.subr.mxu0 0.0
    %1829 = vmatpush1.msra.mxu0 0.0
    %1830 = vmatprep.subr.mxu0 0.0
    %1831 = vmatpush1.msra.mxu0 0.0
    %1832 = vmatprep.subr.mxu0 0.0
    %1833 = vmatpush1.msra.mxu0 0.0
    %1834 = vmatprep.subr.mxu0 0.0
    %1835 = vmatpush1.msra.mxu0 0.0
    %1836 = vmatprep.subr.mxu0 0.0
    %1837 = vmatpush1.msra.mxu0 0.0
    %1838 = vmatprep.subr.mxu0 0.0
    %1839 = vmatpush1.msra.mxu0 0.0
    %1840 = vmatprep.subr.mxu0 0.0
    %1841 = vmatpush1.msra.mxu0 0.0
    %1842 = vmatprep.subr.mxu0 0.0
    %1843 = vmatpush1.msra.mxu0 0.0
    %1844 = vmatprep.subr.mxu0 0.0
    %1845 = vmatpush1.msra.mxu0 0.0
    %1846 = vmatprep.subr.mxu0 0.0
    %1847 = vmatpush1.msra.mxu0 0.0
    %1848 = vmatprep.subr.mxu0 0.0
    %1849 = vmatpush1.msra.mxu0 0.0
    %1850 = vmatprep.subr.mxu0 0.0
    %1851 = vmatpush1.msra.mxu0 0.0
    %1852 = vmatprep.subr.mxu0 0.0
    %1853 = vmatpush1.msra.mxu0 0.0
    %1854 = vmatprep.subr.mxu0 0.0
    %1855 = vmatpush1.msra.mxu0 0.0
    %1856 = vmatprep.subr.mxu0 0.0
    %1857 = vmatpush1.msra.mxu0 0.0
    %1858 = vmatprep.subr.mxu0 0.0
    %1859 = vmatpush1.msra.mxu0 0.0
    %1860 = vmatprep.subr.mxu0 0.0
    %1861 = vmatpush1.msra.mxu0 0.0
    %1862 = vmatprep.subr.mxu0 0.0
    %1863 = vmatpush1.msra.mxu0 0.0
    %1864 = vmatprep.subr.mxu0 0.0
    %1865 = vmatpush1.msra.mxu0 0.0
    %1866 = vmatprep.subr.mxu0 0.0
    %1867 = vmatpush1.msra.mxu0 0.0
    %1868 = vmatprep.subr.mxu0 0.0
    %1869 = vmatpush1.msra.mxu0 0.0
    %1870 = vmatprep.subr.mxu0 0.0
    %1871 = vmatpush1.msra.mxu0 0.0
    %1872 = vmatprep.subr.mxu0 0.0
    %1873 = vmatpush1.msra.mxu0 0.0
    %1874 = vmatprep.mubr.f32.mxu0 0.0
    %1875 = vmatmul.mubr.f32.gmra.mrb[0].mxu0 %v1783
    %v1876 = vpop.f32.mrb[0].mxu0
    %v1877 = vadd.f32 %v1780, %v1876
    %v1878 = vpop.f32.mrb[0].mxu0
    %1879 = vmatprep.mubr.f32.mxu0 0.0
    %1880 = vmatmul.mubr.f32.gmra.mrb[0].mxu0 %v1786
    %v1881 = vpop.f32.mrb[0].mxu0
    %v1882 = vadd.f32 %v1780, %v1881
    %v1883 = vpop.f32.mrb[0].mxu0
    %1884 = vmatprep.mubr.f32.mxu0 0.0
    %1885 = vmatmul.mubr.f32.gmra.mrb[0].mxu0 %v1789
    %v1886 = vpop.f32.mrb[0].mxu0
    %v1887 = vadd.f32 %v1780, %v1886
    %v1888 = vpop.f32.mrb[0].mxu0
    %1889 = vmatprep.mubr.f32.mxu0 0.0
    %1890 = vmatmul.mubr.f32.gmra.mrb[0].mxu0 %v1792
    %v1891 = vpop.f32.mrb[0].mxu0
    %v1892 = vadd.f32 %v1780, %v1891
    %v1893 = vpop.f32.mrb[0].mxu0
    %1894 = vmatprep.mubr.f32.mxu0 0.0
    %1895 = vmatmul.mubr.f32.gmra.mrb[0].mxu0 %v1795
    %v1896 = vpop.f32.mrb[0].mxu0
    %v1897 = vadd.f32 %v1780, %v1896
    %v1898 = vpop.f32.mrb[0].mxu0
    %1899 = vmatprep.mubr.f32.mxu0 0.0
    %1900 = vmatmul.mubr.f32.gmra.mrb[0].mxu0 %v1798
    %v1901 = vpop.f32.mrb[0].mxu0
    %v1902 = vadd.f32 %v1780, %v1901
    %v1903 = vpop.f32.mrb[0].mxu0
    %1904 = vmatprep.mubr.f32.mxu0 0.0
    %1905 = vmatmul.mubr.f32.gmra.mrb[0].mxu0 %v1801
    %v1906 = vpop.f32.mrb[0].mxu0
    %v1907 = vadd.f32 %v1780, %v1906
    %v1908 = vpop.f32.mrb[0].mxu0
    %1909 = vmatprep.mubr.f32.mxu0 0.0
    %1910 = vmatmul.mubr.f32.gmra.mrb[0].mxu0 %v1804
    %v1911 = vpop.f32.mrb[0].mxu0
    %v1912 = vadd.f32 %v1780, %v1911
    %v1913 = vpop.f32.mrb[0].mxu0
    %1914 = vdwg.mxu0
    %v1915 = vmax.f32 %v1877, 0.0
    %v1916 = vmax.f32 %v1882, 0.0
    %v1917 = vmax.f32 %v1887, 0.0
    %v1918 = vmax.f32 %v1892, 0.0
    %v1919 = vmax.f32 %v1897, 0.0
    %v1920 = vmax.f32 %v1902, 0.0
    %v1921 = vmax.f32 %v1907, 0.0
    %v1922 = vmax.f32 %v1912, 0.0
    %v1923 = vmax.f32 %v1915, %v1916
    %v1924 = vmax.f32 %v1923, %v1917
    %v1925 = vmax.f32 %v1924, %v1918
    %v1926 = vmax.f32 %v1925, %v1919
    %v1927 = vmax.f32 %v1926, %v1920
    %v1928 = vmax.f32 %v1927, %v1921
    %v1929 = vmax.f32 %v1928, %v1922
    %v1930 = vsub.f32 %v1915, %v1929
    %v1931 = vmul.f32 %v1930, 1.442695
    %v1932 = vpow.pop %v1931
    %v1933 = vadd.f32 %v1932, 0.0
    %1935 = vset.pattern.permute.xlu0 0
    %1936 = vperm.xlu0 %1935, %v1932
    %v1937 = vpop.permute.xlu0 %1936
    %v1939 = vmul.f32 %v1937, %v183
    %v1940 = vadd.f32 %v1939, 0.0
    %v1941 = vsub.f32 %v1916, %v1929
    %v1942 = vmul.f32 %v1941, 1.442695
    %v1943 = vpow.pop %v1942
    %v1944 = vadd.f32 %v1933, %v1943
    %1946 = vset.pattern.permute.xlu0 0
    %1947 = vperm.xlu0 %1946, %v1943
    %v1948 = vpop.permute.xlu0 %1947
    %v1950 = vmul.f32 %v1948, %v184
    %v1951 = vadd.f32 %v1940, %v1950
    %v1952 = vsub.f32 %v1917, %v1929
    %v1953 = vmul.f32 %v1952, 1.442695
    %v1954 = vpow.pop %v1953
    %v1955 = vadd.f32 %v1944, %v1954
    %1957 = vset.pattern.permute.xlu0 0
    %1958 = vperm.xlu0 %1957, %v1954
    %v1959 = vpop.permute.xlu0 %1958
    %v1961 = vmul.f32 %v1959, %v185
    %v1962 = vadd.f32 %v1951, %v1961
    %v1963 = vsub.f32 %v1918, %v1929
    %v1964 = vmul.f32 %v1963, 1.442695
    %v1965 = vpow.pop %v1964
    %v1966 = vadd.f32 %v1955, %v1965
    %1968 = vset.pattern.permute.xlu0 0
    %1969 = vperm.xlu0 %1968, %v1965
    %v1970 = vpop.permute.xlu0 %1969
    %v1972 = vmul.f32 %v1970, %v186
    %v1973 = vadd.f32 %v1962, %v1972
    %v1974 = vsub.f32 %v1919, %v1929
    %v1975 = vmul.f32 %v1974, 1.442695
    %v1976 = vpow.pop %v1975
    %v1977 = vadd.f32 %v1966, %v1976
    %1979 = vset.pattern.permute.xlu0 0
    %1980 = vperm.xlu0 %1979, %v1976
    %v1981 = vpop.permute.xlu0 %1980
    %v1983 = vmul.f32 %v1981, %v187
    %v1984 = vadd.f32 %v1973, %v1983
    %v1985 = vsub.f32 %v1920, %v1929
    %v1986 = vmul.f32 %v1985, 1.442695
    %v1987 = vpow.pop %v1986
    %v1988 = vadd.f32 %v1977, %v1987
    %1990 = vset.pattern.permute.xlu0 0
    %1991 = vperm.xlu0 %1990, %v1987
    %v1992 = vpop.permute.xlu0 %1991
    %v1994 = vmul.f32 %v1992, %v188
    %v1995 = vadd.f32 %v1984, %v1994
    %v1996 = vsub.f32 %v1921, %v1929
    %v1997 = vmul.f32 %v1996, 1.442695
    %v1998 = vpow.pop %v1997
    %v1999 = vadd.f32 %v1988, %v1998
    %2001 = vset.pattern.permute.xlu0 0
    %2002 = vperm.xlu0 %2001, %v1998
    %v2003 = vpop.permute.xlu0 %2002
    %v2005 = vmul.f32 %v2003, %v189
    %v2006 = vadd.f32 %v1995, %v2005
    %v2007 = vsub.f32 %v1922, %v1929
    %v2008 = vmul.f32 %v2007, 1.442695
    %v2009 = vpow.pop %v2008
    %v2010 = vadd.f32 %v1999, %v2009
    %2012 = vset.pattern.permute.xlu0 0
    %2013 = vperm.xlu0 %2012, %v2009
    %v2014 = vpop.permute.xlu0 %2013
    %v2016 = vmul.f32 %v2014, %v190
    %v2017 = vadd.f32 %v2006, %v2016
    %2019 = vset.pattern.permute.xlu0 0
    %2020 = vperm.xlu0 %2019, %v2010
    %v2021 = vpop.permute.xlu0 %2020
    %v2023 = vrcp.pop %v2021
    %v2024 = vmul.f32 %v2017, %v2023
    %2025 = vst.msk [vmem:[#allocation21] sm:$0xff] %vm216, %v2024
    // Predicated region
    $region90: #{tpu_custom_call.1} parent=1 // pred_check
      _
    $region91: #{tpu_custom_call.1} parent=1 // pred_check_branch
      %2027 = sbr.rel (0) target = $region93
    $region92: #{tpu_custom_call.1} parent=1 // pred_region
      %s2029 = ssub.s32 128, 128
      %2030 = vsyncadd [#allocation5], %s2029
      %s2032 = sshll.u32 [#allocation21], 4
      %s2033 = int_to_ptr.vmem [resolvable:$true] %s2032
      %2035 = dma.vmem_to_hbm [thread:$0]  %s2033, 128, %s11, [#allocation5]
    $region93: #{tpu_custom_call.1} parent=1 // pred_fallthru
      _
    // Predicated region
    $region94: #{tpu_custom_call.1} parent=1 // pred_check
      _
    $region95: #{tpu_custom_call.1} parent=1 // pred_check_branch
      %2037 = sbr.rel (0) target = $region97
    $region96: #{tpu_custom_call.1} parent=1 // pred_region
      %2038 = dma.done [#allocation5], 128
    $region97: #{tpu_custom_call.1} parent=1 // pred_fallthru
      _
    %2039 = vsyncpa [#allocation4], 1
    %2040 = vsyncpa [#allocation7], 1
    %2041 = vsyncpa [#allocation10], 1
    %2042 = vsyncpa [#allocation13], 1
    %2043 = vsyncpa [#allocation16], 1
    %2044 = vsyncpa [#allocation19], 1
    %2045 = vsyncpa [#allocation5], 1

</llo_original>
